<compile_context>
chip_gen: v7x
topology: tpu7x:2x2x1
jax: 0.10.0
libtpu: 0.0.40
codegen_flags: <defaults>
</compile_context>

<pallas_src>
import functools

import numpy as np
import jax
import jax.numpy as jnp
from jax.experimental import pallas as pl
from jax.experimental.pallas import tpu as pltpu


# --------------------------------------------------------------------------- utils
def _all_zero(arrays):
    try:
        return all(bool(np.all(np.asarray(a) == 0)) for a in arrays)
    except Exception:
        # Params are tracers (not concrete): fall back to the general path.
        # TODO(synk): behavioral surprise under param donation -- zero weights
        # would silently take the slower general path.
        return False


def _token_target():
    """Tokens per grid step: single-TensorCore chips (v5e/v6e) get bigger tiles
    (extra grid steps only cost ~0.35us each there); default keeps the tile
    moderate so the batch axis + row axis still give >=2 steps for megacore."""
    try:
        kind = jax.devices()[0].device_kind.lower()
    except Exception:
        return 2048
    if ("v5" in kind) or ("v6" in kind) or ("lite" in kind):
        return 4096
    return 2048


def _choose_row_tile(h, w):
    """Row tile (multiple of 8) targeting ~_token_target() output tokens/step."""
    target = _token_target()
    rows = max(8, (target // max(w, 1) // 8) * 8)
    h8 = ((h + 7) // 8) * 8
    return max(8, min(rows, h8))


# --------------------------------------------------------------------------- kernel
def _fused_dcn_kernel(x_ref, w_ref, o_ref, *, row_tile, w_img, layout, c_total):
    """Fully fused zero-offset DCNFusion step for one (image, row-block).

    x_ref : (1, Hp+2, W+2, C_in) bf16   -- whole halo-padded concat of the six
                                           map/feat inputs, resident per image.
    w_ref : (9, C_total, N_pad) bf16    -- per-tap block-diagonal conv weights.
    o_ref : (1, row_tile*W, N_pad) bf16 -- ReLU'd outputs for this row block.
    """
    r, wpix = row_tile, w_img
    row0 = pl.multiple_of(pl.program_id(1) * r, 8)
    xb = x_ref[0, pl.ds(row0, r + 2), :, :].astype(jnp.float32)   # (r+2, W+2, C_in)

    # fusion_mul for the three branches (map-channel-major, matches the PyTorch
    # view/broadcast ordering), computed on the halo block, kept in VMEM only.
    cols = []
    for (m_lo, m_hi, f_lo, f_hi) in layout:
        m = jax.nn.sigmoid(xb[..., m_lo:m_hi])
        f = xb[..., f_lo:f_hi]
        for i in range(m_hi - m_lo):
            cols.append(m[..., i:i + 1] * f)
    fused = jnp.concatenate(cols, axis=-1).astype(jnp.bfloat16)   # (r+2, W+2, C_total)

    # 3x3 zero-offset deformable conv == plain conv: 9 static VMEM taps, each a
    # bf16 MXU dot against the per-tap block-diagonal weight, f32 accumulation.
    acc = None
    for ky in range(3):
        for kx in range(3):
            tap = fused[ky:ky + r, kx:kx + wpix, :].reshape(r * wpix, c_total)
            d = jnp.dot(tap, w_ref[ky * 3 + kx], preferred_element_type=jnp.float32)
            acc = d if acc is None else acc + d

    o_ref[0] = jnp.maximum(acc, 0.0).astype(o_ref.dtype)          # fused ReLU


# ------------------------------------------------------------------ fast path wrapper
def _fast_forward(derived, center_map, center_feat, corner_map, corner_feat,
                  foreground_feat, foreground_map):
    n, _, h, w = foreground_feat.shape
    c_total, n_out, n_pad = derived["c_total"], derived["n_out"], derived["n_pad"]
    w_all = derived["w_all"]

    # Branch order must match the block-diagonal weight: fg, ctr, cnr.
    groups = ((foreground_map, foreground_feat),
              (center_map, center_feat),
              (corner_map, corner_feat))
    layout, off = [], 0
    for m_t, f_t in groups:
        c1, c2 = int(m_t.shape[1]), int(f_t.shape[1])
        layout.append((off, off + c1, off + c1, off + c1 + c2))
        off += c1 + c2
    layout = tuple(layout)
    c_in = off
    assert sum(int(m.shape[1]) * int(f.shape[1]) for m, f in groups) == c_total

    r = _choose_row_tile(h, w)
    hp = -(-h // r) * r

    # One XLA pass: NCHW->NHWC, lane-dense concat of the six small inputs,
    # spatial zero halo (+1 each side, rows padded up to hp), cast to bf16.
    def nhwc(t):
        return jnp.transpose(t, (0, 2, 3, 1))

    x = jnp.concatenate([nhwc(t) for mf in groups for t in mf], axis=-1)
    x = jnp.pad(x.astype(jnp.bfloat16),
                ((0, 0), (1, 1 + hp - h), (1, 1), (0, 0)))

    kernel = functools.partial(_fused_dcn_kernel, row_tile=r, w_img=w,
                               layout=layout, c_total=c_total)
    out = pl.pallas_call(
        kernel,
        out_shape=jax.ShapeDtypeStruct((n, hp * w, n_pad), jnp.bfloat16),
        grid=(n, hp // r),
        in_specs=[
            # whole padded image per n; constant index along the row axis keeps
            # it resident in VMEM across row-blocks (no re-DMA).
            pl.BlockSpec((1, hp + 2, w + 2, c_in), lambda i, j: (i, 0, 0, 0)),
            pl.BlockSpec((9, c_total, n_pad), lambda i, j: (0, 0, 0)),
        ],
        out_specs=pl.BlockSpec((1, r * w, n_pad), lambda i, j: (i, j, 0)),
        compiler_params=pltpu.CompilerParams(
            dimension_semantics=("parallel", "arbitrary")),
    )(x, w_all)

    out = out[:, : h * w, :n_out].astype(jnp.float32).reshape(n, h, w, n_out)
    return jnp.transpose(out, (0, 3, 1, 2))          # back to NCHW exactly once


# ---------------------------------------------------------------- general (fallback) path
def _deform_im2col(x_nchw, offsets, ksize=3, pad=1):
    """Bilinear-sampled im2col (stride 1).  offsets: (N, 2*K*K, H, W), assumed
    mmcv layout (dy, dx) interleaved per tap, taps row-major.
    TODO(synk): verify boundary masking / offset channel order against mmcv for
    nonzero offsets, and Pallas-ize (halo DMA + in-tile gather) if this path
    ever runs in production -- whole-map XLA gathers are slow on TPU."""
    n, c, h, w = x_nchw.shape
    k = ksize
    off = jnp.transpose(offsets, (0, 2, 3, 1)).reshape(n, h, w, k * k, 2)
    dy = off[..., 0].astype(jnp.float32)
    dx = off[..., 1].astype(jnp.float32)
    ky, kx = jnp.meshgrid(jnp.arange(k, dtype=jnp.float32),
                          jnp.arange(k, dtype=jnp.float32), indexing="ij")
    py = (jnp.arange(h, dtype=jnp.float32)[None, :, None, None]
          + (ky.reshape(-1) - pad)[None, None, None, :] + dy)
    px = (jnp.arange(w, dtype=jnp.float32)[None, None, :, None]
          + (kx.reshape(-1) - pad)[None, None, None, :] + dx)
    xf = jnp.transpose(x_nchw, (0, 2, 3, 1)).astype(jnp.float32).reshape(n, h * w, c)

    def gather(yi, xi):
        valid = (yi >= 0) & (yi < h) & (xi >= 0) & (xi < w)
        flat = (jnp.clip(yi, 0, h - 1) * w + jnp.clip(xi, 0, w - 1)).reshape(n, -1)
        vals = jnp.take_along_axis(xf, flat[..., None], axis=1)
        vals = vals.reshape(n, h, w, k * k, c)
        return vals * valid[..., None].astype(vals.dtype)

    y0 = jnp.floor(py).astype(jnp.int32)
    x0 = jnp.floor(px).astype(jnp.int32)
    wy1 = py - y0.astype(jnp.float32)
    wx1 = px - x0.astype(jnp.float32)
    v = (gather(y0, x0) * ((1 - wy1) * (1 - wx1))[..., None]
         + gather(y0, x0 + 1) * ((1 - wy1) * wx1)[..., None]
         + gather(y0 + 1, x0) * (wy1 * (1 - wx1))[..., None]
         + gather(y0 + 1, x0 + 1) * (wy1 * wx1)[..., None])       # (N,H,W,K*K,C)
    return jnp.transpose(v, (0, 1, 2, 4, 3)).reshape(n, h, w, c * k * k)


def _general_forward(params, orig_feat, center_map, center_feat, corner_map,
                     corner_feat, foreground_feat, foreground_map):
    """Pure-JAX fallback for nonzero conv_offset weights (not exercised here).
    TODO(synk): fold real trained BatchNorm running stats into prep_scale /
    prep_shift when porting checkpoints (defaults mean=0, var=1 are used)."""
    def fusion_mul(m, f):
        bs, c1, hh, ww = m.shape
        c2 = f.shape[1]
        return (m[:, :, None] * f[:, None, :]).reshape(bs, c1 * c2, hh, ww)

    def conv1x1(x, w, b):                    # w: (Cin, Cout), b: (1, Cout)
        y = jnp.einsum("nchw,cd->ndhw", x, w)
        return y + b.reshape(1, -1, 1, 1)

    off_map = conv1x1(orig_feat, params["prep_w"], params["prep_b"])
    scale = params["prep_scale"].reshape(1, -1, 1, 1)
    shift = params["prep_shift"].reshape(1, -1, 1, 1)
    off_map = jnp.maximum(off_map * scale + shift, 0.0)

    fused_list = [
        fusion_mul(jax.nn.sigmoid(foreground_map), foreground_feat),
        fusion_mul(jax.nn.sigmoid(center_map), center_feat),
        fusion_mul(jax.nn.sigmoid(corner_map), corner_feat),
    ]
    outs = []
    for fused, b in zip(fused_list, (params["fg"], params["ctr"], params["cnr"])):
        offsets = conv1x1(off_map, b["off_w"], b["off_b"])        # (N, 18, H, W)
        cols = _deform_im2col(fused, offsets)                     # (N, H, W, Cin*9)
        dw = b["dconv_w"].reshape(b["dconv_w"].shape[0], -1)      # (out, Cin*9)
        y = jnp.einsum("nhwk,ok->nohw", cols, dw)
        outs.append(jnp.maximum(y, 0.0))
    return jnp.concatenate(outs, axis=1)


# --------------------------------------------------------------------------- module
def make_dcn_fusion(params):
    """Precompute the per-tap block-diagonal GEMM weight and the zero-offset
    fast-path flag; return a jitted forward fn."""
    branches = (params["fg"], params["ctr"], params["cnr"])   # output order fg, ctr, cnr
    in_chs = [int(b["dconv_w"].shape[1]) for b in branches]
    out_chs = [int(b["dconv_w"].shape[0]) for b in branches]
    c_total, n_out = sum(in_chs), sum(out_chs)
    n_pad = max(128, -(-n_out // 128) * 128)                  # lane-dense output store

    # w_all[tap, C_total, N_pad]: block-diagonal (one block per branch) per tap.
    w_all = np.zeros((9, c_total, n_pad), np.float32)
    c_off = o_off = 0
    for b in branches:
        dw = np.asarray(b["dconv_w"], np.float32)             # (out, in, 3, 3)
        o, i = dw.shape[0], dw.shape[1]
        for ky in range(3):
            for kx in range(3):
                w_all[ky * 3 + kx, c_off:c_off + i, o_off:o_off + o] = dw[:, :, ky, kx].T
        c_off += i
        o_off += o

    derived = dict(
        c_total=c_total, n_out=n_out, n_pad=n_pad,
        w_all=jnp.asarray(w_all, jnp.bfloat16),
        zero_off=_all_zero([b["off_w"] for b in branches] +
                           [b["off_b"] for b in branches]),
    )

    def forward(orig_feat, center_map, center_feat, corner_map, corner_feat,
                foreground_feat, foreground_map):
        if derived["zero_off"]:
            # init_offset(): offsets identically zero -> offset_prep is dead code
            # and each DeformConv is a plain 3x3 conv (fused Pallas fast path).
            return _fast_forward(derived, center_map, center_feat, corner_map,
                                 corner_feat, foreground_feat, foreground_map)
        return _general_forward(params, orig_feat, center_map, center_feat,
                                corner_map, corner_feat, foreground_feat,
                                foreground_map)

    return jax.jit(forward)


# --------------------------------------------------------------------------- params
def init_params(key, feat_channels, offset_ch, out_channels, num_classes):
    base_ch = num_classes * feat_channels
    keys = jax.random.split(key, 8)

    def conv_init(k, shape, fan_in):
        bound = 1.0 / np.sqrt(float(fan_in))
        return jax.random.uniform(k, shape, jnp.float32, -bound, bound)

    params = {
        # offset_prep 1x1 conv stored (Cin, Cout) for the matmul convention
        "prep_w": conv_init(keys[0], (offset_ch, base_ch), offset_ch),
        "prep_b": conv_init(keys[1], (1, base_ch), offset_ch),
    }
    # BatchNorm2d default init, eval mode: gamma=1, beta=0, mean=0, var=1
    eps = 1e-5
    gamma = jnp.ones((base_ch,), jnp.float32)
    beta = jnp.zeros((base_ch,), jnp.float32)
    mean = jnp.zeros((base_ch,), jnp.float32)
    var = jnp.ones((base_ch,), jnp.float32)
    scale = gamma / jnp.sqrt(var + eps)
    params["prep_scale"] = scale.reshape(1, -1)
    params["prep_shift"] = (beta - mean * scale).reshape(1, -1)

    def adaption(k, in_ch, off_in_ch, out_ch):
        return {
            # FeatureAdaption.init_offset(): conv_offset weight/bias zeroed
            "off_w": jnp.zeros((off_in_ch, 18), jnp.float32),
            "off_b": jnp.zeros((1, 18), jnp.float32),
            # DeformConv 3x3, no bias
            "dconv_w": conv_init(k, (out_ch, in_ch, 3, 3), in_ch * 9),
        }

    params["fg"] = adaption(keys[2], base_ch, base_ch, out_channels)
    params["ctr"] = adaption(keys[3], base_ch, base_ch, out_channels)
    params["cnr"] = adaption(keys[4], 4 * base_ch, base_ch, out_channels)
    return params


# ------------------------------------------------------------------ pure-JAX reference
def _reference_forward(params, orig_feat, center_map, center_feat, corner_map,
                       corner_feat, foreground_feat, foreground_map):
    """f32 reference of DCNFusion.forward with init_offset() (zero offsets):
    each DeformConv reduces to a plain 3x3 conv (zero pad, stride 1, no bias)."""
    def fusion_mul(m, f):
        bs, c1, hh, ww = m.shape
        c2 = f.shape[1]
        return (m[:, :, None] * f[:, None, :]).reshape(bs, c1 * c2, hh, ww)

    def branch(x, p):
        y = jax.lax.conv_general_dilated(
            x, p["dconv_w"], window_strides=(1, 1), padding=((1, 1), (1, 1)),
            dimension_numbers=("NCHW", "OIHW", "NCHW"))
        return jnp.maximum(y, 0.0)

    fg = fusion_mul(jax.nn.sigmoid(foreground_map), foreground_feat)
    ctr = fusion_mul(jax.nn.sigmoid(center_map), center_feat)
    cnr = fusion_mul(jax.nn.sigmoid(corner_map), corner_feat)
    return jnp.concatenate([branch(fg, params["fg"]), branch(ctr, params["ctr"]),
                            branch(cnr, params["cnr"])], axis=1)


# --------------------------------------------------------------------------- main
if __name__ == "__main__":
    num_classes = 2
    feat_channels = 4
    offset_ch = 16
    out_channels = 8
    N, H, W = 2, 16, 16                      # T = N*H*W = 512 tokens

    key = jax.random.PRNGKey(0)
    ks = jax.random.split(key, 10)
    params = init_params(ks[0], feat_channels, offset_ch, out_channels, num_classes)

    orig_feat = jax.random.normal(ks[1], (N, offset_ch, H, W), jnp.float32)
    center_map = jax.random.normal(ks[2], (N, num_classes, H, W), jnp.float32)
    center_feat = jax.random.normal(ks[3], (N, feat_channels, H, W), jnp.float32)
    corner_map = jax.random.normal(ks[4], (N, 4 * num_classes, H, W), jnp.float32)
    corner_feat = jax.random.normal(ks[5], (N, feat_channels, H, W), jnp.float32)
    foreground_feat = jax.random.normal(ks[6], (N, feat_channels, H, W), jnp.float32)
    foreground_map = jax.random.normal(ks[7], (N, num_classes, H, W), jnp.float32)

    fwd = make_dcn_fusion(params)
    out = fwd(orig_feat, center_map, center_feat, corner_map, corner_feat,
              foreground_feat, foreground_map)
    out = jax.block_until_ready(out)

    assert out.shape == (N, 3 * out_channels, H, W), out.shape
    assert bool(jnp.all(jnp.isfinite(out)))

    # numerical sanity check vs f32 reference (kernel runs in bf16 -> loose tol)
    ref = jax.block_until_ready(_reference_forward(
        params, orig_feat, center_map, center_feat, corner_map, corner_feat,
        foreground_feat, foreground_map))
    assert np.allclose(np.asarray(out), np.asarray(ref), rtol=0.1, atol=0.1), \
        float(np.max(np.abs(np.asarray(out) - np.asarray(ref))))

    print("KERNEL_OK")
</pallas_src>

<mosaic_0001>
module attributes {stable_mosaic.version = 11 : i64} {
  func.func @_fused_dcn_kernel(%arg0: i32, %arg1: i32, %arg2: memref<1x18x18x24xbf16, #tpu.memory_space<vmem>>, %arg3: memref<9x48x128xbf16, #tpu.memory_space<vmem>>, %arg4: memref<1x256x128xbf16, #tpu.memory_space<vmem>>) attributes {dimension_semantics = [#tpu.dimension_semantics<parallel>, #tpu.dimension_semantics<arbitrary>], iteration_bounds = array<i64: 2, 1>, scalar_prefetch = 0 : i64, scratch_operands = 0 : i64, tpu.core_type = #tpu.core_type<tc>, window_params = [{transform_indices = @transform_0, window_bounds = array<i64: 1, 18, 18, 24>}, {pipeline_mode = #tpu.pipeline_mode<synchronous>, transform_indices = @transform_1, window_bounds = array<i64: 9, 48, 128>}, {transform_indices = @transform_2, window_bounds = array<i64: 1, 256, 128>}]} {
    %c16_i32 = arith.constant 16 : i32
    %0 = arith.muli %arg1, %c16_i32 : i32
    %1 = tpu.assume_multiple %0, 8 : i32
    %c0 = arith.constant 0 : index
    %2 = arith.index_cast %1 : i32 to index
    %c0_0 = arith.constant 0 : index
    %c0_1 = arith.constant 0 : index
    %3 = vector.load %arg2[%c0, %2, %c0_0, %c0_1] : memref<1x18x18x24xbf16, #tpu.memory_space<vmem>>, vector<1x18x18x24xbf16>
    %4 = vector.shape_cast %3 : vector<1x18x18x24xbf16> to vector<18x18x24xbf16>
    %5 = arith.extf %4 : vector<18x18x24xbf16> to vector<18x18x24xf32>
    %6 = vector.extract_strided_slice %5 {offsets = [0, 0, 0], sizes = [18, 18, 2], strides = [1, 1, 1]} : vector<18x18x24xf32> to vector<18x18x2xf32>
    %7 = arith.negf %6 : vector<18x18x2xf32>
    %8 = math.exp %7 : vector<18x18x2xf32>
    %cst = arith.constant 1.000000e+00 : f32
    %9 = vector.broadcast %cst : f32 to vector<18x18x2xf32>
    %10 = arith.addf %9, %8 : vector<18x18x2xf32>
    %11 = arith.divf %9, %10 : vector<18x18x2xf32>
    %12 = vector.extract_strided_slice %5 {offsets = [0, 0, 2], sizes = [18, 18, 4], strides = [1, 1, 1]} : vector<18x18x24xf32> to vector<18x18x4xf32>
    %13 = vector.extract_strided_slice %11 {offsets = [0, 0, 0], sizes = [18, 18, 1], strides = [1, 1, 1]} : vector<18x18x2xf32> to vector<18x18x1xf32>
    %14 = vector.broadcast %13 : vector<18x18x1xf32> to vector<18x18x4xf32>
    %15 = arith.mulf %14, %12 : vector<18x18x4xf32>
    %16 = vector.extract_strided_slice %11 {offsets = [0, 0, 1], sizes = [18, 18, 1], strides = [1, 1, 1]} : vector<18x18x2xf32> to vector<18x18x1xf32>
    %17 = vector.broadcast %16 : vector<18x18x1xf32> to vector<18x18x4xf32>
    %18 = arith.mulf %17, %12 : vector<18x18x4xf32>
    %19 = vector.extract_strided_slice %5 {offsets = [0, 0, 6], sizes = [18, 18, 2], strides = [1, 1, 1]} : vector<18x18x24xf32> to vector<18x18x2xf32>
    %20 = arith.negf %19 : vector<18x18x2xf32>
    %21 = math.exp %20 : vector<18x18x2xf32>
    %cst_2 = arith.constant 1.000000e+00 : f32
    %22 = vector.broadcast %cst_2 : f32 to vector<18x18x2xf32>
    %23 = arith.addf %22, %21 : vector<18x18x2xf32>
    %24 = arith.divf %22, %23 : vector<18x18x2xf32>
    %25 = vector.extract_strided_slice %5 {offsets = [0, 0, 8], sizes = [18, 18, 4], strides = [1, 1, 1]} : vector<18x18x24xf32> to vector<18x18x4xf32>
    %26 = vector.extract_strided_slice %24 {offsets = [0, 0, 0], sizes = [18, 18, 1], strides = [1, 1, 1]} : vector<18x18x2xf32> to vector<18x18x1xf32>
    %27 = vector.broadcast %26 : vector<18x18x1xf32> to vector<18x18x4xf32>
    %28 = arith.mulf %27, %25 : vector<18x18x4xf32>
    %29 = vector.extract_strided_slice %24 {offsets = [0, 0, 1], sizes = [18, 18, 1], strides = [1, 1, 1]} : vector<18x18x2xf32> to vector<18x18x1xf32>
    %30 = vector.broadcast %29 : vector<18x18x1xf32> to vector<18x18x4xf32>
    %31 = arith.mulf %30, %25 : vector<18x18x4xf32>
    %32 = vector.extract_strided_slice %5 {offsets = [0, 0, 12], sizes = [18, 18, 8], strides = [1, 1, 1]} : vector<18x18x24xf32> to vector<18x18x8xf32>
    %33 = arith.negf %32 : vector<18x18x8xf32>
    %34 = math.exp %33 : vector<18x18x8xf32>
    %cst_3 = arith.constant 1.000000e+00 : f32
    %35 = vector.broadcast %cst_3 : f32 to vector<18x18x8xf32>
    %36 = arith.addf %35, %34 : vector<18x18x8xf32>
    %37 = arith.divf %35, %36 : vector<18x18x8xf32>
    %38 = vector.extract_strided_slice %5 {offsets = [0, 0, 20], sizes = [18, 18, 4], strides = [1, 1, 1]} : vector<18x18x24xf32> to vector<18x18x4xf32>
    %39 = vector.extract_strided_slice %37 {offsets = [0, 0, 0], sizes = [18, 18, 1], strides = [1, 1, 1]} : vector<18x18x8xf32> to vector<18x18x1xf32>
    %40 = vector.broadcast %39 : vector<18x18x1xf32> to vector<18x18x4xf32>
    %41 = arith.mulf %40, %38 : vector<18x18x4xf32>
    %42 = vector.extract_strided_slice %37 {offsets = [0, 0, 1], sizes = [18, 18, 1], strides = [1, 1, 1]} : vector<18x18x8xf32> to vector<18x18x1xf32>
    %43 = vector.broadcast %42 : vector<18x18x1xf32> to vector<18x18x4xf32>
    %44 = arith.mulf %43, %38 : vector<18x18x4xf32>
    %45 = vector.extract_strided_slice %37 {offsets = [0, 0, 2], sizes = [18, 18, 1], strides = [1, 1, 1]} : vector<18x18x8xf32> to vector<18x18x1xf32>
    %46 = vector.broadcast %45 : vector<18x18x1xf32> to vector<18x18x4xf32>
    %47 = arith.mulf %46, %38 : vector<18x18x4xf32>
    %48 = vector.extract_strided_slice %37 {offsets = [0, 0, 3], sizes = [18, 18, 1], strides = [1, 1, 1]} : vector<18x18x8xf32> to vector<18x18x1xf32>
    %49 = vector.broadcast %48 : vector<18x18x1xf32> to vector<18x18x4xf32>
    %50 = arith.mulf %49, %38 : vector<18x18x4xf32>
    %51 = vector.extract_strided_slice %37 {offsets = [0, 0, 4], sizes = [18, 18, 1], strides = [1, 1, 1]} : vector<18x18x8xf32> to vector<18x18x1xf32>
    %52 = vector.broadcast %51 : vector<18x18x1xf32> to vector<18x18x4xf32>
    %53 = arith.mulf %52, %38 : vector<18x18x4xf32>
    %54 = vector.extract_strided_slice %37 {offsets = [0, 0, 5], sizes = [18, 18, 1], strides = [1, 1, 1]} : vector<18x18x8xf32> to vector<18x18x1xf32>
    %55 = vector.broadcast %54 : vector<18x18x1xf32> to vector<18x18x4xf32>
    %56 = arith.mulf %55, %38 : vector<18x18x4xf32>
    %57 = vector.extract_strided_slice %37 {offsets = [0, 0, 6], sizes = [18, 18, 1], strides = [1, 1, 1]} : vector<18x18x8xf32> to vector<18x18x1xf32>
    %58 = vector.broadcast %57 : vector<18x18x1xf32> to vector<18x18x4xf32>
    %59 = arith.mulf %58, %38 : vector<18x18x4xf32>
    %60 = vector.extract_strided_slice %37 {offsets = [0, 0, 7], sizes = [18, 18, 1], strides = [1, 1, 1]} : vector<18x18x8xf32> to vector<18x18x1xf32>
    %61 = vector.broadcast %60 : vector<18x18x1xf32> to vector<18x18x4xf32>
    %62 = arith.mulf %61, %38 : vector<18x18x4xf32>
    %63 = tpu.concatenate %15, %18, %28, %31, %41, %44, %47, %50, %53, %56, %59, %62 in 2 : vector<18x18x4xf32>, vector<18x18x4xf32>, vector<18x18x4xf32>, vector<18x18x4xf32>, vector<18x18x4xf32>, vector<18x18x4xf32>, vector<18x18x4xf32>, vector<18x18x4xf32>, vector<18x18x4xf32>, vector<18x18x4xf32>, vector<18x18x4xf32>, vector<18x18x4xf32> -> vector<18x18x48xf32>
    %64 = arith.truncf %63 : vector<18x18x48xf32> to vector<18x18x48xbf16>
    %65 = vector.extract_strided_slice %64 {offsets = [0, 0, 0], sizes = [16, 16, 48], strides = [1, 1, 1]} : vector<18x18x48xbf16> to vector<16x16x48xbf16>
    %66 = vector.shape_cast %65 : vector<16x16x48xbf16> to vector<256x48xbf16>
    %c0_4 = arith.constant 0 : index
    %c0_5 = arith.constant 0 : index
    %c0_6 = arith.constant 0 : index
    %67 = vector.load %arg3[%c0_4, %c0_5, %c0_6] : memref<9x48x128xbf16, #tpu.memory_space<vmem>>, vector<1x48x128xbf16>
    %68 = vector.shape_cast %67 : vector<1x48x128xbf16> to vector<48x128xbf16>
    %cst_7 = arith.constant dense<0.000000e+00> : vector<256x128xf32>
    %69 = tpu.matmul %66, %68, %cst_7 {dimension_numbers = #tpu.dot_dimension_numbers<[1], [0], [0], [1], [0, 0, 1, 1], [], []>} : vector<256x48xbf16>, vector<48x128xbf16>, vector<256x128xf32> -> vector<256x128xf32>
    %70 = vector.extract_strided_slice %64 {offsets = [0, 1, 0], sizes = [16, 16, 48], strides = [1, 1, 1]} : vector<18x18x48xbf16> to vector<16x16x48xbf16>
    %71 = vector.shape_cast %70 : vector<16x16x48xbf16> to vector<256x48xbf16>
    %c1 = arith.constant 1 : index
    %c0_8 = arith.constant 0 : index
    %c0_9 = arith.constant 0 : index
    %72 = vector.load %arg3[%c1, %c0_8, %c0_9] : memref<9x48x128xbf16, #tpu.memory_space<vmem>>, vector<1x48x128xbf16>
    %73 = vector.shape_cast %72 : vector<1x48x128xbf16> to vector<48x128xbf16>
    %cst_10 = arith.constant dense<0.000000e+00> : vector<256x128xf32>
    %74 = tpu.matmul %71, %73, %cst_10 {dimension_numbers = #tpu.dot_dimension_numbers<[1], [0], [0], [1], [0, 0, 1, 1], [], []>} : vector<256x48xbf16>, vector<48x128xbf16>, vector<256x128xf32> -> vector<256x128xf32>
    %75 = arith.addf %69, %74 : vector<256x128xf32>
    %76 = vector.extract_strided_slice %64 {offsets = [0, 2, 0], sizes = [16, 16, 48], strides = [1, 1, 1]} : vector<18x18x48xbf16> to vector<16x16x48xbf16>
    %77 = vector.shape_cast %76 : vector<16x16x48xbf16> to vector<256x48xbf16>
    %c2 = arith.constant 2 : index
    %c0_11 = arith.constant 0 : index
    %c0_12 = arith.constant 0 : index
    %78 = vector.load %arg3[%c2, %c0_11, %c0_12] : memref<9x48x128xbf16, #tpu.memory_space<vmem>>, vector<1x48x128xbf16>
    %79 = vector.shape_cast %78 : vector<1x48x128xbf16> to vector<48x128xbf16>
    %cst_13 = arith.constant dense<0.000000e+00> : vector<256x128xf32>
    %80 = tpu.matmul %77, %79, %cst_13 {dimension_numbers = #tpu.dot_dimension_numbers<[1], [0], [0], [1], [0, 0, 1, 1], [], []>} : vector<256x48xbf16>, vector<48x128xbf16>, vector<256x128xf32> -> vector<256x128xf32>
    %81 = arith.addf %75, %80 : vector<256x128xf32>
    %82 = vector.extract_strided_slice %64 {offsets = [1, 0, 0], sizes = [16, 16, 48], strides = [1, 1, 1]} : vector<18x18x48xbf16> to vector<16x16x48xbf16>
    %83 = vector.shape_cast %82 : vector<16x16x48xbf16> to vector<256x48xbf16>
    %c3 = arith.constant 3 : index
    %c0_14 = arith.constant 0 : index
    %c0_15 = arith.constant 0 : index
    %84 = vector.load %arg3[%c3, %c0_14, %c0_15] : memref<9x48x128xbf16, #tpu.memory_space<vmem>>, vector<1x48x128xbf16>
    %85 = vector.shape_cast %84 : vector<1x48x128xbf16> to vector<48x128xbf16>
    %cst_16 = arith.constant dense<0.000000e+00> : vector<256x128xf32>
    %86 = tpu.matmul %83, %85, %cst_16 {dimension_numbers = #tpu.dot_dimension_numbers<[1], [0], [0], [1], [0, 0, 1, 1], [], []>} : vector<256x48xbf16>, vector<48x128xbf16>, vector<256x128xf32> -> vector<256x128xf32>
    %87 = arith.addf %81, %86 : vector<256x128xf32>
    %88 = vector.extract_strided_slice %64 {offsets = [1, 1, 0], sizes = [16, 16, 48], strides = [1, 1, 1]} : vector<18x18x48xbf16> to vector<16x16x48xbf16>
    %89 = vector.shape_cast %88 : vector<16x16x48xbf16> to vector<256x48xbf16>
    %c4 = arith.constant 4 : index
    %c0_17 = arith.constant 0 : index
    %c0_18 = arith.constant 0 : index
    %90 = vector.load %arg3[%c4, %c0_17, %c0_18] : memref<9x48x128xbf16, #tpu.memory_space<vmem>>, vector<1x48x128xbf16>
    %91 = vector.shape_cast %90 : vector<1x48x128xbf16> to vector<48x128xbf16>
    %cst_19 = arith.constant dense<0.000000e+00> : vector<256x128xf32>
    %92 = tpu.matmul %89, %91, %cst_19 {dimension_numbers = #tpu.dot_dimension_numbers<[1], [0], [0], [1], [0, 0, 1, 1], [], []>} : vector<256x48xbf16>, vector<48x128xbf16>, vector<256x128xf32> -> vector<256x128xf32>
    %93 = arith.addf %87, %92 : vector<256x128xf32>
    %94 = vector.extract_strided_slice %64 {offsets = [1, 2, 0], sizes = [16, 16, 48], strides = [1, 1, 1]} : vector<18x18x48xbf16> to vector<16x16x48xbf16>
    %95 = vector.shape_cast %94 : vector<16x16x48xbf16> to vector<256x48xbf16>
    %c5 = arith.constant 5 : index
    %c0_20 = arith.constant 0 : index
    %c0_21 = arith.constant 0 : index
    %96 = vector.load %arg3[%c5, %c0_20, %c0_21] : memref<9x48x128xbf16, #tpu.memory_space<vmem>>, vector<1x48x128xbf16>
    %97 = vector.shape_cast %96 : vector<1x48x128xbf16> to vector<48x128xbf16>
    %cst_22 = arith.constant dense<0.000000e+00> : vector<256x128xf32>
    %98 = tpu.matmul %95, %97, %cst_22 {dimension_numbers = #tpu.dot_dimension_numbers<[1], [0], [0], [1], [0, 0, 1, 1], [], []>} : vector<256x48xbf16>, vector<48x128xbf16>, vector<256x128xf32> -> vector<256x128xf32>
    %99 = arith.addf %93, %98 : vector<256x128xf32>
    %100 = vector.extract_strided_slice %64 {offsets = [2, 0, 0], sizes = [16, 16, 48], strides = [1, 1, 1]} : vector<18x18x48xbf16> to vector<16x16x48xbf16>
    %101 = vector.shape_cast %100 : vector<16x16x48xbf16> to vector<256x48xbf16>
    %c6 = arith.constant 6 : index
    %c0_23 = arith.constant 0 : index
    %c0_24 = arith.constant 0 : index
    %102 = vector.load %arg3[%c6, %c0_23, %c0_24] : memref<9x48x128xbf16, #tpu.memory_space<vmem>>, vector<1x48x128xbf16>
    %103 = vector.shape_cast %102 : vector<1x48x128xbf16> to vector<48x128xbf16>
    %cst_25 = arith.constant dense<0.000000e+00> : vector<256x128xf32>
    %104 = tpu.matmul %101, %103, %cst_25 {dimension_numbers = #tpu.dot_dimension_numbers<[1], [0], [0], [1], [0, 0, 1, 1], [], []>} : vector<256x48xbf16>, vector<48x128xbf16>, vector<256x128xf32> -> vector<256x128xf32>
    %105 = arith.addf %99, %104 : vector<256x128xf32>
    %106 = vector.extract_strided_slice %64 {offsets = [2, 1, 0], sizes = [16, 16, 48], strides = [1, 1, 1]} : vector<18x18x48xbf16> to vector<16x16x48xbf16>
    %107 = vector.shape_cast %106 : vector<16x16x48xbf16> to vector<256x48xbf16>
    %c7 = arith.constant 7 : index
    %c0_26 = arith.constant 0 : index
    %c0_27 = arith.constant 0 : index
    %108 = vector.load %arg3[%c7, %c0_26, %c0_27] : memref<9x48x128xbf16, #tpu.memory_space<vmem>>, vector<1x48x128xbf16>
    %109 = vector.shape_cast %108 : vector<1x48x128xbf16> to vector<48x128xbf16>
    %cst_28 = arith.constant dense<0.000000e+00> : vector<256x128xf32>
    %110 = tpu.matmul %107, %109, %cst_28 {dimension_numbers = #tpu.dot_dimension_numbers<[1], [0], [0], [1], [0, 0, 1, 1], [], []>} : vector<256x48xbf16>, vector<48x128xbf16>, vector<256x128xf32> -> vector<256x128xf32>
    %111 = arith.addf %105, %110 : vector<256x128xf32>
    %112 = vector.extract_strided_slice %64 {offsets = [2, 2, 0], sizes = [16, 16, 48], strides = [1, 1, 1]} : vector<18x18x48xbf16> to vector<16x16x48xbf16>
    %113 = vector.shape_cast %112 : vector<16x16x48xbf16> to vector<256x48xbf16>
    %c8 = arith.constant 8 : index
    %c0_29 = arith.constant 0 : index
    %c0_30 = arith.constant 0 : index
    %114 = vector.load %arg3[%c8, %c0_29, %c0_30] : memref<9x48x128xbf16, #tpu.memory_space<vmem>>, vector<1x48x128xbf16>
    %115 = vector.shape_cast %114 : vector<1x48x128xbf16> to vector<48x128xbf16>
    %cst_31 = arith.constant dense<0.000000e+00> : vector<256x128xf32>
    %116 = tpu.matmul %113, %115, %cst_31 {dimension_numbers = #tpu.dot_dimension_numbers<[1], [0], [0], [1], [0, 0, 1, 1], [], []>} : vector<256x48xbf16>, vector<48x128xbf16>, vector<256x128xf32> -> vector<256x128xf32>
    %117 = arith.addf %111, %116 : vector<256x128xf32>
    %cst_32 = arith.constant 0.000000e+00 : f32
    %118 = vector.broadcast %cst_32 : f32 to vector<256x128xf32>
    %119 = arith.maximumf %117, %118 : vector<256x128xf32>
    %120 = arith.truncf %119 : vector<256x128xf32> to vector<256x128xbf16>
    %c0_33 = arith.constant 0 : index
    %c0_34 = arith.constant 0 : index
    %c0_35 = arith.constant 0 : index
    %121 = vector.load %arg4[%c0_33, %c0_34, %c0_35] : memref<1x256x128xbf16, #tpu.memory_space<vmem>>, vector<1x256x128xbf16>
    %122 = vector.shape_cast %121 : vector<1x256x128xbf16> to vector<256x128xbf16>
    %123 = vector.shape_cast %120 : vector<256x128xbf16> to vector<1x256x128xbf16>
    tpu.vector_store %arg4[%c0_33, %c0_34, %c0_35], %123 {strides = array<i32>} : memref<1x256x128xbf16, #tpu.memory_space<vmem>>, vector<1x256x128xbf16>,
    return
  }
  func.func @transform_0(%arg0: i32, %arg1: i32) -> (i32, i32, i32, i32) {
    %c0_i32 = arith.constant 0 : i32
    %c0_i32_0 = arith.constant 0 : i32
    %c0_i32_1 = arith.constant 0 : i32
    %c0_i32_2 = arith.constant 0 : i32
    return %arg0, %c0_i32, %c0_i32_0, %c0_i32_1 : i32, i32, i32, i32
  }
  func.func @transform_1(%arg0: i32, %arg1: i32) -> (i32, i32, i32) {
    %c0_i32 = arith.constant 0 : i32
    %c0_i32_0 = arith.constant 0 : i32
    %c0_i32_1 = arith.constant 0 : i32
    %c0_i32_2 = arith.constant 0 : i32
    return %c0_i32, %c0_i32_0, %c0_i32_1 : i32, i32, i32
  }
  func.func @transform_2(%arg0: i32, %arg1: i32) -> (i32, i32, i32) {
    %c0_i32 = arith.constant 0 : i32
    %c0_i32_0 = arith.constant 0 : i32
    return %arg0, %arg1, %c0_i32 : i32, i32, i32
  }
}

</mosaic_0001>

<llo_original>
// kernel: forward.1
$region0: #{forward.1}
  #allocation0 [shape = 'u32[]', space=smem, size = 0x4, offset = 0x4, fixed_abs, tag = 'smem constant byte address 0x4 - core index']
  #allocation1 [shape = 'u32[144,128]{1,0:T(1,128)}', space=vmem, size = 0x12000, scoped, tag = 'internal scratch']
  %s0 = inlined_call_operand.vmem [shape: bf16[2,18,18,24], index: 0, kind: input, shape index: {}]
  %s1 = inlined_call_operand.vmem [shape: bf16[9,48,128], index: 1, kind: input, shape index: {}]
  %s2 = inlined_call_operand.vmem [shape: bf16[2,256,128], index: 2, kind: output, shape index: {}]
  %s3 = sld [smem:[#allocation0]]
  $region41: #{forward.1} parent=0
    _
  %s5 = ssub.s32 1, %s3
  %s6 = scalar_select 0, %s5, %s3
  loop: start=0, step=1, limit=4
  $region2: #{forward.1} parent=0 // loop_pre_header
    _
  $region3: #{forward.1} parent=0 // loop_header
    %s8 = sphi 0, %s12
    %p9 = scmp.ge.s32.totalorder %s8, 4
    %s15 = sphi 0, %s27
    %s16 = sphi 0, %s23
    %s17 = sphi 0, %s15
    %s18 = sphi 0, %s16
    %s19 = sphi 0, %s17
    %s20 = sphi 0, %s18
    %s30 = sphi 0, %s32
    %s33 = sphi 0, %s30
    %s34 = sphi 0, %s33
    %s50 = sphi 0, %s34
    %s54 = sphi 0, %s54
    %s56 = sphi 0, %s54
    %s57 = sphi 0, %s56
    %s71 = sphi 0, %s57
    %s79 = sphi 0, %s81
    %s82 = sphi 0, %s79
    %s83 = sphi 0, %s82
    %s99 = sphi 0, %s83
  $region4: #{forward.1} parent=0 // loop_header_branch
    %11 = sbr.rel (%p9) target = $region8
  $region5: #{forward.1} parent=0 // loop_body
    %s13 = ssub.s32 %s8, 1
    %s14 = ssub.s32 %s8, 2
    %s21 = sadd.s32 1, %s16
    %p22 = scmp.ge.s32.totalorder %s21, 1
    %s23 = scalar_select %p22, 0, %s21
    %s24 = sadd.s32 1, %s15
    %s25 = scalar_select %p22, %s24, %s15
    %p26 = scmp.ge.s32.totalorder %s25, 2
    %s27 = scalar_select %p26, 0, %s25
    %s28 = ssub.s32 %s15, %s27
    %p29 = scmp.eq.s32.totalorder %s28, 0
    %s31 = sadd.s32 %s30, 1
    %s32 = scalar_select %p29, %s30, %s31
    %p35 = pneg %p29
    %p36 = scmp.eq.s32.totalorder %s8, 1
    %p37 = por %p35, %p36
    %p38 = scmp.ne.s32.totalorder %s30, %s33
    %p39 = scmp.eq.s32.totalorder %s8, 0
    %p40 = por %p38, %p39
    %p41 = scmp.ne.s32.totalorder %s30, %s33
    %p42 = scmp.eq.s32.totalorder %s13, 1
    %p43 = por %p41, %p42
    %p44 = scmp.ne.s32.totalorder %s33, %s34
    %p45 = scmp.eq.s32.totalorder %s13, 0
    %p46 = por %p44, %p45
    %p47 = scmp.ne.s32.totalorder %s33, %s34
    %p48 = scmp.eq.s32.totalorder %s14, 1
    %p49 = por %p47, %p48
    %p51 = scmp.ne.s32.totalorder %s34, %s50
    %p52 = scmp.eq.s32.totalorder %s14, 0
    %p53 = por %p51, %p52
    %s55 = sadd.s32 %s54, 1
    %p58 = scmp.eq.s32.totalorder %s8, 1
    %p59 = scmp.ne.s32.totalorder %s54, %s56
    %p60 = scmp.eq.s32.totalorder %s8, 0
    %p61 = por %p59, %p60
    %p62 = scmp.ne.s32.totalorder %s54, %s56
    %p63 = scmp.eq.s32.totalorder %s13, 1
    %p64 = por %p62, %p63
    %p65 = scmp.ne.s32.totalorder %s56, %s57
    %p66 = scmp.eq.s32.totalorder %s13, 0
    %p67 = por %p65, %p66
    %p68 = scmp.ne.s32.totalorder %s56, %s57
    %p69 = scmp.eq.s32.totalorder %s14, 1
    %p70 = por %p68, %p69
    %p72 = scmp.ne.s32.totalorder %s57, %s71
    %p73 = scmp.eq.s32.totalorder %s14, 0
    %p74 = por %p72, %p73
    %s75 = ssub.s32 %s15, %s27
    %s76 = ssub.s32 %s16, %s23
    %s77 = sor.u32 %s75, %s76
    %p78 = scmp.eq.s32.totalorder %s77, 0
    %s80 = sadd.s32 %s79, 1
    %s81 = scalar_select %p78, %s79, %s80
    %p84 = pneg %p78
    %p85 = scmp.eq.s32.totalorder %s8, 1
    %p86 = por %p84, %p85
    %p87 = scmp.ne.s32.totalorder %s79, %s82
    %p88 = scmp.eq.s32.totalorder %s8, 0
    %p89 = por %p87, %p88
    %p90 = scmp.ne.s32.totalorder %s79, %s82
    %p91 = scmp.eq.s32.totalorder %s13, 1
    %p92 = por %p90, %p91
    %p93 = scmp.ne.s32.totalorder %s82, %s83
    %p94 = scmp.eq.s32.totalorder %s13, 0
    %p95 = por %p93, %p94
    %p96 = scmp.ne.s32.totalorder %s82, %s83
    %p97 = scmp.eq.s32.totalorder %s14, 1
    %p98 = por %p96, %p97
    %p100 = scmp.ne.s32.totalorder %s83, %s99
    %p101 = scmp.eq.s32.totalorder %s14, 0
    %p102 = por %p100, %p101
    %p103 = scmp.le.s32.totalorder 1, %s8
    %p104 = scmp.lt.s32.totalorder %s8, 3
    %p105 = pnand %p103, %p104
    %p106 = pneg %p105
    // Predicated region
    $region9: #{forward.1} parent=5 // pred_check
      _
    $region10: #{forward.1} parent=5 // pred_check_branch
      %108 = sbr.rel (%p105) target = $region12
    $region11: #{forward.1} parent=5 // pred_region
      %s109 = ssub.s32 %s8, 1
      // Predicated region
      $region13: #{forward.1} parent=11 // pred_check
        %p110 = pneg %p67
      $region14: #{forward.1} parent=11 // pred_check_branch
        %112 = sbr.rel (%p110) target = $region16
      $region15: #{forward.1} parent=11 // pred_region
        _
      $region16: #{forward.1} parent=11 // pred_fallthru
        _
    $region12: #{forward.1} parent=5 // pred_fallthru
      _
    %p113 = scmp.lt.s32.totalorder %s8, 2
    // Predicated region
    $region17: #{forward.1} parent=5 // pred_check
      %p114 = pneg %p113
    $region18: #{forward.1} parent=5 // pred_check_branch
      %116 = sbr.rel (%p114) target = $region20
    $region19: #{forward.1} parent=5 // pred_region
      // Predicated region
      $region21: #{forward.1} parent=19 // pred_check
        %p117 = pneg %p40
      $region22: #{forward.1} parent=19 // pred_check_branch
        %119 = sbr.rel (%p117) target = $region24
      $region23: #{forward.1} parent=19 // pred_region
        %p120 = scmp.lt.s32.totalorder %s15, 1
        %s121 = scalar_select %p120, %s15, 1
        %s122 = smul.addr %s121, 54
        %s123 = smul.addr %s122, 4
        %s124 = scalar_lea.vmem %s0, %s123
      $region24: #{forward.1} parent=19 // pred_fallthru
        _
    $region20: #{forward.1} parent=5 // pred_fallthru
      _
    %p125 = scmp.le.s32.totalorder 1, %s8
    %p126 = scmp.lt.s32.totalorder %s8, 3
    %p127 = pnand %p125, %p126
    %p128 = pneg %p127
    // Predicated region
    $region25: #{forward.1} parent=5 // pred_check
      _
    $region26: #{forward.1} parent=5 // pred_check_branch
      %130 = sbr.rel (%p127) target = $region28
    $region27: #{forward.1} parent=5 // pred_region
      %s131 = ssub.s32 %s8, 1
      %p132 = scmp.lt.s32.totalorder %s17, 1
      %s133 = scalar_select %p132, %s17, 1
      %s134 = smul.addr %s133, 54
      %s135 = smul.addr %s134, 4
      %s136 = scalar_lea.vmem %s0, %s135
      %p137 = pneg %p46
      %p138 = pneg %p43
      %p139 = pneg %p67
      %p140 = pneg %p64
      %p141 = pneg %p95
      %p142 = pneg %p92
      %s143 = smul.u32 32, %s18
      %p144 = scmp.lt.s32.totalorder %s17, 1
      %s145 = scalar_select %p144, %s17, 1
      %p146 = scmp.lt.s32.totalorder %s143, 31
      %s147 = scalar_select %p146, %s143, 31
      %s148 = smul.addr %s145, 32
      %s149 = sadd.s32 %s147, %s148
      %s150 = smul.addr %s149, 4
      %s151 = scalar_lea.vmem %s2, %s150
      %p152 = scmp.lt.s32.totalorder %s17, 1
      %s153 = scalar_select %p152, %s17, 1
      %s154 = smul.addr %s153, 54
      %s155 = smul.addr %s154, 4
      %s156 = scalar_lea.vmem %s0, %s155
      %s157 = smul.u32 32, %s18
      %p158 = scmp.lt.s32.totalorder %s17, 1
      %s159 = scalar_select %p158, %s17, 1
      %p160 = scmp.lt.s32.totalorder %s157, 31
      %s161 = scalar_select %p160, %s157, 31
      %s162 = smul.addr %s159, 32
      %s163 = sadd.s32 %s161, %s162
      %s164 = smul.addr %s163, 4
      %s165 = scalar_lea.vmem %s2, %s164
      %s166 = smul.u32 32, %s18
      %s168 = smul.u32 %s18, 16
      %s169 = smul.u32 %s168, 3
      %s170 = smul.addr %s169, 4
      %s171 = scalar_lea.vmem %s156, %s170
      %v172 = vld [vmem:[%s171] sm:$0xf]
      %v173 = vld [vmem:[%s171 + $0x4] sm:$0xf]
      %v174 = vld [vmem:[%s171 + $0x8] sm:$0x1]
      %v175 = vld [vmem:[%s171 + $0xc] sm:$0xf]
      %v176 = vld [vmem:[%s171 + $0x10] sm:$0xf]
      %v177 = vld [vmem:[%s171 + $0x14] sm:$0x1]
      %v178 = vld [vmem:[%s171 + $0x18] sm:$0xf]
      %v179 = vld [vmem:[%s171 + $0x1c] sm:$0xf]
      %v180 = vld [vmem:[%s171 + $0x20] sm:$0x1]
      %v181 = vld [vmem:[%s171 + $0x24] sm:$0xf]
      %v182 = vld [vmem:[%s171 + $0x28] sm:$0xf]
      %v183 = vld [vmem:[%s171 + $0x2c] sm:$0x1]
      %v184 = vld [vmem:[%s171 + $0x30] sm:$0xf]
      %v185 = vld [vmem:[%s171 + $0x34] sm:$0xf]
      %v186 = vld [vmem:[%s171 + $0x38] sm:$0x1]
      %v187 = vld [vmem:[%s171 + $0x3c] sm:$0xf]
      %v188 = vld [vmem:[%s171 + $0x40] sm:$0xf]
      %v189 = vld [vmem:[%s171 + $0x44] sm:$0x1]
      %v190 = vld [vmem:[%s171 + $0x48] sm:$0xf]
      %v191 = vld [vmem:[%s171 + $0x4c] sm:$0xf]
      %v192 = vld [vmem:[%s171 + $0x50] sm:$0x1]
      %v193 = vld [vmem:[%s171 + $0x54] sm:$0xf]
      %v194 = vld [vmem:[%s171 + $0x58] sm:$0xf]
      %v195 = vld [vmem:[%s171 + $0x5c] sm:$0x1]
      %v196 = vld [vmem:[%s171 + $0x60] sm:$0xf]
      %v197 = vld [vmem:[%s171 + $0x64] sm:$0xf]
      %v198 = vld [vmem:[%s171 + $0x68] sm:$0x1]
      %v199 = vld [vmem:[%s171 + $0x6c] sm:$0xf]
      %v200 = vld [vmem:[%s171 + $0x70] sm:$0xf]
      %v201 = vld [vmem:[%s171 + $0x74] sm:$0x1]
      %v202 = vld [vmem:[%s171 + $0x78] sm:$0xf]
      %v203 = vld [vmem:[%s171 + $0x7c] sm:$0xf]
      %v204 = vld [vmem:[%s171 + $0x80] sm:$0x1]
      %v205 = vld [vmem:[%s171 + $0x84] sm:$0xf]
      %v206 = vld [vmem:[%s171 + $0x88] sm:$0xf]
      %v207 = vld [vmem:[%s171 + $0x8c] sm:$0x1]
      %v208 = vld [vmem:[%s171 + $0x90] sm:$0xf]
      %v209 = vld [vmem:[%s171 + $0x94] sm:$0xf]
      %v210 = vld [vmem:[%s171 + $0x98] sm:$0x1]
      %v211 = vld [vmem:[%s171 + $0x9c] sm:$0xf]
      %v212 = vld [vmem:[%s171 + $0xa0] sm:$0xf]
      %v213 = vld [vmem:[%s171 + $0xa4] sm:$0x1]
      %v214 = vld [vmem:[%s171 + $0xa8] sm:$0xf]
      %v215 = vld [vmem:[%s171 + $0xac] sm:$0xf]
      %v216 = vld [vmem:[%s171 + $0xb0] sm:$0x1]
      %v217 = vld [vmem:[%s171 + $0xb4] sm:$0xf]
      %v218 = vld [vmem:[%s171 + $0xb8] sm:$0xf]
      %v219 = vld [vmem:[%s171 + $0xbc] sm:$0x1]
      %v220 = vld [vmem:[%s171 + $0xc0] sm:$0xf]
      %v221 = vld [vmem:[%s171 + $0xc4] sm:$0xf]
      %v222 = vld [vmem:[%s171 + $0xc8] sm:$0x1]
      %v223 = vld [vmem:[%s171 + $0xcc] sm:$0xf]
      %v224 = vld [vmem:[%s171 + $0xd0] sm:$0xf]
      %v225 = vld [vmem:[%s171 + $0xd4] sm:$0x1]
      %v226 = vunpack.c.l.bf16 %v172
      %v227 = vunpack.c.l.bf16 %v173
      %v228 = vunpack.c.l.bf16 %v174
      %v229 = vunpack.c.l.bf16 %v175
      %v230 = vunpack.c.l.bf16 %v176
      %v231 = vunpack.c.l.bf16 %v177
      %v232 = vunpack.c.l.bf16 %v178
      %v233 = vunpack.c.l.bf16 %v179
      %v234 = vunpack.c.l.bf16 %v180
      %v235 = vunpack.c.l.bf16 %v181
      %v236 = vunpack.c.l.bf16 %v182
      %v237 = vunpack.c.l.bf16 %v183
      %v238 = vunpack.c.l.bf16 %v184
      %v239 = vunpack.c.l.bf16 %v185
      %v240 = vunpack.c.l.bf16 %v186
      %v241 = vunpack.c.l.bf16 %v187
      %v242 = vunpack.c.l.bf16 %v188
      %v243 = vunpack.c.l.bf16 %v189
      %v244 = vunpack.c.l.bf16 %v190
      %v245 = vunpack.c.l.bf16 %v191
      %v246 = vunpack.c.l.bf16 %v192
      %v247 = vunpack.c.l.bf16 %v193
      %v248 = vunpack.c.l.bf16 %v194
      %v249 = vunpack.c.l.bf16 %v195
      %v250 = vunpack.c.l.bf16 %v196
      %v251 = vunpack.c.l.bf16 %v197
      %v252 = vunpack.c.l.bf16 %v198
      %v253 = vunpack.c.l.bf16 %v199
      %v254 = vunpack.c.l.bf16 %v200
      %v255 = vunpack.c.l.bf16 %v201
      %v256 = vunpack.c.l.bf16 %v202
      %v257 = vunpack.c.l.bf16 %v203
      %v258 = vunpack.c.l.bf16 %v204
      %v259 = vunpack.c.l.bf16 %v205
      %v260 = vunpack.c.l.bf16 %v206
      %v261 = vunpack.c.l.bf16 %v207
      %v262 = vunpack.c.l.bf16 %v208
      %v263 = vunpack.c.l.bf16 %v209
      %v264 = vunpack.c.l.bf16 %v210
      %v265 = vunpack.c.l.bf16 %v211
      %v266 = vunpack.c.l.bf16 %v212
      %v267 = vunpack.c.l.bf16 %v213
      %v268 = vunpack.c.l.bf16 %v214
      %v269 = vunpack.c.l.bf16 %v215
      %v270 = vunpack.c.l.bf16 %v216
      %v271 = vunpack.c.l.bf16 %v217
      %v272 = vunpack.c.l.bf16 %v218
      %v273 = vunpack.c.l.bf16 %v219
      %v274 = vunpack.c.l.bf16 %v220
      %v275 = vunpack.c.l.bf16 %v221
      %v276 = vunpack.c.l.bf16 %v222
      %v277 = vunpack.c.l.bf16 %v223
      %v278 = vunpack.c.l.bf16 %v224
      %v279 = vunpack.c.l.bf16 %v225
      %v280 = vxor.u32 %v226, 2147483648
      %v281 = vxor.u32 %v227, 2147483648
      %v282 = vxor.u32 %v228, 2147483648
      %v283 = vxor.u32 %v229, 2147483648
      %v284 = vxor.u32 %v230, 2147483648
      %v285 = vxor.u32 %v231, 2147483648
      %v286 = vxor.u32 %v232, 2147483648
      %v287 = vxor.u32 %v233, 2147483648
      %v288 = vxor.u32 %v234, 2147483648
      %v289 = vxor.u32 %v235, 2147483648
      %v290 = vxor.u32 %v236, 2147483648
      %v291 = vxor.u32 %v237, 2147483648
      %v292 = vxor.u32 %v238, 2147483648
      %v293 = vxor.u32 %v239, 2147483648
      %v294 = vxor.u32 %v240, 2147483648
      %v295 = vxor.u32 %v241, 2147483648
      %v296 = vxor.u32 %v242, 2147483648
      %v297 = vxor.u32 %v243, 2147483648
      %v298 = vxor.u32 %v244, 2147483648
      %v299 = vxor.u32 %v245, 2147483648
      %v300 = vxor.u32 %v246, 2147483648
      %v301 = vxor.u32 %v247, 2147483648
      %v302 = vxor.u32 %v248, 2147483648
      %v303 = vxor.u32 %v249, 2147483648
      %v304 = vxor.u32 %v250, 2147483648
      %v305 = vxor.u32 %v251, 2147483648
      %v306 = vxor.u32 %v252, 2147483648
      %v307 = vxor.u32 %v253, 2147483648
      %v308 = vxor.u32 %v254, 2147483648
      %v309 = vxor.u32 %v255, 2147483648
      %v310 = vxor.u32 %v256, 2147483648
      %v311 = vxor.u32 %v257, 2147483648
      %v312 = vxor.u32 %v258, 2147483648
      %v313 = vxor.u32 %v259, 2147483648
      %v314 = vxor.u32 %v260, 2147483648
      %v315 = vxor.u32 %v261, 2147483648
      %v316 = vxor.u32 %v262, 2147483648
      %v317 = vxor.u32 %v263, 2147483648
      %v318 = vxor.u32 %v264, 2147483648
      %v319 = vxor.u32 %v265, 2147483648
      %v320 = vxor.u32 %v266, 2147483648
      %v321 = vxor.u32 %v267, 2147483648
      %v322 = vxor.u32 %v268, 2147483648
      %v323 = vxor.u32 %v269, 2147483648
      %v324 = vxor.u32 %v270, 2147483648
      %v325 = vxor.u32 %v271, 2147483648
      %v326 = vxor.u32 %v272, 2147483648
      %v327 = vxor.u32 %v273, 2147483648
      %v328 = vxor.u32 %v274, 2147483648
      %v329 = vxor.u32 %v275, 2147483648
      %v330 = vxor.u32 %v276, 2147483648
      %v331 = vxor.u32 %v277, 2147483648
      %v332 = vxor.u32 %v278, 2147483648
      %v333 = vxor.u32 %v279, 2147483648
      %v334 = vmul.f32 %v280, 1.442695
      %v335 = vpow.pop %v334
      %v336 = vmul.f32 %v281, 1.442695
      %v337 = vpow.pop %v336
      %v338 = vmul.f32 %v282, 1.442695
      %v339 = vpow.pop %v338
      %v340 = vmul.f32 %v283, 1.442695
      %v341 = vpow.pop %v340
      %v342 = vmul.f32 %v284, 1.442695
      %v343 = vpow.pop %v342
      %v344 = vmul.f32 %v285, 1.442695
      %v345 = vpow.pop %v344
      %v346 = vmul.f32 %v286, 1.442695
      %v347 = vpow.pop %v346
      %v348 = vmul.f32 %v287, 1.442695
      %v349 = vpow.pop %v348
      %v350 = vmul.f32 %v288, 1.442695
      %v351 = vpow.pop %v350
      %v352 = vmul.f32 %v289, 1.442695
      %v353 = vpow.pop %v352
      %v354 = vmul.f32 %v290, 1.442695
      %v355 = vpow.pop %v354
      %v356 = vmul.f32 %v291, 1.442695
      %v357 = vpow.pop %v356
      %v358 = vmul.f32 %v292, 1.442695
      %v359 = vpow.pop %v358
      %v360 = vmul.f32 %v293, 1.442695
      %v361 = vpow.pop %v360
      %v362 = vmul.f32 %v294, 1.442695
      %v363 = vpow.pop %v362
      %v364 = vmul.f32 %v295, 1.442695
      %v365 = vpow.pop %v364
      %v366 = vmul.f32 %v296, 1.442695
      %v367 = vpow.pop %v366
      %v368 = vmul.f32 %v297, 1.442695
      %v369 = vpow.pop %v368
      %v370 = vmul.f32 %v298, 1.442695
      %v371 = vpow.pop %v370
      %v372 = vmul.f32 %v299, 1.442695
      %v373 = vpow.pop %v372
      %v374 = vmul.f32 %v300, 1.442695
      %v375 = vpow.pop %v374
      %v376 = vmul.f32 %v301, 1.442695
      %v377 = vpow.pop %v376
      %v378 = vmul.f32 %v302, 1.442695
      %v379 = vpow.pop %v378
      %v380 = vmul.f32 %v303, 1.442695
      %v381 = vpow.pop %v380
      %v382 = vmul.f32 %v304, 1.442695
      %v383 = vpow.pop %v382
      %v384 = vmul.f32 %v305, 1.442695
      %v385 = vpow.pop %v384
      %v386 = vmul.f32 %v306, 1.442695
      %v387 = vpow.pop %v386
      %v388 = vmul.f32 %v307, 1.442695
      %v389 = vpow.pop %v388
      %v390 = vmul.f32 %v308, 1.442695
      %v391 = vpow.pop %v390
      %v392 = vmul.f32 %v309, 1.442695
      %v393 = vpow.pop %v392
      %v394 = vmul.f32 %v310, 1.442695
      %v395 = vpow.pop %v394
      %v396 = vmul.f32 %v311, 1.442695
      %v397 = vpow.pop %v396
      %v398 = vmul.f32 %v312, 1.442695
      %v399 = vpow.pop %v398
      %v400 = vmul.f32 %v313, 1.442695
      %v401 = vpow.pop %v400
      %v402 = vmul.f32 %v314, 1.442695
      %v403 = vpow.pop %v402
      %v404 = vmul.f32 %v315, 1.442695
      %v405 = vpow.pop %v404
      %v406 = vmul.f32 %v316, 1.442695
      %v407 = vpow.pop %v406
      %v408 = vmul.f32 %v317, 1.442695
      %v409 = vpow.pop %v408
      %v410 = vmul.f32 %v318, 1.442695
      %v411 = vpow.pop %v410
      %v412 = vmul.f32 %v319, 1.442695
      %v413 = vpow.pop %v412
      %v414 = vmul.f32 %v320, 1.442695
      %v415 = vpow.pop %v414
      %v416 = vmul.f32 %v321, 1.442695
      %v417 = vpow.pop %v416
      %v418 = vmul.f32 %v322, 1.442695
      %v419 = vpow.pop %v418
      %v420 = vmul.f32 %v323, 1.442695
      %v421 = vpow.pop %v420
      %v422 = vmul.f32 %v324, 1.442695
      %v423 = vpow.pop %v422
      %v424 = vmul.f32 %v325, 1.442695
      %v425 = vpow.pop %v424
      %v426 = vmul.f32 %v326, 1.442695
      %v427 = vpow.pop %v426
      %v428 = vmul.f32 %v327, 1.442695
      %v429 = vpow.pop %v428
      %v430 = vmul.f32 %v328, 1.442695
      %v431 = vpow.pop %v430
      %v432 = vmul.f32 %v329, 1.442695
      %v433 = vpow.pop %v432
      %v434 = vmul.f32 %v330, 1.442695
      %v435 = vpow.pop %v434
      %v436 = vmul.f32 %v331, 1.442695
      %v437 = vpow.pop %v436
      %v438 = vmul.f32 %v332, 1.442695
      %v439 = vpow.pop %v438
      %v440 = vmul.f32 %v333, 1.442695
      %v441 = vpow.pop %v440
      %v442 = vadd.f32 %v335, 1.0
      %v443 = vadd.f32 %v337, 1.0
      %v444 = vadd.f32 %v339, 1.0
      %v445 = vadd.f32 %v341, 1.0
      %v446 = vadd.f32 %v343, 1.0
      %v447 = vadd.f32 %v345, 1.0
      %v448 = vadd.f32 %v347, 1.0
      %v449 = vadd.f32 %v349, 1.0
      %v450 = vadd.f32 %v351, 1.0
      %v451 = vadd.f32 %v353, 1.0
      %v452 = vadd.f32 %v355, 1.0
      %v453 = vadd.f32 %v357, 1.0
      %v454 = vadd.f32 %v359, 1.0
      %v455 = vadd.f32 %v361, 1.0
      %v456 = vadd.f32 %v363, 1.0
      %v457 = vadd.f32 %v365, 1.0
      %v458 = vadd.f32 %v367, 1.0
      %v459 = vadd.f32 %v369, 1.0
      %v460 = vadd.f32 %v371, 1.0
      %v461 = vadd.f32 %v373, 1.0
      %v462 = vadd.f32 %v375, 1.0
      %v463 = vadd.f32 %v377, 1.0
      %v464 = vadd.f32 %v379, 1.0
      %v465 = vadd.f32 %v381, 1.0
      %v466 = vadd.f32 %v383, 1.0
      %v467 = vadd.f32 %v385, 1.0
      %v468 = vadd.f32 %v387, 1.0
      %v469 = vadd.f32 %v389, 1.0
      %v470 = vadd.f32 %v391, 1.0
      %v471 = vadd.f32 %v393, 1.0
      %v472 = vadd.f32 %v395, 1.0
      %v473 = vadd.f32 %v397, 1.0
      %v474 = vadd.f32 %v399, 1.0
      %v475 = vadd.f32 %v401, 1.0
      %v476 = vadd.f32 %v403, 1.0
      %v477 = vadd.f32 %v405, 1.0
      %v478 = vadd.f32 %v407, 1.0
      %v479 = vadd.f32 %v409, 1.0
      %v480 = vadd.f32 %v411, 1.0
      %v481 = vadd.f32 %v413, 1.0
      %v482 = vadd.f32 %v415, 1.0
      %v483 = vadd.f32 %v417, 1.0
      %v484 = vadd.f32 %v419, 1.0
      %v485 = vadd.f32 %v421, 1.0
      %v486 = vadd.f32 %v423, 1.0
      %v487 = vadd.f32 %v425, 1.0
      %v488 = vadd.f32 %v427, 1.0
      %v489 = vadd.f32 %v429, 1.0
      %v490 = vadd.f32 %v431, 1.0
      %v491 = vadd.f32 %v433, 1.0
      %v492 = vadd.f32 %v435, 1.0
      %v493 = vadd.f32 %v437, 1.0
      %v494 = vadd.f32 %v439, 1.0
      %v495 = vadd.f32 %v441, 1.0
      %v496 = vrcp.pop %v442
      %v497 = vmul.f32 1.0, %v496
      %v498 = vrcp.pop %v443
      %v499 = vmul.f32 1.0, %v498
      %v500 = vrcp.pop %v444
      %v501 = vmul.f32 1.0, %v500
      %v502 = vrcp.pop %v445
      %v503 = vmul.f32 1.0, %v502
      %v504 = vrcp.pop %v446
      %v505 = vmul.f32 1.0, %v504
      %v506 = vrcp.pop %v447
      %v507 = vmul.f32 1.0, %v506
      %v508 = vrcp.pop %v448
      %v509 = vmul.f32 1.0, %v508
      %v510 = vrcp.pop %v449
      %v511 = vmul.f32 1.0, %v510
      %v512 = vrcp.pop %v450
      %v513 = vmul.f32 1.0, %v512
      %v514 = vrcp.pop %v451
      %v515 = vmul.f32 1.0, %v514
      %v516 = vrcp.pop %v452
      %v517 = vmul.f32 1.0, %v516
      %v518 = vrcp.pop %v453
      %v519 = vmul.f32 1.0, %v518
      %v520 = vrcp.pop %v454
      %v521 = vmul.f32 1.0, %v520
      %v522 = vrcp.pop %v455
      %v523 = vmul.f32 1.0, %v522
      %v524 = vrcp.pop %v456
      %v525 = vmul.f32 1.0, %v524
      %v526 = vrcp.pop %v457
      %v527 = vmul.f32 1.0, %v526
      %v528 = vrcp.pop %v458
      %v529 = vmul.f32 1.0, %v528
      %v530 = vrcp.pop %v459
      %v531 = vmul.f32 1.0, %v530
      %v532 = vrcp.pop %v460
      %v533 = vmul.f32 1.0, %v532
      %v534 = vrcp.pop %v461
      %v535 = vmul.f32 1.0, %v534
      %v536 = vrcp.pop %v462
      %v537 = vmul.f32 1.0, %v536
      %v538 = vrcp.pop %v463
      %v539 = vmul.f32 1.0, %v538
      %v540 = vrcp.pop %v464
      %v541 = vmul.f32 1.0, %v540
      %v542 = vrcp.pop %v465
      %v543 = vmul.f32 1.0, %v542
      %v544 = vrcp.pop %v466
      %v545 = vmul.f32 1.0, %v544
      %v546 = vrcp.pop %v467
      %v547 = vmul.f32 1.0, %v546
      %v548 = vrcp.pop %v468
      %v549 = vmul.f32 1.0, %v548
      %v550 = vrcp.pop %v469
      %v551 = vmul.f32 1.0, %v550
      %v552 = vrcp.pop %v470
      %v553 = vmul.f32 1.0, %v552
      %v554 = vrcp.pop %v471
      %v555 = vmul.f32 1.0, %v554
      %v556 = vrcp.pop %v472
      %v557 = vmul.f32 1.0, %v556
      %v558 = vrcp.pop %v473
      %v559 = vmul.f32 1.0, %v558
      %v560 = vrcp.pop %v474
      %v561 = vmul.f32 1.0, %v560
      %v562 = vrcp.pop %v475
      %v563 = vmul.f32 1.0, %v562
      %v564 = vrcp.pop %v476
      %v565 = vmul.f32 1.0, %v564
      %v566 = vrcp.pop %v477
      %v567 = vmul.f32 1.0, %v566
      %v568 = vrcp.pop %v478
      %v569 = vmul.f32 1.0, %v568
      %v570 = vrcp.pop %v479
      %v571 = vmul.f32 1.0, %v570
      %v572 = vrcp.pop %v480
      %v573 = vmul.f32 1.0, %v572
      %v574 = vrcp.pop %v481
      %v575 = vmul.f32 1.0, %v574
      %v576 = vrcp.pop %v482
      %v577 = vmul.f32 1.0, %v576
      %v578 = vrcp.pop %v483
      %v579 = vmul.f32 1.0, %v578
      %v580 = vrcp.pop %v484
      %v581 = vmul.f32 1.0, %v580
      %v582 = vrcp.pop %v485
      %v583 = vmul.f32 1.0, %v582
      %v584 = vrcp.pop %v486
      %v585 = vmul.f32 1.0, %v584
      %v586 = vrcp.pop %v487
      %v587 = vmul.f32 1.0, %v586
      %v588 = vrcp.pop %v488
      %v589 = vmul.f32 1.0, %v588
      %v590 = vrcp.pop %v489
      %v591 = vmul.f32 1.0, %v590
      %v592 = vrcp.pop %v490
      %v593 = vmul.f32 1.0, %v592
      %v594 = vrcp.pop %v491
      %v595 = vmul.f32 1.0, %v594
      %v596 = vrcp.pop %v492
      %v597 = vmul.f32 1.0, %v596
      %v598 = vrcp.pop %v493
      %v599 = vmul.f32 1.0, %v598
      %v600 = vrcp.pop %v494
      %v601 = vmul.f32 1.0, %v600
      %v602 = vrcp.pop %v495
      %v603 = vmul.f32 1.0, %v602
      %605 = vset.pattern.permute.xlu0 0
      %606 = vperm.xlu0 %605, %v497
      %v607 = vpop.permute.xlu0 %606
      %610 = vset.pattern.permute.xlu0 0
      %611 = vperm.xlu0 %610, %v499
      %v612 = vpop.permute.xlu0 %611
      %615 = vset.pattern.permute.xlu0 0
      %616 = vperm.xlu0 %615, %v501
      %v617 = vpop.permute.xlu0 %616
      %620 = vset.pattern.permute.xlu0 0
      %621 = vperm.xlu0 %620, %v503
      %v622 = vpop.permute.xlu0 %621
      %625 = vset.pattern.permute.xlu0 0
      %626 = vperm.xlu0 %625, %v505
      %v627 = vpop.permute.xlu0 %626
      %630 = vset.pattern.permute.xlu0 0
      %631 = vperm.xlu0 %630, %v507
      %v632 = vpop.permute.xlu0 %631
      %635 = vset.pattern.permute.xlu0 0
      %636 = vperm.xlu0 %635, %v509
      %v637 = vpop.permute.xlu0 %636
      %640 = vset.pattern.permute.xlu0 0
      %641 = vperm.xlu0 %640, %v511
      %v642 = vpop.permute.xlu0 %641
      %645 = vset.pattern.permute.xlu0 0
      %646 = vperm.xlu0 %645, %v513
      %v647 = vpop.permute.xlu0 %646
      %650 = vset.pattern.permute.xlu0 0
      %651 = vperm.xlu0 %650, %v515
      %v652 = vpop.permute.xlu0 %651
      %655 = vset.pattern.permute.xlu0 0
      %656 = vperm.xlu0 %655, %v517
      %v657 = vpop.permute.xlu0 %656
      %660 = vset.pattern.permute.xlu0 0
      %661 = vperm.xlu0 %660, %v519
      %v662 = vpop.permute.xlu0 %661
      %665 = vset.pattern.permute.xlu0 0
      %666 = vperm.xlu0 %665, %v521
      %v667 = vpop.permute.xlu0 %666
      %670 = vset.pattern.permute.xlu0 0
      %671 = vperm.xlu0 %670, %v523
      %v672 = vpop.permute.xlu0 %671
      %675 = vset.pattern.permute.xlu0 0
      %676 = vperm.xlu0 %675, %v525
      %v677 = vpop.permute.xlu0 %676
      %680 = vset.pattern.permute.xlu0 0
      %681 = vperm.xlu0 %680, %v527
      %v682 = vpop.permute.xlu0 %681
      %685 = vset.pattern.permute.xlu0 0
      %686 = vperm.xlu0 %685, %v529
      %v687 = vpop.permute.xlu0 %686
      %690 = vset.pattern.permute.xlu0 0
      %691 = vperm.xlu0 %690, %v531
      %v692 = vpop.permute.xlu0 %691
      %695 = vset.pattern.permute.xlu0 0
      %696 = vperm.xlu0 %695, %v533
      %v697 = vpop.permute.xlu0 %696
      %700 = vset.pattern.permute.xlu0 0
      %701 = vperm.xlu0 %700, %v535
      %v702 = vpop.permute.xlu0 %701
      %705 = vset.pattern.permute.xlu0 0
      %706 = vperm.xlu0 %705, %v537
      %v707 = vpop.permute.xlu0 %706
      %710 = vset.pattern.permute.xlu0 0
      %711 = vperm.xlu0 %710, %v539
      %v712 = vpop.permute.xlu0 %711
      %715 = vset.pattern.permute.xlu0 0
      %716 = vperm.xlu0 %715, %v541
      %v717 = vpop.permute.xlu0 %716
      %720 = vset.pattern.permute.xlu0 0
      %721 = vperm.xlu0 %720, %v543
      %v722 = vpop.permute.xlu0 %721
      %725 = vset.pattern.permute.xlu0 0
      %726 = vperm.xlu0 %725, %v545
      %v727 = vpop.permute.xlu0 %726
      %730 = vset.pattern.permute.xlu0 0
      %731 = vperm.xlu0 %730, %v547
      %v732 = vpop.permute.xlu0 %731
      %735 = vset.pattern.permute.xlu0 0
      %736 = vperm.xlu0 %735, %v549
      %v737 = vpop.permute.xlu0 %736
      %740 = vset.pattern.permute.xlu0 0
      %741 = vperm.xlu0 %740, %v551
      %v742 = vpop.permute.xlu0 %741
      %745 = vset.pattern.permute.xlu0 0
      %746 = vperm.xlu0 %745, %v553
      %v747 = vpop.permute.xlu0 %746
      %750 = vset.pattern.permute.xlu0 0
      %751 = vperm.xlu0 %750, %v555
      %v752 = vpop.permute.xlu0 %751
      %755 = vset.pattern.permute.xlu0 0
      %756 = vperm.xlu0 %755, %v557
      %v757 = vpop.permute.xlu0 %756
      %760 = vset.pattern.permute.xlu0 0
      %761 = vperm.xlu0 %760, %v559
      %v762 = vpop.permute.xlu0 %761
      %765 = vset.pattern.permute.xlu0 0
      %766 = vperm.xlu0 %765, %v561
      %v767 = vpop.permute.xlu0 %766
      %770 = vset.pattern.permute.xlu0 0
      %771 = vperm.xlu0 %770, %v563
      %v772 = vpop.permute.xlu0 %771
      %775 = vset.pattern.permute.xlu0 0
      %776 = vperm.xlu0 %775, %v565
      %v777 = vpop.permute.xlu0 %776
      %780 = vset.pattern.permute.xlu0 0
      %781 = vperm.xlu0 %780, %v567
      %v782 = vpop.permute.xlu0 %781
      %785 = vset.pattern.permute.xlu0 0
      %786 = vperm.xlu0 %785, %v569
      %v787 = vpop.permute.xlu0 %786
      %790 = vset.pattern.permute.xlu0 0
      %791 = vperm.xlu0 %790, %v571
      %v792 = vpop.permute.xlu0 %791
      %795 = vset.pattern.permute.xlu0 0
      %796 = vperm.xlu0 %795, %v573
      %v797 = vpop.permute.xlu0 %796
      %800 = vset.pattern.permute.xlu0 0
      %801 = vperm.xlu0 %800, %v575
      %v802 = vpop.permute.xlu0 %801
      %805 = vset.pattern.permute.xlu0 0
      %806 = vperm.xlu0 %805, %v577
      %v807 = vpop.permute.xlu0 %806
      %810 = vset.pattern.permute.xlu0 0
      %811 = vperm.xlu0 %810, %v579
      %v812 = vpop.permute.xlu0 %811
      %815 = vset.pattern.permute.xlu0 0
      %816 = vperm.xlu0 %815, %v581
      %v817 = vpop.permute.xlu0 %816
      %820 = vset.pattern.permute.xlu0 0
      %821 = vperm.xlu0 %820, %v583
      %v822 = vpop.permute.xlu0 %821
      %825 = vset.pattern.permute.xlu0 0
      %826 = vperm.xlu0 %825, %v585
      %v827 = vpop.permute.xlu0 %826
      %830 = vset.pattern.permute.xlu0 0
      %831 = vperm.xlu0 %830, %v587
      %v832 = vpop.permute.xlu0 %831
      %835 = vset.pattern.permute.xlu0 0
      %836 = vperm.xlu0 %835, %v589
      %v837 = vpop.permute.xlu0 %836
      %840 = vset.pattern.permute.xlu0 0
      %841 = vperm.xlu0 %840, %v591
      %v842 = vpop.permute.xlu0 %841
      %845 = vset.pattern.permute.xlu0 0
      %846 = vperm.xlu0 %845, %v593
      %v847 = vpop.permute.xlu0 %846
      %850 = vset.pattern.permute.xlu0 0
      %851 = vperm.xlu0 %850, %v595
      %v852 = vpop.permute.xlu0 %851
      %855 = vset.pattern.permute.xlu0 0
      %856 = vperm.xlu0 %855, %v597
      %v857 = vpop.permute.xlu0 %856
      %860 = vset.pattern.permute.xlu0 0
      %861 = vperm.xlu0 %860, %v599
      %v862 = vpop.permute.xlu0 %861
      %865 = vset.pattern.permute.xlu0 0
      %866 = vperm.xlu0 %865, %v601
      %v867 = vpop.permute.xlu0 %866
      %870 = vset.pattern.permute.xlu0 0
      %871 = vperm.xlu0 %870, %v603
      %v872 = vpop.permute.xlu0 %871
      %v874 = vmul.f32 %v607, %v226
      %v875 = vmul.f32 %v612, %v227
      %v876 = vmul.f32 %v617, %v228
      %v877 = vmul.f32 %v622, %v229
      %v878 = vmul.f32 %v627, %v230
      %v879 = vmul.f32 %v632, %v231
      %v880 = vmul.f32 %v637, %v232
      %v881 = vmul.f32 %v642, %v233
      %v882 = vmul.f32 %v647, %v234
      %v883 = vmul.f32 %v652, %v235
      %v884 = vmul.f32 %v657, %v236
      %v885 = vmul.f32 %v662, %v237
      %v886 = vmul.f32 %v667, %v238
      %v887 = vmul.f32 %v672, %v239
      %v888 = vmul.f32 %v677, %v240
      %v889 = vmul.f32 %v682, %v241
      %v890 = vmul.f32 %v687, %v242
      %v891 = vmul.f32 %v692, %v243
      %v892 = vmul.f32 %v697, %v244
      %v893 = vmul.f32 %v702, %v245
      %v894 = vmul.f32 %v707, %v246
      %v895 = vmul.f32 %v712, %v247
      %v896 = vmul.f32 %v717, %v248
      %v897 = vmul.f32 %v722, %v249
      %v898 = vmul.f32 %v727, %v250
      %v899 = vmul.f32 %v732, %v251
      %v900 = vmul.f32 %v737, %v252
      %v901 = vmul.f32 %v742, %v253
      %v902 = vmul.f32 %v747, %v254
      %v903 = vmul.f32 %v752, %v255
      %v904 = vmul.f32 %v757, %v256
      %v905 = vmul.f32 %v762, %v257
      %v906 = vmul.f32 %v767, %v258
      %v907 = vmul.f32 %v772, %v259
      %v908 = vmul.f32 %v777, %v260
      %v909 = vmul.f32 %v782, %v261
      %v910 = vmul.f32 %v787, %v262
      %v911 = vmul.f32 %v792, %v263
      %v912 = vmul.f32 %v797, %v264
      %v913 = vmul.f32 %v802, %v265
      %v914 = vmul.f32 %v807, %v266
      %v915 = vmul.f32 %v812, %v267
      %v916 = vmul.f32 %v817, %v268
      %v917 = vmul.f32 %v822, %v269
      %v918 = vmul.f32 %v827, %v270
      %v919 = vmul.f32 %v832, %v271
      %v920 = vmul.f32 %v837, %v272
      %v921 = vmul.f32 %v842, %v273
      %v922 = vmul.f32 %v847, %v274
      %v923 = vmul.f32 %v852, %v275
      %v924 = vmul.f32 %v857, %v276
      %v925 = vmul.f32 %v862, %v277
      %v926 = vmul.f32 %v867, %v278
      %v927 = vmul.f32 %v872, %v279
      %928 = vset.pattern.permute.xlu0 1
      %929 = vperm.xlu0 %928, %v497
      %v930 = vpop.permute.xlu0 %929
      %932 = vset.pattern.permute.xlu0 1
      %933 = vperm.xlu0 %932, %v499
      %v934 = vpop.permute.xlu0 %933
      %936 = vset.pattern.permute.xlu0 1
      %937 = vperm.xlu0 %936, %v501
      %v938 = vpop.permute.xlu0 %937
      %940 = vset.pattern.permute.xlu0 1
      %941 = vperm.xlu0 %940, %v503
      %v942 = vpop.permute.xlu0 %941
      %944 = vset.pattern.permute.xlu0 1
      %945 = vperm.xlu0 %944, %v505
      %v946 = vpop.permute.xlu0 %945
      %948 = vset.pattern.permute.xlu0 1
      %949 = vperm.xlu0 %948, %v507
      %v950 = vpop.permute.xlu0 %949
      %952 = vset.pattern.permute.xlu0 1
      %953 = vperm.xlu0 %952, %v509
      %v954 = vpop.permute.xlu0 %953
      %956 = vset.pattern.permute.xlu0 1
      %957 = vperm.xlu0 %956, %v511
      %v958 = vpop.permute.xlu0 %957
      %960 = vset.pattern.permute.xlu0 1
      %961 = vperm.xlu0 %960, %v513
      %v962 = vpop.permute.xlu0 %961
      %964 = vset.pattern.permute.xlu0 1
      %965 = vperm.xlu0 %964, %v515
      %v966 = vpop.permute.xlu0 %965
      %968 = vset.pattern.permute.xlu0 1
      %969 = vperm.xlu0 %968, %v517
      %v970 = vpop.permute.xlu0 %969
      %972 = vset.pattern.permute.xlu0 1
      %973 = vperm.xlu0 %972, %v519
      %v974 = vpop.permute.xlu0 %973
      %976 = vset.pattern.permute.xlu0 1
      %977 = vperm.xlu0 %976, %v521
      %v978 = vpop.permute.xlu0 %977
      %980 = vset.pattern.permute.xlu0 1
      %981 = vperm.xlu0 %980, %v523
      %v982 = vpop.permute.xlu0 %981
      %984 = vset.pattern.permute.xlu0 1
      %985 = vperm.xlu0 %984, %v525
      %v986 = vpop.permute.xlu0 %985
      %988 = vset.pattern.permute.xlu0 1
      %989 = vperm.xlu0 %988, %v527
      %v990 = vpop.permute.xlu0 %989
      %992 = vset.pattern.permute.xlu0 1
      %993 = vperm.xlu0 %992, %v529
      %v994 = vpop.permute.xlu0 %993
      %996 = vset.pattern.permute.xlu0 1
      %997 = vperm.xlu0 %996, %v531
      %v998 = vpop.permute.xlu0 %997
      %1000 = vset.pattern.permute.xlu0 1
      %1001 = vperm.xlu0 %1000, %v533
      %v1002 = vpop.permute.xlu0 %1001
      %1004 = vset.pattern.permute.xlu0 1
      %1005 = vperm.xlu0 %1004, %v535
      %v1006 = vpop.permute.xlu0 %1005
      %1008 = vset.pattern.permute.xlu0 1
      %1009 = vperm.xlu0 %1008, %v537
      %v1010 = vpop.permute.xlu0 %1009
      %1012 = vset.pattern.permute.xlu0 1
      %1013 = vperm.xlu0 %1012, %v539
      %v1014 = vpop.permute.xlu0 %1013
      %1016 = vset.pattern.permute.xlu0 1
      %1017 = vperm.xlu0 %1016, %v541
      %v1018 = vpop.permute.xlu0 %1017
      %1020 = vset.pattern.permute.xlu0 1
      %1021 = vperm.xlu0 %1020, %v543
      %v1022 = vpop.permute.xlu0 %1021
      %1024 = vset.pattern.permute.xlu0 1
      %1025 = vperm.xlu0 %1024, %v545
      %v1026 = vpop.permute.xlu0 %1025
      %1028 = vset.pattern.permute.xlu0 1
      %1029 = vperm.xlu0 %1028, %v547
      %v1030 = vpop.permute.xlu0 %1029
      %1032 = vset.pattern.permute.xlu0 1
      %1033 = vperm.xlu0 %1032, %v549
      %v1034 = vpop.permute.xlu0 %1033
      %1036 = vset.pattern.permute.xlu0 1
      %1037 = vperm.xlu0 %1036, %v551
      %v1038 = vpop.permute.xlu0 %1037
      %1040 = vset.pattern.permute.xlu0 1
      %1041 = vperm.xlu0 %1040, %v553
      %v1042 = vpop.permute.xlu0 %1041
      %1044 = vset.pattern.permute.xlu0 1
      %1045 = vperm.xlu0 %1044, %v555
      %v1046 = vpop.permute.xlu0 %1045
      %1048 = vset.pattern.permute.xlu0 1
      %1049 = vperm.xlu0 %1048, %v557
      %v1050 = vpop.permute.xlu0 %1049
      %1052 = vset.pattern.permute.xlu0 1
      %1053 = vperm.xlu0 %1052, %v559
      %v1054 = vpop.permute.xlu0 %1053
      %1056 = vset.pattern.permute.xlu0 1
      %1057 = vperm.xlu0 %1056, %v561
      %v1058 = vpop.permute.xlu0 %1057
      %1060 = vset.pattern.permute.xlu0 1
      %1061 = vperm.xlu0 %1060, %v563
      %v1062 = vpop.permute.xlu0 %1061
      %1064 = vset.pattern.permute.xlu0 1
      %1065 = vperm.xlu0 %1064, %v565
      %v1066 = vpop.permute.xlu0 %1065
      %1068 = vset.pattern.permute.xlu0 1
      %1069 = vperm.xlu0 %1068, %v567
      %v1070 = vpop.permute.xlu0 %1069
      %1072 = vset.pattern.permute.xlu0 1
      %1073 = vperm.xlu0 %1072, %v569
      %v1074 = vpop.permute.xlu0 %1073
      %1076 = vset.pattern.permute.xlu0 1
      %1077 = vperm.xlu0 %1076, %v571
      %v1078 = vpop.permute.xlu0 %1077
      %1080 = vset.pattern.permute.xlu0 1
      %1081 = vperm.xlu0 %1080, %v573
      %v1082 = vpop.permute.xlu0 %1081
      %1084 = vset.pattern.permute.xlu0 1
      %1085 = vperm.xlu0 %1084, %v575
      %v1086 = vpop.permute.xlu0 %1085
      %1088 = vset.pattern.permute.xlu0 1
      %1089 = vperm.xlu0 %1088, %v577
      %v1090 = vpop.permute.xlu0 %1089
      %1092 = vset.pattern.permute.xlu0 1
      %1093 = vperm.xlu0 %1092, %v579
      %v1094 = vpop.permute.xlu0 %1093
      %1096 = vset.pattern.permute.xlu0 1
      %1097 = vperm.xlu0 %1096, %v581
      %v1098 = vpop.permute.xlu0 %1097
      %1100 = vset.pattern.permute.xlu0 1
      %1101 = vperm.xlu0 %1100, %v583
      %v1102 = vpop.permute.xlu0 %1101
      %1104 = vset.pattern.permute.xlu0 1
      %1105 = vperm.xlu0 %1104, %v585
      %v1106 = vpop.permute.xlu0 %1105
      %1108 = vset.pattern.permute.xlu0 1
      %1109 = vperm.xlu0 %1108, %v587
      %v1110 = vpop.permute.xlu0 %1109
      %1112 = vset.pattern.permute.xlu0 1
      %1113 = vperm.xlu0 %1112, %v589
      %v1114 = vpop.permute.xlu0 %1113
      %1116 = vset.pattern.permute.xlu0 1
      %1117 = vperm.xlu0 %1116, %v591
      %v1118 = vpop.permute.xlu0 %1117
      %1120 = vset.pattern.permute.xlu0 1
      %1121 = vperm.xlu0 %1120, %v593
      %v1122 = vpop.permute.xlu0 %1121
      %1124 = vset.pattern.permute.xlu0 1
      %1125 = vperm.xlu0 %1124, %v595
      %v1126 = vpop.permute.xlu0 %1125
      %1128 = vset.pattern.permute.xlu0 1
      %1129 = vperm.xlu0 %1128, %v597
      %v1130 = vpop.permute.xlu0 %1129
      %1132 = vset.pattern.permute.xlu0 1
      %1133 = vperm.xlu0 %1132, %v599
      %v1134 = vpop.permute.xlu0 %1133
      %1136 = vset.pattern.permute.xlu0 1
      %1137 = vperm.xlu0 %1136, %v601
      %v1138 = vpop.permute.xlu0 %1137
      %1140 = vset.pattern.permute.xlu0 1
      %1141 = vperm.xlu0 %1140, %v603
      %v1142 = vpop.permute.xlu0 %1141
      %v1144 = vmul.f32 %v930, %v226
      %v1145 = vmul.f32 %v934, %v227
      %v1146 = vmul.f32 %v938, %v228
      %v1147 = vmul.f32 %v942, %v229
      %v1148 = vmul.f32 %v946, %v230
      %v1149 = vmul.f32 %v950, %v231
      %v1150 = vmul.f32 %v954, %v232
      %v1151 = vmul.f32 %v958, %v233
      %v1152 = vmul.f32 %v962, %v234
      %v1153 = vmul.f32 %v966, %v235
      %v1154 = vmul.f32 %v970, %v236
      %v1155 = vmul.f32 %v974, %v237
      %v1156 = vmul.f32 %v978, %v238
      %v1157 = vmul.f32 %v982, %v239
      %v1158 = vmul.f32 %v986, %v240
      %v1159 = vmul.f32 %v990, %v241
      %v1160 = vmul.f32 %v994, %v242
      %v1161 = vmul.f32 %v998, %v243
      %v1162 = vmul.f32 %v1002, %v244
      %v1163 = vmul.f32 %v1006, %v245
      %v1164 = vmul.f32 %v1010, %v246
      %v1165 = vmul.f32 %v1014, %v247
      %v1166 = vmul.f32 %v1018, %v248
      %v1167 = vmul.f32 %v1022, %v249
      %v1168 = vmul.f32 %v1026, %v250
      %v1169 = vmul.f32 %v1030, %v251
      %v1170 = vmul.f32 %v1034, %v252
      %v1171 = vmul.f32 %v1038, %v253
      %v1172 = vmul.f32 %v1042, %v254
      %v1173 = vmul.f32 %v1046, %v255
      %v1174 = vmul.f32 %v1050, %v256
      %v1175 = vmul.f32 %v1054, %v257
      %v1176 = vmul.f32 %v1058, %v258
      %v1177 = vmul.f32 %v1062, %v259
      %v1178 = vmul.f32 %v1066, %v260
      %v1179 = vmul.f32 %v1070, %v261
      %v1180 = vmul.f32 %v1074, %v262
      %v1181 = vmul.f32 %v1078, %v263
      %v1182 = vmul.f32 %v1082, %v264
      %v1183 = vmul.f32 %v1086, %v265
      %v1184 = vmul.f32 %v1090, %v266
      %v1185 = vmul.f32 %v1094, %v267
      %v1186 = vmul.f32 %v1098, %v268
      %v1187 = vmul.f32 %v1102, %v269
      %v1188 = vmul.f32 %v1106, %v270
      %v1189 = vmul.f32 %v1110, %v271
      %v1190 = vmul.f32 %v1114, %v272
      %v1191 = vmul.f32 %v1118, %v273
      %v1192 = vmul.f32 %v1122, %v274
      %v1193 = vmul.f32 %v1126, %v275
      %v1194 = vmul.f32 %v1130, %v276
      %v1195 = vmul.f32 %v1134, %v277
      %v1196 = vmul.f32 %v1138, %v278
      %v1197 = vmul.f32 %v1142, %v279
      %1198 = vset.pattern.permute.xlu0 6
      %1199 = vperm.xlu0 %1198, %v497
      %v1200 = vpop.permute.xlu0 %1199
      %1202 = vset.pattern.permute.xlu0 6
      %1203 = vperm.xlu0 %1202, %v499
      %v1204 = vpop.permute.xlu0 %1203
      %1206 = vset.pattern.permute.xlu0 6
      %1207 = vperm.xlu0 %1206, %v501
      %v1208 = vpop.permute.xlu0 %1207
      %1210 = vset.pattern.permute.xlu0 6
      %1211 = vperm.xlu0 %1210, %v503
      %v1212 = vpop.permute.xlu0 %1211
      %1214 = vset.pattern.permute.xlu0 6
      %1215 = vperm.xlu0 %1214, %v505
      %v1216 = vpop.permute.xlu0 %1215
      %1218 = vset.pattern.permute.xlu0 6
      %1219 = vperm.xlu0 %1218, %v507
      %v1220 = vpop.permute.xlu0 %1219
      %1222 = vset.pattern.permute.xlu0 6
      %1223 = vperm.xlu0 %1222, %v509
      %v1224 = vpop.permute.xlu0 %1223
      %1226 = vset.pattern.permute.xlu0 6
      %1227 = vperm.xlu0 %1226, %v511
      %v1228 = vpop.permute.xlu0 %1227
      %1230 = vset.pattern.permute.xlu0 6
      %1231 = vperm.xlu0 %1230, %v513
      %v1232 = vpop.permute.xlu0 %1231
      %1234 = vset.pattern.permute.xlu0 6
      %1235 = vperm.xlu0 %1234, %v515
      %v1236 = vpop.permute.xlu0 %1235
      %1238 = vset.pattern.permute.xlu0 6
      %1239 = vperm.xlu0 %1238, %v517
      %v1240 = vpop.permute.xlu0 %1239
      %1242 = vset.pattern.permute.xlu0 6
      %1243 = vperm.xlu0 %1242, %v519
      %v1244 = vpop.permute.xlu0 %1243
      %1246 = vset.pattern.permute.xlu0 6
      %1247 = vperm.xlu0 %1246, %v521
      %v1248 = vpop.permute.xlu0 %1247
      %1250 = vset.pattern.permute.xlu0 6
      %1251 = vperm.xlu0 %1250, %v523
      %v1252 = vpop.permute.xlu0 %1251
      %1254 = vset.pattern.permute.xlu0 6
      %1255 = vperm.xlu0 %1254, %v525
      %v1256 = vpop.permute.xlu0 %1255
      %1258 = vset.pattern.permute.xlu0 6
      %1259 = vperm.xlu0 %1258, %v527
      %v1260 = vpop.permute.xlu0 %1259
      %1262 = vset.pattern.permute.xlu0 6
      %1263 = vperm.xlu0 %1262, %v529
      %v1264 = vpop.permute.xlu0 %1263
      %1266 = vset.pattern.permute.xlu0 6
      %1267 = vperm.xlu0 %1266, %v531
      %v1268 = vpop.permute.xlu0 %1267
      %1270 = vset.pattern.permute.xlu0 6
      %1271 = vperm.xlu0 %1270, %v533
      %v1272 = vpop.permute.xlu0 %1271
      %1274 = vset.pattern.permute.xlu0 6
      %1275 = vperm.xlu0 %1274, %v535
      %v1276 = vpop.permute.xlu0 %1275
      %1278 = vset.pattern.permute.xlu0 6
      %1279 = vperm.xlu0 %1278, %v537
      %v1280 = vpop.permute.xlu0 %1279
      %1282 = vset.pattern.permute.xlu0 6
      %1283 = vperm.xlu0 %1282, %v539
      %v1284 = vpop.permute.xlu0 %1283
      %1286 = vset.pattern.permute.xlu0 6
      %1287 = vperm.xlu0 %1286, %v541
      %v1288 = vpop.permute.xlu0 %1287
      %1290 = vset.pattern.permute.xlu0 6
      %1291 = vperm.xlu0 %1290, %v543
      %v1292 = vpop.permute.xlu0 %1291
      %1294 = vset.pattern.permute.xlu0 6
      %1295 = vperm.xlu0 %1294, %v545
      %v1296 = vpop.permute.xlu0 %1295
      %1298 = vset.pattern.permute.xlu0 6
      %1299 = vperm.xlu0 %1298, %v547
      %v1300 = vpop.permute.xlu0 %1299
      %1302 = vset.pattern.permute.xlu0 6
      %1303 = vperm.xlu0 %1302, %v549
      %v1304 = vpop.permute.xlu0 %1303
      %1306 = vset.pattern.permute.xlu0 6
      %1307 = vperm.xlu0 %1306, %v551
      %v1308 = vpop.permute.xlu0 %1307
      %1310 = vset.pattern.permute.xlu0 6
      %1311 = vperm.xlu0 %1310, %v553
      %v1312 = vpop.permute.xlu0 %1311
      %1314 = vset.pattern.permute.xlu0 6
      %1315 = vperm.xlu0 %1314, %v555
      %v1316 = vpop.permute.xlu0 %1315
      %1318 = vset.pattern.permute.xlu0 6
      %1319 = vperm.xlu0 %1318, %v557
      %v1320 = vpop.permute.xlu0 %1319
      %1322 = vset.pattern.permute.xlu0 6
      %1323 = vperm.xlu0 %1322, %v559
      %v1324 = vpop.permute.xlu0 %1323
      %1326 = vset.pattern.permute.xlu0 6
      %1327 = vperm.xlu0 %1326, %v561
      %v1328 = vpop.permute.xlu0 %1327
      %1330 = vset.pattern.permute.xlu0 6
      %1331 = vperm.xlu0 %1330, %v563
      %v1332 = vpop.permute.xlu0 %1331
      %1334 = vset.pattern.permute.xlu0 6
      %1335 = vperm.xlu0 %1334, %v565
      %v1336 = vpop.permute.xlu0 %1335
      %1338 = vset.pattern.permute.xlu0 6
      %1339 = vperm.xlu0 %1338, %v567
      %v1340 = vpop.permute.xlu0 %1339
      %1342 = vset.pattern.permute.xlu0 6
      %1343 = vperm.xlu0 %1342, %v569
      %v1344 = vpop.permute.xlu0 %1343
      %1346 = vset.pattern.permute.xlu0 6
      %1347 = vperm.xlu0 %1346, %v571
      %v1348 = vpop.permute.xlu0 %1347
      %1350 = vset.pattern.permute.xlu0 6
      %1351 = vperm.xlu0 %1350, %v573
      %v1352 = vpop.permute.xlu0 %1351
      %1354 = vset.pattern.permute.xlu0 6
      %1355 = vperm.xlu0 %1354, %v575
      %v1356 = vpop.permute.xlu0 %1355
      %1358 = vset.pattern.permute.xlu0 6
      %1359 = vperm.xlu0 %1358, %v577
      %v1360 = vpop.permute.xlu0 %1359
      %1362 = vset.pattern.permute.xlu0 6
      %1363 = vperm.xlu0 %1362, %v579
      %v1364 = vpop.permute.xlu0 %1363
      %1366 = vset.pattern.permute.xlu0 6
      %1367 = vperm.xlu0 %1366, %v581
      %v1368 = vpop.permute.xlu0 %1367
      %1370 = vset.pattern.permute.xlu0 6
      %1371 = vperm.xlu0 %1370, %v583
      %v1372 = vpop.permute.xlu0 %1371
      %1374 = vset.pattern.permute.xlu0 6
      %1375 = vperm.xlu0 %1374, %v585
      %v1376 = vpop.permute.xlu0 %1375
      %1378 = vset.pattern.permute.xlu0 6
      %1379 = vperm.xlu0 %1378, %v587
      %v1380 = vpop.permute.xlu0 %1379
      %1382 = vset.pattern.permute.xlu0 6
      %1383 = vperm.xlu0 %1382, %v589
      %v1384 = vpop.permute.xlu0 %1383
      %1386 = vset.pattern.permute.xlu0 6
      %1387 = vperm.xlu0 %1386, %v591
      %v1388 = vpop.permute.xlu0 %1387
      %1390 = vset.pattern.permute.xlu0 6
      %1391 = vperm.xlu0 %1390, %v593
      %v1392 = vpop.permute.xlu0 %1391
      %1394 = vset.pattern.permute.xlu0 6
      %1395 = vperm.xlu0 %1394, %v595
      %v1396 = vpop.permute.xlu0 %1395
      %1398 = vset.pattern.permute.xlu0 6
      %1399 = vperm.xlu0 %1398, %v597
      %v1400 = vpop.permute.xlu0 %1399
      %1402 = vset.pattern.permute.xlu0 6
      %1403 = vperm.xlu0 %1402, %v599
      %v1404 = vpop.permute.xlu0 %1403
      %1406 = vset.pattern.permute.xlu0 6
      %1407 = vperm.xlu0 %1406, %v601
      %v1408 = vpop.permute.xlu0 %1407
      %1410 = vset.pattern.permute.xlu0 6
      %1411 = vperm.xlu0 %1410, %v603
      %v1412 = vpop.permute.xlu0 %1411
      %v1414 = vmul.f32 %v1200, %v226
      %v1415 = vmul.f32 %v1204, %v227
      %v1416 = vmul.f32 %v1208, %v228
      %v1417 = vmul.f32 %v1212, %v229
      %v1418 = vmul.f32 %v1216, %v230
      %v1419 = vmul.f32 %v1220, %v231
      %v1420 = vmul.f32 %v1224, %v232
      %v1421 = vmul.f32 %v1228, %v233
      %v1422 = vmul.f32 %v1232, %v234
      %v1423 = vmul.f32 %v1236, %v235
      %v1424 = vmul.f32 %v1240, %v236
      %v1425 = vmul.f32 %v1244, %v237
      %v1426 = vmul.f32 %v1248, %v238
      %v1427 = vmul.f32 %v1252, %v239
      %v1428 = vmul.f32 %v1256, %v240
      %v1429 = vmul.f32 %v1260, %v241
      %v1430 = vmul.f32 %v1264, %v242
      %v1431 = vmul.f32 %v1268, %v243
      %v1432 = vmul.f32 %v1272, %v244
      %v1433 = vmul.f32 %v1276, %v245
      %v1434 = vmul.f32 %v1280, %v246
      %v1435 = vmul.f32 %v1284, %v247
      %v1436 = vmul.f32 %v1288, %v248
      %v1437 = vmul.f32 %v1292, %v249
      %v1438 = vmul.f32 %v1296, %v250
      %v1439 = vmul.f32 %v1300, %v251
      %v1440 = vmul.f32 %v1304, %v252
      %v1441 = vmul.f32 %v1308, %v253
      %v1442 = vmul.f32 %v1312, %v254
      %v1443 = vmul.f32 %v1316, %v255
      %v1444 = vmul.f32 %v1320, %v256
      %v1445 = vmul.f32 %v1324, %v257
      %v1446 = vmul.f32 %v1328, %v258
      %v1447 = vmul.f32 %v1332, %v259
      %v1448 = vmul.f32 %v1336, %v260
      %v1449 = vmul.f32 %v1340, %v261
      %v1450 = vmul.f32 %v1344, %v262
      %v1451 = vmul.f32 %v1348, %v263
      %v1452 = vmul.f32 %v1352, %v264
      %v1453 = vmul.f32 %v1356, %v265
      %v1454 = vmul.f32 %v1360, %v266
      %v1455 = vmul.f32 %v1364, %v267
      %v1456 = vmul.f32 %v1368, %v268
      %v1457 = vmul.f32 %v1372, %v269
      %v1458 = vmul.f32 %v1376, %v270
      %v1459 = vmul.f32 %v1380, %v271
      %v1460 = vmul.f32 %v1384, %v272
      %v1461 = vmul.f32 %v1388, %v273
      %v1462 = vmul.f32 %v1392, %v274
      %v1463 = vmul.f32 %v1396, %v275
      %v1464 = vmul.f32 %v1400, %v276
      %v1465 = vmul.f32 %v1404, %v277
      %v1466 = vmul.f32 %v1408, %v278
      %v1467 = vmul.f32 %v1412, %v279
      %1468 = vset.pattern.permute.xlu0 7
      %1469 = vperm.xlu0 %1468, %v497
      %v1470 = vpop.permute.xlu0 %1469
      %1472 = vset.pattern.permute.xlu0 7
      %1473 = vperm.xlu0 %1472, %v499
      %v1474 = vpop.permute.xlu0 %1473
      %1476 = vset.pattern.permute.xlu0 7
      %1477 = vperm.xlu0 %1476, %v501
      %v1478 = vpop.permute.xlu0 %1477
      %1480 = vset.pattern.permute.xlu0 7
      %1481 = vperm.xlu0 %1480, %v503
      %v1482 = vpop.permute.xlu0 %1481
      %1484 = vset.pattern.permute.xlu0 7
      %1485 = vperm.xlu0 %1484, %v505
      %v1486 = vpop.permute.xlu0 %1485
      %1488 = vset.pattern.permute.xlu0 7
      %1489 = vperm.xlu0 %1488, %v507
      %v1490 = vpop.permute.xlu0 %1489
      %1492 = vset.pattern.permute.xlu0 7
      %1493 = vperm.xlu0 %1492, %v509
      %v1494 = vpop.permute.xlu0 %1493
      %1496 = vset.pattern.permute.xlu0 7
      %1497 = vperm.xlu0 %1496, %v511
      %v1498 = vpop.permute.xlu0 %1497
      %1500 = vset.pattern.permute.xlu0 7
      %1501 = vperm.xlu0 %1500, %v513
      %v1502 = vpop.permute.xlu0 %1501
      %1504 = vset.pattern.permute.xlu0 7
      %1505 = vperm.xlu0 %1504, %v515
      %v1506 = vpop.permute.xlu0 %1505
      %1508 = vset.pattern.permute.xlu0 7
      %1509 = vperm.xlu0 %1508, %v517
      %v1510 = vpop.permute.xlu0 %1509
      %1512 = vset.pattern.permute.xlu0 7
      %1513 = vperm.xlu0 %1512, %v519
      %v1514 = vpop.permute.xlu0 %1513
      %1516 = vset.pattern.permute.xlu0 7
      %1517 = vperm.xlu0 %1516, %v521
      %v1518 = vpop.permute.xlu0 %1517
      %1520 = vset.pattern.permute.xlu0 7
      %1521 = vperm.xlu0 %1520, %v523
      %v1522 = vpop.permute.xlu0 %1521
      %1524 = vset.pattern.permute.xlu0 7
      %1525 = vperm.xlu0 %1524, %v525
      %v1526 = vpop.permute.xlu0 %1525
      %1528 = vset.pattern.permute.xlu0 7
      %1529 = vperm.xlu0 %1528, %v527
      %v1530 = vpop.permute.xlu0 %1529
      %1532 = vset.pattern.permute.xlu0 7
      %1533 = vperm.xlu0 %1532, %v529
      %v1534 = vpop.permute.xlu0 %1533
      %1536 = vset.pattern.permute.xlu0 7
      %1537 = vperm.xlu0 %1536, %v531
      %v1538 = vpop.permute.xlu0 %1537
      %1540 = vset.pattern.permute.xlu0 7
      %1541 = vperm.xlu0 %1540, %v533
      %v1542 = vpop.permute.xlu0 %1541
      %1544 = vset.pattern.permute.xlu0 7
      %1545 = vperm.xlu0 %1544, %v535
      %v1546 = vpop.permute.xlu0 %1545
      %1548 = vset.pattern.permute.xlu0 7
      %1549 = vperm.xlu0 %1548, %v537
      %v1550 = vpop.permute.xlu0 %1549
      %1552 = vset.pattern.permute.xlu0 7
      %1553 = vperm.xlu0 %1552, %v539
      %v1554 = vpop.permute.xlu0 %1553
      %1556 = vset.pattern.permute.xlu0 7
      %1557 = vperm.xlu0 %1556, %v541
      %v1558 = vpop.permute.xlu0 %1557
      %1560 = vset.pattern.permute.xlu0 7
      %1561 = vperm.xlu0 %1560, %v543
      %v1562 = vpop.permute.xlu0 %1561
      %1564 = vset.pattern.permute.xlu0 7
      %1565 = vperm.xlu0 %1564, %v545
      %v1566 = vpop.permute.xlu0 %1565
      %1568 = vset.pattern.permute.xlu0 7
      %1569 = vperm.xlu0 %1568, %v547
      %v1570 = vpop.permute.xlu0 %1569
      %1572 = vset.pattern.permute.xlu0 7
      %1573 = vperm.xlu0 %1572, %v549
      %v1574 = vpop.permute.xlu0 %1573
      %1576 = vset.pattern.permute.xlu0 7
      %1577 = vperm.xlu0 %1576, %v551
      %v1578 = vpop.permute.xlu0 %1577
      %1580 = vset.pattern.permute.xlu0 7
      %1581 = vperm.xlu0 %1580, %v553
      %v1582 = vpop.permute.xlu0 %1581
      %1584 = vset.pattern.permute.xlu0 7
      %1585 = vperm.xlu0 %1584, %v555
      %v1586 = vpop.permute.xlu0 %1585
      %1588 = vset.pattern.permute.xlu0 7
      %1589 = vperm.xlu0 %1588, %v557
      %v1590 = vpop.permute.xlu0 %1589
      %1592 = vset.pattern.permute.xlu0 7
      %1593 = vperm.xlu0 %1592, %v559
      %v1594 = vpop.permute.xlu0 %1593
      %1596 = vset.pattern.permute.xlu0 7
      %1597 = vperm.xlu0 %1596, %v561
      %v1598 = vpop.permute.xlu0 %1597
      %1600 = vset.pattern.permute.xlu0 7
      %1601 = vperm.xlu0 %1600, %v563
      %v1602 = vpop.permute.xlu0 %1601
      %1604 = vset.pattern.permute.xlu0 7
      %1605 = vperm.xlu0 %1604, %v565
      %v1606 = vpop.permute.xlu0 %1605
      %1608 = vset.pattern.permute.xlu0 7
      %1609 = vperm.xlu0 %1608, %v567
      %v1610 = vpop.permute.xlu0 %1609
      %1612 = vset.pattern.permute.xlu0 7
      %1613 = vperm.xlu0 %1612, %v569
      %v1614 = vpop.permute.xlu0 %1613
      %1616 = vset.pattern.permute.xlu0 7
      %1617 = vperm.xlu0 %1616, %v571
      %v1618 = vpop.permute.xlu0 %1617
      %1620 = vset.pattern.permute.xlu0 7
      %1621 = vperm.xlu0 %1620, %v573
      %v1622 = vpop.permute.xlu0 %1621
      %1624 = vset.pattern.permute.xlu0 7
      %1625 = vperm.xlu0 %1624, %v575
      %v1626 = vpop.permute.xlu0 %1625
      %1628 = vset.pattern.permute.xlu0 7
      %1629 = vperm.xlu0 %1628, %v577
      %v1630 = vpop.permute.xlu0 %1629
      %1632 = vset.pattern.permute.xlu0 7
      %1633 = vperm.xlu0 %1632, %v579
      %v1634 = vpop.permute.xlu0 %1633
      %1636 = vset.pattern.permute.xlu0 7
      %1637 = vperm.xlu0 %1636, %v581
      %v1638 = vpop.permute.xlu0 %1637
      %1640 = vset.pattern.permute.xlu0 7
      %1641 = vperm.xlu0 %1640, %v583
      %v1642 = vpop.permute.xlu0 %1641
      %1644 = vset.pattern.permute.xlu0 7
      %1645 = vperm.xlu0 %1644, %v585
      %v1646 = vpop.permute.xlu0 %1645
      %1648 = vset.pattern.permute.xlu0 7
      %1649 = vperm.xlu0 %1648, %v587
      %v1650 = vpop.permute.xlu0 %1649
      %1652 = vset.pattern.permute.xlu0 7
      %1653 = vperm.xlu0 %1652, %v589
      %v1654 = vpop.permute.xlu0 %1653
      %1656 = vset.pattern.permute.xlu0 7
      %1657 = vperm.xlu0 %1656, %v591
      %v1658 = vpop.permute.xlu0 %1657
      %1660 = vset.pattern.permute.xlu0 7
      %1661 = vperm.xlu0 %1660, %v593
      %v1662 = vpop.permute.xlu0 %1661
      %1664 = vset.pattern.permute.xlu0 7
      %1665 = vperm.xlu0 %1664, %v595
      %v1666 = vpop.permute.xlu0 %1665
      %1668 = vset.pattern.permute.xlu0 7
      %1669 = vperm.xlu0 %1668, %v597
      %v1670 = vpop.permute.xlu0 %1669
      %1672 = vset.pattern.permute.xlu0 7
      %1673 = vperm.xlu0 %1672, %v599
      %v1674 = vpop.permute.xlu0 %1673
      %1676 = vset.pattern.permute.xlu0 7
      %1677 = vperm.xlu0 %1676, %v601
      %v1678 = vpop.permute.xlu0 %1677
      %1680 = vset.pattern.permute.xlu0 7
      %1681 = vperm.xlu0 %1680, %v603
      %v1682 = vpop.permute.xlu0 %1681
      %v1684 = vmul.f32 %v1470, %v226
      %v1685 = vmul.f32 %v1474, %v227
      %v1686 = vmul.f32 %v1478, %v228
      %v1687 = vmul.f32 %v1482, %v229
      %v1688 = vmul.f32 %v1486, %v230
      %v1689 = vmul.f32 %v1490, %v231
      %v1690 = vmul.f32 %v1494, %v232
      %v1691 = vmul.f32 %v1498, %v233
      %v1692 = vmul.f32 %v1502, %v234
      %v1693 = vmul.f32 %v1506, %v235
      %v1694 = vmul.f32 %v1510, %v236
      %v1695 = vmul.f32 %v1514, %v237
      %v1696 = vmul.f32 %v1518, %v238
      %v1697 = vmul.f32 %v1522, %v239
      %v1698 = vmul.f32 %v1526, %v240
      %v1699 = vmul.f32 %v1530, %v241
      %v1700 = vmul.f32 %v1534, %v242
      %v1701 = vmul.f32 %v1538, %v243
      %v1702 = vmul.f32 %v1542, %v244
      %v1703 = vmul.f32 %v1546, %v245
      %v1704 = vmul.f32 %v1550, %v246
      %v1705 = vmul.f32 %v1554, %v247
      %v1706 = vmul.f32 %v1558, %v248
      %v1707 = vmul.f32 %v1562, %v249
      %v1708 = vmul.f32 %v1566, %v250
      %v1709 = vmul.f32 %v1570, %v251
      %v1710 = vmul.f32 %v1574, %v252
      %v1711 = vmul.f32 %v1578, %v253
      %v1712 = vmul.f32 %v1582, %v254
      %v1713 = vmul.f32 %v1586, %v255
      %v1714 = vmul.f32 %v1590, %v256
      %v1715 = vmul.f32 %v1594, %v257
      %v1716 = vmul.f32 %v1598, %v258
      %v1717 = vmul.f32 %v1602, %v259
      %v1718 = vmul.f32 %v1606, %v260
      %v1719 = vmul.f32 %v1610, %v261
      %v1720 = vmul.f32 %v1614, %v262
      %v1721 = vmul.f32 %v1618, %v263
      %v1722 = vmul.f32 %v1622, %v264
      %v1723 = vmul.f32 %v1626, %v265
      %v1724 = vmul.f32 %v1630, %v266
      %v1725 = vmul.f32 %v1634, %v267
      %v1726 = vmul.f32 %v1638, %v268
      %v1727 = vmul.f32 %v1642, %v269
      %v1728 = vmul.f32 %v1646, %v270
      %v1729 = vmul.f32 %v1650, %v271
      %v1730 = vmul.f32 %v1654, %v272
      %v1731 = vmul.f32 %v1658, %v273
      %v1732 = vmul.f32 %v1662, %v274
      %v1733 = vmul.f32 %v1666, %v275
      %v1734 = vmul.f32 %v1670, %v276
      %v1735 = vmul.f32 %v1674, %v277
      %v1736 = vmul.f32 %v1678, %v278
      %v1737 = vmul.f32 %v1682, %v279
      %1738 = vset.pattern.permute.xlu0 12
      %1739 = vperm.xlu0 %1738, %v497
      %v1740 = vpop.permute.xlu0 %1739
      %1742 = vset.pattern.permute.xlu0 12
      %1743 = vperm.xlu0 %1742, %v499
      %v1744 = vpop.permute.xlu0 %1743
      %1746 = vset.pattern.permute.xlu0 12
      %1747 = vperm.xlu0 %1746, %v501
      %v1748 = vpop.permute.xlu0 %1747
      %1750 = vset.pattern.permute.xlu0 12
      %1751 = vperm.xlu0 %1750, %v503
      %v1752 = vpop.permute.xlu0 %1751
      %1754 = vset.pattern.permute.xlu0 12
      %1755 = vperm.xlu0 %1754, %v505
      %v1756 = vpop.permute.xlu0 %1755
      %1758 = vset.pattern.permute.xlu0 12
      %1759 = vperm.xlu0 %1758, %v507
      %v1760 = vpop.permute.xlu0 %1759
      %1762 = vset.pattern.permute.xlu0 12
      %1763 = vperm.xlu0 %1762, %v509
      %v1764 = vpop.permute.xlu0 %1763
      %1766 = vset.pattern.permute.xlu0 12
      %1767 = vperm.xlu0 %1766, %v511
      %v1768 = vpop.permute.xlu0 %1767
      %1770 = vset.pattern.permute.xlu0 12
      %1771 = vperm.xlu0 %1770, %v513
      %v1772 = vpop.permute.xlu0 %1771
      %1774 = vset.pattern.permute.xlu0 12
      %1775 = vperm.xlu0 %1774, %v515
      %v1776 = vpop.permute.xlu0 %1775
      %1778 = vset.pattern.permute.xlu0 12
      %1779 = vperm.xlu0 %1778, %v517
      %v1780 = vpop.permute.xlu0 %1779
      %1782 = vset.pattern.permute.xlu0 12
      %1783 = vperm.xlu0 %1782, %v519
      %v1784 = vpop.permute.xlu0 %1783
      %1786 = vset.pattern.permute.xlu0 12
      %1787 = vperm.xlu0 %1786, %v521
      %v1788 = vpop.permute.xlu0 %1787
      %1790 = vset.pattern.permute.xlu0 12
      %1791 = vperm.xlu0 %1790, %v523
      %v1792 = vpop.permute.xlu0 %1791
      %1794 = vset.pattern.permute.xlu0 12
      %1795 = vperm.xlu0 %1794, %v525
      %v1796 = vpop.permute.xlu0 %1795
      %1798 = vset.pattern.permute.xlu0 12
      %1799 = vperm.xlu0 %1798, %v527
      %v1800 = vpop.permute.xlu0 %1799
      %1802 = vset.pattern.permute.xlu0 12
      %1803 = vperm.xlu0 %1802, %v529
      %v1804 = vpop.permute.xlu0 %1803
      %1806 = vset.pattern.permute.xlu0 12
      %1807 = vperm.xlu0 %1806, %v531
      %v1808 = vpop.permute.xlu0 %1807
      %1810 = vset.pattern.permute.xlu0 12
      %1811 = vperm.xlu0 %1810, %v533
      %v1812 = vpop.permute.xlu0 %1811
      %1814 = vset.pattern.permute.xlu0 12
      %1815 = vperm.xlu0 %1814, %v535
      %v1816 = vpop.permute.xlu0 %1815
      %1818 = vset.pattern.permute.xlu0 12
      %1819 = vperm.xlu0 %1818, %v537
      %v1820 = vpop.permute.xlu0 %1819
      %1822 = vset.pattern.permute.xlu0 12
      %1823 = vperm.xlu0 %1822, %v539
      %v1824 = vpop.permute.xlu0 %1823
      %1826 = vset.pattern.permute.xlu0 12
      %1827 = vperm.xlu0 %1826, %v541
      %v1828 = vpop.permute.xlu0 %1827
      %1830 = vset.pattern.permute.xlu0 12
      %1831 = vperm.xlu0 %1830, %v543
      %v1832 = vpop.permute.xlu0 %1831
      %1834 = vset.pattern.permute.xlu0 12
      %1835 = vperm.xlu0 %1834, %v545
      %v1836 = vpop.permute.xlu0 %1835
      %1838 = vset.pattern.permute.xlu0 12
      %1839 = vperm.xlu0 %1838, %v547
      %v1840 = vpop.permute.xlu0 %1839
      %1842 = vset.pattern.permute.xlu0 12
      %1843 = vperm.xlu0 %1842, %v549
      %v1844 = vpop.permute.xlu0 %1843
      %1846 = vset.pattern.permute.xlu0 12
      %1847 = vperm.xlu0 %1846, %v551
      %v1848 = vpop.permute.xlu0 %1847
      %1850 = vset.pattern.permute.xlu0 12
      %1851 = vperm.xlu0 %1850, %v553
      %v1852 = vpop.permute.xlu0 %1851
      %1854 = vset.pattern.permute.xlu0 12
      %1855 = vperm.xlu0 %1854, %v555
      %v1856 = vpop.permute.xlu0 %1855
      %1858 = vset.pattern.permute.xlu0 12
      %1859 = vperm.xlu0 %1858, %v557
      %v1860 = vpop.permute.xlu0 %1859
      %1862 = vset.pattern.permute.xlu0 12
      %1863 = vperm.xlu0 %1862, %v559
      %v1864 = vpop.permute.xlu0 %1863
      %1866 = vset.pattern.permute.xlu0 12
      %1867 = vperm.xlu0 %1866, %v561
      %v1868 = vpop.permute.xlu0 %1867
      %1870 = vset.pattern.permute.xlu0 12
      %1871 = vperm.xlu0 %1870, %v563
      %v1872 = vpop.permute.xlu0 %1871
      %1874 = vset.pattern.permute.xlu0 12
      %1875 = vperm.xlu0 %1874, %v565
      %v1876 = vpop.permute.xlu0 %1875
      %1878 = vset.pattern.permute.xlu0 12
      %1879 = vperm.xlu0 %1878, %v567
      %v1880 = vpop.permute.xlu0 %1879
      %1882 = vset.pattern.permute.xlu0 12
      %1883 = vperm.xlu0 %1882, %v569
      %v1884 = vpop.permute.xlu0 %1883
      %1886 = vset.pattern.permute.xlu0 12
      %1887 = vperm.xlu0 %1886, %v571
      %v1888 = vpop.permute.xlu0 %1887
      %1890 = vset.pattern.permute.xlu0 12
      %1891 = vperm.xlu0 %1890, %v573
      %v1892 = vpop.permute.xlu0 %1891
      %1894 = vset.pattern.permute.xlu0 12
      %1895 = vperm.xlu0 %1894, %v575
      %v1896 = vpop.permute.xlu0 %1895
      %1898 = vset.pattern.permute.xlu0 12
      %1899 = vperm.xlu0 %1898, %v577
      %v1900 = vpop.permute.xlu0 %1899
      %1902 = vset.pattern.permute.xlu0 12
      %1903 = vperm.xlu0 %1902, %v579
      %v1904 = vpop.permute.xlu0 %1903
      %1906 = vset.pattern.permute.xlu0 12
      %1907 = vperm.xlu0 %1906, %v581
      %v1908 = vpop.permute.xlu0 %1907
      %1910 = vset.pattern.permute.xlu0 12
      %1911 = vperm.xlu0 %1910, %v583
      %v1912 = vpop.permute.xlu0 %1911
      %1914 = vset.pattern.permute.xlu0 12
      %1915 = vperm.xlu0 %1914, %v585
      %v1916 = vpop.permute.xlu0 %1915
      %1918 = vset.pattern.permute.xlu0 12
      %1919 = vperm.xlu0 %1918, %v587
      %v1920 = vpop.permute.xlu0 %1919
      %1922 = vset.pattern.permute.xlu0 12
      %1923 = vperm.xlu0 %1922, %v589
      %v1924 = vpop.permute.xlu0 %1923
      %1926 = vset.pattern.permute.xlu0 12
      %1927 = vperm.xlu0 %1926, %v591
      %v1928 = vpop.permute.xlu0 %1927
      %1930 = vset.pattern.permute.xlu0 12
      %1931 = vperm.xlu0 %1930, %v593
      %v1932 = vpop.permute.xlu0 %1931
      %1934 = vset.pattern.permute.xlu0 12
      %1935 = vperm.xlu0 %1934, %v595
      %v1936 = vpop.permute.xlu0 %1935
      %1938 = vset.pattern.permute.xlu0 12
      %1939 = vperm.xlu0 %1938, %v597
      %v1940 = vpop.permute.xlu0 %1939
      %1942 = vset.pattern.permute.xlu0 12
      %1943 = vperm.xlu0 %1942, %v599
      %v1944 = vpop.permute.xlu0 %1943
      %1946 = vset.pattern.permute.xlu0 12
      %1947 = vperm.xlu0 %1946, %v601
      %v1948 = vpop.permute.xlu0 %1947
      %1950 = vset.pattern.permute.xlu0 12
      %1951 = vperm.xlu0 %1950, %v603
      %v1952 = vpop.permute.xlu0 %1951
      %v1954 = vmul.f32 %v1740, %v226
      %v1955 = vmul.f32 %v1744, %v227
      %v1956 = vmul.f32 %v1748, %v228
      %v1957 = vmul.f32 %v1752, %v229
      %v1958 = vmul.f32 %v1756, %v230
      %v1959 = vmul.f32 %v1760, %v231
      %v1960 = vmul.f32 %v1764, %v232
      %v1961 = vmul.f32 %v1768, %v233
      %v1962 = vmul.f32 %v1772, %v234
      %v1963 = vmul.f32 %v1776, %v235
      %v1964 = vmul.f32 %v1780, %v236
      %v1965 = vmul.f32 %v1784, %v237
      %v1966 = vmul.f32 %v1788, %v238
      %v1967 = vmul.f32 %v1792, %v239
      %v1968 = vmul.f32 %v1796, %v240
      %v1969 = vmul.f32 %v1800, %v241
      %v1970 = vmul.f32 %v1804, %v242
      %v1971 = vmul.f32 %v1808, %v243
      %v1972 = vmul.f32 %v1812, %v244
      %v1973 = vmul.f32 %v1816, %v245
      %v1974 = vmul.f32 %v1820, %v246
      %v1975 = vmul.f32 %v1824, %v247
      %v1976 = vmul.f32 %v1828, %v248
      %v1977 = vmul.f32 %v1832, %v249
      %v1978 = vmul.f32 %v1836, %v250
      %v1979 = vmul.f32 %v1840, %v251
      %v1980 = vmul.f32 %v1844, %v252
      %v1981 = vmul.f32 %v1848, %v253
      %v1982 = vmul.f32 %v1852, %v254
      %v1983 = vmul.f32 %v1856, %v255
      %v1984 = vmul.f32 %v1860, %v256
      %v1985 = vmul.f32 %v1864, %v257
      %v1986 = vmul.f32 %v1868, %v258
      %v1987 = vmul.f32 %v1872, %v259
      %v1988 = vmul.f32 %v1876, %v260
      %v1989 = vmul.f32 %v1880, %v261
      %v1990 = vmul.f32 %v1884, %v262
      %v1991 = vmul.f32 %v1888, %v263
      %v1992 = vmul.f32 %v1892, %v264
      %v1993 = vmul.f32 %v1896, %v265
      %v1994 = vmul.f32 %v1900, %v266
      %v1995 = vmul.f32 %v1904, %v267
      %v1996 = vmul.f32 %v1908, %v268
      %v1997 = vmul.f32 %v1912, %v269
      %v1998 = vmul.f32 %v1916, %v270
      %v1999 = vmul.f32 %v1920, %v271
      %v2000 = vmul.f32 %v1924, %v272
      %v2001 = vmul.f32 %v1928, %v273
      %v2002 = vmul.f32 %v1932, %v274
      %v2003 = vmul.f32 %v1936, %v275
      %v2004 = vmul.f32 %v1940, %v276
      %v2005 = vmul.f32 %v1944, %v277
      %v2006 = vmul.f32 %v1948, %v278
      %v2007 = vmul.f32 %v1952, %v279
      %2008 = vset.pattern.permute.xlu0 13
      %2009 = vperm.xlu0 %2008, %v497
      %v2010 = vpop.permute.xlu0 %2009
      %2012 = vset.pattern.permute.xlu0 13
      %2013 = vperm.xlu0 %2012, %v499
      %v2014 = vpop.permute.xlu0 %2013
      %2016 = vset.pattern.permute.xlu0 13
      %2017 = vperm.xlu0 %2016, %v501
      %v2018 = vpop.permute.xlu0 %2017
      %2020 = vset.pattern.permute.xlu0 13
      %2021 = vperm.xlu0 %2020, %v503
      %v2022 = vpop.permute.xlu0 %2021
      %2024 = vset.pattern.permute.xlu0 13
      %2025 = vperm.xlu0 %2024, %v505
      %v2026 = vpop.permute.xlu0 %2025
      %2028 = vset.pattern.permute.xlu0 13
      %2029 = vperm.xlu0 %2028, %v507
      %v2030 = vpop.permute.xlu0 %2029
      %2032 = vset.pattern.permute.xlu0 13
      %2033 = vperm.xlu0 %2032, %v509
      %v2034 = vpop.permute.xlu0 %2033
      %2036 = vset.pattern.permute.xlu0 13
      %2037 = vperm.xlu0 %2036, %v511
      %v2038 = vpop.permute.xlu0 %2037
      %2040 = vset.pattern.permute.xlu0 13
      %2041 = vperm.xlu0 %2040, %v513
      %v2042 = vpop.permute.xlu0 %2041
      %2044 = vset.pattern.permute.xlu0 13
      %2045 = vperm.xlu0 %2044, %v515
      %v2046 = vpop.permute.xlu0 %2045
      %2048 = vset.pattern.permute.xlu0 13
      %2049 = vperm.xlu0 %2048, %v517
      %v2050 = vpop.permute.xlu0 %2049
      %2052 = vset.pattern.permute.xlu0 13
      %2053 = vperm.xlu0 %2052, %v519
      %v2054 = vpop.permute.xlu0 %2053
      %2056 = vset.pattern.permute.xlu0 13
      %2057 = vperm.xlu0 %2056, %v521
      %v2058 = vpop.permute.xlu0 %2057
      %2060 = vset.pattern.permute.xlu0 13
      %2061 = vperm.xlu0 %2060, %v523
      %v2062 = vpop.permute.xlu0 %2061
      %2064 = vset.pattern.permute.xlu0 13
      %2065 = vperm.xlu0 %2064, %v525
      %v2066 = vpop.permute.xlu0 %2065
      %2068 = vset.pattern.permute.xlu0 13
      %2069 = vperm.xlu0 %2068, %v527
      %v2070 = vpop.permute.xlu0 %2069
      %2072 = vset.pattern.permute.xlu0 13
      %2073 = vperm.xlu0 %2072, %v529
      %v2074 = vpop.permute.xlu0 %2073
      %2076 = vset.pattern.permute.xlu0 13
      %2077 = vperm.xlu0 %2076, %v531
      %v2078 = vpop.permute.xlu0 %2077
      %2080 = vset.pattern.permute.xlu0 13
      %2081 = vperm.xlu0 %2080, %v533
      %v2082 = vpop.permute.xlu0 %2081
      %2084 = vset.pattern.permute.xlu0 13
      %2085 = vperm.xlu0 %2084, %v535
      %v2086 = vpop.permute.xlu0 %2085
      %2088 = vset.pattern.permute.xlu0 13
      %2089 = vperm.xlu0 %2088, %v537
      %v2090 = vpop.permute.xlu0 %2089
      %2092 = vset.pattern.permute.xlu0 13
      %2093 = vperm.xlu0 %2092, %v539
      %v2094 = vpop.permute.xlu0 %2093
      %2096 = vset.pattern.permute.xlu0 13
      %2097 = vperm.xlu0 %2096, %v541
      %v2098 = vpop.permute.xlu0 %2097
      %2100 = vset.pattern.permute.xlu0 13
      %2101 = vperm.xlu0 %2100, %v543
      %v2102 = vpop.permute.xlu0 %2101
      %2104 = vset.pattern.permute.xlu0 13
      %2105 = vperm.xlu0 %2104, %v545
      %v2106 = vpop.permute.xlu0 %2105
      %2108 = vset.pattern.permute.xlu0 13
      %2109 = vperm.xlu0 %2108, %v547
      %v2110 = vpop.permute.xlu0 %2109
      %2112 = vset.pattern.permute.xlu0 13
      %2113 = vperm.xlu0 %2112, %v549
      %v2114 = vpop.permute.xlu0 %2113
      %2116 = vset.pattern.permute.xlu0 13
      %2117 = vperm.xlu0 %2116, %v551
      %v2118 = vpop.permute.xlu0 %2117
      %2120 = vset.pattern.permute.xlu0 13
      %2121 = vperm.xlu0 %2120, %v553
      %v2122 = vpop.permute.xlu0 %2121
      %2124 = vset.pattern.permute.xlu0 13
      %2125 = vperm.xlu0 %2124, %v555
      %v2126 = vpop.permute.xlu0 %2125
      %2128 = vset.pattern.permute.xlu0 13
      %2129 = vperm.xlu0 %2128, %v557
      %v2130 = vpop.permute.xlu0 %2129
      %2132 = vset.pattern.permute.xlu0 13
      %2133 = vperm.xlu0 %2132, %v559
      %v2134 = vpop.permute.xlu0 %2133
      %2136 = vset.pattern.permute.xlu0 13
      %2137 = vperm.xlu0 %2136, %v561
      %v2138 = vpop.permute.xlu0 %2137
      %2140 = vset.pattern.permute.xlu0 13
      %2141 = vperm.xlu0 %2140, %v563
      %v2142 = vpop.permute.xlu0 %2141
      %2144 = vset.pattern.permute.xlu0 13
      %2145 = vperm.xlu0 %2144, %v565
      %v2146 = vpop.permute.xlu0 %2145
      %2148 = vset.pattern.permute.xlu0 13
      %2149 = vperm.xlu0 %2148, %v567
      %v2150 = vpop.permute.xlu0 %2149
      %2152 = vset.pattern.permute.xlu0 13
      %2153 = vperm.xlu0 %2152, %v569
      %v2154 = vpop.permute.xlu0 %2153
      %2156 = vset.pattern.permute.xlu0 13
      %2157 = vperm.xlu0 %2156, %v571
      %v2158 = vpop.permute.xlu0 %2157
      %2160 = vset.pattern.permute.xlu0 13
      %2161 = vperm.xlu0 %2160, %v573
      %v2162 = vpop.permute.xlu0 %2161
      %2164 = vset.pattern.permute.xlu0 13
      %2165 = vperm.xlu0 %2164, %v575
      %v2166 = vpop.permute.xlu0 %2165
      %2168 = vset.pattern.permute.xlu0 13
      %2169 = vperm.xlu0 %2168, %v577
      %v2170 = vpop.permute.xlu0 %2169
      %2172 = vset.pattern.permute.xlu0 13
      %2173 = vperm.xlu0 %2172, %v579
      %v2174 = vpop.permute.xlu0 %2173
      %2176 = vset.pattern.permute.xlu0 13
      %2177 = vperm.xlu0 %2176, %v581
      %v2178 = vpop.permute.xlu0 %2177
      %2180 = vset.pattern.permute.xlu0 13
      %2181 = vperm.xlu0 %2180, %v583
      %v2182 = vpop.permute.xlu0 %2181
      %2184 = vset.pattern.permute.xlu0 13
      %2185 = vperm.xlu0 %2184, %v585
      %v2186 = vpop.permute.xlu0 %2185
      %2188 = vset.pattern.permute.xlu0 13
      %2189 = vperm.xlu0 %2188, %v587
      %v2190 = vpop.permute.xlu0 %2189
      %2192 = vset.pattern.permute.xlu0 13
      %2193 = vperm.xlu0 %2192, %v589
      %v2194 = vpop.permute.xlu0 %2193
      %2196 = vset.pattern.permute.xlu0 13
      %2197 = vperm.xlu0 %2196, %v591
      %v2198 = vpop.permute.xlu0 %2197
      %2200 = vset.pattern.permute.xlu0 13
      %2201 = vperm.xlu0 %2200, %v593
      %v2202 = vpop.permute.xlu0 %2201
      %2204 = vset.pattern.permute.xlu0 13
      %2205 = vperm.xlu0 %2204, %v595
      %v2206 = vpop.permute.xlu0 %2205
      %2208 = vset.pattern.permute.xlu0 13
      %2209 = vperm.xlu0 %2208, %v597
      %v2210 = vpop.permute.xlu0 %2209
      %2212 = vset.pattern.permute.xlu0 13
      %2213 = vperm.xlu0 %2212, %v599
      %v2214 = vpop.permute.xlu0 %2213
      %2216 = vset.pattern.permute.xlu0 13
      %2217 = vperm.xlu0 %2216, %v601
      %v2218 = vpop.permute.xlu0 %2217
      %2220 = vset.pattern.permute.xlu0 13
      %2221 = vperm.xlu0 %2220, %v603
      %v2222 = vpop.permute.xlu0 %2221
      %v2224 = vmul.f32 %v2010, %v226
      %v2225 = vmul.f32 %v2014, %v227
      %v2226 = vmul.f32 %v2018, %v228
      %v2227 = vmul.f32 %v2022, %v229
      %v2228 = vmul.f32 %v2026, %v230
      %v2229 = vmul.f32 %v2030, %v231
      %v2230 = vmul.f32 %v2034, %v232
      %v2231 = vmul.f32 %v2038, %v233
      %v2232 = vmul.f32 %v2042, %v234
      %v2233 = vmul.f32 %v2046, %v235
      %v2234 = vmul.f32 %v2050, %v236
      %v2235 = vmul.f32 %v2054, %v237
      %v2236 = vmul.f32 %v2058, %v238
      %v2237 = vmul.f32 %v2062, %v239
      %v2238 = vmul.f32 %v2066, %v240
      %v2239 = vmul.f32 %v2070, %v241
      %v2240 = vmul.f32 %v2074, %v242
      %v2241 = vmul.f32 %v2078, %v243
      %v2242 = vmul.f32 %v2082, %v244
      %v2243 = vmul.f32 %v2086, %v245
      %v2244 = vmul.f32 %v2090, %v246
      %v2245 = vmul.f32 %v2094, %v247
      %v2246 = vmul.f32 %v2098, %v248
      %v2247 = vmul.f32 %v2102, %v249
      %v2248 = vmul.f32 %v2106, %v250
      %v2249 = vmul.f32 %v2110, %v251
      %v2250 = vmul.f32 %v2114, %v252
      %v2251 = vmul.f32 %v2118, %v253
      %v2252 = vmul.f32 %v2122, %v254
      %v2253 = vmul.f32 %v2126, %v255
      %v2254 = vmul.f32 %v2130, %v256
      %v2255 = vmul.f32 %v2134, %v257
      %v2256 = vmul.f32 %v2138, %v258
      %v2257 = vmul.f32 %v2142, %v259
      %v2258 = vmul.f32 %v2146, %v260
      %v2259 = vmul.f32 %v2150, %v261
      %v2260 = vmul.f32 %v2154, %v262
      %v2261 = vmul.f32 %v2158, %v263
      %v2262 = vmul.f32 %v2162, %v264
      %v2263 = vmul.f32 %v2166, %v265
      %v2264 = vmul.f32 %v2170, %v266
      %v2265 = vmul.f32 %v2174, %v267
      %v2266 = vmul.f32 %v2178, %v268
      %v2267 = vmul.f32 %v2182, %v269
      %v2268 = vmul.f32 %v2186, %v270
      %v2269 = vmul.f32 %v2190, %v271
      %v2270 = vmul.f32 %v2194, %v272
      %v2271 = vmul.f32 %v2198, %v273
      %v2272 = vmul.f32 %v2202, %v274
      %v2273 = vmul.f32 %v2206, %v275
      %v2274 = vmul.f32 %v2210, %v276
      %v2275 = vmul.f32 %v2214, %v277
      %v2276 = vmul.f32 %v2218, %v278
      %v2277 = vmul.f32 %v2222, %v279
      %2278 = vset.pattern.permute.xlu0 14
      %2279 = vperm.xlu0 %2278, %v497
      %v2280 = vpop.permute.xlu0 %2279
      %2282 = vset.pattern.permute.xlu0 14
      %2283 = vperm.xlu0 %2282, %v499
      %v2284 = vpop.permute.xlu0 %2283
      %2286 = vset.pattern.permute.xlu0 14
      %2287 = vperm.xlu0 %2286, %v501
      %v2288 = vpop.permute.xlu0 %2287
      %2290 = vset.pattern.permute.xlu0 14
      %2291 = vperm.xlu0 %2290, %v503
      %v2292 = vpop.permute.xlu0 %2291
      %2294 = vset.pattern.permute.xlu0 14
      %2295 = vperm.xlu0 %2294, %v505
      %v2296 = vpop.permute.xlu0 %2295
      %2298 = vset.pattern.permute.xlu0 14
      %2299 = vperm.xlu0 %2298, %v507
      %v2300 = vpop.permute.xlu0 %2299
      %2302 = vset.pattern.permute.xlu0 14
      %2303 = vperm.xlu0 %2302, %v509
      %v2304 = vpop.permute.xlu0 %2303
      %2306 = vset.pattern.permute.xlu0 14
      %2307 = vperm.xlu0 %2306, %v511
      %v2308 = vpop.permute.xlu0 %2307
      %2310 = vset.pattern.permute.xlu0 14
      %2311 = vperm.xlu0 %2310, %v513
      %v2312 = vpop.permute.xlu0 %2311
      %2314 = vset.pattern.permute.xlu0 14
      %2315 = vperm.xlu0 %2314, %v515
      %v2316 = vpop.permute.xlu0 %2315
      %2318 = vset.pattern.permute.xlu0 14
      %2319 = vperm.xlu0 %2318, %v517
      %v2320 = vpop.permute.xlu0 %2319
      %2322 = vset.pattern.permute.xlu0 14
      %2323 = vperm.xlu0 %2322, %v519
      %v2324 = vpop.permute.xlu0 %2323
      %2326 = vset.pattern.permute.xlu0 14
      %2327 = vperm.xlu0 %2326, %v521
      %v2328 = vpop.permute.xlu0 %2327
      %2330 = vset.pattern.permute.xlu0 14
      %2331 = vperm.xlu0 %2330, %v523
      %v2332 = vpop.permute.xlu0 %2331
      %2334 = vset.pattern.permute.xlu0 14
      %2335 = vperm.xlu0 %2334, %v525
      %v2336 = vpop.permute.xlu0 %2335
      %2338 = vset.pattern.permute.xlu0 14
      %2339 = vperm.xlu0 %2338, %v527
      %v2340 = vpop.permute.xlu0 %2339
      %2342 = vset.pattern.permute.xlu0 14
      %2343 = vperm.xlu0 %2342, %v529
      %v2344 = vpop.permute.xlu0 %2343
      %2346 = vset.pattern.permute.xlu0 14
      %2347 = vperm.xlu0 %2346, %v531
      %v2348 = vpop.permute.xlu0 %2347
      %2350 = vset.pattern.permute.xlu0 14
      %2351 = vperm.xlu0 %2350, %v533
      %v2352 = vpop.permute.xlu0 %2351
      %2354 = vset.pattern.permute.xlu0 14
      %2355 = vperm.xlu0 %2354, %v535
      %v2356 = vpop.permute.xlu0 %2355
      %2358 = vset.pattern.permute.xlu0 14
      %2359 = vperm.xlu0 %2358, %v537
      %v2360 = vpop.permute.xlu0 %2359
      %2362 = vset.pattern.permute.xlu0 14
      %2363 = vperm.xlu0 %2362, %v539
      %v2364 = vpop.permute.xlu0 %2363
      %2366 = vset.pattern.permute.xlu0 14
      %2367 = vperm.xlu0 %2366, %v541
      %v2368 = vpop.permute.xlu0 %2367
      %2370 = vset.pattern.permute.xlu0 14
      %2371 = vperm.xlu0 %2370, %v543
      %v2372 = vpop.permute.xlu0 %2371
      %2374 = vset.pattern.permute.xlu0 14
      %2375 = vperm.xlu0 %2374, %v545
      %v2376 = vpop.permute.xlu0 %2375
      %2378 = vset.pattern.permute.xlu0 14
      %2379 = vperm.xlu0 %2378, %v547
      %v2380 = vpop.permute.xlu0 %2379
      %2382 = vset.pattern.permute.xlu0 14
      %2383 = vperm.xlu0 %2382, %v549
      %v2384 = vpop.permute.xlu0 %2383
      %2386 = vset.pattern.permute.xlu0 14
      %2387 = vperm.xlu0 %2386, %v551
      %v2388 = vpop.permute.xlu0 %2387
      %2390 = vset.pattern.permute.xlu0 14
      %2391 = vperm.xlu0 %2390, %v553
      %v2392 = vpop.permute.xlu0 %2391
      %2394 = vset.pattern.permute.xlu0 14
      %2395 = vperm.xlu0 %2394, %v555
      %v2396 = vpop.permute.xlu0 %2395
      %2398 = vset.pattern.permute.xlu0 14
      %2399 = vperm.xlu0 %2398, %v557
      %v2400 = vpop.permute.xlu0 %2399
      %2402 = vset.pattern.permute.xlu0 14
      %2403 = vperm.xlu0 %2402, %v559
      %v2404 = vpop.permute.xlu0 %2403
      %2406 = vset.pattern.permute.xlu0 14
      %2407 = vperm.xlu0 %2406, %v561
      %v2408 = vpop.permute.xlu0 %2407
      %2410 = vset.pattern.permute.xlu0 14
      %2411 = vperm.xlu0 %2410, %v563
      %v2412 = vpop.permute.xlu0 %2411
      %2414 = vset.pattern.permute.xlu0 14
      %2415 = vperm.xlu0 %2414, %v565
      %v2416 = vpop.permute.xlu0 %2415
      %2418 = vset.pattern.permute.xlu0 14
      %2419 = vperm.xlu0 %2418, %v567
      %v2420 = vpop.permute.xlu0 %2419
      %2422 = vset.pattern.permute.xlu0 14
      %2423 = vperm.xlu0 %2422, %v569
      %v2424 = vpop.permute.xlu0 %2423
      %2426 = vset.pattern.permute.xlu0 14
      %2427 = vperm.xlu0 %2426, %v571
      %v2428 = vpop.permute.xlu0 %2427
      %2430 = vset.pattern.permute.xlu0 14
      %2431 = vperm.xlu0 %2430, %v573
      %v2432 = vpop.permute.xlu0 %2431
      %2434 = vset.pattern.permute.xlu0 14
      %2435 = vperm.xlu0 %2434, %v575
      %v2436 = vpop.permute.xlu0 %2435
      %2438 = vset.pattern.permute.xlu0 14
      %2439 = vperm.xlu0 %2438, %v577
      %v2440 = vpop.permute.xlu0 %2439
      %2442 = vset.pattern.permute.xlu0 14
      %2443 = vperm.xlu0 %2442, %v579
      %v2444 = vpop.permute.xlu0 %2443
      %2446 = vset.pattern.permute.xlu0 14
      %2447 = vperm.xlu0 %2446, %v581
      %v2448 = vpop.permute.xlu0 %2447
      %2450 = vset.pattern.permute.xlu0 14
      %2451 = vperm.xlu0 %2450, %v583
      %v2452 = vpop.permute.xlu0 %2451
      %2454 = vset.pattern.permute.xlu0 14
      %2455 = vperm.xlu0 %2454, %v585
      %v2456 = vpop.permute.xlu0 %2455
      %2458 = vset.pattern.permute.xlu0 14
      %2459 = vperm.xlu0 %2458, %v587
      %v2460 = vpop.permute.xlu0 %2459
      %2462 = vset.pattern.permute.xlu0 14
      %2463 = vperm.xlu0 %2462, %v589
      %v2464 = vpop.permute.xlu0 %2463
      %2466 = vset.pattern.permute.xlu0 14
      %2467 = vperm.xlu0 %2466, %v591
      %v2468 = vpop.permute.xlu0 %2467
      %2470 = vset.pattern.permute.xlu0 14
      %2471 = vperm.xlu0 %2470, %v593
      %v2472 = vpop.permute.xlu0 %2471
      %2474 = vset.pattern.permute.xlu0 14
      %2475 = vperm.xlu0 %2474, %v595
      %v2476 = vpop.permute.xlu0 %2475
      %2478 = vset.pattern.permute.xlu0 14
      %2479 = vperm.xlu0 %2478, %v597
      %v2480 = vpop.permute.xlu0 %2479
      %2482 = vset.pattern.permute.xlu0 14
      %2483 = vperm.xlu0 %2482, %v599
      %v2484 = vpop.permute.xlu0 %2483
      %2486 = vset.pattern.permute.xlu0 14
      %2487 = vperm.xlu0 %2486, %v601
      %v2488 = vpop.permute.xlu0 %2487
      %2490 = vset.pattern.permute.xlu0 14
      %2491 = vperm.xlu0 %2490, %v603
      %v2492 = vpop.permute.xlu0 %2491
      %v2494 = vmul.f32 %v2280, %v226
      %v2495 = vmul.f32 %v2284, %v227
      %v2496 = vmul.f32 %v2288, %v228
      %v2497 = vmul.f32 %v2292, %v229
      %v2498 = vmul.f32 %v2296, %v230
      %v2499 = vmul.f32 %v2300, %v231
      %v2500 = vmul.f32 %v2304, %v232
      %v2501 = vmul.f32 %v2308, %v233
      %v2502 = vmul.f32 %v2312, %v234
      %v2503 = vmul.f32 %v2316, %v235
      %v2504 = vmul.f32 %v2320, %v236
      %v2505 = vmul.f32 %v2324, %v237
      %v2506 = vmul.f32 %v2328, %v238
      %v2507 = vmul.f32 %v2332, %v239
      %v2508 = vmul.f32 %v2336, %v240
      %v2509 = vmul.f32 %v2340, %v241
      %v2510 = vmul.f32 %v2344, %v242
      %v2511 = vmul.f32 %v2348, %v243
      %v2512 = vmul.f32 %v2352, %v244
      %v2513 = vmul.f32 %v2356, %v245
      %v2514 = vmul.f32 %v2360, %v246
      %v2515 = vmul.f32 %v2364, %v247
      %v2516 = vmul.f32 %v2368, %v248
      %v2517 = vmul.f32 %v2372, %v249
      %v2518 = vmul.f32 %v2376, %v250
      %v2519 = vmul.f32 %v2380, %v251
      %v2520 = vmul.f32 %v2384, %v252
      %v2521 = vmul.f32 %v2388, %v253
      %v2522 = vmul.f32 %v2392, %v254
      %v2523 = vmul.f32 %v2396, %v255
      %v2524 = vmul.f32 %v2400, %v256
      %v2525 = vmul.f32 %v2404, %v257
      %v2526 = vmul.f32 %v2408, %v258
      %v2527 = vmul.f32 %v2412, %v259
      %v2528 = vmul.f32 %v2416, %v260
      %v2529 = vmul.f32 %v2420, %v261
      %v2530 = vmul.f32 %v2424, %v262
      %v2531 = vmul.f32 %v2428, %v263
      %v2532 = vmul.f32 %v2432, %v264
      %v2533 = vmul.f32 %v2436, %v265
      %v2534 = vmul.f32 %v2440, %v266
      %v2535 = vmul.f32 %v2444, %v267
      %v2536 = vmul.f32 %v2448, %v268
      %v2537 = vmul.f32 %v2452, %v269
      %v2538 = vmul.f32 %v2456, %v270
      %v2539 = vmul.f32 %v2460, %v271
      %v2540 = vmul.f32 %v2464, %v272
      %v2541 = vmul.f32 %v2468, %v273
      %v2542 = vmul.f32 %v2472, %v274
      %v2543 = vmul.f32 %v2476, %v275
      %v2544 = vmul.f32 %v2480, %v276
      %v2545 = vmul.f32 %v2484, %v277
      %v2546 = vmul.f32 %v2488, %v278
      %v2547 = vmul.f32 %v2492, %v279
      %2548 = vset.pattern.permute.xlu0 15
      %2549 = vperm.xlu0 %2548, %v497
      %v2550 = vpop.permute.xlu0 %2549
      %2552 = vset.pattern.permute.xlu0 15
      %2553 = vperm.xlu0 %2552, %v499
      %v2554 = vpop.permute.xlu0 %2553
      %2556 = vset.pattern.permute.xlu0 15
      %2557 = vperm.xlu0 %2556, %v501
      %v2558 = vpop.permute.xlu0 %2557
      %2560 = vset.pattern.permute.xlu0 15
      %2561 = vperm.xlu0 %2560, %v503
      %v2562 = vpop.permute.xlu0 %2561
      %2564 = vset.pattern.permute.xlu0 15
      %2565 = vperm.xlu0 %2564, %v505
      %v2566 = vpop.permute.xlu0 %2565
      %2568 = vset.pattern.permute.xlu0 15
      %2569 = vperm.xlu0 %2568, %v507
      %v2570 = vpop.permute.xlu0 %2569
      %2572 = vset.pattern.permute.xlu0 15
      %2573 = vperm.xlu0 %2572, %v509
      %v2574 = vpop.permute.xlu0 %2573
      %2576 = vset.pattern.permute.xlu0 15
      %2577 = vperm.xlu0 %2576, %v511
      %v2578 = vpop.permute.xlu0 %2577
      %2580 = vset.pattern.permute.xlu0 15
      %2581 = vperm.xlu0 %2580, %v513
      %v2582 = vpop.permute.xlu0 %2581
      %2584 = vset.pattern.permute.xlu0 15
      %2585 = vperm.xlu0 %2584, %v515
      %v2586 = vpop.permute.xlu0 %2585
      %2588 = vset.pattern.permute.xlu0 15
      %2589 = vperm.xlu0 %2588, %v517
      %v2590 = vpop.permute.xlu0 %2589
      %2592 = vset.pattern.permute.xlu0 15
      %2593 = vperm.xlu0 %2592, %v519
      %v2594 = vpop.permute.xlu0 %2593
      %2596 = vset.pattern.permute.xlu0 15
      %2597 = vperm.xlu0 %2596, %v521
      %v2598 = vpop.permute.xlu0 %2597
      %2600 = vset.pattern.permute.xlu0 15
      %2601 = vperm.xlu0 %2600, %v523
      %v2602 = vpop.permute.xlu0 %2601
      %2604 = vset.pattern.permute.xlu0 15
      %2605 = vperm.xlu0 %2604, %v525
      %v2606 = vpop.permute.xlu0 %2605
      %2608 = vset.pattern.permute.xlu0 15
      %2609 = vperm.xlu0 %2608, %v527
      %v2610 = vpop.permute.xlu0 %2609
      %2612 = vset.pattern.permute.xlu0 15
      %2613 = vperm.xlu0 %2612, %v529
      %v2614 = vpop.permute.xlu0 %2613
      %2616 = vset.pattern.permute.xlu0 15
      %2617 = vperm.xlu0 %2616, %v531
      %v2618 = vpop.permute.xlu0 %2617
      %2620 = vset.pattern.permute.xlu0 15
      %2621 = vperm.xlu0 %2620, %v533
      %v2622 = vpop.permute.xlu0 %2621
      %2624 = vset.pattern.permute.xlu0 15
      %2625 = vperm.xlu0 %2624, %v535
      %v2626 = vpop.permute.xlu0 %2625
      %2628 = vset.pattern.permute.xlu0 15
      %2629 = vperm.xlu0 %2628, %v537
      %v2630 = vpop.permute.xlu0 %2629
      %2632 = vset.pattern.permute.xlu0 15
      %2633 = vperm.xlu0 %2632, %v539
      %v2634 = vpop.permute.xlu0 %2633
      %2636 = vset.pattern.permute.xlu0 15
      %2637 = vperm.xlu0 %2636, %v541
      %v2638 = vpop.permute.xlu0 %2637
      %2640 = vset.pattern.permute.xlu0 15
      %2641 = vperm.xlu0 %2640, %v543
      %v2642 = vpop.permute.xlu0 %2641
      %2644 = vset.pattern.permute.xlu0 15
      %2645 = vperm.xlu0 %2644, %v545
      %v2646 = vpop.permute.xlu0 %2645
      %2648 = vset.pattern.permute.xlu0 15
      %2649 = vperm.xlu0 %2648, %v547
      %v2650 = vpop.permute.xlu0 %2649
      %2652 = vset.pattern.permute.xlu0 15
      %2653 = vperm.xlu0 %2652, %v549
      %v2654 = vpop.permute.xlu0 %2653
      %2656 = vset.pattern.permute.xlu0 15
      %2657 = vperm.xlu0 %2656, %v551
      %v2658 = vpop.permute.xlu0 %2657
      %2660 = vset.pattern.permute.xlu0 15
      %2661 = vperm.xlu0 %2660, %v553
      %v2662 = vpop.permute.xlu0 %2661
      %2664 = vset.pattern.permute.xlu0 15
      %2665 = vperm.xlu0 %2664, %v555
      %v2666 = vpop.permute.xlu0 %2665
      %2668 = vset.pattern.permute.xlu0 15
      %2669 = vperm.xlu0 %2668, %v557
      %v2670 = vpop.permute.xlu0 %2669
      %2672 = vset.pattern.permute.xlu0 15
      %2673 = vperm.xlu0 %2672, %v559
      %v2674 = vpop.permute.xlu0 %2673
      %2676 = vset.pattern.permute.xlu0 15
      %2677 = vperm.xlu0 %2676, %v561
      %v2678 = vpop.permute.xlu0 %2677
      %2680 = vset.pattern.permute.xlu0 15
      %2681 = vperm.xlu0 %2680, %v563
      %v2682 = vpop.permute.xlu0 %2681
      %2684 = vset.pattern.permute.xlu0 15
      %2685 = vperm.xlu0 %2684, %v565
      %v2686 = vpop.permute.xlu0 %2685
      %2688 = vset.pattern.permute.xlu0 15
      %2689 = vperm.xlu0 %2688, %v567
      %v2690 = vpop.permute.xlu0 %2689
      %2692 = vset.pattern.permute.xlu0 15
      %2693 = vperm.xlu0 %2692, %v569
      %v2694 = vpop.permute.xlu0 %2693
      %2696 = vset.pattern.permute.xlu0 15
      %2697 = vperm.xlu0 %2696, %v571
      %v2698 = vpop.permute.xlu0 %2697
      %2700 = vset.pattern.permute.xlu0 15
      %2701 = vperm.xlu0 %2700, %v573
      %v2702 = vpop.permute.xlu0 %2701
      %2704 = vset.pattern.permute.xlu0 15
      %2705 = vperm.xlu0 %2704, %v575
      %v2706 = vpop.permute.xlu0 %2705
      %2708 = vset.pattern.permute.xlu0 15
      %2709 = vperm.xlu0 %2708, %v577
      %v2710 = vpop.permute.xlu0 %2709
      %2712 = vset.pattern.permute.xlu0 15
      %2713 = vperm.xlu0 %2712, %v579
      %v2714 = vpop.permute.xlu0 %2713
      %2716 = vset.pattern.permute.xlu0 15
      %2717 = vperm.xlu0 %2716, %v581
      %v2718 = vpop.permute.xlu0 %2717
      %2720 = vset.pattern.permute.xlu0 15
      %2721 = vperm.xlu0 %2720, %v583
      %v2722 = vpop.permute.xlu0 %2721
      %2724 = vset.pattern.permute.xlu0 15
      %2725 = vperm.xlu0 %2724, %v585
      %v2726 = vpop.permute.xlu0 %2725
      %2728 = vset.pattern.permute.xlu0 15
      %2729 = vperm.xlu0 %2728, %v587
      %v2730 = vpop.permute.xlu0 %2729
      %2732 = vset.pattern.permute.xlu0 15
      %2733 = vperm.xlu0 %2732, %v589
      %v2734 = vpop.permute.xlu0 %2733
      %2736 = vset.pattern.permute.xlu0 15
      %2737 = vperm.xlu0 %2736, %v591
      %v2738 = vpop.permute.xlu0 %2737
      %2740 = vset.pattern.permute.xlu0 15
      %2741 = vperm.xlu0 %2740, %v593
      %v2742 = vpop.permute.xlu0 %2741
      %2744 = vset.pattern.permute.xlu0 15
      %2745 = vperm.xlu0 %2744, %v595
      %v2746 = vpop.permute.xlu0 %2745
      %2748 = vset.pattern.permute.xlu0 15
      %2749 = vperm.xlu0 %2748, %v597
      %v2750 = vpop.permute.xlu0 %2749
      %2752 = vset.pattern.permute.xlu0 15
      %2753 = vperm.xlu0 %2752, %v599
      %v2754 = vpop.permute.xlu0 %2753
      %2756 = vset.pattern.permute.xlu0 15
      %2757 = vperm.xlu0 %2756, %v601
      %v2758 = vpop.permute.xlu0 %2757
      %2760 = vset.pattern.permute.xlu0 15
      %2761 = vperm.xlu0 %2760, %v603
      %v2762 = vpop.permute.xlu0 %2761
      %v2764 = vmul.f32 %v2550, %v226
      %v2765 = vmul.f32 %v2554, %v227
      %v2766 = vmul.f32 %v2558, %v228
      %v2767 = vmul.f32 %v2562, %v229
      %v2768 = vmul.f32 %v2566, %v230
      %v2769 = vmul.f32 %v2570, %v231
      %v2770 = vmul.f32 %v2574, %v232
      %v2771 = vmul.f32 %v2578, %v233
      %v2772 = vmul.f32 %v2582, %v234
      %v2773 = vmul.f32 %v2586, %v235
      %v2774 = vmul.f32 %v2590, %v236
      %v2775 = vmul.f32 %v2594, %v237
      %v2776 = vmul.f32 %v2598, %v238
      %v2777 = vmul.f32 %v2602, %v239
      %v2778 = vmul.f32 %v2606, %v240
      %v2779 = vmul.f32 %v2610, %v241
      %v2780 = vmul.f32 %v2614, %v242
      %v2781 = vmul.f32 %v2618, %v243
      %v2782 = vmul.f32 %v2622, %v244
      %v2783 = vmul.f32 %v2626, %v245
      %v2784 = vmul.f32 %v2630, %v246
      %v2785 = vmul.f32 %v2634, %v247
      %v2786 = vmul.f32 %v2638, %v248
      %v2787 = vmul.f32 %v2642, %v249
      %v2788 = vmul.f32 %v2646, %v250
      %v2789 = vmul.f32 %v2650, %v251
      %v2790 = vmul.f32 %v2654, %v252
      %v2791 = vmul.f32 %v2658, %v253
      %v2792 = vmul.f32 %v2662, %v254
      %v2793 = vmul.f32 %v2666, %v255
      %v2794 = vmul.f32 %v2670, %v256
      %v2795 = vmul.f32 %v2674, %v257
      %v2796 = vmul.f32 %v2678, %v258
      %v2797 = vmul.f32 %v2682, %v259
      %v2798 = vmul.f32 %v2686, %v260
      %v2799 = vmul.f32 %v2690, %v261
      %v2800 = vmul.f32 %v2694, %v262
      %v2801 = vmul.f32 %v2698, %v263
      %v2802 = vmul.f32 %v2702, %v264
      %v2803 = vmul.f32 %v2706, %v265
      %v2804 = vmul.f32 %v2710, %v266
      %v2805 = vmul.f32 %v2714, %v267
      %v2806 = vmul.f32 %v2718, %v268
      %v2807 = vmul.f32 %v2722, %v269
      %v2808 = vmul.f32 %v2726, %v270
      %v2809 = vmul.f32 %v2730, %v271
      %v2810 = vmul.f32 %v2734, %v272
      %v2811 = vmul.f32 %v2738, %v273
      %v2812 = vmul.f32 %v2742, %v274
      %v2813 = vmul.f32 %v2746, %v275
      %v2814 = vmul.f32 %v2750, %v276
      %v2815 = vmul.f32 %v2754, %v277
      %v2816 = vmul.f32 %v2758, %v278
      %v2817 = vmul.f32 %v2762, %v279
      %2818 = vset.pattern.permute.xlu0 16
      %2819 = vperm.xlu0 %2818, %v497
      %v2820 = vpop.permute.xlu0 %2819
      %2822 = vset.pattern.permute.xlu0 16
      %2823 = vperm.xlu0 %2822, %v499
      %v2824 = vpop.permute.xlu0 %2823
      %2826 = vset.pattern.permute.xlu0 16
      %2827 = vperm.xlu0 %2826, %v501
      %v2828 = vpop.permute.xlu0 %2827
      %2830 = vset.pattern.permute.xlu0 16
      %2831 = vperm.xlu0 %2830, %v503
      %v2832 = vpop.permute.xlu0 %2831
      %2834 = vset.pattern.permute.xlu0 16
      %2835 = vperm.xlu0 %2834, %v505
      %v2836 = vpop.permute.xlu0 %2835
      %2838 = vset.pattern.permute.xlu0 16
      %2839 = vperm.xlu0 %2838, %v507
      %v2840 = vpop.permute.xlu0 %2839
      %2842 = vset.pattern.permute.xlu0 16
      %2843 = vperm.xlu0 %2842, %v509
      %v2844 = vpop.permute.xlu0 %2843
      %2846 = vset.pattern.permute.xlu0 16
      %2847 = vperm.xlu0 %2846, %v511
      %v2848 = vpop.permute.xlu0 %2847
      %2850 = vset.pattern.permute.xlu0 16
      %2851 = vperm.xlu0 %2850, %v513
      %v2852 = vpop.permute.xlu0 %2851
      %2854 = vset.pattern.permute.xlu0 16
      %2855 = vperm.xlu0 %2854, %v515
      %v2856 = vpop.permute.xlu0 %2855
      %2858 = vset.pattern.permute.xlu0 16
      %2859 = vperm.xlu0 %2858, %v517
      %v2860 = vpop.permute.xlu0 %2859
      %2862 = vset.pattern.permute.xlu0 16
      %2863 = vperm.xlu0 %2862, %v519
      %v2864 = vpop.permute.xlu0 %2863
      %2866 = vset.pattern.permute.xlu0 16
      %2867 = vperm.xlu0 %2866, %v521
      %v2868 = vpop.permute.xlu0 %2867
      %2870 = vset.pattern.permute.xlu0 16
      %2871 = vperm.xlu0 %2870, %v523
      %v2872 = vpop.permute.xlu0 %2871
      %2874 = vset.pattern.permute.xlu0 16
      %2875 = vperm.xlu0 %2874, %v525
      %v2876 = vpop.permute.xlu0 %2875
      %2878 = vset.pattern.permute.xlu0 16
      %2879 = vperm.xlu0 %2878, %v527
      %v2880 = vpop.permute.xlu0 %2879
      %2882 = vset.pattern.permute.xlu0 16
      %2883 = vperm.xlu0 %2882, %v529
      %v2884 = vpop.permute.xlu0 %2883
      %2886 = vset.pattern.permute.xlu0 16
      %2887 = vperm.xlu0 %2886, %v531
      %v2888 = vpop.permute.xlu0 %2887
      %2890 = vset.pattern.permute.xlu0 16
      %2891 = vperm.xlu0 %2890, %v533
      %v2892 = vpop.permute.xlu0 %2891
      %2894 = vset.pattern.permute.xlu0 16
      %2895 = vperm.xlu0 %2894, %v535
      %v2896 = vpop.permute.xlu0 %2895
      %2898 = vset.pattern.permute.xlu0 16
      %2899 = vperm.xlu0 %2898, %v537
      %v2900 = vpop.permute.xlu0 %2899
      %2902 = vset.pattern.permute.xlu0 16
      %2903 = vperm.xlu0 %2902, %v539
      %v2904 = vpop.permute.xlu0 %2903
      %2906 = vset.pattern.permute.xlu0 16
      %2907 = vperm.xlu0 %2906, %v541
      %v2908 = vpop.permute.xlu0 %2907
      %2910 = vset.pattern.permute.xlu0 16
      %2911 = vperm.xlu0 %2910, %v543
      %v2912 = vpop.permute.xlu0 %2911
      %2914 = vset.pattern.permute.xlu0 16
      %2915 = vperm.xlu0 %2914, %v545
      %v2916 = vpop.permute.xlu0 %2915
      %2918 = vset.pattern.permute.xlu0 16
      %2919 = vperm.xlu0 %2918, %v547
      %v2920 = vpop.permute.xlu0 %2919
      %2922 = vset.pattern.permute.xlu0 16
      %2923 = vperm.xlu0 %2922, %v549
      %v2924 = vpop.permute.xlu0 %2923
      %2926 = vset.pattern.permute.xlu0 16
      %2927 = vperm.xlu0 %2926, %v551
      %v2928 = vpop.permute.xlu0 %2927
      %2930 = vset.pattern.permute.xlu0 16
      %2931 = vperm.xlu0 %2930, %v553
      %v2932 = vpop.permute.xlu0 %2931
      %2934 = vset.pattern.permute.xlu0 16
      %2935 = vperm.xlu0 %2934, %v555
      %v2936 = vpop.permute.xlu0 %2935
      %2938 = vset.pattern.permute.xlu0 16
      %2939 = vperm.xlu0 %2938, %v557
      %v2940 = vpop.permute.xlu0 %2939
      %2942 = vset.pattern.permute.xlu0 16
      %2943 = vperm.xlu0 %2942, %v559
      %v2944 = vpop.permute.xlu0 %2943
      %2946 = vset.pattern.permute.xlu0 16
      %2947 = vperm.xlu0 %2946, %v561
      %v2948 = vpop.permute.xlu0 %2947
      %2950 = vset.pattern.permute.xlu0 16
      %2951 = vperm.xlu0 %2950, %v563
      %v2952 = vpop.permute.xlu0 %2951
      %2954 = vset.pattern.permute.xlu0 16
      %2955 = vperm.xlu0 %2954, %v565
      %v2956 = vpop.permute.xlu0 %2955
      %2958 = vset.pattern.permute.xlu0 16
      %2959 = vperm.xlu0 %2958, %v567
      %v2960 = vpop.permute.xlu0 %2959
      %2962 = vset.pattern.permute.xlu0 16
      %2963 = vperm.xlu0 %2962, %v569
      %v2964 = vpop.permute.xlu0 %2963
      %2966 = vset.pattern.permute.xlu0 16
      %2967 = vperm.xlu0 %2966, %v571
      %v2968 = vpop.permute.xlu0 %2967
      %2970 = vset.pattern.permute.xlu0 16
      %2971 = vperm.xlu0 %2970, %v573
      %v2972 = vpop.permute.xlu0 %2971
      %2974 = vset.pattern.permute.xlu0 16
      %2975 = vperm.xlu0 %2974, %v575
      %v2976 = vpop.permute.xlu0 %2975
      %2978 = vset.pattern.permute.xlu0 16
      %2979 = vperm.xlu0 %2978, %v577
      %v2980 = vpop.permute.xlu0 %2979
      %2982 = vset.pattern.permute.xlu0 16
      %2983 = vperm.xlu0 %2982, %v579
      %v2984 = vpop.permute.xlu0 %2983
      %2986 = vset.pattern.permute.xlu0 16
      %2987 = vperm.xlu0 %2986, %v581
      %v2988 = vpop.permute.xlu0 %2987
      %2990 = vset.pattern.permute.xlu0 16
      %2991 = vperm.xlu0 %2990, %v583
      %v2992 = vpop.permute.xlu0 %2991
      %2994 = vset.pattern.permute.xlu0 16
      %2995 = vperm.xlu0 %2994, %v585
      %v2996 = vpop.permute.xlu0 %2995
      %2998 = vset.pattern.permute.xlu0 16
      %2999 = vperm.xlu0 %2998, %v587
      %v3000 = vpop.permute.xlu0 %2999
      %3002 = vset.pattern.permute.xlu0 16
      %3003 = vperm.xlu0 %3002, %v589
      %v3004 = vpop.permute.xlu0 %3003
      %3006 = vset.pattern.permute.xlu0 16
      %3007 = vperm.xlu0 %3006, %v591
      %v3008 = vpop.permute.xlu0 %3007
      %3010 = vset.pattern.permute.xlu0 16
      %3011 = vperm.xlu0 %3010, %v593
      %v3012 = vpop.permute.xlu0 %3011
      %3014 = vset.pattern.permute.xlu0 16
      %3015 = vperm.xlu0 %3014, %v595
      %v3016 = vpop.permute.xlu0 %3015
      %3018 = vset.pattern.permute.xlu0 16
      %3019 = vperm.xlu0 %3018, %v597
      %v3020 = vpop.permute.xlu0 %3019
      %3022 = vset.pattern.permute.xlu0 16
      %3023 = vperm.xlu0 %3022, %v599
      %v3024 = vpop.permute.xlu0 %3023
      %3026 = vset.pattern.permute.xlu0 16
      %3027 = vperm.xlu0 %3026, %v601
      %v3028 = vpop.permute.xlu0 %3027
      %3030 = vset.pattern.permute.xlu0 16
      %3031 = vperm.xlu0 %3030, %v603
      %v3032 = vpop.permute.xlu0 %3031
      %v3034 = vmul.f32 %v2820, %v226
      %v3035 = vmul.f32 %v2824, %v227
      %v3036 = vmul.f32 %v2828, %v228
      %v3037 = vmul.f32 %v2832, %v229
      %v3038 = vmul.f32 %v2836, %v230
      %v3039 = vmul.f32 %v2840, %v231
      %v3040 = vmul.f32 %v2844, %v232
      %v3041 = vmul.f32 %v2848, %v233
      %v3042 = vmul.f32 %v2852, %v234
      %v3043 = vmul.f32 %v2856, %v235
      %v3044 = vmul.f32 %v2860, %v236
      %v3045 = vmul.f32 %v2864, %v237
      %v3046 = vmul.f32 %v2868, %v238
      %v3047 = vmul.f32 %v2872, %v239
      %v3048 = vmul.f32 %v2876, %v240
      %v3049 = vmul.f32 %v2880, %v241
      %v3050 = vmul.f32 %v2884, %v242
      %v3051 = vmul.f32 %v2888, %v243
      %v3052 = vmul.f32 %v2892, %v244
      %v3053 = vmul.f32 %v2896, %v245
      %v3054 = vmul.f32 %v2900, %v246
      %v3055 = vmul.f32 %v2904, %v247
      %v3056 = vmul.f32 %v2908, %v248
      %v3057 = vmul.f32 %v2912, %v249
      %v3058 = vmul.f32 %v2916, %v250
      %v3059 = vmul.f32 %v2920, %v251
      %v3060 = vmul.f32 %v2924, %v252
      %v3061 = vmul.f32 %v2928, %v253
      %v3062 = vmul.f32 %v2932, %v254
      %v3063 = vmul.f32 %v2936, %v255
      %v3064 = vmul.f32 %v2940, %v256
      %v3065 = vmul.f32 %v2944, %v257
      %v3066 = vmul.f32 %v2948, %v258
      %v3067 = vmul.f32 %v2952, %v259
      %v3068 = vmul.f32 %v2956, %v260
      %v3069 = vmul.f32 %v2960, %v261
      %v3070 = vmul.f32 %v2964, %v262
      %v3071 = vmul.f32 %v2968, %v263
      %v3072 = vmul.f32 %v2972, %v264
      %v3073 = vmul.f32 %v2976, %v265
      %v3074 = vmul.f32 %v2980, %v266
      %v3075 = vmul.f32 %v2984, %v267
      %v3076 = vmul.f32 %v2988, %v268
      %v3077 = vmul.f32 %v2992, %v269
      %v3078 = vmul.f32 %v2996, %v270
      %v3079 = vmul.f32 %v3000, %v271
      %v3080 = vmul.f32 %v3004, %v272
      %v3081 = vmul.f32 %v3008, %v273
      %v3082 = vmul.f32 %v3012, %v274
      %v3083 = vmul.f32 %v3016, %v275
      %v3084 = vmul.f32 %v3020, %v276
      %v3085 = vmul.f32 %v3024, %v277
      %v3086 = vmul.f32 %v3028, %v278
      %v3087 = vmul.f32 %v3032, %v279
      %3088 = vset.pattern.permute.xlu0 17
      %3089 = vperm.xlu0 %3088, %v497
      %v3090 = vpop.permute.xlu0 %3089
      %3092 = vset.pattern.permute.xlu0 17
      %3093 = vperm.xlu0 %3092, %v499
      %v3094 = vpop.permute.xlu0 %3093
      %3096 = vset.pattern.permute.xlu0 17
      %3097 = vperm.xlu0 %3096, %v501
      %v3098 = vpop.permute.xlu0 %3097
      %3100 = vset.pattern.permute.xlu0 17
      %3101 = vperm.xlu0 %3100, %v503
      %v3102 = vpop.permute.xlu0 %3101
      %3104 = vset.pattern.permute.xlu0 17
      %3105 = vperm.xlu0 %3104, %v505
      %v3106 = vpop.permute.xlu0 %3105
      %3108 = vset.pattern.permute.xlu0 17
      %3109 = vperm.xlu0 %3108, %v507
      %v3110 = vpop.permute.xlu0 %3109
      %3112 = vset.pattern.permute.xlu0 17
      %3113 = vperm.xlu0 %3112, %v509
      %v3114 = vpop.permute.xlu0 %3113
      %3116 = vset.pattern.permute.xlu0 17
      %3117 = vperm.xlu0 %3116, %v511
      %v3118 = vpop.permute.xlu0 %3117
      %3120 = vset.pattern.permute.xlu0 17
      %3121 = vperm.xlu0 %3120, %v513
      %v3122 = vpop.permute.xlu0 %3121
      %3124 = vset.pattern.permute.xlu0 17
      %3125 = vperm.xlu0 %3124, %v515
      %v3126 = vpop.permute.xlu0 %3125
      %3128 = vset.pattern.permute.xlu0 17
      %3129 = vperm.xlu0 %3128, %v517
      %v3130 = vpop.permute.xlu0 %3129
      %3132 = vset.pattern.permute.xlu0 17
      %3133 = vperm.xlu0 %3132, %v519
      %v3134 = vpop.permute.xlu0 %3133
      %3136 = vset.pattern.permute.xlu0 17
      %3137 = vperm.xlu0 %3136, %v521
      %v3138 = vpop.permute.xlu0 %3137
      %3140 = vset.pattern.permute.xlu0 17
      %3141 = vperm.xlu0 %3140, %v523
      %v3142 = vpop.permute.xlu0 %3141
      %3144 = vset.pattern.permute.xlu0 17
      %3145 = vperm.xlu0 %3144, %v525
      %v3146 = vpop.permute.xlu0 %3145
      %3148 = vset.pattern.permute.xlu0 17
      %3149 = vperm.xlu0 %3148, %v527
      %v3150 = vpop.permute.xlu0 %3149
      %3152 = vset.pattern.permute.xlu0 17
      %3153 = vperm.xlu0 %3152, %v529
      %v3154 = vpop.permute.xlu0 %3153
      %3156 = vset.pattern.permute.xlu0 17
      %3157 = vperm.xlu0 %3156, %v531
      %v3158 = vpop.permute.xlu0 %3157
      %3160 = vset.pattern.permute.xlu0 17
      %3161 = vperm.xlu0 %3160, %v533
      %v3162 = vpop.permute.xlu0 %3161
      %3164 = vset.pattern.permute.xlu0 17
      %3165 = vperm.xlu0 %3164, %v535
      %v3166 = vpop.permute.xlu0 %3165
      %3168 = vset.pattern.permute.xlu0 17
      %3169 = vperm.xlu0 %3168, %v537
      %v3170 = vpop.permute.xlu0 %3169
      %3172 = vset.pattern.permute.xlu0 17
      %3173 = vperm.xlu0 %3172, %v539
      %v3174 = vpop.permute.xlu0 %3173
      %3176 = vset.pattern.permute.xlu0 17
      %3177 = vperm.xlu0 %3176, %v541
      %v3178 = vpop.permute.xlu0 %3177
      %3180 = vset.pattern.permute.xlu0 17
      %3181 = vperm.xlu0 %3180, %v543
      %v3182 = vpop.permute.xlu0 %3181
      %3184 = vset.pattern.permute.xlu0 17
      %3185 = vperm.xlu0 %3184, %v545
      %v3186 = vpop.permute.xlu0 %3185
      %3188 = vset.pattern.permute.xlu0 17
      %3189 = vperm.xlu0 %3188, %v547
      %v3190 = vpop.permute.xlu0 %3189
      %3192 = vset.pattern.permute.xlu0 17
      %3193 = vperm.xlu0 %3192, %v549
      %v3194 = vpop.permute.xlu0 %3193
      %3196 = vset.pattern.permute.xlu0 17
      %3197 = vperm.xlu0 %3196, %v551
      %v3198 = vpop.permute.xlu0 %3197
      %3200 = vset.pattern.permute.xlu0 17
      %3201 = vperm.xlu0 %3200, %v553
      %v3202 = vpop.permute.xlu0 %3201
      %3204 = vset.pattern.permute.xlu0 17
      %3205 = vperm.xlu0 %3204, %v555
      %v3206 = vpop.permute.xlu0 %3205
      %3208 = vset.pattern.permute.xlu0 17
      %3209 = vperm.xlu0 %3208, %v557
      %v3210 = vpop.permute.xlu0 %3209
      %3212 = vset.pattern.permute.xlu0 17
      %3213 = vperm.xlu0 %3212, %v559
      %v3214 = vpop.permute.xlu0 %3213
      %3216 = vset.pattern.permute.xlu0 17
      %3217 = vperm.xlu0 %3216, %v561
      %v3218 = vpop.permute.xlu0 %3217
      %3220 = vset.pattern.permute.xlu0 17
      %3221 = vperm.xlu0 %3220, %v563
      %v3222 = vpop.permute.xlu0 %3221
      %3224 = vset.pattern.permute.xlu0 17
      %3225 = vperm.xlu0 %3224, %v565
      %v3226 = vpop.permute.xlu0 %3225
      %3228 = vset.pattern.permute.xlu0 17
      %3229 = vperm.xlu0 %3228, %v567
      %v3230 = vpop.permute.xlu0 %3229
      %3232 = vset.pattern.permute.xlu0 17
      %3233 = vperm.xlu0 %3232, %v569
      %v3234 = vpop.permute.xlu0 %3233
      %3236 = vset.pattern.permute.xlu0 17
      %3237 = vperm.xlu0 %3236, %v571
      %v3238 = vpop.permute.xlu0 %3237
      %3240 = vset.pattern.permute.xlu0 17
      %3241 = vperm.xlu0 %3240, %v573
      %v3242 = vpop.permute.xlu0 %3241
      %3244 = vset.pattern.permute.xlu0 17
      %3245 = vperm.xlu0 %3244, %v575
      %v3246 = vpop.permute.xlu0 %3245
      %3248 = vset.pattern.permute.xlu0 17
      %3249 = vperm.xlu0 %3248, %v577
      %v3250 = vpop.permute.xlu0 %3249
      %3252 = vset.pattern.permute.xlu0 17
      %3253 = vperm.xlu0 %3252, %v579
      %v3254 = vpop.permute.xlu0 %3253
      %3256 = vset.pattern.permute.xlu0 17
      %3257 = vperm.xlu0 %3256, %v581
      %v3258 = vpop.permute.xlu0 %3257
      %3260 = vset.pattern.permute.xlu0 17
      %3261 = vperm.xlu0 %3260, %v583
      %v3262 = vpop.permute.xlu0 %3261
      %3264 = vset.pattern.permute.xlu0 17
      %3265 = vperm.xlu0 %3264, %v585
      %v3266 = vpop.permute.xlu0 %3265
      %3268 = vset.pattern.permute.xlu0 17
      %3269 = vperm.xlu0 %3268, %v587
      %v3270 = vpop.permute.xlu0 %3269
      %3272 = vset.pattern.permute.xlu0 17
      %3273 = vperm.xlu0 %3272, %v589
      %v3274 = vpop.permute.xlu0 %3273
      %3276 = vset.pattern.permute.xlu0 17
      %3277 = vperm.xlu0 %3276, %v591
      %v3278 = vpop.permute.xlu0 %3277
      %3280 = vset.pattern.permute.xlu0 17
      %3281 = vperm.xlu0 %3280, %v593
      %v3282 = vpop.permute.xlu0 %3281
      %3284 = vset.pattern.permute.xlu0 17
      %3285 = vperm.xlu0 %3284, %v595
      %v3286 = vpop.permute.xlu0 %3285
      %3288 = vset.pattern.permute.xlu0 17
      %3289 = vperm.xlu0 %3288, %v597
      %v3290 = vpop.permute.xlu0 %3289
      %3292 = vset.pattern.permute.xlu0 17
      %3293 = vperm.xlu0 %3292, %v599
      %v3294 = vpop.permute.xlu0 %3293
      %3296 = vset.pattern.permute.xlu0 17
      %3297 = vperm.xlu0 %3296, %v601
      %v3298 = vpop.permute.xlu0 %3297
      %3300 = vset.pattern.permute.xlu0 17
      %3301 = vperm.xlu0 %3300, %v603
      %v3302 = vpop.permute.xlu0 %3301
      %v3304 = vmul.f32 %v3090, %v226
      %v3305 = vmul.f32 %v3094, %v227
      %v3306 = vmul.f32 %v3098, %v228
      %v3307 = vmul.f32 %v3102, %v229
      %v3308 = vmul.f32 %v3106, %v230
      %v3309 = vmul.f32 %v3110, %v231
      %v3310 = vmul.f32 %v3114, %v232
      %v3311 = vmul.f32 %v3118, %v233
      %v3312 = vmul.f32 %v3122, %v234
      %v3313 = vmul.f32 %v3126, %v235
      %v3314 = vmul.f32 %v3130, %v236
      %v3315 = vmul.f32 %v3134, %v237
      %v3316 = vmul.f32 %v3138, %v238
      %v3317 = vmul.f32 %v3142, %v239
      %v3318 = vmul.f32 %v3146, %v240
      %v3319 = vmul.f32 %v3150, %v241
      %v3320 = vmul.f32 %v3154, %v242
      %v3321 = vmul.f32 %v3158, %v243
      %v3322 = vmul.f32 %v3162, %v244
      %v3323 = vmul.f32 %v3166, %v245
      %v3324 = vmul.f32 %v3170, %v246
      %v3325 = vmul.f32 %v3174, %v247
      %v3326 = vmul.f32 %v3178, %v248
      %v3327 = vmul.f32 %v3182, %v249
      %v3328 = vmul.f32 %v3186, %v250
      %v3329 = vmul.f32 %v3190, %v251
      %v3330 = vmul.f32 %v3194, %v252
      %v3331 = vmul.f32 %v3198, %v253
      %v3332 = vmul.f32 %v3202, %v254
      %v3333 = vmul.f32 %v3206, %v255
      %v3334 = vmul.f32 %v3210, %v256
      %v3335 = vmul.f32 %v3214, %v257
      %v3336 = vmul.f32 %v3218, %v258
      %v3337 = vmul.f32 %v3222, %v259
      %v3338 = vmul.f32 %v3226, %v260
      %v3339 = vmul.f32 %v3230, %v261
      %v3340 = vmul.f32 %v3234, %v262
      %v3341 = vmul.f32 %v3238, %v263
      %v3342 = vmul.f32 %v3242, %v264
      %v3343 = vmul.f32 %v3246, %v265
      %v3344 = vmul.f32 %v3250, %v266
      %v3345 = vmul.f32 %v3254, %v267
      %v3346 = vmul.f32 %v3258, %v268
      %v3347 = vmul.f32 %v3262, %v269
      %v3348 = vmul.f32 %v3266, %v270
      %v3349 = vmul.f32 %v3270, %v271
      %v3350 = vmul.f32 %v3274, %v272
      %v3351 = vmul.f32 %v3278, %v273
      %v3352 = vmul.f32 %v3282, %v274
      %v3353 = vmul.f32 %v3286, %v275
      %v3354 = vmul.f32 %v3290, %v276
      %v3355 = vmul.f32 %v3294, %v277
      %v3356 = vmul.f32 %v3298, %v278
      %v3357 = vmul.f32 %v3302, %v279
      %3358 = vset.pattern.permute.xlu0 18
      %3359 = vperm.xlu0 %3358, %v497
      %v3360 = vpop.permute.xlu0 %3359
      %3362 = vset.pattern.permute.xlu0 18
      %3363 = vperm.xlu0 %3362, %v499
      %v3364 = vpop.permute.xlu0 %3363
      %3366 = vset.pattern.permute.xlu0 18
      %3367 = vperm.xlu0 %3366, %v501
      %v3368 = vpop.permute.xlu0 %3367
      %3370 = vset.pattern.permute.xlu0 18
      %3371 = vperm.xlu0 %3370, %v503
      %v3372 = vpop.permute.xlu0 %3371
      %3374 = vset.pattern.permute.xlu0 18
      %3375 = vperm.xlu0 %3374, %v505
      %v3376 = vpop.permute.xlu0 %3375
      %3378 = vset.pattern.permute.xlu0 18
      %3379 = vperm.xlu0 %3378, %v507
      %v3380 = vpop.permute.xlu0 %3379
      %3382 = vset.pattern.permute.xlu0 18
      %3383 = vperm.xlu0 %3382, %v509
      %v3384 = vpop.permute.xlu0 %3383
      %3386 = vset.pattern.permute.xlu0 18
      %3387 = vperm.xlu0 %3386, %v511
      %v3388 = vpop.permute.xlu0 %3387
      %3390 = vset.pattern.permute.xlu0 18
      %3391 = vperm.xlu0 %3390, %v513
      %v3392 = vpop.permute.xlu0 %3391
      %3394 = vset.pattern.permute.xlu0 18
      %3395 = vperm.xlu0 %3394, %v515
      %v3396 = vpop.permute.xlu0 %3395
      %3398 = vset.pattern.permute.xlu0 18
      %3399 = vperm.xlu0 %3398, %v517
      %v3400 = vpop.permute.xlu0 %3399
      %3402 = vset.pattern.permute.xlu0 18
      %3403 = vperm.xlu0 %3402, %v519
      %v3404 = vpop.permute.xlu0 %3403
      %3406 = vset.pattern.permute.xlu0 18
      %3407 = vperm.xlu0 %3406, %v521
      %v3408 = vpop.permute.xlu0 %3407
      %3410 = vset.pattern.permute.xlu0 18
      %3411 = vperm.xlu0 %3410, %v523
      %v3412 = vpop.permute.xlu0 %3411
      %3414 = vset.pattern.permute.xlu0 18
      %3415 = vperm.xlu0 %3414, %v525
      %v3416 = vpop.permute.xlu0 %3415
      %3418 = vset.pattern.permute.xlu0 18
      %3419 = vperm.xlu0 %3418, %v527
      %v3420 = vpop.permute.xlu0 %3419
      %3422 = vset.pattern.permute.xlu0 18
      %3423 = vperm.xlu0 %3422, %v529
      %v3424 = vpop.permute.xlu0 %3423
      %3426 = vset.pattern.permute.xlu0 18
      %3427 = vperm.xlu0 %3426, %v531
      %v3428 = vpop.permute.xlu0 %3427
      %3430 = vset.pattern.permute.xlu0 18
      %3431 = vperm.xlu0 %3430, %v533
      %v3432 = vpop.permute.xlu0 %3431
      %3434 = vset.pattern.permute.xlu0 18
      %3435 = vperm.xlu0 %3434, %v535
      %v3436 = vpop.permute.xlu0 %3435
      %3438 = vset.pattern.permute.xlu0 18
      %3439 = vperm.xlu0 %3438, %v537
      %v3440 = vpop.permute.xlu0 %3439
      %3442 = vset.pattern.permute.xlu0 18
      %3443 = vperm.xlu0 %3442, %v539
      %v3444 = vpop.permute.xlu0 %3443
      %3446 = vset.pattern.permute.xlu0 18
      %3447 = vperm.xlu0 %3446, %v541
      %v3448 = vpop.permute.xlu0 %3447
      %3450 = vset.pattern.permute.xlu0 18
      %3451 = vperm.xlu0 %3450, %v543
      %v3452 = vpop.permute.xlu0 %3451
      %3454 = vset.pattern.permute.xlu0 18
      %3455 = vperm.xlu0 %3454, %v545
      %v3456 = vpop.permute.xlu0 %3455
      %3458 = vset.pattern.permute.xlu0 18
      %3459 = vperm.xlu0 %3458, %v547
      %v3460 = vpop.permute.xlu0 %3459
      %3462 = vset.pattern.permute.xlu0 18
      %3463 = vperm.xlu0 %3462, %v549
      %v3464 = vpop.permute.xlu0 %3463
      %3466 = vset.pattern.permute.xlu0 18
      %3467 = vperm.xlu0 %3466, %v551
      %v3468 = vpop.permute.xlu0 %3467
      %3470 = vset.pattern.permute.xlu0 18
      %3471 = vperm.xlu0 %3470, %v553
      %v3472 = vpop.permute.xlu0 %3471
      %3474 = vset.pattern.permute.xlu0 18
      %3475 = vperm.xlu0 %3474, %v555
      %v3476 = vpop.permute.xlu0 %3475
      %3478 = vset.pattern.permute.xlu0 18
      %3479 = vperm.xlu0 %3478, %v557
      %v3480 = vpop.permute.xlu0 %3479
      %3482 = vset.pattern.permute.xlu0 18
      %3483 = vperm.xlu0 %3482, %v559
      %v3484 = vpop.permute.xlu0 %3483
      %3486 = vset.pattern.permute.xlu0 18
      %3487 = vperm.xlu0 %3486, %v561
      %v3488 = vpop.permute.xlu0 %3487
      %3490 = vset.pattern.permute.xlu0 18
      %3491 = vperm.xlu0 %3490, %v563
      %v3492 = vpop.permute.xlu0 %3491
      %3494 = vset.pattern.permute.xlu0 18
      %3495 = vperm.xlu0 %3494, %v565
      %v3496 = vpop.permute.xlu0 %3495
      %3498 = vset.pattern.permute.xlu0 18
      %3499 = vperm.xlu0 %3498, %v567
      %v3500 = vpop.permute.xlu0 %3499
      %3502 = vset.pattern.permute.xlu0 18
      %3503 = vperm.xlu0 %3502, %v569
      %v3504 = vpop.permute.xlu0 %3503
      %3506 = vset.pattern.permute.xlu0 18
      %3507 = vperm.xlu0 %3506, %v571
      %v3508 = vpop.permute.xlu0 %3507
      %3510 = vset.pattern.permute.xlu0 18
      %3511 = vperm.xlu0 %3510, %v573
      %v3512 = vpop.permute.xlu0 %3511
      %3514 = vset.pattern.permute.xlu0 18
      %3515 = vperm.xlu0 %3514, %v575
      %v3516 = vpop.permute.xlu0 %3515
      %3518 = vset.pattern.permute.xlu0 18
      %3519 = vperm.xlu0 %3518, %v577
      %v3520 = vpop.permute.xlu0 %3519
      %3522 = vset.pattern.permute.xlu0 18
      %3523 = vperm.xlu0 %3522, %v579
      %v3524 = vpop.permute.xlu0 %3523
      %3526 = vset.pattern.permute.xlu0 18
      %3527 = vperm.xlu0 %3526, %v581
      %v3528 = vpop.permute.xlu0 %3527
      %3530 = vset.pattern.permute.xlu0 18
      %3531 = vperm.xlu0 %3530, %v583
      %v3532 = vpop.permute.xlu0 %3531
      %3534 = vset.pattern.permute.xlu0 18
      %3535 = vperm.xlu0 %3534, %v585
      %v3536 = vpop.permute.xlu0 %3535
      %3538 = vset.pattern.permute.xlu0 18
      %3539 = vperm.xlu0 %3538, %v587
      %v3540 = vpop.permute.xlu0 %3539
      %3542 = vset.pattern.permute.xlu0 18
      %3543 = vperm.xlu0 %3542, %v589
      %v3544 = vpop.permute.xlu0 %3543
      %3546 = vset.pattern.permute.xlu0 18
      %3547 = vperm.xlu0 %3546, %v591
      %v3548 = vpop.permute.xlu0 %3547
      %3550 = vset.pattern.permute.xlu0 18
      %3551 = vperm.xlu0 %3550, %v593
      %v3552 = vpop.permute.xlu0 %3551
      %3554 = vset.pattern.permute.xlu0 18
      %3555 = vperm.xlu0 %3554, %v595
      %v3556 = vpop.permute.xlu0 %3555
      %3558 = vset.pattern.permute.xlu0 18
      %3559 = vperm.xlu0 %3558, %v597
      %v3560 = vpop.permute.xlu0 %3559
      %3562 = vset.pattern.permute.xlu0 18
      %3563 = vperm.xlu0 %3562, %v599
      %v3564 = vpop.permute.xlu0 %3563
      %3566 = vset.pattern.permute.xlu0 18
      %3567 = vperm.xlu0 %3566, %v601
      %v3568 = vpop.permute.xlu0 %3567
      %3570 = vset.pattern.permute.xlu0 18
      %3571 = vperm.xlu0 %3570, %v603
      %v3572 = vpop.permute.xlu0 %3571
      %v3574 = vmul.f32 %v3360, %v226
      %v3575 = vmul.f32 %v3364, %v227
      %v3576 = vmul.f32 %v3368, %v228
      %v3577 = vmul.f32 %v3372, %v229
      %v3578 = vmul.f32 %v3376, %v230
      %v3579 = vmul.f32 %v3380, %v231
      %v3580 = vmul.f32 %v3384, %v232
      %v3581 = vmul.f32 %v3388, %v233
      %v3582 = vmul.f32 %v3392, %v234
      %v3583 = vmul.f32 %v3396, %v235
      %v3584 = vmul.f32 %v3400, %v236
      %v3585 = vmul.f32 %v3404, %v237
      %v3586 = vmul.f32 %v3408, %v238
      %v3587 = vmul.f32 %v3412, %v239
      %v3588 = vmul.f32 %v3416, %v240
      %v3589 = vmul.f32 %v3420, %v241
      %v3590 = vmul.f32 %v3424, %v242
      %v3591 = vmul.f32 %v3428, %v243
      %v3592 = vmul.f32 %v3432, %v244
      %v3593 = vmul.f32 %v3436, %v245
      %v3594 = vmul.f32 %v3440, %v246
      %v3595 = vmul.f32 %v3444, %v247
      %v3596 = vmul.f32 %v3448, %v248
      %v3597 = vmul.f32 %v3452, %v249
      %v3598 = vmul.f32 %v3456, %v250
      %v3599 = vmul.f32 %v3460, %v251
      %v3600 = vmul.f32 %v3464, %v252
      %v3601 = vmul.f32 %v3468, %v253
      %v3602 = vmul.f32 %v3472, %v254
      %v3603 = vmul.f32 %v3476, %v255
      %v3604 = vmul.f32 %v3480, %v256
      %v3605 = vmul.f32 %v3484, %v257
      %v3606 = vmul.f32 %v3488, %v258
      %v3607 = vmul.f32 %v3492, %v259
      %v3608 = vmul.f32 %v3496, %v260
      %v3609 = vmul.f32 %v3500, %v261
      %v3610 = vmul.f32 %v3504, %v262
      %v3611 = vmul.f32 %v3508, %v263
      %v3612 = vmul.f32 %v3512, %v264
      %v3613 = vmul.f32 %v3516, %v265
      %v3614 = vmul.f32 %v3520, %v266
      %v3615 = vmul.f32 %v3524, %v267
      %v3616 = vmul.f32 %v3528, %v268
      %v3617 = vmul.f32 %v3532, %v269
      %v3618 = vmul.f32 %v3536, %v270
      %v3619 = vmul.f32 %v3540, %v271
      %v3620 = vmul.f32 %v3544, %v272
      %v3621 = vmul.f32 %v3548, %v273
      %v3622 = vmul.f32 %v3552, %v274
      %v3623 = vmul.f32 %v3556, %v275
      %v3624 = vmul.f32 %v3560, %v276
      %v3625 = vmul.f32 %v3564, %v277
      %v3626 = vmul.f32 %v3568, %v278
      %v3627 = vmul.f32 %v3572, %v279
      %3628 = vset.pattern.permute.xlu0 19
      %3629 = vperm.xlu0 %3628, %v497
      %v3630 = vpop.permute.xlu0 %3629
      %3632 = vset.pattern.permute.xlu0 19
      %3633 = vperm.xlu0 %3632, %v499
      %v3634 = vpop.permute.xlu0 %3633
      %3636 = vset.pattern.permute.xlu0 19
      %3637 = vperm.xlu0 %3636, %v501
      %v3638 = vpop.permute.xlu0 %3637
      %3640 = vset.pattern.permute.xlu0 19
      %3641 = vperm.xlu0 %3640, %v503
      %v3642 = vpop.permute.xlu0 %3641
      %3644 = vset.pattern.permute.xlu0 19
      %3645 = vperm.xlu0 %3644, %v505
      %v3646 = vpop.permute.xlu0 %3645
      %3648 = vset.pattern.permute.xlu0 19
      %3649 = vperm.xlu0 %3648, %v507
      %v3650 = vpop.permute.xlu0 %3649
      %3652 = vset.pattern.permute.xlu0 19
      %3653 = vperm.xlu0 %3652, %v509
      %v3654 = vpop.permute.xlu0 %3653
      %3656 = vset.pattern.permute.xlu0 19
      %3657 = vperm.xlu0 %3656, %v511
      %v3658 = vpop.permute.xlu0 %3657
      %3660 = vset.pattern.permute.xlu0 19
      %3661 = vperm.xlu0 %3660, %v513
      %v3662 = vpop.permute.xlu0 %3661
      %3664 = vset.pattern.permute.xlu0 19
      %3665 = vperm.xlu0 %3664, %v515
      %v3666 = vpop.permute.xlu0 %3665
      %3668 = vset.pattern.permute.xlu0 19
      %3669 = vperm.xlu0 %3668, %v517
      %v3670 = vpop.permute.xlu0 %3669
      %3672 = vset.pattern.permute.xlu0 19
      %3673 = vperm.xlu0 %3672, %v519
      %v3674 = vpop.permute.xlu0 %3673
      %3676 = vset.pattern.permute.xlu0 19
      %3677 = vperm.xlu0 %3676, %v521
      %v3678 = vpop.permute.xlu0 %3677
      %3680 = vset.pattern.permute.xlu0 19
      %3681 = vperm.xlu0 %3680, %v523
      %v3682 = vpop.permute.xlu0 %3681
      %3684 = vset.pattern.permute.xlu0 19
      %3685 = vperm.xlu0 %3684, %v525
      %v3686 = vpop.permute.xlu0 %3685
      %3688 = vset.pattern.permute.xlu0 19
      %3689 = vperm.xlu0 %3688, %v527
      %v3690 = vpop.permute.xlu0 %3689
      %3692 = vset.pattern.permute.xlu0 19
      %3693 = vperm.xlu0 %3692, %v529
      %v3694 = vpop.permute.xlu0 %3693
      %3696 = vset.pattern.permute.xlu0 19
      %3697 = vperm.xlu0 %3696, %v531
      %v3698 = vpop.permute.xlu0 %3697
      %3700 = vset.pattern.permute.xlu0 19
      %3701 = vperm.xlu0 %3700, %v533
      %v3702 = vpop.permute.xlu0 %3701
      %3704 = vset.pattern.permute.xlu0 19
      %3705 = vperm.xlu0 %3704, %v535
      %v3706 = vpop.permute.xlu0 %3705
      %3708 = vset.pattern.permute.xlu0 19
      %3709 = vperm.xlu0 %3708, %v537
      %v3710 = vpop.permute.xlu0 %3709
      %3712 = vset.pattern.permute.xlu0 19
      %3713 = vperm.xlu0 %3712, %v539
      %v3714 = vpop.permute.xlu0 %3713
      %3716 = vset.pattern.permute.xlu0 19
      %3717 = vperm.xlu0 %3716, %v541
      %v3718 = vpop.permute.xlu0 %3717
      %3720 = vset.pattern.permute.xlu0 19
      %3721 = vperm.xlu0 %3720, %v543
      %v3722 = vpop.permute.xlu0 %3721
      %3724 = vset.pattern.permute.xlu0 19
      %3725 = vperm.xlu0 %3724, %v545
      %v3726 = vpop.permute.xlu0 %3725
      %3728 = vset.pattern.permute.xlu0 19
      %3729 = vperm.xlu0 %3728, %v547
      %v3730 = vpop.permute.xlu0 %3729
      %3732 = vset.pattern.permute.xlu0 19
      %3733 = vperm.xlu0 %3732, %v549
      %v3734 = vpop.permute.xlu0 %3733
      %3736 = vset.pattern.permute.xlu0 19
      %3737 = vperm.xlu0 %3736, %v551
      %v3738 = vpop.permute.xlu0 %3737
      %3740 = vset.pattern.permute.xlu0 19
      %3741 = vperm.xlu0 %3740, %v553
      %v3742 = vpop.permute.xlu0 %3741
      %3744 = vset.pattern.permute.xlu0 19
      %3745 = vperm.xlu0 %3744, %v555
      %v3746 = vpop.permute.xlu0 %3745
      %3748 = vset.pattern.permute.xlu0 19
      %3749 = vperm.xlu0 %3748, %v557
      %v3750 = vpop.permute.xlu0 %3749
      %3752 = vset.pattern.permute.xlu0 19
      %3753 = vperm.xlu0 %3752, %v559
      %v3754 = vpop.permute.xlu0 %3753
      %3756 = vset.pattern.permute.xlu0 19
      %3757 = vperm.xlu0 %3756, %v561
      %v3758 = vpop.permute.xlu0 %3757
      %3760 = vset.pattern.permute.xlu0 19
      %3761 = vperm.xlu0 %3760, %v563
      %v3762 = vpop.permute.xlu0 %3761
      %3764 = vset.pattern.permute.xlu0 19
      %3765 = vperm.xlu0 %3764, %v565
      %v3766 = vpop.permute.xlu0 %3765
      %3768 = vset.pattern.permute.xlu0 19
      %3769 = vperm.xlu0 %3768, %v567
      %v3770 = vpop.permute.xlu0 %3769
      %3772 = vset.pattern.permute.xlu0 19
      %3773 = vperm.xlu0 %3772, %v569
      %v3774 = vpop.permute.xlu0 %3773
      %3776 = vset.pattern.permute.xlu0 19
      %3777 = vperm.xlu0 %3776, %v571
      %v3778 = vpop.permute.xlu0 %3777
      %3780 = vset.pattern.permute.xlu0 19
      %3781 = vperm.xlu0 %3780, %v573
      %v3782 = vpop.permute.xlu0 %3781
      %3784 = vset.pattern.permute.xlu0 19
      %3785 = vperm.xlu0 %3784, %v575
      %v3786 = vpop.permute.xlu0 %3785
      %3788 = vset.pattern.permute.xlu0 19
      %3789 = vperm.xlu0 %3788, %v577
      %v3790 = vpop.permute.xlu0 %3789
      %3792 = vset.pattern.permute.xlu0 19
      %3793 = vperm.xlu0 %3792, %v579
      %v3794 = vpop.permute.xlu0 %3793
      %3796 = vset.pattern.permute.xlu0 19
      %3797 = vperm.xlu0 %3796, %v581
      %v3798 = vpop.permute.xlu0 %3797
      %3800 = vset.pattern.permute.xlu0 19
      %3801 = vperm.xlu0 %3800, %v583
      %v3802 = vpop.permute.xlu0 %3801
      %3804 = vset.pattern.permute.xlu0 19
      %3805 = vperm.xlu0 %3804, %v585
      %v3806 = vpop.permute.xlu0 %3805
      %3808 = vset.pattern.permute.xlu0 19
      %3809 = vperm.xlu0 %3808, %v587
      %v3810 = vpop.permute.xlu0 %3809
      %3812 = vset.pattern.permute.xlu0 19
      %3813 = vperm.xlu0 %3812, %v589
      %v3814 = vpop.permute.xlu0 %3813
      %3816 = vset.pattern.permute.xlu0 19
      %3817 = vperm.xlu0 %3816, %v591
      %v3818 = vpop.permute.xlu0 %3817
      %3820 = vset.pattern.permute.xlu0 19
      %3821 = vperm.xlu0 %3820, %v593
      %v3822 = vpop.permute.xlu0 %3821
      %3824 = vset.pattern.permute.xlu0 19
      %3825 = vperm.xlu0 %3824, %v595
      %v3826 = vpop.permute.xlu0 %3825
      %3828 = vset.pattern.permute.xlu0 19
      %3829 = vperm.xlu0 %3828, %v597
      %v3830 = vpop.permute.xlu0 %3829
      %3832 = vset.pattern.permute.xlu0 19
      %3833 = vperm.xlu0 %3832, %v599
      %v3834 = vpop.permute.xlu0 %3833
      %3836 = vset.pattern.permute.xlu0 19
      %3837 = vperm.xlu0 %3836, %v601
      %v3838 = vpop.permute.xlu0 %3837
      %3840 = vset.pattern.permute.xlu0 19
      %3841 = vperm.xlu0 %3840, %v603
      %v3842 = vpop.permute.xlu0 %3841
      %v3844 = vmul.f32 %v3630, %v226
      %v3845 = vmul.f32 %v3634, %v227
      %v3846 = vmul.f32 %v3638, %v228
      %v3847 = vmul.f32 %v3642, %v229
      %v3848 = vmul.f32 %v3646, %v230
      %v3849 = vmul.f32 %v3650, %v231
      %v3850 = vmul.f32 %v3654, %v232
      %v3851 = vmul.f32 %v3658, %v233
      %v3852 = vmul.f32 %v3662, %v234
      %v3853 = vmul.f32 %v3666, %v235
      %v3854 = vmul.f32 %v3670, %v236
      %v3855 = vmul.f32 %v3674, %v237
      %v3856 = vmul.f32 %v3678, %v238
      %v3857 = vmul.f32 %v3682, %v239
      %v3858 = vmul.f32 %v3686, %v240
      %v3859 = vmul.f32 %v3690, %v241
      %v3860 = vmul.f32 %v3694, %v242
      %v3861 = vmul.f32 %v3698, %v243
      %v3862 = vmul.f32 %v3702, %v244
      %v3863 = vmul.f32 %v3706, %v245
      %v3864 = vmul.f32 %v3710, %v246
      %v3865 = vmul.f32 %v3714, %v247
      %v3866 = vmul.f32 %v3718, %v248
      %v3867 = vmul.f32 %v3722, %v249
      %v3868 = vmul.f32 %v3726, %v250
      %v3869 = vmul.f32 %v3730, %v251
      %v3870 = vmul.f32 %v3734, %v252
      %v3871 = vmul.f32 %v3738, %v253
      %v3872 = vmul.f32 %v3742, %v254
      %v3873 = vmul.f32 %v3746, %v255
      %v3874 = vmul.f32 %v3750, %v256
      %v3875 = vmul.f32 %v3754, %v257
      %v3876 = vmul.f32 %v3758, %v258
      %v3877 = vmul.f32 %v3762, %v259
      %v3878 = vmul.f32 %v3766, %v260
      %v3879 = vmul.f32 %v3770, %v261
      %v3880 = vmul.f32 %v3774, %v262
      %v3881 = vmul.f32 %v3778, %v263
      %v3882 = vmul.f32 %v3782, %v264
      %v3883 = vmul.f32 %v3786, %v265
      %v3884 = vmul.f32 %v3790, %v266
      %v3885 = vmul.f32 %v3794, %v267
      %v3886 = vmul.f32 %v3798, %v268
      %v3887 = vmul.f32 %v3802, %v269
      %v3888 = vmul.f32 %v3806, %v270
      %v3889 = vmul.f32 %v3810, %v271
      %v3890 = vmul.f32 %v3814, %v272
      %v3891 = vmul.f32 %v3818, %v273
      %v3892 = vmul.f32 %v3822, %v274
      %v3893 = vmul.f32 %v3826, %v275
      %v3894 = vmul.f32 %v3830, %v276
      %v3895 = vmul.f32 %v3834, %v277
      %v3896 = vmul.f32 %v3838, %v278
      %v3897 = vmul.f32 %v3842, %v279
      %3952 = vrot.lane.b32.xlu0 %v874, 126
      %v3953 = vpop.permute.xlu0 %3952
      %3954 = vrot.lane.b32.xlu0 %v875, 126
      %v3955 = vpop.permute.xlu0 %3954
      %3956 = vrot.lane.b32.xlu0 %v876, 126
      %v3957 = vpop.permute.xlu0 %3956
      %3958 = vrot.lane.b32.xlu0 %v877, 126
      %v3959 = vpop.permute.xlu0 %3958
      %3960 = vrot.lane.b32.xlu0 %v878, 126
      %v3961 = vpop.permute.xlu0 %3960
      %3962 = vrot.lane.b32.xlu0 %v879, 126
      %v3963 = vpop.permute.xlu0 %3962
      %3964 = vrot.lane.b32.xlu0 %v880, 126
      %v3965 = vpop.permute.xlu0 %3964
      %3966 = vrot.lane.b32.xlu0 %v881, 126
      %v3967 = vpop.permute.xlu0 %3966
      %3968 = vrot.lane.b32.xlu0 %v882, 126
      %v3969 = vpop.permute.xlu0 %3968
      %3970 = vrot.lane.b32.xlu0 %v883, 126
      %v3971 = vpop.permute.xlu0 %3970
      %3972 = vrot.lane.b32.xlu0 %v884, 126
      %v3973 = vpop.permute.xlu0 %3972
      %3974 = vrot.lane.b32.xlu0 %v885, 126
      %v3975 = vpop.permute.xlu0 %3974
      %3976 = vrot.lane.b32.xlu0 %v886, 126
      %v3977 = vpop.permute.xlu0 %3976
      %3978 = vrot.lane.b32.xlu0 %v887, 126
      %v3979 = vpop.permute.xlu0 %3978
      %3980 = vrot.lane.b32.xlu0 %v888, 126
      %v3981 = vpop.permute.xlu0 %3980
      %3982 = vrot.lane.b32.xlu0 %v889, 126
      %v3983 = vpop.permute.xlu0 %3982
      %3984 = vrot.lane.b32.xlu0 %v890, 126
      %v3985 = vpop.permute.xlu0 %3984
      %3986 = vrot.lane.b32.xlu0 %v891, 126
      %v3987 = vpop.permute.xlu0 %3986
      %3988 = vrot.lane.b32.xlu0 %v892, 126
      %v3989 = vpop.permute.xlu0 %3988
      %3990 = vrot.lane.b32.xlu0 %v893, 126
      %v3991 = vpop.permute.xlu0 %3990
      %3992 = vrot.lane.b32.xlu0 %v894, 126
      %v3993 = vpop.permute.xlu0 %3992
      %3994 = vrot.lane.b32.xlu0 %v895, 126
      %v3995 = vpop.permute.xlu0 %3994
      %3996 = vrot.lane.b32.xlu0 %v896, 126
      %v3997 = vpop.permute.xlu0 %3996
      %3998 = vrot.lane.b32.xlu0 %v897, 126
      %v3999 = vpop.permute.xlu0 %3998
      %4000 = vrot.lane.b32.xlu0 %v898, 126
      %v4001 = vpop.permute.xlu0 %4000
      %4002 = vrot.lane.b32.xlu0 %v899, 126
      %v4003 = vpop.permute.xlu0 %4002
      %4004 = vrot.lane.b32.xlu0 %v900, 126
      %v4005 = vpop.permute.xlu0 %4004
      %4006 = vrot.lane.b32.xlu0 %v901, 126
      %v4007 = vpop.permute.xlu0 %4006
      %4008 = vrot.lane.b32.xlu0 %v902, 126
      %v4009 = vpop.permute.xlu0 %4008
      %4010 = vrot.lane.b32.xlu0 %v903, 126
      %v4011 = vpop.permute.xlu0 %4010
      %4012 = vrot.lane.b32.xlu0 %v904, 126
      %v4013 = vpop.permute.xlu0 %4012
      %4014 = vrot.lane.b32.xlu0 %v905, 126
      %v4015 = vpop.permute.xlu0 %4014
      %4016 = vrot.lane.b32.xlu0 %v906, 126
      %v4017 = vpop.permute.xlu0 %4016
      %4018 = vrot.lane.b32.xlu0 %v907, 126
      %v4019 = vpop.permute.xlu0 %4018
      %4020 = vrot.lane.b32.xlu0 %v908, 126
      %v4021 = vpop.permute.xlu0 %4020
      %4022 = vrot.lane.b32.xlu0 %v909, 126
      %v4023 = vpop.permute.xlu0 %4022
      %4024 = vrot.lane.b32.xlu0 %v910, 126
      %v4025 = vpop.permute.xlu0 %4024
      %4026 = vrot.lane.b32.xlu0 %v911, 126
      %v4027 = vpop.permute.xlu0 %4026
      %4028 = vrot.lane.b32.xlu0 %v912, 126
      %v4029 = vpop.permute.xlu0 %4028
      %4030 = vrot.lane.b32.xlu0 %v913, 126
      %v4031 = vpop.permute.xlu0 %4030
      %4032 = vrot.lane.b32.xlu0 %v914, 126
      %v4033 = vpop.permute.xlu0 %4032
      %4034 = vrot.lane.b32.xlu0 %v915, 126
      %v4035 = vpop.permute.xlu0 %4034
      %4036 = vrot.lane.b32.xlu0 %v916, 126
      %v4037 = vpop.permute.xlu0 %4036
      %4038 = vrot.lane.b32.xlu0 %v917, 126
      %v4039 = vpop.permute.xlu0 %4038
      %4040 = vrot.lane.b32.xlu0 %v918, 126
      %v4041 = vpop.permute.xlu0 %4040
      %4042 = vrot.lane.b32.xlu0 %v919, 126
      %v4043 = vpop.permute.xlu0 %4042
      %4044 = vrot.lane.b32.xlu0 %v920, 126
      %v4045 = vpop.permute.xlu0 %4044
      %4046 = vrot.lane.b32.xlu0 %v921, 126
      %v4047 = vpop.permute.xlu0 %4046
      %4048 = vrot.lane.b32.xlu0 %v922, 126
      %v4049 = vpop.permute.xlu0 %4048
      %4050 = vrot.lane.b32.xlu0 %v923, 126
      %v4051 = vpop.permute.xlu0 %4050
      %4052 = vrot.lane.b32.xlu0 %v924, 126
      %v4053 = vpop.permute.xlu0 %4052
      %4054 = vrot.lane.b32.xlu0 %v925, 126
      %v4055 = vpop.permute.xlu0 %4054
      %4056 = vrot.lane.b32.xlu0 %v926, 126
      %v4057 = vpop.permute.xlu0 %4056
      %4058 = vrot.lane.b32.xlu0 %v927, 126
      %v4059 = vpop.permute.xlu0 %4058
      %4168 = vrot.lane.b32.xlu0 %v1144, 2
      %v4169 = vpop.permute.xlu0 %4168
      %4170 = vrot.lane.b32.xlu0 %v1145, 2
      %v4171 = vpop.permute.xlu0 %4170
      %4172 = vrot.lane.b32.xlu0 %v1146, 2
      %v4173 = vpop.permute.xlu0 %4172
      %4174 = vrot.lane.b32.xlu0 %v1147, 2
      %v4175 = vpop.permute.xlu0 %4174
      %4176 = vrot.lane.b32.xlu0 %v1148, 2
      %v4177 = vpop.permute.xlu0 %4176
      %4178 = vrot.lane.b32.xlu0 %v1149, 2
      %v4179 = vpop.permute.xlu0 %4178
      %4180 = vrot.lane.b32.xlu0 %v1150, 2
      %v4181 = vpop.permute.xlu0 %4180
      %4182 = vrot.lane.b32.xlu0 %v1151, 2
      %v4183 = vpop.permute.xlu0 %4182
      %4184 = vrot.lane.b32.xlu0 %v1152, 2
      %v4185 = vpop.permute.xlu0 %4184
      %4186 = vrot.lane.b32.xlu0 %v1153, 2
      %v4187 = vpop.permute.xlu0 %4186
      %4188 = vrot.lane.b32.xlu0 %v1154, 2
      %v4189 = vpop.permute.xlu0 %4188
      %4190 = vrot.lane.b32.xlu0 %v1155, 2
      %v4191 = vpop.permute.xlu0 %4190
      %4192 = vrot.lane.b32.xlu0 %v1156, 2
      %v4193 = vpop.permute.xlu0 %4192
      %4194 = vrot.lane.b32.xlu0 %v1157, 2
      %v4195 = vpop.permute.xlu0 %4194
      %4196 = vrot.lane.b32.xlu0 %v1158, 2
      %v4197 = vpop.permute.xlu0 %4196
      %4198 = vrot.lane.b32.xlu0 %v1159, 2
      %v4199 = vpop.permute.xlu0 %4198
      %4200 = vrot.lane.b32.xlu0 %v1160, 2
      %v4201 = vpop.permute.xlu0 %4200
      %4202 = vrot.lane.b32.xlu0 %v1161, 2
      %v4203 = vpop.permute.xlu0 %4202
      %4204 = vrot.lane.b32.xlu0 %v1162, 2
      %v4205 = vpop.permute.xlu0 %4204
      %4206 = vrot.lane.b32.xlu0 %v1163, 2
      %v4207 = vpop.permute.xlu0 %4206
      %4208 = vrot.lane.b32.xlu0 %v1164, 2
      %v4209 = vpop.permute.xlu0 %4208
      %4210 = vrot.lane.b32.xlu0 %v1165, 2
      %v4211 = vpop.permute.xlu0 %4210
      %4212 = vrot.lane.b32.xlu0 %v1166, 2
      %v4213 = vpop.permute.xlu0 %4212
      %4214 = vrot.lane.b32.xlu0 %v1167, 2
      %v4215 = vpop.permute.xlu0 %4214
      %4216 = vrot.lane.b32.xlu0 %v1168, 2
      %v4217 = vpop.permute.xlu0 %4216
      %4218 = vrot.lane.b32.xlu0 %v1169, 2
      %v4219 = vpop.permute.xlu0 %4218
      %4220 = vrot.lane.b32.xlu0 %v1170, 2
      %v4221 = vpop.permute.xlu0 %4220
      %4222 = vrot.lane.b32.xlu0 %v1171, 2
      %v4223 = vpop.permute.xlu0 %4222
      %4224 = vrot.lane.b32.xlu0 %v1172, 2
      %v4225 = vpop.permute.xlu0 %4224
      %4226 = vrot.lane.b32.xlu0 %v1173, 2
      %v4227 = vpop.permute.xlu0 %4226
      %4228 = vrot.lane.b32.xlu0 %v1174, 2
      %v4229 = vpop.permute.xlu0 %4228
      %4230 = vrot.lane.b32.xlu0 %v1175, 2
      %v4231 = vpop.permute.xlu0 %4230
      %4232 = vrot.lane.b32.xlu0 %v1176, 2
      %v4233 = vpop.permute.xlu0 %4232
      %4234 = vrot.lane.b32.xlu0 %v1177, 2
      %v4235 = vpop.permute.xlu0 %4234
      %4236 = vrot.lane.b32.xlu0 %v1178, 2
      %v4237 = vpop.permute.xlu0 %4236
      %4238 = vrot.lane.b32.xlu0 %v1179, 2
      %v4239 = vpop.permute.xlu0 %4238
      %4240 = vrot.lane.b32.xlu0 %v1180, 2
      %v4241 = vpop.permute.xlu0 %4240
      %4242 = vrot.lane.b32.xlu0 %v1181, 2
      %v4243 = vpop.permute.xlu0 %4242
      %4244 = vrot.lane.b32.xlu0 %v1182, 2
      %v4245 = vpop.permute.xlu0 %4244
      %4246 = vrot.lane.b32.xlu0 %v1183, 2
      %v4247 = vpop.permute.xlu0 %4246
      %4248 = vrot.lane.b32.xlu0 %v1184, 2
      %v4249 = vpop.permute.xlu0 %4248
      %4250 = vrot.lane.b32.xlu0 %v1185, 2
      %v4251 = vpop.permute.xlu0 %4250
      %4252 = vrot.lane.b32.xlu0 %v1186, 2
      %v4253 = vpop.permute.xlu0 %4252
      %4254 = vrot.lane.b32.xlu0 %v1187, 2
      %v4255 = vpop.permute.xlu0 %4254
      %4256 = vrot.lane.b32.xlu0 %v1188, 2
      %v4257 = vpop.permute.xlu0 %4256
      %4258 = vrot.lane.b32.xlu0 %v1189, 2
      %v4259 = vpop.permute.xlu0 %4258
      %4260 = vrot.lane.b32.xlu0 %v1190, 2
      %v4261 = vpop.permute.xlu0 %4260
      %4262 = vrot.lane.b32.xlu0 %v1191, 2
      %v4263 = vpop.permute.xlu0 %4262
      %4264 = vrot.lane.b32.xlu0 %v1192, 2
      %v4265 = vpop.permute.xlu0 %4264
      %4266 = vrot.lane.b32.xlu0 %v1193, 2
      %v4267 = vpop.permute.xlu0 %4266
      %4268 = vrot.lane.b32.xlu0 %v1194, 2
      %v4269 = vpop.permute.xlu0 %4268
      %4270 = vrot.lane.b32.xlu0 %v1195, 2
      %v4271 = vpop.permute.xlu0 %4270
      %4272 = vrot.lane.b32.xlu0 %v1196, 2
      %v4273 = vpop.permute.xlu0 %4272
      %4274 = vrot.lane.b32.xlu0 %v1197, 2
      %v4275 = vpop.permute.xlu0 %4274
      %4384 = vrot.lane.b32.xlu0 %v1684, 4
      %v4385 = vpop.permute.xlu0 %4384
      %4386 = vrot.lane.b32.xlu0 %v1685, 4
      %v4387 = vpop.permute.xlu0 %4386
      %4388 = vrot.lane.b32.xlu0 %v1686, 4
      %v4389 = vpop.permute.xlu0 %4388
      %4390 = vrot.lane.b32.xlu0 %v1687, 4
      %v4391 = vpop.permute.xlu0 %4390
      %4392 = vrot.lane.b32.xlu0 %v1688, 4
      %v4393 = vpop.permute.xlu0 %4392
      %4394 = vrot.lane.b32.xlu0 %v1689, 4
      %v4395 = vpop.permute.xlu0 %4394
      %4396 = vrot.lane.b32.xlu0 %v1690, 4
      %v4397 = vpop.permute.xlu0 %4396
      %4398 = vrot.lane.b32.xlu0 %v1691, 4
      %v4399 = vpop.permute.xlu0 %4398
      %4400 = vrot.lane.b32.xlu0 %v1692, 4
      %v4401 = vpop.permute.xlu0 %4400
      %4402 = vrot.lane.b32.xlu0 %v1693, 4
      %v4403 = vpop.permute.xlu0 %4402
      %4404 = vrot.lane.b32.xlu0 %v1694, 4
      %v4405 = vpop.permute.xlu0 %4404
      %4406 = vrot.lane.b32.xlu0 %v1695, 4
      %v4407 = vpop.permute.xlu0 %4406
      %4408 = vrot.lane.b32.xlu0 %v1696, 4
      %v4409 = vpop.permute.xlu0 %4408
      %4410 = vrot.lane.b32.xlu0 %v1697, 4
      %v4411 = vpop.permute.xlu0 %4410
      %4412 = vrot.lane.b32.xlu0 %v1698, 4
      %v4413 = vpop.permute.xlu0 %4412
      %4414 = vrot.lane.b32.xlu0 %v1699, 4
      %v4415 = vpop.permute.xlu0 %4414
      %4416 = vrot.lane.b32.xlu0 %v1700, 4
      %v4417 = vpop.permute.xlu0 %4416
      %4418 = vrot.lane.b32.xlu0 %v1701, 4
      %v4419 = vpop.permute.xlu0 %4418
      %4420 = vrot.lane.b32.xlu0 %v1702, 4
      %v4421 = vpop.permute.xlu0 %4420
      %4422 = vrot.lane.b32.xlu0 %v1703, 4
      %v4423 = vpop.permute.xlu0 %4422
      %4424 = vrot.lane.b32.xlu0 %v1704, 4
      %v4425 = vpop.permute.xlu0 %4424
      %4426 = vrot.lane.b32.xlu0 %v1705, 4
      %v4427 = vpop.permute.xlu0 %4426
      %4428 = vrot.lane.b32.xlu0 %v1706, 4
      %v4429 = vpop.permute.xlu0 %4428
      %4430 = vrot.lane.b32.xlu0 %v1707, 4
      %v4431 = vpop.permute.xlu0 %4430
      %4432 = vrot.lane.b32.xlu0 %v1708, 4
      %v4433 = vpop.permute.xlu0 %4432
      %4434 = vrot.lane.b32.xlu0 %v1709, 4
      %v4435 = vpop.permute.xlu0 %4434
      %4436 = vrot.lane.b32.xlu0 %v1710, 4
      %v4437 = vpop.permute.xlu0 %4436
      %4438 = vrot.lane.b32.xlu0 %v1711, 4
      %v4439 = vpop.permute.xlu0 %4438
      %4440 = vrot.lane.b32.xlu0 %v1712, 4
      %v4441 = vpop.permute.xlu0 %4440
      %4442 = vrot.lane.b32.xlu0 %v1713, 4
      %v4443 = vpop.permute.xlu0 %4442
      %4444 = vrot.lane.b32.xlu0 %v1714, 4
      %v4445 = vpop.permute.xlu0 %4444
      %4446 = vrot.lane.b32.xlu0 %v1715, 4
      %v4447 = vpop.permute.xlu0 %4446
      %4448 = vrot.lane.b32.xlu0 %v1716, 4
      %v4449 = vpop.permute.xlu0 %4448
      %4450 = vrot.lane.b32.xlu0 %v1717, 4
      %v4451 = vpop.permute.xlu0 %4450
      %4452 = vrot.lane.b32.xlu0 %v1718, 4
      %v4453 = vpop.permute.xlu0 %4452
      %4454 = vrot.lane.b32.xlu0 %v1719, 4
      %v4455 = vpop.permute.xlu0 %4454
      %4456 = vrot.lane.b32.xlu0 %v1720, 4
      %v4457 = vpop.permute.xlu0 %4456
      %4458 = vrot.lane.b32.xlu0 %v1721, 4
      %v4459 = vpop.permute.xlu0 %4458
      %4460 = vrot.lane.b32.xlu0 %v1722, 4
      %v4461 = vpop.permute.xlu0 %4460
      %4462 = vrot.lane.b32.xlu0 %v1723, 4
      %v4463 = vpop.permute.xlu0 %4462
      %4464 = vrot.lane.b32.xlu0 %v1724, 4
      %v4465 = vpop.permute.xlu0 %4464
      %4466 = vrot.lane.b32.xlu0 %v1725, 4
      %v4467 = vpop.permute.xlu0 %4466
      %4468 = vrot.lane.b32.xlu0 %v1726, 4
      %v4469 = vpop.permute.xlu0 %4468
      %4470 = vrot.lane.b32.xlu0 %v1727, 4
      %v4471 = vpop.permute.xlu0 %4470
      %4472 = vrot.lane.b32.xlu0 %v1728, 4
      %v4473 = vpop.permute.xlu0 %4472
      %4474 = vrot.lane.b32.xlu0 %v1729, 4
      %v4475 = vpop.permute.xlu0 %4474
      %4476 = vrot.lane.b32.xlu0 %v1730, 4
      %v4477 = vpop.permute.xlu0 %4476
      %4478 = vrot.lane.b32.xlu0 %v1731, 4
      %v4479 = vpop.permute.xlu0 %4478
      %4480 = vrot.lane.b32.xlu0 %v1732, 4
      %v4481 = vpop.permute.xlu0 %4480
      %4482 = vrot.lane.b32.xlu0 %v1733, 4
      %v4483 = vpop.permute.xlu0 %4482
      %4484 = vrot.lane.b32.xlu0 %v1734, 4
      %v4485 = vpop.permute.xlu0 %4484
      %4486 = vrot.lane.b32.xlu0 %v1735, 4
      %v4487 = vpop.permute.xlu0 %4486
      %4488 = vrot.lane.b32.xlu0 %v1736, 4
      %v4489 = vpop.permute.xlu0 %4488
      %4490 = vrot.lane.b32.xlu0 %v1737, 4
      %v4491 = vpop.permute.xlu0 %4490
      %4600 = vrot.lane.b32.xlu0 %v1954, 124
      %v4601 = vpop.permute.xlu0 %4600
      %4602 = vrot.lane.b32.xlu0 %v1955, 124
      %v4603 = vpop.permute.xlu0 %4602
      %4604 = vrot.lane.b32.xlu0 %v1956, 124
      %v4605 = vpop.permute.xlu0 %4604
      %4606 = vrot.lane.b32.xlu0 %v1957, 124
      %v4607 = vpop.permute.xlu0 %4606
      %4608 = vrot.lane.b32.xlu0 %v1958, 124
      %v4609 = vpop.permute.xlu0 %4608
      %4610 = vrot.lane.b32.xlu0 %v1959, 124
      %v4611 = vpop.permute.xlu0 %4610
      %4612 = vrot.lane.b32.xlu0 %v1960, 124
      %v4613 = vpop.permute.xlu0 %4612
      %4614 = vrot.lane.b32.xlu0 %v1961, 124
      %v4615 = vpop.permute.xlu0 %4614
      %4616 = vrot.lane.b32.xlu0 %v1962, 124
      %v4617 = vpop.permute.xlu0 %4616
      %4618 = vrot.lane.b32.xlu0 %v1963, 124
      %v4619 = vpop.permute.xlu0 %4618
      %4620 = vrot.lane.b32.xlu0 %v1964, 124
      %v4621 = vpop.permute.xlu0 %4620
      %4622 = vrot.lane.b32.xlu0 %v1965, 124
      %v4623 = vpop.permute.xlu0 %4622
      %4624 = vrot.lane.b32.xlu0 %v1966, 124
      %v4625 = vpop.permute.xlu0 %4624
      %4626 = vrot.lane.b32.xlu0 %v1967, 124
      %v4627 = vpop.permute.xlu0 %4626
      %4628 = vrot.lane.b32.xlu0 %v1968, 124
      %v4629 = vpop.permute.xlu0 %4628
      %4630 = vrot.lane.b32.xlu0 %v1969, 124
      %v4631 = vpop.permute.xlu0 %4630
      %4632 = vrot.lane.b32.xlu0 %v1970, 124
      %v4633 = vpop.permute.xlu0 %4632
      %4634 = vrot.lane.b32.xlu0 %v1971, 124
      %v4635 = vpop.permute.xlu0 %4634
      %4636 = vrot.lane.b32.xlu0 %v1972, 124
      %v4637 = vpop.permute.xlu0 %4636
      %4638 = vrot.lane.b32.xlu0 %v1973, 124
      %v4639 = vpop.permute.xlu0 %4638
      %4640 = vrot.lane.b32.xlu0 %v1974, 124
      %v4641 = vpop.permute.xlu0 %4640
      %4642 = vrot.lane.b32.xlu0 %v1975, 124
      %v4643 = vpop.permute.xlu0 %4642
      %4644 = vrot.lane.b32.xlu0 %v1976, 124
      %v4645 = vpop.permute.xlu0 %4644
      %4646 = vrot.lane.b32.xlu0 %v1977, 124
      %v4647 = vpop.permute.xlu0 %4646
      %4648 = vrot.lane.b32.xlu0 %v1978, 124
      %v4649 = vpop.permute.xlu0 %4648
      %4650 = vrot.lane.b32.xlu0 %v1979, 124
      %v4651 = vpop.permute.xlu0 %4650
      %4652 = vrot.lane.b32.xlu0 %v1980, 124
      %v4653 = vpop.permute.xlu0 %4652
      %4654 = vrot.lane.b32.xlu0 %v1981, 124
      %v4655 = vpop.permute.xlu0 %4654
      %4656 = vrot.lane.b32.xlu0 %v1982, 124
      %v4657 = vpop.permute.xlu0 %4656
      %4658 = vrot.lane.b32.xlu0 %v1983, 124
      %v4659 = vpop.permute.xlu0 %4658
      %4660 = vrot.lane.b32.xlu0 %v1984, 124
      %v4661 = vpop.permute.xlu0 %4660
      %4662 = vrot.lane.b32.xlu0 %v1985, 124
      %v4663 = vpop.permute.xlu0 %4662
      %4664 = vrot.lane.b32.xlu0 %v1986, 124
      %v4665 = vpop.permute.xlu0 %4664
      %4666 = vrot.lane.b32.xlu0 %v1987, 124
      %v4667 = vpop.permute.xlu0 %4666
      %4668 = vrot.lane.b32.xlu0 %v1988, 124
      %v4669 = vpop.permute.xlu0 %4668
      %4670 = vrot.lane.b32.xlu0 %v1989, 124
      %v4671 = vpop.permute.xlu0 %4670
      %4672 = vrot.lane.b32.xlu0 %v1990, 124
      %v4673 = vpop.permute.xlu0 %4672
      %4674 = vrot.lane.b32.xlu0 %v1991, 124
      %v4675 = vpop.permute.xlu0 %4674
      %4676 = vrot.lane.b32.xlu0 %v1992, 124
      %v4677 = vpop.permute.xlu0 %4676
      %4678 = vrot.lane.b32.xlu0 %v1993, 124
      %v4679 = vpop.permute.xlu0 %4678
      %4680 = vrot.lane.b32.xlu0 %v1994, 124
      %v4681 = vpop.permute.xlu0 %4680
      %4682 = vrot.lane.b32.xlu0 %v1995, 124
      %v4683 = vpop.permute.xlu0 %4682
      %4684 = vrot.lane.b32.xlu0 %v1996, 124
      %v4685 = vpop.permute.xlu0 %4684
      %4686 = vrot.lane.b32.xlu0 %v1997, 124
      %v4687 = vpop.permute.xlu0 %4686
      %4688 = vrot.lane.b32.xlu0 %v1998, 124
      %v4689 = vpop.permute.xlu0 %4688
      %4690 = vrot.lane.b32.xlu0 %v1999, 124
      %v4691 = vpop.permute.xlu0 %4690
      %4692 = vrot.lane.b32.xlu0 %v2000, 124
      %v4693 = vpop.permute.xlu0 %4692
      %4694 = vrot.lane.b32.xlu0 %v2001, 124
      %v4695 = vpop.permute.xlu0 %4694
      %4696 = vrot.lane.b32.xlu0 %v2002, 124
      %v4697 = vpop.permute.xlu0 %4696
      %4698 = vrot.lane.b32.xlu0 %v2003, 124
      %v4699 = vpop.permute.xlu0 %4698
      %4700 = vrot.lane.b32.xlu0 %v2004, 124
      %v4701 = vpop.permute.xlu0 %4700
      %4702 = vrot.lane.b32.xlu0 %v2005, 124
      %v4703 = vpop.permute.xlu0 %4702
      %4704 = vrot.lane.b32.xlu0 %v2006, 124
      %v4705 = vpop.permute.xlu0 %4704
      %4706 = vrot.lane.b32.xlu0 %v2007, 124
      %v4707 = vpop.permute.xlu0 %4706
      %4816 = vrot.lane.b32.xlu0 %v2494, 4
      %v4817 = vpop.permute.xlu0 %4816
      %4818 = vrot.lane.b32.xlu0 %v2495, 4
      %v4819 = vpop.permute.xlu0 %4818
      %4820 = vrot.lane.b32.xlu0 %v2496, 4
      %v4821 = vpop.permute.xlu0 %4820
      %4822 = vrot.lane.b32.xlu0 %v2497, 4
      %v4823 = vpop.permute.xlu0 %4822
      %4824 = vrot.lane.b32.xlu0 %v2498, 4
      %v4825 = vpop.permute.xlu0 %4824
      %4826 = vrot.lane.b32.xlu0 %v2499, 4
      %v4827 = vpop.permute.xlu0 %4826
      %4828 = vrot.lane.b32.xlu0 %v2500, 4
      %v4829 = vpop.permute.xlu0 %4828
      %4830 = vrot.lane.b32.xlu0 %v2501, 4
      %v4831 = vpop.permute.xlu0 %4830
      %4832 = vrot.lane.b32.xlu0 %v2502, 4
      %v4833 = vpop.permute.xlu0 %4832
      %4834 = vrot.lane.b32.xlu0 %v2503, 4
      %v4835 = vpop.permute.xlu0 %4834
      %4836 = vrot.lane.b32.xlu0 %v2504, 4
      %v4837 = vpop.permute.xlu0 %4836
      %4838 = vrot.lane.b32.xlu0 %v2505, 4
      %v4839 = vpop.permute.xlu0 %4838
      %4840 = vrot.lane.b32.xlu0 %v2506, 4
      %v4841 = vpop.permute.xlu0 %4840
      %4842 = vrot.lane.b32.xlu0 %v2507, 4
      %v4843 = vpop.permute.xlu0 %4842
      %4844 = vrot.lane.b32.xlu0 %v2508, 4
      %v4845 = vpop.permute.xlu0 %4844
      %4846 = vrot.lane.b32.xlu0 %v2509, 4
      %v4847 = vpop.permute.xlu0 %4846
      %4848 = vrot.lane.b32.xlu0 %v2510, 4
      %v4849 = vpop.permute.xlu0 %4848
      %4850 = vrot.lane.b32.xlu0 %v2511, 4
      %v4851 = vpop.permute.xlu0 %4850
      %4852 = vrot.lane.b32.xlu0 %v2512, 4
      %v4853 = vpop.permute.xlu0 %4852
      %4854 = vrot.lane.b32.xlu0 %v2513, 4
      %v4855 = vpop.permute.xlu0 %4854
      %4856 = vrot.lane.b32.xlu0 %v2514, 4
      %v4857 = vpop.permute.xlu0 %4856
      %4858 = vrot.lane.b32.xlu0 %v2515, 4
      %v4859 = vpop.permute.xlu0 %4858
      %4860 = vrot.lane.b32.xlu0 %v2516, 4
      %v4861 = vpop.permute.xlu0 %4860
      %4862 = vrot.lane.b32.xlu0 %v2517, 4
      %v4863 = vpop.permute.xlu0 %4862
      %4864 = vrot.lane.b32.xlu0 %v2518, 4
      %v4865 = vpop.permute.xlu0 %4864
      %4866 = vrot.lane.b32.xlu0 %v2519, 4
      %v4867 = vpop.permute.xlu0 %4866
      %4868 = vrot.lane.b32.xlu0 %v2520, 4
      %v4869 = vpop.permute.xlu0 %4868
      %4870 = vrot.lane.b32.xlu0 %v2521, 4
      %v4871 = vpop.permute.xlu0 %4870
      %4872 = vrot.lane.b32.xlu0 %v2522, 4
      %v4873 = vpop.permute.xlu0 %4872
      %4874 = vrot.lane.b32.xlu0 %v2523, 4
      %v4875 = vpop.permute.xlu0 %4874
      %4876 = vrot.lane.b32.xlu0 %v2524, 4
      %v4877 = vpop.permute.xlu0 %4876
      %4878 = vrot.lane.b32.xlu0 %v2525, 4
      %v4879 = vpop.permute.xlu0 %4878
      %4880 = vrot.lane.b32.xlu0 %v2526, 4
      %v4881 = vpop.permute.xlu0 %4880
      %4882 = vrot.lane.b32.xlu0 %v2527, 4
      %v4883 = vpop.permute.xlu0 %4882
      %4884 = vrot.lane.b32.xlu0 %v2528, 4
      %v4885 = vpop.permute.xlu0 %4884
      %4886 = vrot.lane.b32.xlu0 %v2529, 4
      %v4887 = vpop.permute.xlu0 %4886
      %4888 = vrot.lane.b32.xlu0 %v2530, 4
      %v4889 = vpop.permute.xlu0 %4888
      %4890 = vrot.lane.b32.xlu0 %v2531, 4
      %v4891 = vpop.permute.xlu0 %4890
      %4892 = vrot.lane.b32.xlu0 %v2532, 4
      %v4893 = vpop.permute.xlu0 %4892
      %4894 = vrot.lane.b32.xlu0 %v2533, 4
      %v4895 = vpop.permute.xlu0 %4894
      %4896 = vrot.lane.b32.xlu0 %v2534, 4
      %v4897 = vpop.permute.xlu0 %4896
      %4898 = vrot.lane.b32.xlu0 %v2535, 4
      %v4899 = vpop.permute.xlu0 %4898
      %4900 = vrot.lane.b32.xlu0 %v2536, 4
      %v4901 = vpop.permute.xlu0 %4900
      %4902 = vrot.lane.b32.xlu0 %v2537, 4
      %v4903 = vpop.permute.xlu0 %4902
      %4904 = vrot.lane.b32.xlu0 %v2538, 4
      %v4905 = vpop.permute.xlu0 %4904
      %4906 = vrot.lane.b32.xlu0 %v2539, 4
      %v4907 = vpop.permute.xlu0 %4906
      %4908 = vrot.lane.b32.xlu0 %v2540, 4
      %v4909 = vpop.permute.xlu0 %4908
      %4910 = vrot.lane.b32.xlu0 %v2541, 4
      %v4911 = vpop.permute.xlu0 %4910
      %4912 = vrot.lane.b32.xlu0 %v2542, 4
      %v4913 = vpop.permute.xlu0 %4912
      %4914 = vrot.lane.b32.xlu0 %v2543, 4
      %v4915 = vpop.permute.xlu0 %4914
      %4916 = vrot.lane.b32.xlu0 %v2544, 4
      %v4917 = vpop.permute.xlu0 %4916
      %4918 = vrot.lane.b32.xlu0 %v2545, 4
      %v4919 = vpop.permute.xlu0 %4918
      %4920 = vrot.lane.b32.xlu0 %v2546, 4
      %v4921 = vpop.permute.xlu0 %4920
      %4922 = vrot.lane.b32.xlu0 %v2547, 4
      %v4923 = vpop.permute.xlu0 %4922
      %5032 = vrot.lane.b32.xlu0 %v2764, 8
      %v5033 = vpop.permute.xlu0 %5032
      %5034 = vrot.lane.b32.xlu0 %v2765, 8
      %v5035 = vpop.permute.xlu0 %5034
      %5036 = vrot.lane.b32.xlu0 %v2766, 8
      %v5037 = vpop.permute.xlu0 %5036
      %5038 = vrot.lane.b32.xlu0 %v2767, 8
      %v5039 = vpop.permute.xlu0 %5038
      %5040 = vrot.lane.b32.xlu0 %v2768, 8
      %v5041 = vpop.permute.xlu0 %5040
      %5042 = vrot.lane.b32.xlu0 %v2769, 8
      %v5043 = vpop.permute.xlu0 %5042
      %5044 = vrot.lane.b32.xlu0 %v2770, 8
      %v5045 = vpop.permute.xlu0 %5044
      %5046 = vrot.lane.b32.xlu0 %v2771, 8
      %v5047 = vpop.permute.xlu0 %5046
      %5048 = vrot.lane.b32.xlu0 %v2772, 8
      %v5049 = vpop.permute.xlu0 %5048
      %5050 = vrot.lane.b32.xlu0 %v2773, 8
      %v5051 = vpop.permute.xlu0 %5050
      %5052 = vrot.lane.b32.xlu0 %v2774, 8
      %v5053 = vpop.permute.xlu0 %5052
      %5054 = vrot.lane.b32.xlu0 %v2775, 8
      %v5055 = vpop.permute.xlu0 %5054
      %5056 = vrot.lane.b32.xlu0 %v2776, 8
      %v5057 = vpop.permute.xlu0 %5056
      %5058 = vrot.lane.b32.xlu0 %v2777, 8
      %v5059 = vpop.permute.xlu0 %5058
      %5060 = vrot.lane.b32.xlu0 %v2778, 8
      %v5061 = vpop.permute.xlu0 %5060
      %5062 = vrot.lane.b32.xlu0 %v2779, 8
      %v5063 = vpop.permute.xlu0 %5062
      %5064 = vrot.lane.b32.xlu0 %v2780, 8
      %v5065 = vpop.permute.xlu0 %5064
      %5066 = vrot.lane.b32.xlu0 %v2781, 8
      %v5067 = vpop.permute.xlu0 %5066
      %5068 = vrot.lane.b32.xlu0 %v2782, 8
      %v5069 = vpop.permute.xlu0 %5068
      %5070 = vrot.lane.b32.xlu0 %v2783, 8
      %v5071 = vpop.permute.xlu0 %5070
      %5072 = vrot.lane.b32.xlu0 %v2784, 8
      %v5073 = vpop.permute.xlu0 %5072
      %5074 = vrot.lane.b32.xlu0 %v2785, 8
      %v5075 = vpop.permute.xlu0 %5074
      %5076 = vrot.lane.b32.xlu0 %v2786, 8
      %v5077 = vpop.permute.xlu0 %5076
      %5078 = vrot.lane.b32.xlu0 %v2787, 8
      %v5079 = vpop.permute.xlu0 %5078
      %5080 = vrot.lane.b32.xlu0 %v2788, 8
      %v5081 = vpop.permute.xlu0 %5080
      %5082 = vrot.lane.b32.xlu0 %v2789, 8
      %v5083 = vpop.permute.xlu0 %5082
      %5084 = vrot.lane.b32.xlu0 %v2790, 8
      %v5085 = vpop.permute.xlu0 %5084
      %5086 = vrot.lane.b32.xlu0 %v2791, 8
      %v5087 = vpop.permute.xlu0 %5086
      %5088 = vrot.lane.b32.xlu0 %v2792, 8
      %v5089 = vpop.permute.xlu0 %5088
      %5090 = vrot.lane.b32.xlu0 %v2793, 8
      %v5091 = vpop.permute.xlu0 %5090
      %5092 = vrot.lane.b32.xlu0 %v2794, 8
      %v5093 = vpop.permute.xlu0 %5092
      %5094 = vrot.lane.b32.xlu0 %v2795, 8
      %v5095 = vpop.permute.xlu0 %5094
      %5096 = vrot.lane.b32.xlu0 %v2796, 8
      %v5097 = vpop.permute.xlu0 %5096
      %5098 = vrot.lane.b32.xlu0 %v2797, 8
      %v5099 = vpop.permute.xlu0 %5098
      %5100 = vrot.lane.b32.xlu0 %v2798, 8
      %v5101 = vpop.permute.xlu0 %5100
      %5102 = vrot.lane.b32.xlu0 %v2799, 8
      %v5103 = vpop.permute.xlu0 %5102
      %5104 = vrot.lane.b32.xlu0 %v2800, 8
      %v5105 = vpop.permute.xlu0 %5104
      %5106 = vrot.lane.b32.xlu0 %v2801, 8
      %v5107 = vpop.permute.xlu0 %5106
      %5108 = vrot.lane.b32.xlu0 %v2802, 8
      %v5109 = vpop.permute.xlu0 %5108
      %5110 = vrot.lane.b32.xlu0 %v2803, 8
      %v5111 = vpop.permute.xlu0 %5110
      %5112 = vrot.lane.b32.xlu0 %v2804, 8
      %v5113 = vpop.permute.xlu0 %5112
      %5114 = vrot.lane.b32.xlu0 %v2805, 8
      %v5115 = vpop.permute.xlu0 %5114
      %5116 = vrot.lane.b32.xlu0 %v2806, 8
      %v5117 = vpop.permute.xlu0 %5116
      %5118 = vrot.lane.b32.xlu0 %v2807, 8
      %v5119 = vpop.permute.xlu0 %5118
      %5120 = vrot.lane.b32.xlu0 %v2808, 8
      %v5121 = vpop.permute.xlu0 %5120
      %5122 = vrot.lane.b32.xlu0 %v2809, 8
      %v5123 = vpop.permute.xlu0 %5122
      %5124 = vrot.lane.b32.xlu0 %v2810, 8
      %v5125 = vpop.permute.xlu0 %5124
      %5126 = vrot.lane.b32.xlu0 %v2811, 8
      %v5127 = vpop.permute.xlu0 %5126
      %5128 = vrot.lane.b32.xlu0 %v2812, 8
      %v5129 = vpop.permute.xlu0 %5128
      %5130 = vrot.lane.b32.xlu0 %v2813, 8
      %v5131 = vpop.permute.xlu0 %5130
      %5132 = vrot.lane.b32.xlu0 %v2814, 8
      %v5133 = vpop.permute.xlu0 %5132
      %5134 = vrot.lane.b32.xlu0 %v2815, 8
      %v5135 = vpop.permute.xlu0 %5134
      %5136 = vrot.lane.b32.xlu0 %v2816, 8
      %v5137 = vpop.permute.xlu0 %5136
      %5138 = vrot.lane.b32.xlu0 %v2817, 8
      %v5139 = vpop.permute.xlu0 %5138
      %5248 = vrot.lane.b32.xlu0 %v3034, 12
      %v5249 = vpop.permute.xlu0 %5248
      %5250 = vrot.lane.b32.xlu0 %v3035, 12
      %v5251 = vpop.permute.xlu0 %5250
      %5252 = vrot.lane.b32.xlu0 %v3036, 12
      %v5253 = vpop.permute.xlu0 %5252
      %5254 = vrot.lane.b32.xlu0 %v3037, 12
      %v5255 = vpop.permute.xlu0 %5254
      %5256 = vrot.lane.b32.xlu0 %v3038, 12
      %v5257 = vpop.permute.xlu0 %5256
      %5258 = vrot.lane.b32.xlu0 %v3039, 12
      %v5259 = vpop.permute.xlu0 %5258
      %5260 = vrot.lane.b32.xlu0 %v3040, 12
      %v5261 = vpop.permute.xlu0 %5260
      %5262 = vrot.lane.b32.xlu0 %v3041, 12
      %v5263 = vpop.permute.xlu0 %5262
      %5264 = vrot.lane.b32.xlu0 %v3042, 12
      %v5265 = vpop.permute.xlu0 %5264
      %5266 = vrot.lane.b32.xlu0 %v3043, 12
      %v5267 = vpop.permute.xlu0 %5266
      %5268 = vrot.lane.b32.xlu0 %v3044, 12
      %v5269 = vpop.permute.xlu0 %5268
      %5270 = vrot.lane.b32.xlu0 %v3045, 12
      %v5271 = vpop.permute.xlu0 %5270
      %5272 = vrot.lane.b32.xlu0 %v3046, 12
      %v5273 = vpop.permute.xlu0 %5272
      %5274 = vrot.lane.b32.xlu0 %v3047, 12
      %v5275 = vpop.permute.xlu0 %5274
      %5276 = vrot.lane.b32.xlu0 %v3048, 12
      %v5277 = vpop.permute.xlu0 %5276
      %5278 = vrot.lane.b32.xlu0 %v3049, 12
      %v5279 = vpop.permute.xlu0 %5278
      %5280 = vrot.lane.b32.xlu0 %v3050, 12
      %v5281 = vpop.permute.xlu0 %5280
      %5282 = vrot.lane.b32.xlu0 %v3051, 12
      %v5283 = vpop.permute.xlu0 %5282
      %5284 = vrot.lane.b32.xlu0 %v3052, 12
      %v5285 = vpop.permute.xlu0 %5284
      %5286 = vrot.lane.b32.xlu0 %v3053, 12
      %v5287 = vpop.permute.xlu0 %5286
      %5288 = vrot.lane.b32.xlu0 %v3054, 12
      %v5289 = vpop.permute.xlu0 %5288
      %5290 = vrot.lane.b32.xlu0 %v3055, 12
      %v5291 = vpop.permute.xlu0 %5290
      %5292 = vrot.lane.b32.xlu0 %v3056, 12
      %v5293 = vpop.permute.xlu0 %5292
      %5294 = vrot.lane.b32.xlu0 %v3057, 12
      %v5295 = vpop.permute.xlu0 %5294
      %5296 = vrot.lane.b32.xlu0 %v3058, 12
      %v5297 = vpop.permute.xlu0 %5296
      %5298 = vrot.lane.b32.xlu0 %v3059, 12
      %v5299 = vpop.permute.xlu0 %5298
      %5300 = vrot.lane.b32.xlu0 %v3060, 12
      %v5301 = vpop.permute.xlu0 %5300
      %5302 = vrot.lane.b32.xlu0 %v3061, 12
      %v5303 = vpop.permute.xlu0 %5302
      %5304 = vrot.lane.b32.xlu0 %v3062, 12
      %v5305 = vpop.permute.xlu0 %5304
      %5306 = vrot.lane.b32.xlu0 %v3063, 12
      %v5307 = vpop.permute.xlu0 %5306
      %5308 = vrot.lane.b32.xlu0 %v3064, 12
      %v5309 = vpop.permute.xlu0 %5308
      %5310 = vrot.lane.b32.xlu0 %v3065, 12
      %v5311 = vpop.permute.xlu0 %5310
      %5312 = vrot.lane.b32.xlu0 %v3066, 12
      %v5313 = vpop.permute.xlu0 %5312
      %5314 = vrot.lane.b32.xlu0 %v3067, 12
      %v5315 = vpop.permute.xlu0 %5314
      %5316 = vrot.lane.b32.xlu0 %v3068, 12
      %v5317 = vpop.permute.xlu0 %5316
      %5318 = vrot.lane.b32.xlu0 %v3069, 12
      %v5319 = vpop.permute.xlu0 %5318
      %5320 = vrot.lane.b32.xlu0 %v3070, 12
      %v5321 = vpop.permute.xlu0 %5320
      %5322 = vrot.lane.b32.xlu0 %v3071, 12
      %v5323 = vpop.permute.xlu0 %5322
      %5324 = vrot.lane.b32.xlu0 %v3072, 12
      %v5325 = vpop.permute.xlu0 %5324
      %5326 = vrot.lane.b32.xlu0 %v3073, 12
      %v5327 = vpop.permute.xlu0 %5326
      %5328 = vrot.lane.b32.xlu0 %v3074, 12
      %v5329 = vpop.permute.xlu0 %5328
      %5330 = vrot.lane.b32.xlu0 %v3075, 12
      %v5331 = vpop.permute.xlu0 %5330
      %5332 = vrot.lane.b32.xlu0 %v3076, 12
      %v5333 = vpop.permute.xlu0 %5332
      %5334 = vrot.lane.b32.xlu0 %v3077, 12
      %v5335 = vpop.permute.xlu0 %5334
      %5336 = vrot.lane.b32.xlu0 %v3078, 12
      %v5337 = vpop.permute.xlu0 %5336
      %5338 = vrot.lane.b32.xlu0 %v3079, 12
      %v5339 = vpop.permute.xlu0 %5338
      %5340 = vrot.lane.b32.xlu0 %v3080, 12
      %v5341 = vpop.permute.xlu0 %5340
      %5342 = vrot.lane.b32.xlu0 %v3081, 12
      %v5343 = vpop.permute.xlu0 %5342
      %5344 = vrot.lane.b32.xlu0 %v3082, 12
      %v5345 = vpop.permute.xlu0 %5344
      %5346 = vrot.lane.b32.xlu0 %v3083, 12
      %v5347 = vpop.permute.xlu0 %5346
      %5348 = vrot.lane.b32.xlu0 %v3084, 12
      %v5349 = vpop.permute.xlu0 %5348
      %5350 = vrot.lane.b32.xlu0 %v3085, 12
      %v5351 = vpop.permute.xlu0 %5350
      %5352 = vrot.lane.b32.xlu0 %v3086, 12
      %v5353 = vpop.permute.xlu0 %5352
      %5354 = vrot.lane.b32.xlu0 %v3087, 12
      %v5355 = vpop.permute.xlu0 %5354
      %5464 = vrot.lane.b32.xlu0 %v3304, 16
      %v5465 = vpop.permute.xlu0 %5464
      %5466 = vrot.lane.b32.xlu0 %v3305, 16
      %v5467 = vpop.permute.xlu0 %5466
      %5468 = vrot.lane.b32.xlu0 %v3306, 16
      %v5469 = vpop.permute.xlu0 %5468
      %5470 = vrot.lane.b32.xlu0 %v3307, 16
      %v5471 = vpop.permute.xlu0 %5470
      %5472 = vrot.lane.b32.xlu0 %v3308, 16
      %v5473 = vpop.permute.xlu0 %5472
      %5474 = vrot.lane.b32.xlu0 %v3309, 16
      %v5475 = vpop.permute.xlu0 %5474
      %5476 = vrot.lane.b32.xlu0 %v3310, 16
      %v5477 = vpop.permute.xlu0 %5476
      %5478 = vrot.lane.b32.xlu0 %v3311, 16
      %v5479 = vpop.permute.xlu0 %5478
      %5480 = vrot.lane.b32.xlu0 %v3312, 16
      %v5481 = vpop.permute.xlu0 %5480
      %5482 = vrot.lane.b32.xlu0 %v3313, 16
      %v5483 = vpop.permute.xlu0 %5482
      %5484 = vrot.lane.b32.xlu0 %v3314, 16
      %v5485 = vpop.permute.xlu0 %5484
      %5486 = vrot.lane.b32.xlu0 %v3315, 16
      %v5487 = vpop.permute.xlu0 %5486
      %5488 = vrot.lane.b32.xlu0 %v3316, 16
      %v5489 = vpop.permute.xlu0 %5488
      %5490 = vrot.lane.b32.xlu0 %v3317, 16
      %v5491 = vpop.permute.xlu0 %5490
      %5492 = vrot.lane.b32.xlu0 %v3318, 16
      %v5493 = vpop.permute.xlu0 %5492
      %5494 = vrot.lane.b32.xlu0 %v3319, 16
      %v5495 = vpop.permute.xlu0 %5494
      %5496 = vrot.lane.b32.xlu0 %v3320, 16
      %v5497 = vpop.permute.xlu0 %5496
      %5498 = vrot.lane.b32.xlu0 %v3321, 16
      %v5499 = vpop.permute.xlu0 %5498
      %5500 = vrot.lane.b32.xlu0 %v3322, 16
      %v5501 = vpop.permute.xlu0 %5500
      %5502 = vrot.lane.b32.xlu0 %v3323, 16
      %v5503 = vpop.permute.xlu0 %5502
      %5504 = vrot.lane.b32.xlu0 %v3324, 16
      %v5505 = vpop.permute.xlu0 %5504
      %5506 = vrot.lane.b32.xlu0 %v3325, 16
      %v5507 = vpop.permute.xlu0 %5506
      %5508 = vrot.lane.b32.xlu0 %v3326, 16
      %v5509 = vpop.permute.xlu0 %5508
      %5510 = vrot.lane.b32.xlu0 %v3327, 16
      %v5511 = vpop.permute.xlu0 %5510
      %5512 = vrot.lane.b32.xlu0 %v3328, 16
      %v5513 = vpop.permute.xlu0 %5512
      %5514 = vrot.lane.b32.xlu0 %v3329, 16
      %v5515 = vpop.permute.xlu0 %5514
      %5516 = vrot.lane.b32.xlu0 %v3330, 16
      %v5517 = vpop.permute.xlu0 %5516
      %5518 = vrot.lane.b32.xlu0 %v3331, 16
      %v5519 = vpop.permute.xlu0 %5518
      %5520 = vrot.lane.b32.xlu0 %v3332, 16
      %v5521 = vpop.permute.xlu0 %5520
      %5522 = vrot.lane.b32.xlu0 %v3333, 16
      %v5523 = vpop.permute.xlu0 %5522
      %5524 = vrot.lane.b32.xlu0 %v3334, 16
      %v5525 = vpop.permute.xlu0 %5524
      %5526 = vrot.lane.b32.xlu0 %v3335, 16
      %v5527 = vpop.permute.xlu0 %5526
      %5528 = vrot.lane.b32.xlu0 %v3336, 16
      %v5529 = vpop.permute.xlu0 %5528
      %5530 = vrot.lane.b32.xlu0 %v3337, 16
      %v5531 = vpop.permute.xlu0 %5530
      %5532 = vrot.lane.b32.xlu0 %v3338, 16
      %v5533 = vpop.permute.xlu0 %5532
      %5534 = vrot.lane.b32.xlu0 %v3339, 16
      %v5535 = vpop.permute.xlu0 %5534
      %5536 = vrot.lane.b32.xlu0 %v3340, 16
      %v5537 = vpop.permute.xlu0 %5536
      %5538 = vrot.lane.b32.xlu0 %v3341, 16
      %v5539 = vpop.permute.xlu0 %5538
      %5540 = vrot.lane.b32.xlu0 %v3342, 16
      %v5541 = vpop.permute.xlu0 %5540
      %5542 = vrot.lane.b32.xlu0 %v3343, 16
      %v5543 = vpop.permute.xlu0 %5542
      %5544 = vrot.lane.b32.xlu0 %v3344, 16
      %v5545 = vpop.permute.xlu0 %5544
      %5546 = vrot.lane.b32.xlu0 %v3345, 16
      %v5547 = vpop.permute.xlu0 %5546
      %5548 = vrot.lane.b32.xlu0 %v3346, 16
      %v5549 = vpop.permute.xlu0 %5548
      %5550 = vrot.lane.b32.xlu0 %v3347, 16
      %v5551 = vpop.permute.xlu0 %5550
      %5552 = vrot.lane.b32.xlu0 %v3348, 16
      %v5553 = vpop.permute.xlu0 %5552
      %5554 = vrot.lane.b32.xlu0 %v3349, 16
      %v5555 = vpop.permute.xlu0 %5554
      %5556 = vrot.lane.b32.xlu0 %v3350, 16
      %v5557 = vpop.permute.xlu0 %5556
      %5558 = vrot.lane.b32.xlu0 %v3351, 16
      %v5559 = vpop.permute.xlu0 %5558
      %5560 = vrot.lane.b32.xlu0 %v3352, 16
      %v5561 = vpop.permute.xlu0 %5560
      %5562 = vrot.lane.b32.xlu0 %v3353, 16
      %v5563 = vpop.permute.xlu0 %5562
      %5564 = vrot.lane.b32.xlu0 %v3354, 16
      %v5565 = vpop.permute.xlu0 %5564
      %5566 = vrot.lane.b32.xlu0 %v3355, 16
      %v5567 = vpop.permute.xlu0 %5566
      %5568 = vrot.lane.b32.xlu0 %v3356, 16
      %v5569 = vpop.permute.xlu0 %5568
      %5570 = vrot.lane.b32.xlu0 %v3357, 16
      %v5571 = vpop.permute.xlu0 %5570
      %5680 = vrot.lane.b32.xlu0 %v3574, 20
      %v5681 = vpop.permute.xlu0 %5680
      %5682 = vrot.lane.b32.xlu0 %v3575, 20
      %v5683 = vpop.permute.xlu0 %5682
      %5684 = vrot.lane.b32.xlu0 %v3576, 20
      %v5685 = vpop.permute.xlu0 %5684
      %5686 = vrot.lane.b32.xlu0 %v3577, 20
      %v5687 = vpop.permute.xlu0 %5686
      %5688 = vrot.lane.b32.xlu0 %v3578, 20
      %v5689 = vpop.permute.xlu0 %5688
      %5690 = vrot.lane.b32.xlu0 %v3579, 20
      %v5691 = vpop.permute.xlu0 %5690
      %5692 = vrot.lane.b32.xlu0 %v3580, 20
      %v5693 = vpop.permute.xlu0 %5692
      %5694 = vrot.lane.b32.xlu0 %v3581, 20
      %v5695 = vpop.permute.xlu0 %5694
      %5696 = vrot.lane.b32.xlu0 %v3582, 20
      %v5697 = vpop.permute.xlu0 %5696
      %5698 = vrot.lane.b32.xlu0 %v3583, 20
      %v5699 = vpop.permute.xlu0 %5698
      %5700 = vrot.lane.b32.xlu0 %v3584, 20
      %v5701 = vpop.permute.xlu0 %5700
      %5702 = vrot.lane.b32.xlu0 %v3585, 20
      %v5703 = vpop.permute.xlu0 %5702
      %5704 = vrot.lane.b32.xlu0 %v3586, 20
      %v5705 = vpop.permute.xlu0 %5704
      %5706 = vrot.lane.b32.xlu0 %v3587, 20
      %v5707 = vpop.permute.xlu0 %5706
      %5708 = vrot.lane.b32.xlu0 %v3588, 20
      %v5709 = vpop.permute.xlu0 %5708
      %5710 = vrot.lane.b32.xlu0 %v3589, 20
      %v5711 = vpop.permute.xlu0 %5710
      %5712 = vrot.lane.b32.xlu0 %v3590, 20
      %v5713 = vpop.permute.xlu0 %5712
      %5714 = vrot.lane.b32.xlu0 %v3591, 20
      %v5715 = vpop.permute.xlu0 %5714
      %5716 = vrot.lane.b32.xlu0 %v3592, 20
      %v5717 = vpop.permute.xlu0 %5716
      %5718 = vrot.lane.b32.xlu0 %v3593, 20
      %v5719 = vpop.permute.xlu0 %5718
      %5720 = vrot.lane.b32.xlu0 %v3594, 20
      %v5721 = vpop.permute.xlu0 %5720
      %5722 = vrot.lane.b32.xlu0 %v3595, 20
      %v5723 = vpop.permute.xlu0 %5722
      %5724 = vrot.lane.b32.xlu0 %v3596, 20
      %v5725 = vpop.permute.xlu0 %5724
      %5726 = vrot.lane.b32.xlu0 %v3597, 20
      %v5727 = vpop.permute.xlu0 %5726
      %5728 = vrot.lane.b32.xlu0 %v3598, 20
      %v5729 = vpop.permute.xlu0 %5728
      %5730 = vrot.lane.b32.xlu0 %v3599, 20
      %v5731 = vpop.permute.xlu0 %5730
      %5732 = vrot.lane.b32.xlu0 %v3600, 20
      %v5733 = vpop.permute.xlu0 %5732
      %5734 = vrot.lane.b32.xlu0 %v3601, 20
      %v5735 = vpop.permute.xlu0 %5734
      %5736 = vrot.lane.b32.xlu0 %v3602, 20
      %v5737 = vpop.permute.xlu0 %5736
      %5738 = vrot.lane.b32.xlu0 %v3603, 20
      %v5739 = vpop.permute.xlu0 %5738
      %5740 = vrot.lane.b32.xlu0 %v3604, 20
      %v5741 = vpop.permute.xlu0 %5740
      %5742 = vrot.lane.b32.xlu0 %v3605, 20
      %v5743 = vpop.permute.xlu0 %5742
      %5744 = vrot.lane.b32.xlu0 %v3606, 20
      %v5745 = vpop.permute.xlu0 %5744
      %5746 = vrot.lane.b32.xlu0 %v3607, 20
      %v5747 = vpop.permute.xlu0 %5746
      %5748 = vrot.lane.b32.xlu0 %v3608, 20
      %v5749 = vpop.permute.xlu0 %5748
      %5750 = vrot.lane.b32.xlu0 %v3609, 20
      %v5751 = vpop.permute.xlu0 %5750
      %5752 = vrot.lane.b32.xlu0 %v3610, 20
      %v5753 = vpop.permute.xlu0 %5752
      %5754 = vrot.lane.b32.xlu0 %v3611, 20
      %v5755 = vpop.permute.xlu0 %5754
      %5756 = vrot.lane.b32.xlu0 %v3612, 20
      %v5757 = vpop.permute.xlu0 %5756
      %5758 = vrot.lane.b32.xlu0 %v3613, 20
      %v5759 = vpop.permute.xlu0 %5758
      %5760 = vrot.lane.b32.xlu0 %v3614, 20
      %v5761 = vpop.permute.xlu0 %5760
      %5762 = vrot.lane.b32.xlu0 %v3615, 20
      %v5763 = vpop.permute.xlu0 %5762
      %5764 = vrot.lane.b32.xlu0 %v3616, 20
      %v5765 = vpop.permute.xlu0 %5764
      %5766 = vrot.lane.b32.xlu0 %v3617, 20
      %v5767 = vpop.permute.xlu0 %5766
      %5768 = vrot.lane.b32.xlu0 %v3618, 20
      %v5769 = vpop.permute.xlu0 %5768
      %5770 = vrot.lane.b32.xlu0 %v3619, 20
      %v5771 = vpop.permute.xlu0 %5770
      %5772 = vrot.lane.b32.xlu0 %v3620, 20
      %v5773 = vpop.permute.xlu0 %5772
      %5774 = vrot.lane.b32.xlu0 %v3621, 20
      %v5775 = vpop.permute.xlu0 %5774
      %5776 = vrot.lane.b32.xlu0 %v3622, 20
      %v5777 = vpop.permute.xlu0 %5776
      %5778 = vrot.lane.b32.xlu0 %v3623, 20
      %v5779 = vpop.permute.xlu0 %5778
      %5780 = vrot.lane.b32.xlu0 %v3624, 20
      %v5781 = vpop.permute.xlu0 %5780
      %5782 = vrot.lane.b32.xlu0 %v3625, 20
      %v5783 = vpop.permute.xlu0 %5782
      %5784 = vrot.lane.b32.xlu0 %v3626, 20
      %v5785 = vpop.permute.xlu0 %5784
      %5786 = vrot.lane.b32.xlu0 %v3627, 20
      %v5787 = vpop.permute.xlu0 %5786
      %5896 = vrot.lane.b32.xlu0 %v3844, 24
      %v5897 = vpop.permute.xlu0 %5896
      %5898 = vrot.lane.b32.xlu0 %v3845, 24
      %v5899 = vpop.permute.xlu0 %5898
      %5900 = vrot.lane.b32.xlu0 %v3846, 24
      %v5901 = vpop.permute.xlu0 %5900
      %5902 = vrot.lane.b32.xlu0 %v3847, 24
      %v5903 = vpop.permute.xlu0 %5902
      %5904 = vrot.lane.b32.xlu0 %v3848, 24
      %v5905 = vpop.permute.xlu0 %5904
      %5906 = vrot.lane.b32.xlu0 %v3849, 24
      %v5907 = vpop.permute.xlu0 %5906
      %5908 = vrot.lane.b32.xlu0 %v3850, 24
      %v5909 = vpop.permute.xlu0 %5908
      %5910 = vrot.lane.b32.xlu0 %v3851, 24
      %v5911 = vpop.permute.xlu0 %5910
      %5912 = vrot.lane.b32.xlu0 %v3852, 24
      %v5913 = vpop.permute.xlu0 %5912
      %5914 = vrot.lane.b32.xlu0 %v3853, 24
      %v5915 = vpop.permute.xlu0 %5914
      %5916 = vrot.lane.b32.xlu0 %v3854, 24
      %v5917 = vpop.permute.xlu0 %5916
      %5918 = vrot.lane.b32.xlu0 %v3855, 24
      %v5919 = vpop.permute.xlu0 %5918
      %5920 = vrot.lane.b32.xlu0 %v3856, 24
      %v5921 = vpop.permute.xlu0 %5920
      %5922 = vrot.lane.b32.xlu0 %v3857, 24
      %v5923 = vpop.permute.xlu0 %5922
      %5924 = vrot.lane.b32.xlu0 %v3858, 24
      %v5925 = vpop.permute.xlu0 %5924
      %5926 = vrot.lane.b32.xlu0 %v3859, 24
      %v5927 = vpop.permute.xlu0 %5926
      %5928 = vrot.lane.b32.xlu0 %v3860, 24
      %v5929 = vpop.permute.xlu0 %5928
      %5930 = vrot.lane.b32.xlu0 %v3861, 24
      %v5931 = vpop.permute.xlu0 %5930
      %5932 = vrot.lane.b32.xlu0 %v3862, 24
      %v5933 = vpop.permute.xlu0 %5932
      %5934 = vrot.lane.b32.xlu0 %v3863, 24
      %v5935 = vpop.permute.xlu0 %5934
      %5936 = vrot.lane.b32.xlu0 %v3864, 24
      %v5937 = vpop.permute.xlu0 %5936
      %5938 = vrot.lane.b32.xlu0 %v3865, 24
      %v5939 = vpop.permute.xlu0 %5938
      %5940 = vrot.lane.b32.xlu0 %v3866, 24
      %v5941 = vpop.permute.xlu0 %5940
      %5942 = vrot.lane.b32.xlu0 %v3867, 24
      %v5943 = vpop.permute.xlu0 %5942
      %5944 = vrot.lane.b32.xlu0 %v3868, 24
      %v5945 = vpop.permute.xlu0 %5944
      %5946 = vrot.lane.b32.xlu0 %v3869, 24
      %v5947 = vpop.permute.xlu0 %5946
      %5948 = vrot.lane.b32.xlu0 %v3870, 24
      %v5949 = vpop.permute.xlu0 %5948
      %5950 = vrot.lane.b32.xlu0 %v3871, 24
      %v5951 = vpop.permute.xlu0 %5950
      %5952 = vrot.lane.b32.xlu0 %v3872, 24
      %v5953 = vpop.permute.xlu0 %5952
      %5954 = vrot.lane.b32.xlu0 %v3873, 24
      %v5955 = vpop.permute.xlu0 %5954
      %5956 = vrot.lane.b32.xlu0 %v3874, 24
      %v5957 = vpop.permute.xlu0 %5956
      %5958 = vrot.lane.b32.xlu0 %v3875, 24
      %v5959 = vpop.permute.xlu0 %5958
      %5960 = vrot.lane.b32.xlu0 %v3876, 24
      %v5961 = vpop.permute.xlu0 %5960
      %5962 = vrot.lane.b32.xlu0 %v3877, 24
      %v5963 = vpop.permute.xlu0 %5962
      %5964 = vrot.lane.b32.xlu0 %v3878, 24
      %v5965 = vpop.permute.xlu0 %5964
      %5966 = vrot.lane.b32.xlu0 %v3879, 24
      %v5967 = vpop.permute.xlu0 %5966
      %5968 = vrot.lane.b32.xlu0 %v3880, 24
      %v5969 = vpop.permute.xlu0 %5968
      %5970 = vrot.lane.b32.xlu0 %v3881, 24
      %v5971 = vpop.permute.xlu0 %5970
      %5972 = vrot.lane.b32.xlu0 %v3882, 24
      %v5973 = vpop.permute.xlu0 %5972
      %5974 = vrot.lane.b32.xlu0 %v3883, 24
      %v5975 = vpop.permute.xlu0 %5974
      %5976 = vrot.lane.b32.xlu0 %v3884, 24
      %v5977 = vpop.permute.xlu0 %5976
      %5978 = vrot.lane.b32.xlu0 %v3885, 24
      %v5979 = vpop.permute.xlu0 %5978
      %5980 = vrot.lane.b32.xlu0 %v3886, 24
      %v5981 = vpop.permute.xlu0 %5980
      %5982 = vrot.lane.b32.xlu0 %v3887, 24
      %v5983 = vpop.permute.xlu0 %5982
      %5984 = vrot.lane.b32.xlu0 %v3888, 24
      %v5985 = vpop.permute.xlu0 %5984
      %5986 = vrot.lane.b32.xlu0 %v3889, 24
      %v5987 = vpop.permute.xlu0 %5986
      %5988 = vrot.lane.b32.xlu0 %v3890, 24
      %v5989 = vpop.permute.xlu0 %5988
      %5990 = vrot.lane.b32.xlu0 %v3891, 24
      %v5991 = vpop.permute.xlu0 %5990
      %5992 = vrot.lane.b32.xlu0 %v3892, 24
      %v5993 = vpop.permute.xlu0 %5992
      %5994 = vrot.lane.b32.xlu0 %v3893, 24
      %v5995 = vpop.permute.xlu0 %5994
      %5996 = vrot.lane.b32.xlu0 %v3894, 24
      %v5997 = vpop.permute.xlu0 %5996
      %5998 = vrot.lane.b32.xlu0 %v3895, 24
      %v5999 = vpop.permute.xlu0 %5998
      %6000 = vrot.lane.b32.xlu0 %v3896, 24
      %v6001 = vpop.permute.xlu0 %6000
      %6002 = vrot.lane.b32.xlu0 %v3897, 24
      %v6003 = vpop.permute.xlu0 %6002
      %vm6058 = vcmask 31744
      %v6059 = vsel %vm6058, %v3953, %v4169
      %v6060 = vsel %vm6058, %v3955, %v4171
      %v6061 = vsel %vm6058, %v3957, %v4173
      %v6062 = vsel %vm6058, %v3959, %v4175
      %v6063 = vsel %vm6058, %v3961, %v4177
      %v6064 = vsel %vm6058, %v3963, %v4179
      %v6065 = vsel %vm6058, %v3965, %v4181
      %v6066 = vsel %vm6058, %v3967, %v4183
      %v6067 = vsel %vm6058, %v3969, %v4185
      %v6068 = vsel %vm6058, %v3971, %v4187
      %v6069 = vsel %vm6058, %v3973, %v4189
      %v6070 = vsel %vm6058, %v3975, %v4191
      %v6071 = vsel %vm6058, %v3977, %v4193
      %v6072 = vsel %vm6058, %v3979, %v4195
      %v6073 = vsel %vm6058, %v3981, %v4197
      %v6074 = vsel %vm6058, %v3983, %v4199
      %v6075 = vsel %vm6058, %v3985, %v4201
      %v6076 = vsel %vm6058, %v3987, %v4203
      %v6077 = vsel %vm6058, %v3989, %v4205
      %v6078 = vsel %vm6058, %v3991, %v4207
      %v6079 = vsel %vm6058, %v3993, %v4209
      %v6080 = vsel %vm6058, %v3995, %v4211
      %v6081 = vsel %vm6058, %v3997, %v4213
      %v6082 = vsel %vm6058, %v3999, %v4215
      %v6083 = vsel %vm6058, %v4001, %v4217
      %v6084 = vsel %vm6058, %v4003, %v4219
      %v6085 = vsel %vm6058, %v4005, %v4221
      %v6086 = vsel %vm6058, %v4007, %v4223
      %v6087 = vsel %vm6058, %v4009, %v4225
      %v6088 = vsel %vm6058, %v4011, %v4227
      %v6089 = vsel %vm6058, %v4013, %v4229
      %v6090 = vsel %vm6058, %v4015, %v4231
      %v6091 = vsel %vm6058, %v4017, %v4233
      %v6092 = vsel %vm6058, %v4019, %v4235
      %v6093 = vsel %vm6058, %v4021, %v4237
      %v6094 = vsel %vm6058, %v4023, %v4239
      %v6095 = vsel %vm6058, %v4025, %v4241
      %v6096 = vsel %vm6058, %v4027, %v4243
      %v6097 = vsel %vm6058, %v4029, %v4245
      %v6098 = vsel %vm6058, %v4031, %v4247
      %v6099 = vsel %vm6058, %v4033, %v4249
      %v6100 = vsel %vm6058, %v4035, %v4251
      %v6101 = vsel %vm6058, %v4037, %v4253
      %v6102 = vsel %vm6058, %v4039, %v4255
      %v6103 = vsel %vm6058, %v4041, %v4257
      %v6104 = vsel %vm6058, %v4043, %v4259
      %v6105 = vsel %vm6058, %v4045, %v4261
      %v6106 = vsel %vm6058, %v4047, %v4263
      %v6107 = vsel %vm6058, %v4049, %v4265
      %v6108 = vsel %vm6058, %v4051, %v4267
      %v6109 = vsel %vm6058, %v4053, %v4269
      %v6110 = vsel %vm6058, %v4055, %v4271
      %v6111 = vsel %vm6058, %v4057, %v4273
      %v6112 = vsel %vm6058, %v4059, %v4275
      %vm6113 = vcmask 64512
      %v6114 = vsel %vm6113, %v6059, %v1414
      %v6115 = vsel %vm6113, %v6060, %v1415
      %v6116 = vsel %vm6113, %v6061, %v1416
      %v6117 = vsel %vm6113, %v6062, %v1417
      %v6118 = vsel %vm6113, %v6063, %v1418
      %v6119 = vsel %vm6113, %v6064, %v1419
      %v6120 = vsel %vm6113, %v6065, %v1420
      %v6121 = vsel %vm6113, %v6066, %v1421
      %v6122 = vsel %vm6113, %v6067, %v1422
      %v6123 = vsel %vm6113, %v6068, %v1423
      %v6124 = vsel %vm6113, %v6069, %v1424
      %v6125 = vsel %vm6113, %v6070, %v1425
      %v6126 = vsel %vm6113, %v6071, %v1426
      %v6127 = vsel %vm6113, %v6072, %v1427
      %v6128 = vsel %vm6113, %v6073, %v1428
      %v6129 = vsel %vm6113, %v6074, %v1429
      %v6130 = vsel %vm6113, %v6075, %v1430
      %v6131 = vsel %vm6113, %v6076, %v1431
      %v6132 = vsel %vm6113, %v6077, %v1432
      %v6133 = vsel %vm6113, %v6078, %v1433
      %v6134 = vsel %vm6113, %v6079, %v1434
      %v6135 = vsel %vm6113, %v6080, %v1435
      %v6136 = vsel %vm6113, %v6081, %v1436
      %v6137 = vsel %vm6113, %v6082, %v1437
      %v6138 = vsel %vm6113, %v6083, %v1438
      %v6139 = vsel %vm6113, %v6084, %v1439
      %v6140 = vsel %vm6113, %v6085, %v1440
      %v6141 = vsel %vm6113, %v6086, %v1441
      %v6142 = vsel %vm6113, %v6087, %v1442
      %v6143 = vsel %vm6113, %v6088, %v1443
      %v6144 = vsel %vm6113, %v6089, %v1444
      %v6145 = vsel %vm6113, %v6090, %v1445
      %v6146 = vsel %vm6113, %v6091, %v1446
      %v6147 = vsel %vm6113, %v6092, %v1447
      %v6148 = vsel %vm6113, %v6093, %v1448
      %v6149 = vsel %vm6113, %v6094, %v1449
      %v6150 = vsel %vm6113, %v6095, %v1450
      %v6151 = vsel %vm6113, %v6096, %v1451
      %v6152 = vsel %vm6113, %v6097, %v1452
      %v6153 = vsel %vm6113, %v6098, %v1453
      %v6154 = vsel %vm6113, %v6099, %v1454
      %v6155 = vsel %vm6113, %v6100, %v1455
      %v6156 = vsel %vm6113, %v6101, %v1456
      %v6157 = vsel %vm6113, %v6102, %v1457
      %v6158 = vsel %vm6113, %v6103, %v1458
      %v6159 = vsel %vm6113, %v6104, %v1459
      %v6160 = vsel %vm6113, %v6105, %v1460
      %v6161 = vsel %vm6113, %v6106, %v1461
      %v6162 = vsel %vm6113, %v6107, %v1462
      %v6163 = vsel %vm6113, %v6108, %v1463
      %v6164 = vsel %vm6113, %v6109, %v1464
      %v6165 = vsel %vm6113, %v6110, %v1465
      %v6166 = vsel %vm6113, %v6111, %v1466
      %v6167 = vsel %vm6113, %v6112, %v1467
      %vm6168 = vcmask 97280
      %v6169 = vsel %vm6168, %v6114, %v4385
      %v6170 = vsel %vm6168, %v6115, %v4387
      %v6171 = vsel %vm6168, %v6116, %v4389
      %v6172 = vsel %vm6168, %v6117, %v4391
      %v6173 = vsel %vm6168, %v6118, %v4393
      %v6174 = vsel %vm6168, %v6119, %v4395
      %v6175 = vsel %vm6168, %v6120, %v4397
      %v6176 = vsel %vm6168, %v6121, %v4399
      %v6177 = vsel %vm6168, %v6122, %v4401
      %v6178 = vsel %vm6168, %v6123, %v4403
      %v6179 = vsel %vm6168, %v6124, %v4405
      %v6180 = vsel %vm6168, %v6125, %v4407
      %v6181 = vsel %vm6168, %v6126, %v4409
      %v6182 = vsel %vm6168, %v6127, %v4411
      %v6183 = vsel %vm6168, %v6128, %v4413
      %v6184 = vsel %vm6168, %v6129, %v4415
      %v6185 = vsel %vm6168, %v6130, %v4417
      %v6186 = vsel %vm6168, %v6131, %v4419
      %v6187 = vsel %vm6168, %v6132, %v4421
      %v6188 = vsel %vm6168, %v6133, %v4423
      %v6189 = vsel %vm6168, %v6134, %v4425
      %v6190 = vsel %vm6168, %v6135, %v4427
      %v6191 = vsel %vm6168, %v6136, %v4429
      %v6192 = vsel %vm6168, %v6137, %v4431
      %v6193 = vsel %vm6168, %v6138, %v4433
      %v6194 = vsel %vm6168, %v6139, %v4435
      %v6195 = vsel %vm6168, %v6140, %v4437
      %v6196 = vsel %vm6168, %v6141, %v4439
      %v6197 = vsel %vm6168, %v6142, %v4441
      %v6198 = vsel %vm6168, %v6143, %v4443
      %v6199 = vsel %vm6168, %v6144, %v4445
      %v6200 = vsel %vm6168, %v6145, %v4447
      %v6201 = vsel %vm6168, %v6146, %v4449
      %v6202 = vsel %vm6168, %v6147, %v4451
      %v6203 = vsel %vm6168, %v6148, %v4453
      %v6204 = vsel %vm6168, %v6149, %v4455
      %v6205 = vsel %vm6168, %v6150, %v4457
      %v6206 = vsel %vm6168, %v6151, %v4459
      %v6207 = vsel %vm6168, %v6152, %v4461
      %v6208 = vsel %vm6168, %v6153, %v4463
      %v6209 = vsel %vm6168, %v6154, %v4465
      %v6210 = vsel %vm6168, %v6155, %v4467
      %v6211 = vsel %vm6168, %v6156, %v4469
      %v6212 = vsel %vm6168, %v6157, %v4471
      %v6213 = vsel %vm6168, %v6158, %v4473
      %v6214 = vsel %vm6168, %v6159, %v4475
      %v6215 = vsel %vm6168, %v6160, %v4477
      %v6216 = vsel %vm6168, %v6161, %v4479
      %v6217 = vsel %vm6168, %v6162, %v4481
      %v6218 = vsel %vm6168, %v6163, %v4483
      %v6219 = vsel %vm6168, %v6164, %v4485
      %v6220 = vsel %vm6168, %v6165, %v4487
      %v6221 = vsel %vm6168, %v6166, %v4489
      %v6222 = vsel %vm6168, %v6167, %v4491
      %vm6223 = vcmask 130048
      %v6224 = vsel %vm6223, %v6169, %v4601
      %v6225 = vsel %vm6223, %v6170, %v4603
      %v6226 = vsel %vm6223, %v6171, %v4605
      %v6227 = vsel %vm6223, %v6172, %v4607
      %v6228 = vsel %vm6223, %v6173, %v4609
      %v6229 = vsel %vm6223, %v6174, %v4611
      %v6230 = vsel %vm6223, %v6175, %v4613
      %v6231 = vsel %vm6223, %v6176, %v4615
      %v6232 = vsel %vm6223, %v6177, %v4617
      %v6233 = vsel %vm6223, %v6178, %v4619
      %v6234 = vsel %vm6223, %v6179, %v4621
      %v6235 = vsel %vm6223, %v6180, %v4623
      %v6236 = vsel %vm6223, %v6181, %v4625
      %v6237 = vsel %vm6223, %v6182, %v4627
      %v6238 = vsel %vm6223, %v6183, %v4629
      %v6239 = vsel %vm6223, %v6184, %v4631
      %v6240 = vsel %vm6223, %v6185, %v4633
      %v6241 = vsel %vm6223, %v6186, %v4635
      %v6242 = vsel %vm6223, %v6187, %v4637
      %v6243 = vsel %vm6223, %v6188, %v4639
      %v6244 = vsel %vm6223, %v6189, %v4641
      %v6245 = vsel %vm6223, %v6190, %v4643
      %v6246 = vsel %vm6223, %v6191, %v4645
      %v6247 = vsel %vm6223, %v6192, %v4647
      %v6248 = vsel %vm6223, %v6193, %v4649
      %v6249 = vsel %vm6223, %v6194, %v4651
      %v6250 = vsel %vm6223, %v6195, %v4653
      %v6251 = vsel %vm6223, %v6196, %v4655
      %v6252 = vsel %vm6223, %v6197, %v4657
      %v6253 = vsel %vm6223, %v6198, %v4659
      %v6254 = vsel %vm6223, %v6199, %v4661
      %v6255 = vsel %vm6223, %v6200, %v4663
      %v6256 = vsel %vm6223, %v6201, %v4665
      %v6257 = vsel %vm6223, %v6202, %v4667
      %v6258 = vsel %vm6223, %v6203, %v4669
      %v6259 = vsel %vm6223, %v6204, %v4671
      %v6260 = vsel %vm6223, %v6205, %v4673
      %v6261 = vsel %vm6223, %v6206, %v4675
      %v6262 = vsel %vm6223, %v6207, %v4677
      %v6263 = vsel %vm6223, %v6208, %v4679
      %v6264 = vsel %vm6223, %v6209, %v4681
      %v6265 = vsel %vm6223, %v6210, %v4683
      %v6266 = vsel %vm6223, %v6211, %v4685
      %v6267 = vsel %vm6223, %v6212, %v4687
      %v6268 = vsel %vm6223, %v6213, %v4689
      %v6269 = vsel %vm6223, %v6214, %v4691
      %v6270 = vsel %vm6223, %v6215, %v4693
      %v6271 = vsel %vm6223, %v6216, %v4695
      %v6272 = vsel %vm6223, %v6217, %v4697
      %v6273 = vsel %vm6223, %v6218, %v4699
      %v6274 = vsel %vm6223, %v6219, %v4701
      %v6275 = vsel %vm6223, %v6220, %v4703
      %v6276 = vsel %vm6223, %v6221, %v4705
      %v6277 = vsel %vm6223, %v6222, %v4707
      %vm6278 = vcmask 162816
      %v6279 = vsel %vm6278, %v6224, %v2224
      %v6280 = vsel %vm6278, %v6225, %v2225
      %v6281 = vsel %vm6278, %v6226, %v2226
      %v6282 = vsel %vm6278, %v6227, %v2227
      %v6283 = vsel %vm6278, %v6228, %v2228
      %v6284 = vsel %vm6278, %v6229, %v2229
      %v6285 = vsel %vm6278, %v6230, %v2230
      %v6286 = vsel %vm6278, %v6231, %v2231
      %v6287 = vsel %vm6278, %v6232, %v2232
      %v6288 = vsel %vm6278, %v6233, %v2233
      %v6289 = vsel %vm6278, %v6234, %v2234
      %v6290 = vsel %vm6278, %v6235, %v2235
      %v6291 = vsel %vm6278, %v6236, %v2236
      %v6292 = vsel %vm6278, %v6237, %v2237
      %v6293 = vsel %vm6278, %v6238, %v2238
      %v6294 = vsel %vm6278, %v6239, %v2239
      %v6295 = vsel %vm6278, %v6240, %v2240
      %v6296 = vsel %vm6278, %v6241, %v2241
      %v6297 = vsel %vm6278, %v6242, %v2242
      %v6298 = vsel %vm6278, %v6243, %v2243
      %v6299 = vsel %vm6278, %v6244, %v2244
      %v6300 = vsel %vm6278, %v6245, %v2245
      %v6301 = vsel %vm6278, %v6246, %v2246
      %v6302 = vsel %vm6278, %v6247, %v2247
      %v6303 = vsel %vm6278, %v6248, %v2248
      %v6304 = vsel %vm6278, %v6249, %v2249
      %v6305 = vsel %vm6278, %v6250, %v2250
      %v6306 = vsel %vm6278, %v6251, %v2251
      %v6307 = vsel %vm6278, %v6252, %v2252
      %v6308 = vsel %vm6278, %v6253, %v2253
      %v6309 = vsel %vm6278, %v6254, %v2254
      %v6310 = vsel %vm6278, %v6255, %v2255
      %v6311 = vsel %vm6278, %v6256, %v2256
      %v6312 = vsel %vm6278, %v6257, %v2257
      %v6313 = vsel %vm6278, %v6258, %v2258
      %v6314 = vsel %vm6278, %v6259, %v2259
      %v6315 = vsel %vm6278, %v6260, %v2260
      %v6316 = vsel %vm6278, %v6261, %v2261
      %v6317 = vsel %vm6278, %v6262, %v2262
      %v6318 = vsel %vm6278, %v6263, %v2263
      %v6319 = vsel %vm6278, %v6264, %v2264
      %v6320 = vsel %vm6278, %v6265, %v2265
      %v6321 = vsel %vm6278, %v6266, %v2266
      %v6322 = vsel %vm6278, %v6267, %v2267
      %v6323 = vsel %vm6278, %v6268, %v2268
      %v6324 = vsel %vm6278, %v6269, %v2269
      %v6325 = vsel %vm6278, %v6270, %v2270
      %v6326 = vsel %vm6278, %v6271, %v2271
      %v6327 = vsel %vm6278, %v6272, %v2272
      %v6328 = vsel %vm6278, %v6273, %v2273
      %v6329 = vsel %vm6278, %v6274, %v2274
      %v6330 = vsel %vm6278, %v6275, %v2275
      %v6331 = vsel %vm6278, %v6276, %v2276
      %v6332 = vsel %vm6278, %v6277, %v2277
      %vm6333 = vcmask 195584
      %v6334 = vsel %vm6333, %v6279, %v4817
      %v6335 = vsel %vm6333, %v6280, %v4819
      %v6336 = vsel %vm6333, %v6281, %v4821
      %v6337 = vsel %vm6333, %v6282, %v4823
      %v6338 = vsel %vm6333, %v6283, %v4825
      %v6339 = vsel %vm6333, %v6284, %v4827
      %v6340 = vsel %vm6333, %v6285, %v4829
      %v6341 = vsel %vm6333, %v6286, %v4831
      %v6342 = vsel %vm6333, %v6287, %v4833
      %v6343 = vsel %vm6333, %v6288, %v4835
      %v6344 = vsel %vm6333, %v6289, %v4837
      %v6345 = vsel %vm6333, %v6290, %v4839
      %v6346 = vsel %vm6333, %v6291, %v4841
      %v6347 = vsel %vm6333, %v6292, %v4843
      %v6348 = vsel %vm6333, %v6293, %v4845
      %v6349 = vsel %vm6333, %v6294, %v4847
      %v6350 = vsel %vm6333, %v6295, %v4849
      %v6351 = vsel %vm6333, %v6296, %v4851
      %v6352 = vsel %vm6333, %v6297, %v4853
      %v6353 = vsel %vm6333, %v6298, %v4855
      %v6354 = vsel %vm6333, %v6299, %v4857
      %v6355 = vsel %vm6333, %v6300, %v4859
      %v6356 = vsel %vm6333, %v6301, %v4861
      %v6357 = vsel %vm6333, %v6302, %v4863
      %v6358 = vsel %vm6333, %v6303, %v4865
      %v6359 = vsel %vm6333, %v6304, %v4867
      %v6360 = vsel %vm6333, %v6305, %v4869
      %v6361 = vsel %vm6333, %v6306, %v4871
      %v6362 = vsel %vm6333, %v6307, %v4873
      %v6363 = vsel %vm6333, %v6308, %v4875
      %v6364 = vsel %vm6333, %v6309, %v4877
      %v6365 = vsel %vm6333, %v6310, %v4879
      %v6366 = vsel %vm6333, %v6311, %v4881
      %v6367 = vsel %vm6333, %v6312, %v4883
      %v6368 = vsel %vm6333, %v6313, %v4885
      %v6369 = vsel %vm6333, %v6314, %v4887
      %v6370 = vsel %vm6333, %v6315, %v4889
      %v6371 = vsel %vm6333, %v6316, %v4891
      %v6372 = vsel %vm6333, %v6317, %v4893
      %v6373 = vsel %vm6333, %v6318, %v4895
      %v6374 = vsel %vm6333, %v6319, %v4897
      %v6375 = vsel %vm6333, %v6320, %v4899
      %v6376 = vsel %vm6333, %v6321, %v4901
      %v6377 = vsel %vm6333, %v6322, %v4903
      %v6378 = vsel %vm6333, %v6323, %v4905
      %v6379 = vsel %vm6333, %v6324, %v4907
      %v6380 = vsel %vm6333, %v6325, %v4909
      %v6381 = vsel %vm6333, %v6326, %v4911
      %v6382 = vsel %vm6333, %v6327, %v4913
      %v6383 = vsel %vm6333, %v6328, %v4915
      %v6384 = vsel %vm6333, %v6329, %v4917
      %v6385 = vsel %vm6333, %v6330, %v4919
      %v6386 = vsel %vm6333, %v6331, %v4921
      %v6387 = vsel %vm6333, %v6332, %v4923
      %vm6388 = vcmask 228352
      %v6389 = vsel %vm6388, %v6334, %v5033
      %v6390 = vsel %vm6388, %v6335, %v5035
      %v6391 = vsel %vm6388, %v6336, %v5037
      %v6392 = vsel %vm6388, %v6337, %v5039
      %v6393 = vsel %vm6388, %v6338, %v5041
      %v6394 = vsel %vm6388, %v6339, %v5043
      %v6395 = vsel %vm6388, %v6340, %v5045
      %v6396 = vsel %vm6388, %v6341, %v5047
      %v6397 = vsel %vm6388, %v6342, %v5049
      %v6398 = vsel %vm6388, %v6343, %v5051
      %v6399 = vsel %vm6388, %v6344, %v5053
      %v6400 = vsel %vm6388, %v6345, %v5055
      %v6401 = vsel %vm6388, %v6346, %v5057
      %v6402 = vsel %vm6388, %v6347, %v5059
      %v6403 = vsel %vm6388, %v6348, %v5061
      %v6404 = vsel %vm6388, %v6349, %v5063
      %v6405 = vsel %vm6388, %v6350, %v5065
      %v6406 = vsel %vm6388, %v6351, %v5067
      %v6407 = vsel %vm6388, %v6352, %v5069
      %v6408 = vsel %vm6388, %v6353, %v5071
      %v6409 = vsel %vm6388, %v6354, %v5073
      %v6410 = vsel %vm6388, %v6355, %v5075
      %v6411 = vsel %vm6388, %v6356, %v5077
      %v6412 = vsel %vm6388, %v6357, %v5079
      %v6413 = vsel %vm6388, %v6358, %v5081
      %v6414 = vsel %vm6388, %v6359, %v5083
      %v6415 = vsel %vm6388, %v6360, %v5085
      %v6416 = vsel %vm6388, %v6361, %v5087
      %v6417 = vsel %vm6388, %v6362, %v5089
      %v6418 = vsel %vm6388, %v6363, %v5091
      %v6419 = vsel %vm6388, %v6364, %v5093
      %v6420 = vsel %vm6388, %v6365, %v5095
      %v6421 = vsel %vm6388, %v6366, %v5097
      %v6422 = vsel %vm6388, %v6367, %v5099
      %v6423 = vsel %vm6388, %v6368, %v5101
      %v6424 = vsel %vm6388, %v6369, %v5103
      %v6425 = vsel %vm6388, %v6370, %v5105
      %v6426 = vsel %vm6388, %v6371, %v5107
      %v6427 = vsel %vm6388, %v6372, %v5109
      %v6428 = vsel %vm6388, %v6373, %v5111
      %v6429 = vsel %vm6388, %v6374, %v5113
      %v6430 = vsel %vm6388, %v6375, %v5115
      %v6431 = vsel %vm6388, %v6376, %v5117
      %v6432 = vsel %vm6388, %v6377, %v5119
      %v6433 = vsel %vm6388, %v6378, %v5121
      %v6434 = vsel %vm6388, %v6379, %v5123
      %v6435 = vsel %vm6388, %v6380, %v5125
      %v6436 = vsel %vm6388, %v6381, %v5127
      %v6437 = vsel %vm6388, %v6382, %v5129
      %v6438 = vsel %vm6388, %v6383, %v5131
      %v6439 = vsel %vm6388, %v6384, %v5133
      %v6440 = vsel %vm6388, %v6385, %v5135
      %v6441 = vsel %vm6388, %v6386, %v5137
      %v6442 = vsel %vm6388, %v6387, %v5139
      %vm6443 = vcmask 261120
      %v6444 = vsel %vm6443, %v6389, %v5249
      %v6445 = vsel %vm6443, %v6390, %v5251
      %v6446 = vsel %vm6443, %v6391, %v5253
      %v6447 = vsel %vm6443, %v6392, %v5255
      %v6448 = vsel %vm6443, %v6393, %v5257
      %v6449 = vsel %vm6443, %v6394, %v5259
      %v6450 = vsel %vm6443, %v6395, %v5261
      %v6451 = vsel %vm6443, %v6396, %v5263
      %v6452 = vsel %vm6443, %v6397, %v5265
      %v6453 = vsel %vm6443, %v6398, %v5267
      %v6454 = vsel %vm6443, %v6399, %v5269
      %v6455 = vsel %vm6443, %v6400, %v5271
      %v6456 = vsel %vm6443, %v6401, %v5273
      %v6457 = vsel %vm6443, %v6402, %v5275
      %v6458 = vsel %vm6443, %v6403, %v5277
      %v6459 = vsel %vm6443, %v6404, %v5279
      %v6460 = vsel %vm6443, %v6405, %v5281
      %v6461 = vsel %vm6443, %v6406, %v5283
      %v6462 = vsel %vm6443, %v6407, %v5285
      %v6463 = vsel %vm6443, %v6408, %v5287
      %v6464 = vsel %vm6443, %v6409, %v5289
      %v6465 = vsel %vm6443, %v6410, %v5291
      %v6466 = vsel %vm6443, %v6411, %v5293
      %v6467 = vsel %vm6443, %v6412, %v5295
      %v6468 = vsel %vm6443, %v6413, %v5297
      %v6469 = vsel %vm6443, %v6414, %v5299
      %v6470 = vsel %vm6443, %v6415, %v5301
      %v6471 = vsel %vm6443, %v6416, %v5303
      %v6472 = vsel %vm6443, %v6417, %v5305
      %v6473 = vsel %vm6443, %v6418, %v5307
      %v6474 = vsel %vm6443, %v6419, %v5309
      %v6475 = vsel %vm6443, %v6420, %v5311
      %v6476 = vsel %vm6443, %v6421, %v5313
      %v6477 = vsel %vm6443, %v6422, %v5315
      %v6478 = vsel %vm6443, %v6423, %v5317
      %v6479 = vsel %vm6443, %v6424, %v5319
      %v6480 = vsel %vm6443, %v6425, %v5321
      %v6481 = vsel %vm6443, %v6426, %v5323
      %v6482 = vsel %vm6443, %v6427, %v5325
      %v6483 = vsel %vm6443, %v6428, %v5327
      %v6484 = vsel %vm6443, %v6429, %v5329
      %v6485 = vsel %vm6443, %v6430, %v5331
      %v6486 = vsel %vm6443, %v6431, %v5333
      %v6487 = vsel %vm6443, %v6432, %v5335
      %v6488 = vsel %vm6443, %v6433, %v5337
      %v6489 = vsel %vm6443, %v6434, %v5339
      %v6490 = vsel %vm6443, %v6435, %v5341
      %v6491 = vsel %vm6443, %v6436, %v5343
      %v6492 = vsel %vm6443, %v6437, %v5345
      %v6493 = vsel %vm6443, %v6438, %v5347
      %v6494 = vsel %vm6443, %v6439, %v5349
      %v6495 = vsel %vm6443, %v6440, %v5351
      %v6496 = vsel %vm6443, %v6441, %v5353
      %v6497 = vsel %vm6443, %v6442, %v5355
      %vm6498 = vcmask 293888
      %v6499 = vsel %vm6498, %v6444, %v5465
      %v6500 = vsel %vm6498, %v6445, %v5467
      %v6501 = vsel %vm6498, %v6446, %v5469
      %v6502 = vsel %vm6498, %v6447, %v5471
      %v6503 = vsel %vm6498, %v6448, %v5473
      %v6504 = vsel %vm6498, %v6449, %v5475
      %v6505 = vsel %vm6498, %v6450, %v5477
      %v6506 = vsel %vm6498, %v6451, %v5479
      %v6507 = vsel %vm6498, %v6452, %v5481
      %v6508 = vsel %vm6498, %v6453, %v5483
      %v6509 = vsel %vm6498, %v6454, %v5485
      %v6510 = vsel %vm6498, %v6455, %v5487
      %v6511 = vsel %vm6498, %v6456, %v5489
      %v6512 = vsel %vm6498, %v6457, %v5491
      %v6513 = vsel %vm6498, %v6458, %v5493
      %v6514 = vsel %vm6498, %v6459, %v5495
      %v6515 = vsel %vm6498, %v6460, %v5497
      %v6516 = vsel %vm6498, %v6461, %v5499
      %v6517 = vsel %vm6498, %v6462, %v5501
      %v6518 = vsel %vm6498, %v6463, %v5503
      %v6519 = vsel %vm6498, %v6464, %v5505
      %v6520 = vsel %vm6498, %v6465, %v5507
      %v6521 = vsel %vm6498, %v6466, %v5509
      %v6522 = vsel %vm6498, %v6467, %v5511
      %v6523 = vsel %vm6498, %v6468, %v5513
      %v6524 = vsel %vm6498, %v6469, %v5515
      %v6525 = vsel %vm6498, %v6470, %v5517
      %v6526 = vsel %vm6498, %v6471, %v5519
      %v6527 = vsel %vm6498, %v6472, %v5521
      %v6528 = vsel %vm6498, %v6473, %v5523
      %v6529 = vsel %vm6498, %v6474, %v5525
      %v6530 = vsel %vm6498, %v6475, %v5527
      %v6531 = vsel %vm6498, %v6476, %v5529
      %v6532 = vsel %vm6498, %v6477, %v5531
      %v6533 = vsel %vm6498, %v6478, %v5533
      %v6534 = vsel %vm6498, %v6479, %v5535
      %v6535 = vsel %vm6498, %v6480, %v5537
      %v6536 = vsel %vm6498, %v6481, %v5539
      %v6537 = vsel %vm6498, %v6482, %v5541
      %v6538 = vsel %vm6498, %v6483, %v5543
      %v6539 = vsel %vm6498, %v6484, %v5545
      %v6540 = vsel %vm6498, %v6485, %v5547
      %v6541 = vsel %vm6498, %v6486, %v5549
      %v6542 = vsel %vm6498, %v6487, %v5551
      %v6543 = vsel %vm6498, %v6488, %v5553
      %v6544 = vsel %vm6498, %v6489, %v5555
      %v6545 = vsel %vm6498, %v6490, %v5557
      %v6546 = vsel %vm6498, %v6491, %v5559
      %v6547 = vsel %vm6498, %v6492, %v5561
      %v6548 = vsel %vm6498, %v6493, %v5563
      %v6549 = vsel %vm6498, %v6494, %v5565
      %v6550 = vsel %vm6498, %v6495, %v5567
      %v6551 = vsel %vm6498, %v6496, %v5569
      %v6552 = vsel %vm6498, %v6497, %v5571
      %vm6553 = vcmask 326656
      %v6554 = vsel %vm6553, %v6499, %v5681
      %v6555 = vsel %vm6553, %v6500, %v5683
      %v6556 = vsel %vm6553, %v6501, %v5685
      %v6557 = vsel %vm6553, %v6502, %v5687
      %v6558 = vsel %vm6553, %v6503, %v5689
      %v6559 = vsel %vm6553, %v6504, %v5691
      %v6560 = vsel %vm6553, %v6505, %v5693
      %v6561 = vsel %vm6553, %v6506, %v5695
      %v6562 = vsel %vm6553, %v6507, %v5697
      %v6563 = vsel %vm6553, %v6508, %v5699
      %v6564 = vsel %vm6553, %v6509, %v5701
      %v6565 = vsel %vm6553, %v6510, %v5703
      %v6566 = vsel %vm6553, %v6511, %v5705
      %v6567 = vsel %vm6553, %v6512, %v5707
      %v6568 = vsel %vm6553, %v6513, %v5709
      %v6569 = vsel %vm6553, %v6514, %v5711
      %v6570 = vsel %vm6553, %v6515, %v5713
      %v6571 = vsel %vm6553, %v6516, %v5715
      %v6572 = vsel %vm6553, %v6517, %v5717
      %v6573 = vsel %vm6553, %v6518, %v5719
      %v6574 = vsel %vm6553, %v6519, %v5721
      %v6575 = vsel %vm6553, %v6520, %v5723
      %v6576 = vsel %vm6553, %v6521, %v5725
      %v6577 = vsel %vm6553, %v6522, %v5727
      %v6578 = vsel %vm6553, %v6523, %v5729
      %v6579 = vsel %vm6553, %v6524, %v5731
      %v6580 = vsel %vm6553, %v6525, %v5733
      %v6581 = vsel %vm6553, %v6526, %v5735
      %v6582 = vsel %vm6553, %v6527, %v5737
      %v6583 = vsel %vm6553, %v6528, %v5739
      %v6584 = vsel %vm6553, %v6529, %v5741
      %v6585 = vsel %vm6553, %v6530, %v5743
      %v6586 = vsel %vm6553, %v6531, %v5745
      %v6587 = vsel %vm6553, %v6532, %v5747
      %v6588 = vsel %vm6553, %v6533, %v5749
      %v6589 = vsel %vm6553, %v6534, %v5751
      %v6590 = vsel %vm6553, %v6535, %v5753
      %v6591 = vsel %vm6553, %v6536, %v5755
      %v6592 = vsel %vm6553, %v6537, %v5757
      %v6593 = vsel %vm6553, %v6538, %v5759
      %v6594 = vsel %vm6553, %v6539, %v5761
      %v6595 = vsel %vm6553, %v6540, %v5763
      %v6596 = vsel %vm6553, %v6541, %v5765
      %v6597 = vsel %vm6553, %v6542, %v5767
      %v6598 = vsel %vm6553, %v6543, %v5769
      %v6599 = vsel %vm6553, %v6544, %v5771
      %v6600 = vsel %vm6553, %v6545, %v5773
      %v6601 = vsel %vm6553, %v6546, %v5775
      %v6602 = vsel %vm6553, %v6547, %v5777
      %v6603 = vsel %vm6553, %v6548, %v5779
      %v6604 = vsel %vm6553, %v6549, %v5781
      %v6605 = vsel %vm6553, %v6550, %v5783
      %v6606 = vsel %vm6553, %v6551, %v5785
      %v6607 = vsel %vm6553, %v6552, %v5787
      %vm6608 = vcmask 359424
      %v6609 = vsel %vm6608, %v6554, %v5897
      %v6610 = vsel %vm6608, %v6555, %v5899
      %v6611 = vsel %vm6608, %v6556, %v5901
      %v6612 = vsel %vm6608, %v6557, %v5903
      %v6613 = vsel %vm6608, %v6558, %v5905
      %v6614 = vsel %vm6608, %v6559, %v5907
      %v6615 = vsel %vm6608, %v6560, %v5909
      %v6616 = vsel %vm6608, %v6561, %v5911
      %v6617 = vsel %vm6608, %v6562, %v5913
      %v6618 = vsel %vm6608, %v6563, %v5915
      %v6619 = vsel %vm6608, %v6564, %v5917
      %v6620 = vsel %vm6608, %v6565, %v5919
      %v6621 = vsel %vm6608, %v6566, %v5921
      %v6622 = vsel %vm6608, %v6567, %v5923
      %v6623 = vsel %vm6608, %v6568, %v5925
      %v6624 = vsel %vm6608, %v6569, %v5927
      %v6625 = vsel %vm6608, %v6570, %v5929
      %v6626 = vsel %vm6608, %v6571, %v5931
      %v6627 = vsel %vm6608, %v6572, %v5933
      %v6628 = vsel %vm6608, %v6573, %v5935
      %v6629 = vsel %vm6608, %v6574, %v5937
      %v6630 = vsel %vm6608, %v6575, %v5939
      %v6631 = vsel %vm6608, %v6576, %v5941
      %v6632 = vsel %vm6608, %v6577, %v5943
      %v6633 = vsel %vm6608, %v6578, %v5945
      %v6634 = vsel %vm6608, %v6579, %v5947
      %v6635 = vsel %vm6608, %v6580, %v5949
      %v6636 = vsel %vm6608, %v6581, %v5951
      %v6637 = vsel %vm6608, %v6582, %v5953
      %v6638 = vsel %vm6608, %v6583, %v5955
      %v6639 = vsel %vm6608, %v6584, %v5957
      %v6640 = vsel %vm6608, %v6585, %v5959
      %v6641 = vsel %vm6608, %v6586, %v5961
      %v6642 = vsel %vm6608, %v6587, %v5963
      %v6643 = vsel %vm6608, %v6588, %v5965
      %v6644 = vsel %vm6608, %v6589, %v5967
      %v6645 = vsel %vm6608, %v6590, %v5969
      %v6646 = vsel %vm6608, %v6591, %v5971
      %v6647 = vsel %vm6608, %v6592, %v5973
      %v6648 = vsel %vm6608, %v6593, %v5975
      %v6649 = vsel %vm6608, %v6594, %v5977
      %v6650 = vsel %vm6608, %v6595, %v5979
      %v6651 = vsel %vm6608, %v6596, %v5981
      %v6652 = vsel %vm6608, %v6597, %v5983
      %v6653 = vsel %vm6608, %v6598, %v5985
      %v6654 = vsel %vm6608, %v6599, %v5987
      %v6655 = vsel %vm6608, %v6600, %v5989
      %v6656 = vsel %vm6608, %v6601, %v5991
      %v6657 = vsel %vm6608, %v6602, %v5993
      %v6658 = vsel %vm6608, %v6603, %v5995
      %v6659 = vsel %vm6608, %v6604, %v5997
      %v6660 = vsel %vm6608, %v6605, %v5999
      %v6661 = vsel %vm6608, %v6606, %v6001
      %v6662 = vsel %vm6608, %v6607, %v6003
      %v6663 = vpack.c.bf16 %v6610, %v6609
      %v6664 = vpack.c.bf16 %v6611, %v6611
      %v6665 = vpack.c.bf16 %v6613, %v6612
      %v6666 = vpack.c.bf16 %v6614, %v6614
      %v6667 = vpack.c.bf16 %v6616, %v6615
      %v6668 = vpack.c.bf16 %v6617, %v6617
      %v6669 = vpack.c.bf16 %v6619, %v6618
      %v6670 = vpack.c.bf16 %v6620, %v6620
      %v6671 = vpack.c.bf16 %v6622, %v6621
      %v6672 = vpack.c.bf16 %v6623, %v6623
      %v6673 = vpack.c.bf16 %v6625, %v6624
      %v6674 = vpack.c.bf16 %v6626, %v6626
      %v6675 = vpack.c.bf16 %v6628, %v6627
      %v6676 = vpack.c.bf16 %v6629, %v6629
      %v6677 = vpack.c.bf16 %v6631, %v6630
      %v6678 = vpack.c.bf16 %v6632, %v6632
      %v6679 = vpack.c.bf16 %v6634, %v6633
      %v6680 = vpack.c.bf16 %v6635, %v6635
      %v6681 = vpack.c.bf16 %v6637, %v6636
      %v6682 = vpack.c.bf16 %v6638, %v6638
      %v6683 = vpack.c.bf16 %v6640, %v6639
      %v6684 = vpack.c.bf16 %v6641, %v6641
      %v6685 = vpack.c.bf16 %v6643, %v6642
      %v6686 = vpack.c.bf16 %v6644, %v6644
      %v6687 = vpack.c.bf16 %v6646, %v6645
      %v6688 = vpack.c.bf16 %v6647, %v6647
      %v6689 = vpack.c.bf16 %v6649, %v6648
      %v6690 = vpack.c.bf16 %v6650, %v6650
      %v6691 = vpack.c.bf16 %v6652, %v6651
      %v6692 = vpack.c.bf16 %v6653, %v6653
      %v6693 = vpack.c.bf16 %v6655, %v6654
      %v6694 = vpack.c.bf16 %v6656, %v6656
      %v6695 = vpack.c.bf16 %v6658, %v6657
      %v6696 = vpack.c.bf16 %v6659, %v6659
      %v6697 = vpack.c.bf16 %v6661, %v6660
      %v6698 = vpack.c.bf16 %v6662, %v6662
      %v6699 = vld [vmem:[%s1] sm:$0xf]
      %v6700 = vld [vmem:[%s1 + $0x4] sm:$0xf]
      %v6701 = vld [vmem:[%s1 + $0x8] sm:$0xf]
      %v6702 = vld [vmem:[%s1 + $0xc] sm:$0xf]
      %v6703 = vld [vmem:[%s1 + $0x10] sm:$0xf]
      %v6704 = vld [vmem:[%s1 + $0x14] sm:$0xf]
      %vm6705 = vsmask.f32 7424
      %v6707 = vshrl.u32 %v6663, 16
      %v6709 = vshll.u32 %v6663, 16
      %v6711 = vrot.slane %v6709, 1
      %v6712 = vor.u32 %v6707, %v6711
      %v6714 = vshll.u32 %v6664, 16
      %v6716 = vrot.slane %v6714, 1
      %v6717 = vsel %vm6705, %v6712, %v6716
      %v6719 = vshrl.u32 %v6665, 16
      %v6721 = vshll.u32 %v6665, 16
      %v6723 = vrot.slane %v6721, 1
      %v6724 = vor.u32 %v6719, %v6723
      %v6726 = vshll.u32 %v6666, 16
      %v6728 = vrot.slane %v6726, 1
      %v6729 = vsel %vm6705, %v6724, %v6728
      %v6731 = vshrl.u32 %v6667, 16
      %v6733 = vshll.u32 %v6667, 16
      %v6735 = vrot.slane %v6733, 1
      %v6736 = vor.u32 %v6731, %v6735
      %v6738 = vshll.u32 %v6668, 16
      %v6740 = vrot.slane %v6738, 1
      %v6741 = vsel %vm6705, %v6736, %v6740
      %v6743 = vshrl.u32 %v6669, 16
      %v6745 = vshll.u32 %v6669, 16
      %v6747 = vrot.slane %v6745, 1
      %v6748 = vor.u32 %v6743, %v6747
      %v6750 = vshll.u32 %v6670, 16
      %v6752 = vrot.slane %v6750, 1
      %v6753 = vsel %vm6705, %v6748, %v6752
      %v6755 = vshrl.u32 %v6671, 16
      %v6757 = vshll.u32 %v6671, 16
      %v6759 = vrot.slane %v6757, 1
      %v6760 = vor.u32 %v6755, %v6759
      %v6762 = vshll.u32 %v6672, 16
      %v6764 = vrot.slane %v6762, 1
      %v6765 = vsel %vm6705, %v6760, %v6764
      %v6767 = vshrl.u32 %v6673, 16
      %v6769 = vshll.u32 %v6673, 16
      %v6771 = vrot.slane %v6769, 1
      %v6772 = vor.u32 %v6767, %v6771
      %v6774 = vshll.u32 %v6674, 16
      %v6776 = vrot.slane %v6774, 1
      %v6777 = vsel %vm6705, %v6772, %v6776
      %v6779 = vshrl.u32 %v6675, 16
      %v6781 = vshll.u32 %v6675, 16
      %v6783 = vrot.slane %v6781, 1
      %v6784 = vor.u32 %v6779, %v6783
      %v6786 = vshll.u32 %v6676, 16
      %v6788 = vrot.slane %v6786, 1
      %v6789 = vsel %vm6705, %v6784, %v6788
      %v6791 = vshrl.u32 %v6677, 16
      %v6793 = vshll.u32 %v6677, 16
      %v6795 = vrot.slane %v6793, 1
      %v6796 = vor.u32 %v6791, %v6795
      %v6798 = vshll.u32 %v6678, 16
      %v6800 = vrot.slane %v6798, 1
      %v6801 = vsel %vm6705, %v6796, %v6800
      %v6803 = vshrl.u32 %v6679, 16
      %v6805 = vshll.u32 %v6679, 16
      %v6807 = vrot.slane %v6805, 1
      %v6808 = vor.u32 %v6803, %v6807
      %v6810 = vshll.u32 %v6680, 16
      %v6812 = vrot.slane %v6810, 1
      %v6813 = vsel %vm6705, %v6808, %v6812
      %v6815 = vshrl.u32 %v6681, 16
      %v6817 = vshll.u32 %v6681, 16
      %v6819 = vrot.slane %v6817, 1
      %v6820 = vor.u32 %v6815, %v6819
      %v6822 = vshll.u32 %v6682, 16
      %v6824 = vrot.slane %v6822, 1
      %v6825 = vsel %vm6705, %v6820, %v6824
      %v6827 = vshrl.u32 %v6683, 16
      %v6829 = vshll.u32 %v6683, 16
      %v6831 = vrot.slane %v6829, 1
      %v6832 = vor.u32 %v6827, %v6831
      %v6834 = vshll.u32 %v6684, 16
      %v6836 = vrot.slane %v6834, 1
      %v6837 = vsel %vm6705, %v6832, %v6836
      %v6839 = vshrl.u32 %v6685, 16
      %v6841 = vshll.u32 %v6685, 16
      %v6843 = vrot.slane %v6841, 1
      %v6844 = vor.u32 %v6839, %v6843
      %v6846 = vshll.u32 %v6686, 16
      %v6848 = vrot.slane %v6846, 1
      %v6849 = vsel %vm6705, %v6844, %v6848
      %v6851 = vshrl.u32 %v6687, 16
      %v6853 = vshll.u32 %v6687, 16
      %v6855 = vrot.slane %v6853, 1
      %v6856 = vor.u32 %v6851, %v6855
      %v6858 = vshll.u32 %v6688, 16
      %v6860 = vrot.slane %v6858, 1
      %v6861 = vsel %vm6705, %v6856, %v6860
      %v6863 = vshrl.u32 %v6689, 16
      %v6865 = vshll.u32 %v6689, 16
      %v6867 = vrot.slane %v6865, 1
      %v6868 = vor.u32 %v6863, %v6867
      %v6870 = vshll.u32 %v6690, 16
      %v6872 = vrot.slane %v6870, 1
      %v6873 = vsel %vm6705, %v6868, %v6872
      %v6875 = vshrl.u32 %v6691, 16
      %v6877 = vshll.u32 %v6691, 16
      %v6879 = vrot.slane %v6877, 1
      %v6880 = vor.u32 %v6875, %v6879
      %v6882 = vshll.u32 %v6692, 16
      %v6884 = vrot.slane %v6882, 1
      %v6885 = vsel %vm6705, %v6880, %v6884
      %v6887 = vshrl.u32 %v6693, 16
      %v6889 = vshll.u32 %v6693, 16
      %v6891 = vrot.slane %v6889, 1
      %v6892 = vor.u32 %v6887, %v6891
      %v6894 = vshll.u32 %v6694, 16
      %v6896 = vrot.slane %v6894, 1
      %v6897 = vsel %vm6705, %v6892, %v6896
      %s6898 = scalar_lea.vmem %s1, 24
      %v6899 = vld [vmem:[%s6898] sm:$0xf]
      %v6900 = vld [vmem:[%s6898 + $0x4] sm:$0xf]
      %v6901 = vld [vmem:[%s6898 + $0x8] sm:$0xf]
      %v6902 = vld [vmem:[%s6898 + $0xc] sm:$0xf]
      %v6903 = vld [vmem:[%s6898 + $0x10] sm:$0xf]
      %v6904 = vld [vmem:[%s6898 + $0x14] sm:$0xf]
      %v6911 = vunpack.c.l.b16 %v6899
      %v6912 = vunpack.c.l.b16 %v6900
      %v6913 = vunpack.c.l.b16 %v6901
      %v6914 = vunpack.c.l.b16 %v6902
      %v6915 = vunpack.c.l.b16 %v6903
      %v6916 = vunpack.c.l.b16 %v6904
      %v6917 = vpack.c.b16 %v6912, %v6911
      %v6918 = vpack.c.b16 %v6914, %v6913
      %v6919 = vpack.c.b16 %v6916, %v6915
      %vm6923 = vcmask 392192
      %v6925 = vsel %vm6923, %v6717, 0
      %v6928 = vsel %vm6923, %v6729, 0
      %v6931 = vsel %vm6923, %v6741, 0
      %v6934 = vsel %vm6923, %v6753, 0
      %v6937 = vsel %vm6923, %v6765, 0
      %v6940 = vsel %vm6923, %v6777, 0
      %v6943 = vsel %vm6923, %v6789, 0
      %v6946 = vsel %vm6923, %v6801, 0
      %v6949 = vsel %vm6923, %v6813, 0
      %v6952 = vsel %vm6923, %v6825, 0
      %v6955 = vsel %vm6923, %v6837, 0
      %v6958 = vsel %vm6923, %v6849, 0
      %v6961 = vsel %vm6923, %v6861, 0
      %v6964 = vsel %vm6923, %v6873, 0
      %v6967 = vsel %vm6923, %v6885, 0
      %v6970 = vsel %vm6923, %v6897, 0
      %6972 = vmatprep.subr.bf16.mxu0 0
      %6973 = vmatpush1.bf16.msra.mxu0 %v6917
      %6974 = vmatprep.subr.bf16.mxu0 0
      %6975 = vmatpush1.bf16.msra.mxu0 %v6918
      %6976 = vmatprep.subr.bf16.mxu0 0
      %6977 = vmatpush1.bf16.msra.mxu0 %v6919
      %6978 = vmatprep.subr.bf16.mxu0 0
      %6979 = vmatpush1.bf16.msra.mxu0 0
      %6980 = vmatprep.subr.bf16.mxu0 0
      %6981 = vmatpush1.bf16.msra.mxu0 0
      %6982 = vmatprep.subr.bf16.mxu0 0
      %6983 = vmatpush1.bf16.msra.mxu0 0
      %6984 = vmatprep.subr.bf16.mxu0 0
      %6985 = vmatpush1.bf16.msra.mxu0 0
      %6986 = vmatprep.subr.bf16.mxu0 0
      %6987 = vmatpush1.bf16.msra.mxu0 0
      %6988 = vmatprep.subr.bf16.mxu0 0
      %6989 = vmatpush1.bf16.msra.mxu0 0
      %6990 = vmatprep.subr.bf16.mxu0 0
      %6991 = vmatpush1.bf16.msra.mxu0 0
      %6992 = vmatprep.subr.bf16.mxu0 0
      %6993 = vmatpush1.bf16.msra.mxu0 0
      %6994 = vmatprep.subr.bf16.mxu0 0
      %6995 = vmatpush1.bf16.msra.mxu0 0
      %6996 = vmatprep.subr.bf16.mxu0 0
      %6997 = vmatpush1.bf16.msra.mxu0 0
      %6998 = vmatprep.subr.bf16.mxu0 0
      %6999 = vmatpush1.bf16.msra.mxu0 0
      %7000 = vmatprep.subr.bf16.mxu0 0
      %7001 = vmatpush1.bf16.msra.mxu0 0
      %7002 = vmatprep.subr.bf16.mxu0 0
      %7003 = vmatpush1.bf16.msra.mxu0 0
      %7004 = vmatprep.mubr.bf16.mxu0 0
      %7005 = vmatmul.mubr.bf16.gmra.mrb[0].mxu0 %v6925
      %v7006 = vpop.f32.mrb[0].mxu0
      %v7007 = vadd.f32 0.0, %v7006
      %v7008 = vpop.f32.mrb[0].mxu0
      %v7009 = vpop.f32.mrb[0].mxu0
      %v7010 = vadd.f32 0.0, %v7009
      %v7011 = vpop.f32.mrb[0].mxu0
      %7012 = vmatprep.mubr.bf16.mxu0 0
      %7013 = vmatmul.mubr.bf16.gmra.mrb[0].mxu0 %v6928
      %v7014 = vpop.f32.mrb[0].mxu0
      %v7015 = vadd.f32 0.0, %v7014
      %v7016 = vpop.f32.mrb[0].mxu0
      %v7017 = vpop.f32.mrb[0].mxu0
      %v7018 = vadd.f32 0.0, %v7017
      %v7019 = vpop.f32.mrb[0].mxu0
      %7020 = vmatprep.mubr.bf16.mxu0 0
      %7021 = vmatmul.mubr.bf16.gmra.mrb[0].mxu0 %v6931
      %v7022 = vpop.f32.mrb[0].mxu0
      %v7023 = vadd.f32 0.0, %v7022
      %v7024 = vpop.f32.mrb[0].mxu0
      %v7025 = vpop.f32.mrb[0].mxu0
      %v7026 = vadd.f32 0.0, %v7025
      %v7027 = vpop.f32.mrb[0].mxu0
      %7028 = vmatprep.mubr.bf16.mxu0 0
      %7029 = vmatmul.mubr.bf16.gmra.mrb[0].mxu0 %v6934
      %v7030 = vpop.f32.mrb[0].mxu0
      %v7031 = vadd.f32 0.0, %v7030
      %v7032 = vpop.f32.mrb[0].mxu0
      %v7033 = vpop.f32.mrb[0].mxu0
      %v7034 = vadd.f32 0.0, %v7033
      %v7035 = vpop.f32.mrb[0].mxu0
      %7036 = vmatprep.mubr.bf16.mxu0 0
      %7037 = vmatmul.mubr.bf16.gmra.mrb[0].mxu0 %v6937
      %v7038 = vpop.f32.mrb[0].mxu0
      %v7039 = vadd.f32 0.0, %v7038
      %v7040 = vpop.f32.mrb[0].mxu0
      %v7041 = vpop.f32.mrb[0].mxu0
      %v7042 = vadd.f32 0.0, %v7041
      %v7043 = vpop.f32.mrb[0].mxu0
      %7044 = vmatprep.mubr.bf16.mxu0 0
      %7045 = vmatmul.mubr.bf16.gmra.mrb[0].mxu0 %v6940
      %v7046 = vpop.f32.mrb[0].mxu0
      %v7047 = vadd.f32 0.0, %v7046
      %v7048 = vpop.f32.mrb[0].mxu0
      %v7049 = vpop.f32.mrb[0].mxu0
      %v7050 = vadd.f32 0.0, %v7049
      %v7051 = vpop.f32.mrb[0].mxu0
      %7052 = vmatprep.mubr.bf16.mxu0 0
      %7053 = vmatmul.mubr.bf16.gmra.mrb[0].mxu0 %v6943
      %v7054 = vpop.f32.mrb[0].mxu0
      %v7055 = vadd.f32 0.0, %v7054
      %v7056 = vpop.f32.mrb[0].mxu0
      %v7057 = vpop.f32.mrb[0].mxu0
      %v7058 = vadd.f32 0.0, %v7057
      %v7059 = vpop.f32.mrb[0].mxu0
      %7060 = vmatprep.mubr.bf16.mxu0 0
      %7061 = vmatmul.mubr.bf16.gmra.mrb[0].mxu0 %v6946
      %v7062 = vpop.f32.mrb[0].mxu0
      %v7063 = vadd.f32 0.0, %v7062
      %v7064 = vpop.f32.mrb[0].mxu0
      %v7065 = vpop.f32.mrb[0].mxu0
      %v7066 = vadd.f32 0.0, %v7065
      %v7067 = vpop.f32.mrb[0].mxu0
      %7068 = vmatprep.mubr.bf16.mxu0 0
      %7069 = vmatmul.mubr.bf16.gmra.mrb[0].mxu0 %v6949
      %v7070 = vpop.f32.mrb[0].mxu0
      %v7071 = vadd.f32 0.0, %v7070
      %v7072 = vpop.f32.mrb[0].mxu0
      %v7073 = vpop.f32.mrb[0].mxu0
      %v7074 = vadd.f32 0.0, %v7073
      %v7075 = vpop.f32.mrb[0].mxu0
      %7076 = vmatprep.mubr.bf16.mxu0 0
      %7077 = vmatmul.mubr.bf16.gmra.mrb[0].mxu0 %v6952
      %v7078 = vpop.f32.mrb[0].mxu0
      %v7079 = vadd.f32 0.0, %v7078
      %v7080 = vpop.f32.mrb[0].mxu0
      %v7081 = vpop.f32.mrb[0].mxu0
      %v7082 = vadd.f32 0.0, %v7081
      %v7083 = vpop.f32.mrb[0].mxu0
      %7084 = vmatprep.mubr.bf16.mxu0 0
      %7085 = vmatmul.mubr.bf16.gmra.mrb[0].mxu0 %v6955
      %v7086 = vpop.f32.mrb[0].mxu0
      %v7087 = vadd.f32 0.0, %v7086
      %v7088 = vpop.f32.mrb[0].mxu0
      %v7089 = vpop.f32.mrb[0].mxu0
      %v7090 = vadd.f32 0.0, %v7089
      %v7091 = vpop.f32.mrb[0].mxu0
      %7092 = vmatprep.mubr.bf16.mxu0 0
      %7093 = vmatmul.mubr.bf16.gmra.mrb[0].mxu0 %v6958
      %v7094 = vpop.f32.mrb[0].mxu0
      %v7095 = vadd.f32 0.0, %v7094
      %v7096 = vpop.f32.mrb[0].mxu0
      %v7097 = vpop.f32.mrb[0].mxu0
      %v7098 = vadd.f32 0.0, %v7097
      %v7099 = vpop.f32.mrb[0].mxu0
      %7100 = vmatprep.mubr.bf16.mxu0 0
      %7101 = vmatmul.mubr.bf16.gmra.mrb[0].mxu0 %v6961
      %v7102 = vpop.f32.mrb[0].mxu0
      %v7103 = vadd.f32 0.0, %v7102
      %v7104 = vpop.f32.mrb[0].mxu0
      %v7105 = vpop.f32.mrb[0].mxu0
      %v7106 = vadd.f32 0.0, %v7105
      %v7107 = vpop.f32.mrb[0].mxu0
      %7108 = vmatprep.mubr.bf16.mxu0 0
      %7109 = vmatmul.mubr.bf16.gmra.mrb[0].mxu0 %v6964
      %v7110 = vpop.f32.mrb[0].mxu0
      %v7111 = vadd.f32 0.0, %v7110
      %v7112 = vpop.f32.mrb[0].mxu0
      %v7113 = vpop.f32.mrb[0].mxu0
      %v7114 = vadd.f32 0.0, %v7113
      %v7115 = vpop.f32.mrb[0].mxu0
      %7116 = vmatprep.mubr.bf16.mxu0 0
      %7117 = vmatmul.mubr.bf16.gmra.mrb[0].mxu0 %v6967
      %v7118 = vpop.f32.mrb[0].mxu0
      %v7119 = vadd.f32 0.0, %v7118
      %v7120 = vpop.f32.mrb[0].mxu0
      %v7121 = vpop.f32.mrb[0].mxu0
      %v7122 = vadd.f32 0.0, %v7121
      %v7123 = vpop.f32.mrb[0].mxu0
      %7124 = vmatprep.mubr.bf16.mxu0 0
      %7125 = vmatmul.mubr.bf16.gmra.mrb[0].mxu0 %v6970
      %v7126 = vpop.f32.mrb[0].mxu0
      %v7127 = vadd.f32 0.0, %v7126
      %v7128 = vpop.f32.mrb[0].mxu0
      %v7129 = vpop.f32.mrb[0].mxu0
      %v7130 = vadd.f32 0.0, %v7129
      %v7131 = vpop.f32.mrb[0].mxu0
      %7132 = vdwg.mxu0
      %v7139 = vunpack.c.l.b16 %v6699
      %v7140 = vunpack.c.l.b16 %v6700
      %v7141 = vunpack.c.l.b16 %v6701
      %v7142 = vunpack.c.l.b16 %v6702
      %v7143 = vunpack.c.l.b16 %v6703
      %v7144 = vunpack.c.l.b16 %v6704
      %v7145 = vpack.c.b16 %v7140, %v7139
      %v7146 = vpack.c.b16 %v7142, %v7141
      %v7147 = vpack.c.b16 %v7144, %v7143
      %v7151 = vsel %vm6923, %v6663, 0
      %v7153 = vsel %vm6923, %v6665, 0
      %v7155 = vsel %vm6923, %v6667, 0
      %v7157 = vsel %vm6923, %v6669, 0
      %v7159 = vsel %vm6923, %v6671, 0
      %v7161 = vsel %vm6923, %v6673, 0
      %v7163 = vsel %vm6923, %v6675, 0
      %v7165 = vsel %vm6923, %v6677, 0
      %v7167 = vsel %vm6923, %v6679, 0
      %v7169 = vsel %vm6923, %v6681, 0
      %v7171 = vsel %vm6923, %v6683, 0
      %v7173 = vsel %vm6923, %v6685, 0
      %v7175 = vsel %vm6923, %v6687, 0
      %v7177 = vsel %vm6923, %v6689, 0
      %v7179 = vsel %vm6923, %v6691, 0
      %v7181 = vsel %vm6923, %v6693, 0
      %7183 = vmatprep.subr.bf16.mxu0 0
      %7184 = vmatpush1.bf16.msra.mxu0 %v7145
      %7185 = vmatprep.subr.bf16.mxu0 0
      %7186 = vmatpush1.bf16.msra.mxu0 %v7146
      %7187 = vmatprep.subr.bf16.mxu0 0
      %7188 = vmatpush1.bf16.msra.mxu0 %v7147
      %7189 = vmatprep.subr.bf16.mxu0 0
      %7190 = vmatpush1.bf16.msra.mxu0 0
      %7191 = vmatprep.subr.bf16.mxu0 0
      %7192 = vmatpush1.bf16.msra.mxu0 0
      %7193 = vmatprep.subr.bf16.mxu0 0
      %7194 = vmatpush1.bf16.msra.mxu0 0
      %7195 = vmatprep.subr.bf16.mxu0 0
      %7196 = vmatpush1.bf16.msra.mxu0 0
      %7197 = vmatprep.subr.bf16.mxu0 0
      %7198 = vmatpush1.bf16.msra.mxu0 0
      %7199 = vmatprep.subr.bf16.mxu0 0
      %7200 = vmatpush1.bf16.msra.mxu0 0
      %7201 = vmatprep.subr.bf16.mxu0 0
      %7202 = vmatpush1.bf16.msra.mxu0 0
      %7203 = vmatprep.subr.bf16.mxu0 0
      %7204 = vmatpush1.bf16.msra.mxu0 0
      %7205 = vmatprep.subr.bf16.mxu0 0
      %7206 = vmatpush1.bf16.msra.mxu0 0
      %7207 = vmatprep.subr.bf16.mxu0 0
      %7208 = vmatpush1.bf16.msra.mxu0 0
      %7209 = vmatprep.subr.bf16.mxu0 0
      %7210 = vmatpush1.bf16.msra.mxu0 0
      %7211 = vmatprep.subr.bf16.mxu0 0
      %7212 = vmatpush1.bf16.msra.mxu0 0
      %7213 = vmatprep.subr.bf16.mxu0 0
      %7214 = vmatpush1.bf16.msra.mxu0 0
      %7215 = vmatprep.mubr.bf16.mxu0 0
      %7216 = vmatmul.mubr.bf16.gmra.mrb[0].mxu0 %v7151
      %v7217 = vpop.f32.mrb[0].mxu0
      %v7218 = vadd.f32 %v7007, %v7217
      %v7219 = vpop.f32.mrb[0].mxu0
      %v7220 = vpop.f32.mrb[0].mxu0
      %v7221 = vadd.f32 %v7010, %v7220
      %v7222 = vpop.f32.mrb[0].mxu0
      %7223 = vmatprep.mubr.bf16.mxu0 0
      %7224 = vmatmul.mubr.bf16.gmra.mrb[0].mxu0 %v7153
      %v7225 = vpop.f32.mrb[0].mxu0
      %v7226 = vadd.f32 %v7015, %v7225
      %v7227 = vpop.f32.mrb[0].mxu0
      %v7228 = vpop.f32.mrb[0].mxu0
      %v7229 = vadd.f32 %v7018, %v7228
      %v7230 = vpop.f32.mrb[0].mxu0
      %7231 = vmatprep.mubr.bf16.mxu0 0
      %7232 = vmatmul.mubr.bf16.gmra.mrb[0].mxu0 %v7155
      %v7233 = vpop.f32.mrb[0].mxu0
      %v7234 = vadd.f32 %v7023, %v7233
      %v7235 = vpop.f32.mrb[0].mxu0
      %v7236 = vpop.f32.mrb[0].mxu0
      %v7237 = vadd.f32 %v7026, %v7236
      %v7238 = vpop.f32.mrb[0].mxu0
      %7239 = vmatprep.mubr.bf16.mxu0 0
      %7240 = vmatmul.mubr.bf16.gmra.mrb[0].mxu0 %v7157
      %v7241 = vpop.f32.mrb[0].mxu0
      %v7242 = vadd.f32 %v7031, %v7241
      %v7243 = vpop.f32.mrb[0].mxu0
      %v7244 = vpop.f32.mrb[0].mxu0
      %v7245 = vadd.f32 %v7034, %v7244
      %v7246 = vpop.f32.mrb[0].mxu0
      %7247 = vmatprep.mubr.bf16.mxu0 0
      %7248 = vmatmul.mubr.bf16.gmra.mrb[0].mxu0 %v7159
      %v7249 = vpop.f32.mrb[0].mxu0
      %v7250 = vadd.f32 %v7039, %v7249
      %v7251 = vpop.f32.mrb[0].mxu0
      %v7252 = vpop.f32.mrb[0].mxu0
      %v7253 = vadd.f32 %v7042, %v7252
      %v7254 = vpop.f32.mrb[0].mxu0
      %7255 = vmatprep.mubr.bf16.mxu0 0
      %7256 = vmatmul.mubr.bf16.gmra.mrb[0].mxu0 %v7161
      %v7257 = vpop.f32.mrb[0].mxu0
      %v7258 = vadd.f32 %v7047, %v7257
      %v7259 = vpop.f32.mrb[0].mxu0
      %v7260 = vpop.f32.mrb[0].mxu0
      %v7261 = vadd.f32 %v7050, %v7260
      %v7262 = vpop.f32.mrb[0].mxu0
      %7263 = vmatprep.mubr.bf16.mxu0 0
      %7264 = vmatmul.mubr.bf16.gmra.mrb[0].mxu0 %v7163
      %v7265 = vpop.f32.mrb[0].mxu0
      %v7266 = vadd.f32 %v7055, %v7265
      %v7267 = vpop.f32.mrb[0].mxu0
      %v7268 = vpop.f32.mrb[0].mxu0
      %v7269 = vadd.f32 %v7058, %v7268
      %v7270 = vpop.f32.mrb[0].mxu0
      %7271 = vmatprep.mubr.bf16.mxu0 0
      %7272 = vmatmul.mubr.bf16.gmra.mrb[0].mxu0 %v7165
      %v7273 = vpop.f32.mrb[0].mxu0
      %v7274 = vadd.f32 %v7063, %v7273
      %v7275 = vpop.f32.mrb[0].mxu0
      %v7276 = vpop.f32.mrb[0].mxu0
      %v7277 = vadd.f32 %v7066, %v7276
      %v7278 = vpop.f32.mrb[0].mxu0
      %7279 = vmatprep.mubr.bf16.mxu0 0
      %7280 = vmatmul.mubr.bf16.gmra.mrb[0].mxu0 %v7167
      %v7281 = vpop.f32.mrb[0].mxu0
      %v7282 = vadd.f32 %v7071, %v7281
      %v7283 = vpop.f32.mrb[0].mxu0
      %v7284 = vpop.f32.mrb[0].mxu0
      %v7285 = vadd.f32 %v7074, %v7284
      %v7286 = vpop.f32.mrb[0].mxu0
      %7287 = vmatprep.mubr.bf16.mxu0 0
      %7288 = vmatmul.mubr.bf16.gmra.mrb[0].mxu0 %v7169
      %v7289 = vpop.f32.mrb[0].mxu0
      %v7290 = vadd.f32 %v7079, %v7289
      %v7291 = vpop.f32.mrb[0].mxu0
      %v7292 = vpop.f32.mrb[0].mxu0
      %v7293 = vadd.f32 %v7082, %v7292
      %v7294 = vpop.f32.mrb[0].mxu0
      %7295 = vmatprep.mubr.bf16.mxu0 0
      %7296 = vmatmul.mubr.bf16.gmra.mrb[0].mxu0 %v7171
      %v7297 = vpop.f32.mrb[0].mxu0
      %v7298 = vadd.f32 %v7087, %v7297
      %v7299 = vpop.f32.mrb[0].mxu0
      %v7300 = vpop.f32.mrb[0].mxu0
      %v7301 = vadd.f32 %v7090, %v7300
      %v7302 = vpop.f32.mrb[0].mxu0
      %7303 = vmatprep.mubr.bf16.mxu0 0
      %7304 = vmatmul.mubr.bf16.gmra.mrb[0].mxu0 %v7173
      %v7305 = vpop.f32.mrb[0].mxu0
      %v7306 = vadd.f32 %v7095, %v7305
      %v7307 = vpop.f32.mrb[0].mxu0
      %v7308 = vpop.f32.mrb[0].mxu0
      %v7309 = vadd.f32 %v7098, %v7308
      %v7310 = vpop.f32.mrb[0].mxu0
      %7311 = vmatprep.mubr.bf16.mxu0 0
      %7312 = vmatmul.mubr.bf16.gmra.mrb[0].mxu0 %v7175
      %v7313 = vpop.f32.mrb[0].mxu0
      %v7314 = vadd.f32 %v7103, %v7313
      %v7315 = vpop.f32.mrb[0].mxu0
      %v7316 = vpop.f32.mrb[0].mxu0
      %v7317 = vadd.f32 %v7106, %v7316
      %v7318 = vpop.f32.mrb[0].mxu0
      %7319 = vmatprep.mubr.bf16.mxu0 0
      %7320 = vmatmul.mubr.bf16.gmra.mrb[0].mxu0 %v7177
      %v7321 = vpop.f32.mrb[0].mxu0
      %v7322 = vadd.f32 %v7111, %v7321
      %v7323 = vpop.f32.mrb[0].mxu0
      %v7324 = vpop.f32.mrb[0].mxu0
      %v7325 = vadd.f32 %v7114, %v7324
      %v7326 = vpop.f32.mrb[0].mxu0
      %7327 = vmatprep.mubr.bf16.mxu0 0
      %7328 = vmatmul.mubr.bf16.gmra.mrb[0].mxu0 %v7179
      %v7329 = vpop.f32.mrb[0].mxu0
      %v7330 = vadd.f32 %v7119, %v7329
      %v7331 = vpop.f32.mrb[0].mxu0
      %v7332 = vpop.f32.mrb[0].mxu0
      %v7333 = vadd.f32 %v7122, %v7332
      %v7334 = vpop.f32.mrb[0].mxu0
      %7335 = vmatprep.mubr.bf16.mxu0 0
      %7336 = vmatmul.mubr.bf16.gmra.mrb[0].mxu0 %v7181
      %v7337 = vpop.f32.mrb[0].mxu0
      %v7338 = vadd.f32 %v7127, %v7337
      %v7339 = vpop.f32.mrb[0].mxu0
      %v7340 = vpop.f32.mrb[0].mxu0
      %v7341 = vadd.f32 %v7130, %v7340
      %v7342 = vpop.f32.mrb[0].mxu0
      %7343 = vdwg.mxu0
      %vm7376 = vcmask 1046528
      %v7377 = vrot.slane %v6663, 1
      %v7378 = vrot.slane %v6664, 1
      %v7379 = vsel %vm7376, %v7377, %v7378
      %v7380 = vrot.slane %v6665, 1
      %v7381 = vrot.slane %v6666, 1
      %v7382 = vsel %vm7376, %v7380, %v7381
      %v7383 = vrot.slane %v6667, 1
      %v7384 = vrot.slane %v6668, 1
      %v7385 = vsel %vm7376, %v7383, %v7384
      %v7386 = vrot.slane %v6669, 1
      %v7387 = vrot.slane %v6670, 1
      %v7388 = vsel %vm7376, %v7386, %v7387
      %v7389 = vrot.slane %v6671, 1
      %v7390 = vrot.slane %v6672, 1
      %v7391 = vsel %vm7376, %v7389, %v7390
      %v7392 = vrot.slane %v6673, 1
      %v7393 = vrot.slane %v6674, 1
      %v7394 = vsel %vm7376, %v7392, %v7393
      %v7395 = vrot.slane %v6675, 1
      %v7396 = vrot.slane %v6676, 1
      %v7397 = vsel %vm7376, %v7395, %v7396
      %v7398 = vrot.slane %v6677, 1
      %v7399 = vrot.slane %v6678, 1
      %v7400 = vsel %vm7376, %v7398, %v7399
      %v7401 = vrot.slane %v6679, 1
      %v7402 = vrot.slane %v6680, 1
      %v7403 = vsel %vm7376, %v7401, %v7402
      %v7404 = vrot.slane %v6681, 1
      %v7405 = vrot.slane %v6682, 1
      %v7406 = vsel %vm7376, %v7404, %v7405
      %v7407 = vrot.slane %v6683, 1
      %v7408 = vrot.slane %v6684, 1
      %v7409 = vsel %vm7376, %v7407, %v7408
      %v7410 = vrot.slane %v6685, 1
      %v7411 = vrot.slane %v6686, 1
      %v7412 = vsel %vm7376, %v7410, %v7411
      %v7413 = vrot.slane %v6687, 1
      %v7414 = vrot.slane %v6688, 1
      %v7415 = vsel %vm7376, %v7413, %v7414
      %v7416 = vrot.slane %v6689, 1
      %v7417 = vrot.slane %v6690, 1
      %v7418 = vsel %vm7376, %v7416, %v7417
      %v7419 = vrot.slane %v6691, 1
      %v7420 = vrot.slane %v6692, 1
      %v7421 = vsel %vm7376, %v7419, %v7420
      %v7422 = vrot.slane %v6693, 1
      %v7423 = vrot.slane %v6694, 1
      %v7424 = vsel %vm7376, %v7422, %v7423
      %s7425 = scalar_lea.vmem %s1, 48
      %v7426 = vld [vmem:[%s7425] sm:$0xf]
      %v7427 = vld [vmem:[%s7425 + $0x4] sm:$0xf]
      %v7428 = vld [vmem:[%s7425 + $0x8] sm:$0xf]
      %v7429 = vld [vmem:[%s7425 + $0xc] sm:$0xf]
      %v7430 = vld [vmem:[%s7425 + $0x10] sm:$0xf]
      %v7431 = vld [vmem:[%s7425 + $0x14] sm:$0xf]
      %v7438 = vunpack.c.l.b16 %v7426
      %v7439 = vunpack.c.l.b16 %v7427
      %v7440 = vunpack.c.l.b16 %v7428
      %v7441 = vunpack.c.l.b16 %v7429
      %v7442 = vunpack.c.l.b16 %v7430
      %v7443 = vunpack.c.l.b16 %v7431
      %v7444 = vpack.c.b16 %v7439, %v7438
      %v7445 = vpack.c.b16 %v7441, %v7440
      %v7446 = vpack.c.b16 %v7443, %v7442
      %v7451 = vsel %vm6923, %v7379, 0
      %v7454 = vsel %vm6923, %v7382, 0
      %v7457 = vsel %vm6923, %v7385, 0
      %v7460 = vsel %vm6923, %v7388, 0
      %v7463 = vsel %vm6923, %v7391, 0
      %v7466 = vsel %vm6923, %v7394, 0
      %v7469 = vsel %vm6923, %v7397, 0
      %v7472 = vsel %vm6923, %v7400, 0
      %v7475 = vsel %vm6923, %v7403, 0
      %v7478 = vsel %vm6923, %v7406, 0
      %v7481 = vsel %vm6923, %v7409, 0
      %v7484 = vsel %vm6923, %v7412, 0
      %v7487 = vsel %vm6923, %v7415, 0
      %v7490 = vsel %vm6923, %v7418, 0
      %v7493 = vsel %vm6923, %v7421, 0
      %v7496 = vsel %vm6923, %v7424, 0
      %7498 = vmatprep.subr.bf16.mxu0 0
      %7499 = vmatpush1.bf16.msra.mxu0 %v7444
      %7500 = vmatprep.subr.bf16.mxu0 0
      %7501 = vmatpush1.bf16.msra.mxu0 %v7445
      %7502 = vmatprep.subr.bf16.mxu0 0
      %7503 = vmatpush1.bf16.msra.mxu0 %v7446
      %7504 = vmatprep.subr.bf16.mxu0 0
      %7505 = vmatpush1.bf16.msra.mxu0 0
      %7506 = vmatprep.subr.bf16.mxu0 0
      %7507 = vmatpush1.bf16.msra.mxu0 0
      %7508 = vmatprep.subr.bf16.mxu0 0
      %7509 = vmatpush1.bf16.msra.mxu0 0
      %7510 = vmatprep.subr.bf16.mxu0 0
      %7511 = vmatpush1.bf16.msra.mxu0 0
      %7512 = vmatprep.subr.bf16.mxu0 0
      %7513 = vmatpush1.bf16.msra.mxu0 0
      %7514 = vmatprep.subr.bf16.mxu0 0
      %7515 = vmatpush1.bf16.msra.mxu0 0
      %7516 = vmatprep.subr.bf16.mxu0 0
      %7517 = vmatpush1.bf16.msra.mxu0 0
      %7518 = vmatprep.subr.bf16.mxu0 0
      %7519 = vmatpush1.bf16.msra.mxu0 0
      %7520 = vmatprep.subr.bf16.mxu0 0
      %7521 = vmatpush1.bf16.msra.mxu0 0
      %7522 = vmatprep.subr.bf16.mxu0 0
      %7523 = vmatpush1.bf16.msra.mxu0 0
      %7524 = vmatprep.subr.bf16.mxu0 0
      %7525 = vmatpush1.bf16.msra.mxu0 0
      %7526 = vmatprep.subr.bf16.mxu0 0
      %7527 = vmatpush1.bf16.msra.mxu0 0
      %7528 = vmatprep.subr.bf16.mxu0 0
      %7529 = vmatpush1.bf16.msra.mxu0 0
      %7530 = vmatprep.mubr.bf16.mxu0 0
      %7531 = vmatmul.mubr.bf16.gmra.mrb[0].mxu0 %v7451
      %v7532 = vpop.f32.mrb[0].mxu0
      %v7533 = vadd.f32 0.0, %v7532
      %v7534 = vpop.f32.mrb[0].mxu0
      %v7535 = vpop.f32.mrb[0].mxu0
      %v7536 = vadd.f32 0.0, %v7535
      %v7537 = vpop.f32.mrb[0].mxu0
      %7538 = vmatprep.mubr.bf16.mxu0 0
      %7539 = vmatmul.mubr.bf16.gmra.mrb[0].mxu0 %v7454
      %v7540 = vpop.f32.mrb[0].mxu0
      %v7541 = vadd.f32 0.0, %v7540
      %v7542 = vpop.f32.mrb[0].mxu0
      %v7543 = vpop.f32.mrb[0].mxu0
      %v7544 = vadd.f32 0.0, %v7543
      %v7545 = vpop.f32.mrb[0].mxu0
      %7546 = vmatprep.mubr.bf16.mxu0 0
      %7547 = vmatmul.mubr.bf16.gmra.mrb[0].mxu0 %v7457
      %v7548 = vpop.f32.mrb[0].mxu0
      %v7549 = vadd.f32 0.0, %v7548
      %v7550 = vpop.f32.mrb[0].mxu0
      %v7551 = vpop.f32.mrb[0].mxu0
      %v7552 = vadd.f32 0.0, %v7551
      %v7553 = vpop.f32.mrb[0].mxu0
      %7554 = vmatprep.mubr.bf16.mxu0 0
      %7555 = vmatmul.mubr.bf16.gmra.mrb[0].mxu0 %v7460
      %v7556 = vpop.f32.mrb[0].mxu0
      %v7557 = vadd.f32 0.0, %v7556
      %v7558 = vpop.f32.mrb[0].mxu0
      %v7559 = vpop.f32.mrb[0].mxu0
      %v7560 = vadd.f32 0.0, %v7559
      %v7561 = vpop.f32.mrb[0].mxu0
      %7562 = vmatprep.mubr.bf16.mxu0 0
      %7563 = vmatmul.mubr.bf16.gmra.mrb[0].mxu0 %v7463
      %v7564 = vpop.f32.mrb[0].mxu0
      %v7565 = vadd.f32 0.0, %v7564
      %v7566 = vpop.f32.mrb[0].mxu0
      %v7567 = vpop.f32.mrb[0].mxu0
      %v7568 = vadd.f32 0.0, %v7567
      %v7569 = vpop.f32.mrb[0].mxu0
      %7570 = vmatprep.mubr.bf16.mxu0 0
      %7571 = vmatmul.mubr.bf16.gmra.mrb[0].mxu0 %v7466
      %v7572 = vpop.f32.mrb[0].mxu0
      %v7573 = vadd.f32 0.0, %v7572
      %v7574 = vpop.f32.mrb[0].mxu0
      %v7575 = vpop.f32.mrb[0].mxu0
      %v7576 = vadd.f32 0.0, %v7575
      %v7577 = vpop.f32.mrb[0].mxu0
      %7578 = vmatprep.mubr.bf16.mxu0 0
      %7579 = vmatmul.mubr.bf16.gmra.mrb[0].mxu0 %v7469
      %v7580 = vpop.f32.mrb[0].mxu0
      %v7581 = vadd.f32 0.0, %v7580
      %v7582 = vpop.f32.mrb[0].mxu0
      %v7583 = vpop.f32.mrb[0].mxu0
      %v7584 = vadd.f32 0.0, %v7583
      %v7585 = vpop.f32.mrb[0].mxu0
      %7586 = vmatprep.mubr.bf16.mxu0 0
      %7587 = vmatmul.mubr.bf16.gmra.mrb[0].mxu0 %v7472
      %v7588 = vpop.f32.mrb[0].mxu0
      %v7589 = vadd.f32 0.0, %v7588
      %v7590 = vpop.f32.mrb[0].mxu0
      %v7591 = vpop.f32.mrb[0].mxu0
      %v7592 = vadd.f32 0.0, %v7591
      %v7593 = vpop.f32.mrb[0].mxu0
      %7594 = vmatprep.mubr.bf16.mxu0 0
      %7595 = vmatmul.mubr.bf16.gmra.mrb[0].mxu0 %v7475
      %v7596 = vpop.f32.mrb[0].mxu0
      %v7597 = vadd.f32 0.0, %v7596
      %v7598 = vpop.f32.mrb[0].mxu0
      %v7599 = vpop.f32.mrb[0].mxu0
      %v7600 = vadd.f32 0.0, %v7599
      %v7601 = vpop.f32.mrb[0].mxu0
      %7602 = vmatprep.mubr.bf16.mxu0 0
      %7603 = vmatmul.mubr.bf16.gmra.mrb[0].mxu0 %v7478
      %v7604 = vpop.f32.mrb[0].mxu0
      %v7605 = vadd.f32 0.0, %v7604
      %v7606 = vpop.f32.mrb[0].mxu0
      %v7607 = vpop.f32.mrb[0].mxu0
      %v7608 = vadd.f32 0.0, %v7607
      %v7609 = vpop.f32.mrb[0].mxu0
      %7610 = vmatprep.mubr.bf16.mxu0 0
      %7611 = vmatmul.mubr.bf16.gmra.mrb[0].mxu0 %v7481
      %v7612 = vpop.f32.mrb[0].mxu0
      %v7613 = vadd.f32 0.0, %v7612
      %v7614 = vpop.f32.mrb[0].mxu0
      %v7615 = vpop.f32.mrb[0].mxu0
      %v7616 = vadd.f32 0.0, %v7615
      %v7617 = vpop.f32.mrb[0].mxu0
      %7618 = vmatprep.mubr.bf16.mxu0 0
      %7619 = vmatmul.mubr.bf16.gmra.mrb[0].mxu0 %v7484
      %v7620 = vpop.f32.mrb[0].mxu0
      %v7621 = vadd.f32 0.0, %v7620
      %v7622 = vpop.f32.mrb[0].mxu0
      %v7623 = vpop.f32.mrb[0].mxu0
      %v7624 = vadd.f32 0.0, %v7623
      %v7625 = vpop.f32.mrb[0].mxu0
      %7626 = vmatprep.mubr.bf16.mxu0 0
      %7627 = vmatmul.mubr.bf16.gmra.mrb[0].mxu0 %v7487
      %v7628 = vpop.f32.mrb[0].mxu0
      %v7629 = vadd.f32 0.0, %v7628
      %v7630 = vpop.f32.mrb[0].mxu0
      %v7631 = vpop.f32.mrb[0].mxu0
      %v7632 = vadd.f32 0.0, %v7631
      %v7633 = vpop.f32.mrb[0].mxu0
      %7634 = vmatprep.mubr.bf16.mxu0 0
      %7635 = vmatmul.mubr.bf16.gmra.mrb[0].mxu0 %v7490
      %v7636 = vpop.f32.mrb[0].mxu0
      %v7637 = vadd.f32 0.0, %v7636
      %v7638 = vpop.f32.mrb[0].mxu0
      %v7639 = vpop.f32.mrb[0].mxu0
      %v7640 = vadd.f32 0.0, %v7639
      %v7641 = vpop.f32.mrb[0].mxu0
      %7642 = vmatprep.mubr.bf16.mxu0 0
      %7643 = vmatmul.mubr.bf16.gmra.mrb[0].mxu0 %v7493
      %v7644 = vpop.f32.mrb[0].mxu0
      %v7645 = vadd.f32 0.0, %v7644
      %v7646 = vpop.f32.mrb[0].mxu0
      %v7647 = vpop.f32.mrb[0].mxu0
      %v7648 = vadd.f32 0.0, %v7647
      %v7649 = vpop.f32.mrb[0].mxu0
      %7650 = vmatprep.mubr.bf16.mxu0 0
      %7651 = vmatmul.mubr.bf16.gmra.mrb[0].mxu0 %v7496
      %v7652 = vpop.f32.mrb[0].mxu0
      %v7653 = vadd.f32 0.0, %v7652
      %v7654 = vpop.f32.mrb[0].mxu0
      %v7655 = vpop.f32.mrb[0].mxu0
      %v7656 = vadd.f32 0.0, %v7655
      %v7657 = vpop.f32.mrb[0].mxu0
      %7658 = vdwg.mxu0
      %v7659 = vadd.f32 %v7218, %v7533
      %v7660 = vadd.f32 %v7221, %v7536
      %v7661 = vadd.f32 %v7226, %v7541
      %v7662 = vadd.f32 %v7229, %v7544
      %v7663 = vadd.f32 %v7234, %v7549
      %v7664 = vadd.f32 %v7237, %v7552
      %v7665 = vadd.f32 %v7242, %v7557
      %v7666 = vadd.f32 %v7245, %v7560
      %v7667 = vadd.f32 %v7250, %v7565
      %v7668 = vadd.f32 %v7253, %v7568
      %v7669 = vadd.f32 %v7258, %v7573
      %v7670 = vadd.f32 %v7261, %v7576
      %v7671 = vadd.f32 %v7266, %v7581
      %v7672 = vadd.f32 %v7269, %v7584
      %v7673 = vadd.f32 %v7274, %v7589
      %v7674 = vadd.f32 %v7277, %v7592
      %v7675 = vadd.f32 %v7282, %v7597
      %v7676 = vadd.f32 %v7285, %v7600
      %v7677 = vadd.f32 %v7290, %v7605
      %v7678 = vadd.f32 %v7293, %v7608
      %v7679 = vadd.f32 %v7298, %v7613
      %v7680 = vadd.f32 %v7301, %v7616
      %v7681 = vadd.f32 %v7306, %v7621
      %v7682 = vadd.f32 %v7309, %v7624
      %v7683 = vadd.f32 %v7314, %v7629
      %v7684 = vadd.f32 %v7317, %v7632
      %v7685 = vadd.f32 %v7322, %v7637
      %v7686 = vadd.f32 %v7325, %v7640
      %v7687 = vadd.f32 %v7330, %v7645
      %v7688 = vadd.f32 %v7333, %v7648
      %v7689 = vadd.f32 %v7338, %v7653
      %v7690 = vadd.f32 %v7341, %v7656
      %s7691 = scalar_lea.vmem %s1, 72
      %v7692 = vld [vmem:[%s7691] sm:$0xf]
      %v7693 = vld [vmem:[%s7691 + $0x4] sm:$0xf]
      %v7694 = vld [vmem:[%s7691 + $0x8] sm:$0xf]
      %v7695 = vld [vmem:[%s7691 + $0xc] sm:$0xf]
      %v7696 = vld [vmem:[%s7691 + $0x10] sm:$0xf]
      %v7697 = vld [vmem:[%s7691 + $0x14] sm:$0xf]
      %v7704 = vunpack.c.l.b16 %v7692
      %v7705 = vunpack.c.l.b16 %v7693
      %v7706 = vunpack.c.l.b16 %v7694
      %v7707 = vunpack.c.l.b16 %v7695
      %v7708 = vunpack.c.l.b16 %v7696
      %v7709 = vunpack.c.l.b16 %v7697
      %v7710 = vpack.c.b16 %v7705, %v7704
      %v7711 = vpack.c.b16 %v7707, %v7706
      %v7712 = vpack.c.b16 %v7709, %v7708
      %v7717 = vsel %vm6923, %v6695, 0
      %7719 = vmatprep.subr.bf16.mxu0 0
      %7720 = vmatpush1.bf16.msra.mxu0 %v7710
      %7721 = vmatprep.subr.bf16.mxu0 0
      %7722 = vmatpush1.bf16.msra.mxu0 %v7711
      %7723 = vmatprep.subr.bf16.mxu0 0
      %7724 = vmatpush1.bf16.msra.mxu0 %v7712
      %7725 = vmatprep.subr.bf16.mxu0 0
      %7726 = vmatpush1.bf16.msra.mxu0 0
      %7727 = vmatprep.subr.bf16.mxu0 0
      %7728 = vmatpush1.bf16.msra.mxu0 0
      %7729 = vmatprep.subr.bf16.mxu0 0
      %7730 = vmatpush1.bf16.msra.mxu0 0
      %7731 = vmatprep.subr.bf16.mxu0 0
      %7732 = vmatpush1.bf16.msra.mxu0 0
      %7733 = vmatprep.subr.bf16.mxu0 0
      %7734 = vmatpush1.bf16.msra.mxu0 0
      %7735 = vmatprep.subr.bf16.mxu0 0
      %7736 = vmatpush1.bf16.msra.mxu0 0
      %7737 = vmatprep.subr.bf16.mxu0 0
      %7738 = vmatpush1.bf16.msra.mxu0 0
      %7739 = vmatprep.subr.bf16.mxu0 0
      %7740 = vmatpush1.bf16.msra.mxu0 0
      %7741 = vmatprep.subr.bf16.mxu0 0
      %7742 = vmatpush1.bf16.msra.mxu0 0
      %7743 = vmatprep.subr.bf16.mxu0 0
      %7744 = vmatpush1.bf16.msra.mxu0 0
      %7745 = vmatprep.subr.bf16.mxu0 0
      %7746 = vmatpush1.bf16.msra.mxu0 0
      %7747 = vmatprep.subr.bf16.mxu0 0
      %7748 = vmatpush1.bf16.msra.mxu0 0
      %7749 = vmatprep.subr.bf16.mxu0 0
      %7750 = vmatpush1.bf16.msra.mxu0 0
      %7751 = vmatprep.mubr.bf16.mxu0 0
      %7752 = vmatmul.mubr.bf16.gmra.mrb[0].mxu0 %v7153
      %v7753 = vpop.f32.mrb[0].mxu0
      %v7754 = vadd.f32 0.0, %v7753
      %v7755 = vpop.f32.mrb[0].mxu0
      %v7756 = vpop.f32.mrb[0].mxu0
      %v7757 = vadd.f32 0.0, %v7756
      %v7758 = vpop.f32.mrb[0].mxu0
      %7759 = vmatprep.mubr.bf16.mxu0 0
      %7760 = vmatmul.mubr.bf16.gmra.mrb[0].mxu0 %v7155
      %v7761 = vpop.f32.mrb[0].mxu0
      %v7762 = vadd.f32 0.0, %v7761
      %v7763 = vpop.f32.mrb[0].mxu0
      %v7764 = vpop.f32.mrb[0].mxu0
      %v7765 = vadd.f32 0.0, %v7764
      %v7766 = vpop.f32.mrb[0].mxu0
      %7767 = vmatprep.mubr.bf16.mxu0 0
      %7768 = vmatmul.mubr.bf16.gmra.mrb[0].mxu0 %v7157
      %v7769 = vpop.f32.mrb[0].mxu0
      %v7770 = vadd.f32 0.0, %v7769
      %v7771 = vpop.f32.mrb[0].mxu0
      %v7772 = vpop.f32.mrb[0].mxu0
      %v7773 = vadd.f32 0.0, %v7772
      %v7774 = vpop.f32.mrb[0].mxu0
      %7775 = vmatprep.mubr.bf16.mxu0 0
      %7776 = vmatmul.mubr.bf16.gmra.mrb[0].mxu0 %v7159
      %v7777 = vpop.f32.mrb[0].mxu0
      %v7778 = vadd.f32 0.0, %v7777
      %v7779 = vpop.f32.mrb[0].mxu0
      %v7780 = vpop.f32.mrb[0].mxu0
      %v7781 = vadd.f32 0.0, %v7780
      %v7782 = vpop.f32.mrb[0].mxu0
      %7783 = vmatprep.mubr.bf16.mxu0 0
      %7784 = vmatmul.mubr.bf16.gmra.mrb[0].mxu0 %v7161
      %v7785 = vpop.f32.mrb[0].mxu0
      %v7786 = vadd.f32 0.0, %v7785
      %v7787 = vpop.f32.mrb[0].mxu0
      %v7788 = vpop.f32.mrb[0].mxu0
      %v7789 = vadd.f32 0.0, %v7788
      %v7790 = vpop.f32.mrb[0].mxu0
      %7791 = vmatprep.mubr.bf16.mxu0 0
      %7792 = vmatmul.mubr.bf16.gmra.mrb[0].mxu0 %v7163
      %v7793 = vpop.f32.mrb[0].mxu0
      %v7794 = vadd.f32 0.0, %v7793
      %v7795 = vpop.f32.mrb[0].mxu0
      %v7796 = vpop.f32.mrb[0].mxu0
      %v7797 = vadd.f32 0.0, %v7796
      %v7798 = vpop.f32.mrb[0].mxu0
      %7799 = vmatprep.mubr.bf16.mxu0 0
      %7800 = vmatmul.mubr.bf16.gmra.mrb[0].mxu0 %v7165
      %v7801 = vpop.f32.mrb[0].mxu0
      %v7802 = vadd.f32 0.0, %v7801
      %v7803 = vpop.f32.mrb[0].mxu0
      %v7804 = vpop.f32.mrb[0].mxu0
      %v7805 = vadd.f32 0.0, %v7804
      %v7806 = vpop.f32.mrb[0].mxu0
      %7807 = vmatprep.mubr.bf16.mxu0 0
      %7808 = vmatmul.mubr.bf16.gmra.mrb[0].mxu0 %v7167
      %v7809 = vpop.f32.mrb[0].mxu0
      %v7810 = vadd.f32 0.0, %v7809
      %v7811 = vpop.f32.mrb[0].mxu0
      %v7812 = vpop.f32.mrb[0].mxu0
      %v7813 = vadd.f32 0.0, %v7812
      %v7814 = vpop.f32.mrb[0].mxu0
      %7815 = vmatprep.mubr.bf16.mxu0 0
      %7816 = vmatmul.mubr.bf16.gmra.mrb[0].mxu0 %v7169
      %v7817 = vpop.f32.mrb[0].mxu0
      %v7818 = vadd.f32 0.0, %v7817
      %v7819 = vpop.f32.mrb[0].mxu0
      %v7820 = vpop.f32.mrb[0].mxu0
      %v7821 = vadd.f32 0.0, %v7820
      %v7822 = vpop.f32.mrb[0].mxu0
      %7823 = vmatprep.mubr.bf16.mxu0 0
      %7824 = vmatmul.mubr.bf16.gmra.mrb[0].mxu0 %v7171
      %v7825 = vpop.f32.mrb[0].mxu0
      %v7826 = vadd.f32 0.0, %v7825
      %v7827 = vpop.f32.mrb[0].mxu0
      %v7828 = vpop.f32.mrb[0].mxu0
      %v7829 = vadd.f32 0.0, %v7828
      %v7830 = vpop.f32.mrb[0].mxu0
      %7831 = vmatprep.mubr.bf16.mxu0 0
      %7832 = vmatmul.mubr.bf16.gmra.mrb[0].mxu0 %v7173
      %v7833 = vpop.f32.mrb[0].mxu0
      %v7834 = vadd.f32 0.0, %v7833
      %v7835 = vpop.f32.mrb[0].mxu0
      %v7836 = vpop.f32.mrb[0].mxu0
      %v7837 = vadd.f32 0.0, %v7836
      %v7838 = vpop.f32.mrb[0].mxu0
      %7839 = vmatprep.mubr.bf16.mxu0 0
      %7840 = vmatmul.mubr.bf16.gmra.mrb[0].mxu0 %v7175
      %v7841 = vpop.f32.mrb[0].mxu0
      %v7842 = vadd.f32 0.0, %v7841
      %v7843 = vpop.f32.mrb[0].mxu0
      %v7844 = vpop.f32.mrb[0].mxu0
      %v7845 = vadd.f32 0.0, %v7844
      %v7846 = vpop.f32.mrb[0].mxu0
      %7847 = vmatprep.mubr.bf16.mxu0 0
      %7848 = vmatmul.mubr.bf16.gmra.mrb[0].mxu0 %v7177
      %v7849 = vpop.f32.mrb[0].mxu0
      %v7850 = vadd.f32 0.0, %v7849
      %v7851 = vpop.f32.mrb[0].mxu0
      %v7852 = vpop.f32.mrb[0].mxu0
      %v7853 = vadd.f32 0.0, %v7852
      %v7854 = vpop.f32.mrb[0].mxu0
      %7855 = vmatprep.mubr.bf16.mxu0 0
      %7856 = vmatmul.mubr.bf16.gmra.mrb[0].mxu0 %v7179
      %v7857 = vpop.f32.mrb[0].mxu0
      %v7858 = vadd.f32 0.0, %v7857
      %v7859 = vpop.f32.mrb[0].mxu0
      %v7860 = vpop.f32.mrb[0].mxu0
      %v7861 = vadd.f32 0.0, %v7860
      %v7862 = vpop.f32.mrb[0].mxu0
      %7863 = vmatprep.mubr.bf16.mxu0 0
      %7864 = vmatmul.mubr.bf16.gmra.mrb[0].mxu0 %v7181
      %v7865 = vpop.f32.mrb[0].mxu0
      %v7866 = vadd.f32 0.0, %v7865
      %v7867 = vpop.f32.mrb[0].mxu0
      %v7868 = vpop.f32.mrb[0].mxu0
      %v7869 = vadd.f32 0.0, %v7868
      %v7870 = vpop.f32.mrb[0].mxu0
      %7871 = vmatprep.mubr.bf16.mxu0 0
      %7872 = vmatmul.mubr.bf16.gmra.mrb[0].mxu0 %v7717
      %v7873 = vpop.f32.mrb[0].mxu0
      %v7874 = vadd.f32 0.0, %v7873
      %v7875 = vpop.f32.mrb[0].mxu0
      %v7876 = vpop.f32.mrb[0].mxu0
      %v7877 = vadd.f32 0.0, %v7876
      %v7878 = vpop.f32.mrb[0].mxu0
      %7879 = vdwg.mxu0
      %v7880 = vadd.f32 %v7659, %v7754
      %v7881 = vadd.f32 %v7660, %v7757
      %v7882 = vadd.f32 %v7661, %v7762
      %v7883 = vadd.f32 %v7662, %v7765
      %v7884 = vadd.f32 %v7663, %v7770
      %v7885 = vadd.f32 %v7664, %v7773
      %v7886 = vadd.f32 %v7665, %v7778
      %v7887 = vadd.f32 %v7666, %v7781
      %v7888 = vadd.f32 %v7667, %v7786
      %v7889 = vadd.f32 %v7668, %v7789
      %v7890 = vadd.f32 %v7669, %v7794
      %v7891 = vadd.f32 %v7670, %v7797
      %v7892 = vadd.f32 %v7671, %v7802
      %v7893 = vadd.f32 %v7672, %v7805
      %v7894 = vadd.f32 %v7673, %v7810
      %v7895 = vadd.f32 %v7674, %v7813
      %v7896 = vadd.f32 %v7675, %v7818
      %v7897 = vadd.f32 %v7676, %v7821
      %v7898 = vadd.f32 %v7677, %v7826
      %v7899 = vadd.f32 %v7678, %v7829
      %v7900 = vadd.f32 %v7679, %v7834
      %v7901 = vadd.f32 %v7680, %v7837
      %v7902 = vadd.f32 %v7681, %v7842
      %v7903 = vadd.f32 %v7682, %v7845
      %v7904 = vadd.f32 %v7683, %v7850
      %v7905 = vadd.f32 %v7684, %v7853
      %v7906 = vadd.f32 %v7685, %v7858
      %v7907 = vadd.f32 %v7686, %v7861
      %v7908 = vadd.f32 %v7687, %v7866
      %v7909 = vadd.f32 %v7688, %v7869
      %v7910 = vadd.f32 %v7689, %v7874
      %v7911 = vadd.f32 %v7690, %v7877
      %v7912 = vshrl.u32 %v6695, 16
      %v7914 = vshll.u32 %v6695, 16
      %v7916 = vrot.slane %v7914, 1
      %v7917 = vor.u32 %v7912, %v7916
      %v7919 = vshll.u32 %v6696, 16
      %v7921 = vrot.slane %v7919, 1
      %v7922 = vsel %vm6705, %v7917, %v7921
      %s7923 = scalar_lea.vmem %s1, 96
      %v7924 = vld [vmem:[%s7923] sm:$0xf]
      %v7925 = vld [vmem:[%s7923 + $0x4] sm:$0xf]
      %v7926 = vld [vmem:[%s7923 + $0x8] sm:$0xf]
      %v7927 = vld [vmem:[%s7923 + $0xc] sm:$0xf]
      %v7928 = vld [vmem:[%s7923 + $0x10] sm:$0xf]
      %v7929 = vld [vmem:[%s7923 + $0x14] sm:$0xf]
      %v7936 = vunpack.c.l.b16 %v7924
      %v7937 = vunpack.c.l.b16 %v7925
      %v7938 = vunpack.c.l.b16 %v7926
      %v7939 = vunpack.c.l.b16 %v7927
      %v7940 = vunpack.c.l.b16 %v7928
      %v7941 = vunpack.c.l.b16 %v7929
      %v7942 = vpack.c.b16 %v7937, %v7936
      %v7943 = vpack.c.b16 %v7939, %v7938
      %v7944 = vpack.c.b16 %v7941, %v7940
      %v7949 = vsel %vm6923, %v7922, 0
      %7951 = vmatprep.subr.bf16.mxu0 0
      %7952 = vmatpush1.bf16.msra.mxu0 %v7942
      %7953 = vmatprep.subr.bf16.mxu0 0
      %7954 = vmatpush1.bf16.msra.mxu0 %v7943
      %7955 = vmatprep.subr.bf16.mxu0 0
      %7956 = vmatpush1.bf16.msra.mxu0 %v7944
      %7957 = vmatprep.subr.bf16.mxu0 0
      %7958 = vmatpush1.bf16.msra.mxu0 0
      %7959 = vmatprep.subr.bf16.mxu0 0
      %7960 = vmatpush1.bf16.msra.mxu0 0
      %7961 = vmatprep.subr.bf16.mxu0 0
      %7962 = vmatpush1.bf16.msra.mxu0 0
      %7963 = vmatprep.subr.bf16.mxu0 0
      %7964 = vmatpush1.bf16.msra.mxu0 0
      %7965 = vmatprep.subr.bf16.mxu0 0
      %7966 = vmatpush1.bf16.msra.mxu0 0
      %7967 = vmatprep.subr.bf16.mxu0 0
      %7968 = vmatpush1.bf16.msra.mxu0 0
      %7969 = vmatprep.subr.bf16.mxu0 0
      %7970 = vmatpush1.bf16.msra.mxu0 0
      %7971 = vmatprep.subr.bf16.mxu0 0
      %7972 = vmatpush1.bf16.msra.mxu0 0
      %7973 = vmatprep.subr.bf16.mxu0 0
      %7974 = vmatpush1.bf16.msra.mxu0 0
      %7975 = vmatprep.subr.bf16.mxu0 0
      %7976 = vmatpush1.bf16.msra.mxu0 0
      %7977 = vmatprep.subr.bf16.mxu0 0
      %7978 = vmatpush1.bf16.msra.mxu0 0
      %7979 = vmatprep.subr.bf16.mxu0 0
      %7980 = vmatpush1.bf16.msra.mxu0 0
      %7981 = vmatprep.subr.bf16.mxu0 0
      %7982 = vmatpush1.bf16.msra.mxu0 0
      %7983 = vmatprep.mubr.bf16.mxu0 0
      %7984 = vmatmul.mubr.bf16.gmra.mrb[0].mxu0 %v6928
      %v7985 = vpop.f32.mrb[0].mxu0
      %v7986 = vadd.f32 0.0, %v7985
      %v7987 = vpop.f32.mrb[0].mxu0
      %v7988 = vpop.f32.mrb[0].mxu0
      %v7989 = vadd.f32 0.0, %v7988
      %v7990 = vpop.f32.mrb[0].mxu0
      %7991 = vmatprep.mubr.bf16.mxu0 0
      %7992 = vmatmul.mubr.bf16.gmra.mrb[0].mxu0 %v6931
      %v7993 = vpop.f32.mrb[0].mxu0
      %v7994 = vadd.f32 0.0, %v7993
      %v7995 = vpop.f32.mrb[0].mxu0
      %v7996 = vpop.f32.mrb[0].mxu0
      %v7997 = vadd.f32 0.0, %v7996
      %v7998 = vpop.f32.mrb[0].mxu0
      %7999 = vmatprep.mubr.bf16.mxu0 0
      %8000 = vmatmul.mubr.bf16.gmra.mrb[0].mxu0 %v6934
      %v8001 = vpop.f32.mrb[0].mxu0
      %v8002 = vadd.f32 0.0, %v8001
      %v8003 = vpop.f32.mrb[0].mxu0
      %v8004 = vpop.f32.mrb[0].mxu0
      %v8005 = vadd.f32 0.0, %v8004
      %v8006 = vpop.f32.mrb[0].mxu0
      %8007 = vmatprep.mubr.bf16.mxu0 0
      %8008 = vmatmul.mubr.bf16.gmra.mrb[0].mxu0 %v6937
      %v8009 = vpop.f32.mrb[0].mxu0
      %v8010 = vadd.f32 0.0, %v8009
      %v8011 = vpop.f32.mrb[0].mxu0
      %v8012 = vpop.f32.mrb[0].mxu0
      %v8013 = vadd.f32 0.0, %v8012
      %v8014 = vpop.f32.mrb[0].mxu0
      %8015 = vmatprep.mubr.bf16.mxu0 0
      %8016 = vmatmul.mubr.bf16.gmra.mrb[0].mxu0 %v6940
      %v8017 = vpop.f32.mrb[0].mxu0
      %v8018 = vadd.f32 0.0, %v8017
      %v8019 = vpop.f32.mrb[0].mxu0
      %v8020 = vpop.f32.mrb[0].mxu0
      %v8021 = vadd.f32 0.0, %v8020
      %v8022 = vpop.f32.mrb[0].mxu0
      %8023 = vmatprep.mubr.bf16.mxu0 0
      %8024 = vmatmul.mubr.bf16.gmra.mrb[0].mxu0 %v6943
      %v8025 = vpop.f32.mrb[0].mxu0
      %v8026 = vadd.f32 0.0, %v8025
      %v8027 = vpop.f32.mrb[0].mxu0
      %v8028 = vpop.f32.mrb[0].mxu0
      %v8029 = vadd.f32 0.0, %v8028
      %v8030 = vpop.f32.mrb[0].mxu0
      %8031 = vmatprep.mubr.bf16.mxu0 0
      %8032 = vmatmul.mubr.bf16.gmra.mrb[0].mxu0 %v6946
      %v8033 = vpop.f32.mrb[0].mxu0
      %v8034 = vadd.f32 0.0, %v8033
      %v8035 = vpop.f32.mrb[0].mxu0
      %v8036 = vpop.f32.mrb[0].mxu0
      %v8037 = vadd.f32 0.0, %v8036
      %v8038 = vpop.f32.mrb[0].mxu0
      %8039 = vmatprep.mubr.bf16.mxu0 0
      %8040 = vmatmul.mubr.bf16.gmra.mrb[0].mxu0 %v6949
      %v8041 = vpop.f32.mrb[0].mxu0
      %v8042 = vadd.f32 0.0, %v8041
      %v8043 = vpop.f32.mrb[0].mxu0
      %v8044 = vpop.f32.mrb[0].mxu0
      %v8045 = vadd.f32 0.0, %v8044
      %v8046 = vpop.f32.mrb[0].mxu0
      %8047 = vmatprep.mubr.bf16.mxu0 0
      %8048 = vmatmul.mubr.bf16.gmra.mrb[0].mxu0 %v6952
      %v8049 = vpop.f32.mrb[0].mxu0
      %v8050 = vadd.f32 0.0, %v8049
      %v8051 = vpop.f32.mrb[0].mxu0
      %v8052 = vpop.f32.mrb[0].mxu0
      %v8053 = vadd.f32 0.0, %v8052
      %v8054 = vpop.f32.mrb[0].mxu0
      %8055 = vmatprep.mubr.bf16.mxu0 0
      %8056 = vmatmul.mubr.bf16.gmra.mrb[0].mxu0 %v6955
      %v8057 = vpop.f32.mrb[0].mxu0
      %v8058 = vadd.f32 0.0, %v8057
      %v8059 = vpop.f32.mrb[0].mxu0
      %v8060 = vpop.f32.mrb[0].mxu0
      %v8061 = vadd.f32 0.0, %v8060
      %v8062 = vpop.f32.mrb[0].mxu0
      %8063 = vmatprep.mubr.bf16.mxu0 0
      %8064 = vmatmul.mubr.bf16.gmra.mrb[0].mxu0 %v6958
      %v8065 = vpop.f32.mrb[0].mxu0
      %v8066 = vadd.f32 0.0, %v8065
      %v8067 = vpop.f32.mrb[0].mxu0
      %v8068 = vpop.f32.mrb[0].mxu0
      %v8069 = vadd.f32 0.0, %v8068
      %v8070 = vpop.f32.mrb[0].mxu0
      %8071 = vmatprep.mubr.bf16.mxu0 0
      %8072 = vmatmul.mubr.bf16.gmra.mrb[0].mxu0 %v6961
      %v8073 = vpop.f32.mrb[0].mxu0
      %v8074 = vadd.f32 0.0, %v8073
      %v8075 = vpop.f32.mrb[0].mxu0
      %v8076 = vpop.f32.mrb[0].mxu0
      %v8077 = vadd.f32 0.0, %v8076
      %v8078 = vpop.f32.mrb[0].mxu0
      %8079 = vmatprep.mubr.bf16.mxu0 0
      %8080 = vmatmul.mubr.bf16.gmra.mrb[0].mxu0 %v6964
      %v8081 = vpop.f32.mrb[0].mxu0
      %v8082 = vadd.f32 0.0, %v8081
      %v8083 = vpop.f32.mrb[0].mxu0
      %v8084 = vpop.f32.mrb[0].mxu0
      %v8085 = vadd.f32 0.0, %v8084
      %v8086 = vpop.f32.mrb[0].mxu0
      %8087 = vmatprep.mubr.bf16.mxu0 0
      %8088 = vmatmul.mubr.bf16.gmra.mrb[0].mxu0 %v6967
      %v8089 = vpop.f32.mrb[0].mxu0
      %v8090 = vadd.f32 0.0, %v8089
      %v8091 = vpop.f32.mrb[0].mxu0
      %v8092 = vpop.f32.mrb[0].mxu0
      %v8093 = vadd.f32 0.0, %v8092
      %v8094 = vpop.f32.mrb[0].mxu0
      %8095 = vmatprep.mubr.bf16.mxu0 0
      %8096 = vmatmul.mubr.bf16.gmra.mrb[0].mxu0 %v6970
      %v8097 = vpop.f32.mrb[0].mxu0
      %v8098 = vadd.f32 0.0, %v8097
      %v8099 = vpop.f32.mrb[0].mxu0
      %v8100 = vpop.f32.mrb[0].mxu0
      %v8101 = vadd.f32 0.0, %v8100
      %v8102 = vpop.f32.mrb[0].mxu0
      %8103 = vmatprep.mubr.bf16.mxu0 0
      %8104 = vmatmul.mubr.bf16.gmra.mrb[0].mxu0 %v7949
      %v8105 = vpop.f32.mrb[0].mxu0
      %v8106 = vadd.f32 0.0, %v8105
      %v8107 = vpop.f32.mrb[0].mxu0
      %v8108 = vpop.f32.mrb[0].mxu0
      %v8109 = vadd.f32 0.0, %v8108
      %v8110 = vpop.f32.mrb[0].mxu0
      %8111 = vdwg.mxu0
      %v8112 = vadd.f32 %v7880, %v7986
      %v8113 = vadd.f32 %v7881, %v7989
      %v8114 = vadd.f32 %v7882, %v7994
      %v8115 = vadd.f32 %v7883, %v7997
      %v8116 = vadd.f32 %v7884, %v8002
      %v8117 = vadd.f32 %v7885, %v8005
      %v8118 = vadd.f32 %v7886, %v8010
      %v8119 = vadd.f32 %v7887, %v8013
      %v8120 = vadd.f32 %v7888, %v8018
      %v8121 = vadd.f32 %v7889, %v8021
      %v8122 = vadd.f32 %v7890, %v8026
      %v8123 = vadd.f32 %v7891, %v8029
      %v8124 = vadd.f32 %v7892, %v8034
      %v8125 = vadd.f32 %v7893, %v8037
      %v8126 = vadd.f32 %v7894, %v8042
      %v8127 = vadd.f32 %v7895, %v8045
      %v8128 = vadd.f32 %v7896, %v8050
      %v8129 = vadd.f32 %v7897, %v8053
      %v8130 = vadd.f32 %v7898, %v8058
      %v8131 = vadd.f32 %v7899, %v8061
      %v8132 = vadd.f32 %v7900, %v8066
      %v8133 = vadd.f32 %v7901, %v8069
      %v8134 = vadd.f32 %v7902, %v8074
      %v8135 = vadd.f32 %v7903, %v8077
      %v8136 = vadd.f32 %v7904, %v8082
      %v8137 = vadd.f32 %v7905, %v8085
      %v8138 = vadd.f32 %v7906, %v8090
      %v8139 = vadd.f32 %v7907, %v8093
      %v8140 = vadd.f32 %v7908, %v8098
      %v8141 = vadd.f32 %v7909, %v8101
      %v8142 = vadd.f32 %v7910, %v8106
      %v8143 = vadd.f32 %v7911, %v8109
      %v8146 = vrot.slane %v6695, 1
      %v8147 = vrot.slane %v6696, 1
      %v8148 = vsel %vm7376, %v8146, %v8147
      %s8149 = scalar_lea.vmem %s1, 120
      %v8150 = vld [vmem:[%s8149] sm:$0xf]
      %v8151 = vld [vmem:[%s8149 + $0x4] sm:$0xf]
      %v8152 = vld [vmem:[%s8149 + $0x8] sm:$0xf]
      %v8153 = vld [vmem:[%s8149 + $0xc] sm:$0xf]
      %v8154 = vld [vmem:[%s8149 + $0x10] sm:$0xf]
      %v8155 = vld [vmem:[%s8149 + $0x14] sm:$0xf]
      %v8162 = vunpack.c.l.b16 %v8150
      %v8163 = vunpack.c.l.b16 %v8151
      %v8164 = vunpack.c.l.b16 %v8152
      %v8165 = vunpack.c.l.b16 %v8153
      %v8166 = vunpack.c.l.b16 %v8154
      %v8167 = vunpack.c.l.b16 %v8155
      %v8168 = vpack.c.b16 %v8163, %v8162
      %v8169 = vpack.c.b16 %v8165, %v8164
      %v8170 = vpack.c.b16 %v8167, %v8166
      %v8175 = vsel %vm6923, %v8148, 0
      %8177 = vmatprep.subr.bf16.mxu0 0
      %8178 = vmatpush1.bf16.msra.mxu0 %v8168
      %8179 = vmatprep.subr.bf16.mxu0 0
      %8180 = vmatpush1.bf16.msra.mxu0 %v8169
      %8181 = vmatprep.subr.bf16.mxu0 0
      %8182 = vmatpush1.bf16.msra.mxu0 %v8170
      %8183 = vmatprep.subr.bf16.mxu0 0
      %8184 = vmatpush1.bf16.msra.mxu0 0
      %8185 = vmatprep.subr.bf16.mxu0 0
      %8186 = vmatpush1.bf16.msra.mxu0 0
      %8187 = vmatprep.subr.bf16.mxu0 0
      %8188 = vmatpush1.bf16.msra.mxu0 0
      %8189 = vmatprep.subr.bf16.mxu0 0
      %8190 = vmatpush1.bf16.msra.mxu0 0
      %8191 = vmatprep.subr.bf16.mxu0 0
      %8192 = vmatpush1.bf16.msra.mxu0 0
      %8193 = vmatprep.subr.bf16.mxu0 0
      %8194 = vmatpush1.bf16.msra.mxu0 0
      %8195 = vmatprep.subr.bf16.mxu0 0
      %8196 = vmatpush1.bf16.msra.mxu0 0
      %8197 = vmatprep.subr.bf16.mxu0 0
      %8198 = vmatpush1.bf16.msra.mxu0 0
      %8199 = vmatprep.subr.bf16.mxu0 0
      %8200 = vmatpush1.bf16.msra.mxu0 0
      %8201 = vmatprep.subr.bf16.mxu0 0
      %8202 = vmatpush1.bf16.msra.mxu0 0
      %8203 = vmatprep.subr.bf16.mxu0 0
      %8204 = vmatpush1.bf16.msra.mxu0 0
      %8205 = vmatprep.subr.bf16.mxu0 0
      %8206 = vmatpush1.bf16.msra.mxu0 0
      %8207 = vmatprep.subr.bf16.mxu0 0
      %8208 = vmatpush1.bf16.msra.mxu0 0
      %8209 = vmatprep.mubr.bf16.mxu0 0
      %8210 = vmatmul.mubr.bf16.gmra.mrb[0].mxu0 %v7454
      %v8211 = vpop.f32.mrb[0].mxu0
      %v8212 = vadd.f32 0.0, %v8211
      %v8213 = vpop.f32.mrb[0].mxu0
      %v8214 = vpop.f32.mrb[0].mxu0
      %v8215 = vadd.f32 0.0, %v8214
      %v8216 = vpop.f32.mrb[0].mxu0
      %8217 = vmatprep.mubr.bf16.mxu0 0
      %8218 = vmatmul.mubr.bf16.gmra.mrb[0].mxu0 %v7457
      %v8219 = vpop.f32.mrb[0].mxu0
      %v8220 = vadd.f32 0.0, %v8219
      %v8221 = vpop.f32.mrb[0].mxu0
      %v8222 = vpop.f32.mrb[0].mxu0
      %v8223 = vadd.f32 0.0, %v8222
      %v8224 = vpop.f32.mrb[0].mxu0
      %8225 = vmatprep.mubr.bf16.mxu0 0
      %8226 = vmatmul.mubr.bf16.gmra.mrb[0].mxu0 %v7460
      %v8227 = vpop.f32.mrb[0].mxu0
      %v8228 = vadd.f32 0.0, %v8227
      %v8229 = vpop.f32.mrb[0].mxu0
      %v8230 = vpop.f32.mrb[0].mxu0
      %v8231 = vadd.f32 0.0, %v8230
      %v8232 = vpop.f32.mrb[0].mxu0
      %8233 = vmatprep.mubr.bf16.mxu0 0
      %8234 = vmatmul.mubr.bf16.gmra.mrb[0].mxu0 %v7463
      %v8235 = vpop.f32.mrb[0].mxu0
      %v8236 = vadd.f32 0.0, %v8235
      %v8237 = vpop.f32.mrb[0].mxu0
      %v8238 = vpop.f32.mrb[0].mxu0
      %v8239 = vadd.f32 0.0, %v8238
      %v8240 = vpop.f32.mrb[0].mxu0
      %8241 = vmatprep.mubr.bf16.mxu0 0
      %8242 = vmatmul.mubr.bf16.gmra.mrb[0].mxu0 %v7466
      %v8243 = vpop.f32.mrb[0].mxu0
      %v8244 = vadd.f32 0.0, %v8243
      %v8245 = vpop.f32.mrb[0].mxu0
      %v8246 = vpop.f32.mrb[0].mxu0
      %v8247 = vadd.f32 0.0, %v8246
      %v8248 = vpop.f32.mrb[0].mxu0
      %8249 = vmatprep.mubr.bf16.mxu0 0
      %8250 = vmatmul.mubr.bf16.gmra.mrb[0].mxu0 %v7469
      %v8251 = vpop.f32.mrb[0].mxu0
      %v8252 = vadd.f32 0.0, %v8251
      %v8253 = vpop.f32.mrb[0].mxu0
      %v8254 = vpop.f32.mrb[0].mxu0
      %v8255 = vadd.f32 0.0, %v8254
      %v8256 = vpop.f32.mrb[0].mxu0
      %8257 = vmatprep.mubr.bf16.mxu0 0
      %8258 = vmatmul.mubr.bf16.gmra.mrb[0].mxu0 %v7472
      %v8259 = vpop.f32.mrb[0].mxu0
      %v8260 = vadd.f32 0.0, %v8259
      %v8261 = vpop.f32.mrb[0].mxu0
      %v8262 = vpop.f32.mrb[0].mxu0
      %v8263 = vadd.f32 0.0, %v8262
      %v8264 = vpop.f32.mrb[0].mxu0
      %8265 = vmatprep.mubr.bf16.mxu0 0
      %8266 = vmatmul.mubr.bf16.gmra.mrb[0].mxu0 %v7475
      %v8267 = vpop.f32.mrb[0].mxu0
      %v8268 = vadd.f32 0.0, %v8267
      %v8269 = vpop.f32.mrb[0].mxu0
      %v8270 = vpop.f32.mrb[0].mxu0
      %v8271 = vadd.f32 0.0, %v8270
      %v8272 = vpop.f32.mrb[0].mxu0
      %8273 = vmatprep.mubr.bf16.mxu0 0
      %8274 = vmatmul.mubr.bf16.gmra.mrb[0].mxu0 %v7478
      %v8275 = vpop.f32.mrb[0].mxu0
      %v8276 = vadd.f32 0.0, %v8275
      %v8277 = vpop.f32.mrb[0].mxu0
      %v8278 = vpop.f32.mrb[0].mxu0
      %v8279 = vadd.f32 0.0, %v8278
      %v8280 = vpop.f32.mrb[0].mxu0
      %8281 = vmatprep.mubr.bf16.mxu0 0
      %8282 = vmatmul.mubr.bf16.gmra.mrb[0].mxu0 %v7481
      %v8283 = vpop.f32.mrb[0].mxu0
      %v8284 = vadd.f32 0.0, %v8283
      %v8285 = vpop.f32.mrb[0].mxu0
      %v8286 = vpop.f32.mrb[0].mxu0
      %v8287 = vadd.f32 0.0, %v8286
      %v8288 = vpop.f32.mrb[0].mxu0
      %8289 = vmatprep.mubr.bf16.mxu0 0
      %8290 = vmatmul.mubr.bf16.gmra.mrb[0].mxu0 %v7484
      %v8291 = vpop.f32.mrb[0].mxu0
      %v8292 = vadd.f32 0.0, %v8291
      %v8293 = vpop.f32.mrb[0].mxu0
      %v8294 = vpop.f32.mrb[0].mxu0
      %v8295 = vadd.f32 0.0, %v8294
      %v8296 = vpop.f32.mrb[0].mxu0
      %8297 = vmatprep.mubr.bf16.mxu0 0
      %8298 = vmatmul.mubr.bf16.gmra.mrb[0].mxu0 %v7487
      %v8299 = vpop.f32.mrb[0].mxu0
      %v8300 = vadd.f32 0.0, %v8299
      %v8301 = vpop.f32.mrb[0].mxu0
      %v8302 = vpop.f32.mrb[0].mxu0
      %v8303 = vadd.f32 0.0, %v8302
      %v8304 = vpop.f32.mrb[0].mxu0
      %8305 = vmatprep.mubr.bf16.mxu0 0
      %8306 = vmatmul.mubr.bf16.gmra.mrb[0].mxu0 %v7490
      %v8307 = vpop.f32.mrb[0].mxu0
      %v8308 = vadd.f32 0.0, %v8307
      %v8309 = vpop.f32.mrb[0].mxu0
      %v8310 = vpop.f32.mrb[0].mxu0
      %v8311 = vadd.f32 0.0, %v8310
      %v8312 = vpop.f32.mrb[0].mxu0
      %8313 = vmatprep.mubr.bf16.mxu0 0
      %8314 = vmatmul.mubr.bf16.gmra.mrb[0].mxu0 %v7493
      %v8315 = vpop.f32.mrb[0].mxu0
      %v8316 = vadd.f32 0.0, %v8315
      %v8317 = vpop.f32.mrb[0].mxu0
      %v8318 = vpop.f32.mrb[0].mxu0
      %v8319 = vadd.f32 0.0, %v8318
      %v8320 = vpop.f32.mrb[0].mxu0
      %8321 = vmatprep.mubr.bf16.mxu0 0
      %8322 = vmatmul.mubr.bf16.gmra.mrb[0].mxu0 %v7496
      %v8323 = vpop.f32.mrb[0].mxu0
      %v8324 = vadd.f32 0.0, %v8323
      %v8325 = vpop.f32.mrb[0].mxu0
      %v8326 = vpop.f32.mrb[0].mxu0
      %v8327 = vadd.f32 0.0, %v8326
      %v8328 = vpop.f32.mrb[0].mxu0
      %8329 = vmatprep.mubr.bf16.mxu0 0
      %8330 = vmatmul.mubr.bf16.gmra.mrb[0].mxu0 %v8175
      %v8331 = vpop.f32.mrb[0].mxu0
      %v8332 = vadd.f32 0.0, %v8331
      %v8333 = vpop.f32.mrb[0].mxu0
      %v8334 = vpop.f32.mrb[0].mxu0
      %v8335 = vadd.f32 0.0, %v8334
      %v8336 = vpop.f32.mrb[0].mxu0
      %8337 = vdwg.mxu0
      %v8338 = vadd.f32 %v8112, %v8212
      %v8339 = vadd.f32 %v8113, %v8215
      %v8340 = vadd.f32 %v8114, %v8220
      %v8341 = vadd.f32 %v8115, %v8223
      %v8342 = vadd.f32 %v8116, %v8228
      %v8343 = vadd.f32 %v8117, %v8231
      %v8344 = vadd.f32 %v8118, %v8236
      %v8345 = vadd.f32 %v8119, %v8239
      %v8346 = vadd.f32 %v8120, %v8244
      %v8347 = vadd.f32 %v8121, %v8247
      %v8348 = vadd.f32 %v8122, %v8252
      %v8349 = vadd.f32 %v8123, %v8255
      %v8350 = vadd.f32 %v8124, %v8260
      %v8351 = vadd.f32 %v8125, %v8263
      %v8352 = vadd.f32 %v8126, %v8268
      %v8353 = vadd.f32 %v8127, %v8271
      %v8354 = vadd.f32 %v8128, %v8276
      %v8355 = vadd.f32 %v8129, %v8279
      %v8356 = vadd.f32 %v8130, %v8284
      %v8357 = vadd.f32 %v8131, %v8287
      %v8358 = vadd.f32 %v8132, %v8292
      %v8359 = vadd.f32 %v8133, %v8295
      %v8360 = vadd.f32 %v8134, %v8300
      %v8361 = vadd.f32 %v8135, %v8303
      %v8362 = vadd.f32 %v8136, %v8308
      %v8363 = vadd.f32 %v8137, %v8311
      %v8364 = vadd.f32 %v8138, %v8316
      %v8365 = vadd.f32 %v8139, %v8319
      %v8366 = vadd.f32 %v8140, %v8324
      %v8367 = vadd.f32 %v8141, %v8327
      %v8368 = vadd.f32 %v8142, %v8332
      %v8369 = vadd.f32 %v8143, %v8335
      %s8370 = scalar_lea.vmem %s1, 144
      %v8371 = vld [vmem:[%s8370] sm:$0xf]
      %v8372 = vld [vmem:[%s8370 + $0x4] sm:$0xf]
      %v8373 = vld [vmem:[%s8370 + $0x8] sm:$0xf]
      %v8374 = vld [vmem:[%s8370 + $0xc] sm:$0xf]
      %v8375 = vld [vmem:[%s8370 + $0x10] sm:$0xf]
      %v8376 = vld [vmem:[%s8370 + $0x14] sm:$0xf]
      %v8383 = vunpack.c.l.b16 %v8371
      %v8384 = vunpack.c.l.b16 %v8372
      %v8385 = vunpack.c.l.b16 %v8373
      %v8386 = vunpack.c.l.b16 %v8374
      %v8387 = vunpack.c.l.b16 %v8375
      %v8388 = vunpack.c.l.b16 %v8376
      %v8389 = vpack.c.b16 %v8384, %v8383
      %v8390 = vpack.c.b16 %v8386, %v8385
      %v8391 = vpack.c.b16 %v8388, %v8387
      %v8396 = vsel %vm6923, %v6697, 0
      %8398 = vmatprep.subr.bf16.mxu0 0
      %8399 = vmatpush1.bf16.msra.mxu0 %v8389
      %8400 = vmatprep.subr.bf16.mxu0 0
      %8401 = vmatpush1.bf16.msra.mxu0 %v8390
      %8402 = vmatprep.subr.bf16.mxu0 0
      %8403 = vmatpush1.bf16.msra.mxu0 %v8391
      %8404 = vmatprep.subr.bf16.mxu0 0
      %8405 = vmatpush1.bf16.msra.mxu0 0
      %8406 = vmatprep.subr.bf16.mxu0 0
      %8407 = vmatpush1.bf16.msra.mxu0 0
      %8408 = vmatprep.subr.bf16.mxu0 0
      %8409 = vmatpush1.bf16.msra.mxu0 0
      %8410 = vmatprep.subr.bf16.mxu0 0
      %8411 = vmatpush1.bf16.msra.mxu0 0
      %8412 = vmatprep.subr.bf16.mxu0 0
      %8413 = vmatpush1.bf16.msra.mxu0 0
      %8414 = vmatprep.subr.bf16.mxu0 0
      %8415 = vmatpush1.bf16.msra.mxu0 0
      %8416 = vmatprep.subr.bf16.mxu0 0
      %8417 = vmatpush1.bf16.msra.mxu0 0
      %8418 = vmatprep.subr.bf16.mxu0 0
      %8419 = vmatpush1.bf16.msra.mxu0 0
      %8420 = vmatprep.subr.bf16.mxu0 0
      %8421 = vmatpush1.bf16.msra.mxu0 0
      %8422 = vmatprep.subr.bf16.mxu0 0
      %8423 = vmatpush1.bf16.msra.mxu0 0
      %8424 = vmatprep.subr.bf16.mxu0 0
      %8425 = vmatpush1.bf16.msra.mxu0 0
      %8426 = vmatprep.subr.bf16.mxu0 0
      %8427 = vmatpush1.bf16.msra.mxu0 0
      %8428 = vmatprep.subr.bf16.mxu0 0
      %8429 = vmatpush1.bf16.msra.mxu0 0
      %8430 = vmatprep.mubr.bf16.mxu0 0
      %8431 = vmatmul.mubr.bf16.gmra.mrb[0].mxu0 %v7155
      %v8432 = vpop.f32.mrb[0].mxu0
      %v8433 = vadd.f32 0.0, %v8432
      %v8434 = vpop.f32.mrb[0].mxu0
      %v8435 = vpop.f32.mrb[0].mxu0
      %v8436 = vadd.f32 0.0, %v8435
      %v8437 = vpop.f32.mrb[0].mxu0
      %8438 = vmatprep.mubr.bf16.mxu0 0
      %8439 = vmatmul.mubr.bf16.gmra.mrb[0].mxu0 %v7157
      %v8440 = vpop.f32.mrb[0].mxu0
      %v8441 = vadd.f32 0.0, %v8440
      %v8442 = vpop.f32.mrb[0].mxu0
      %v8443 = vpop.f32.mrb[0].mxu0
      %v8444 = vadd.f32 0.0, %v8443
      %v8445 = vpop.f32.mrb[0].mxu0
      %8446 = vmatprep.mubr.bf16.mxu0 0
      %8447 = vmatmul.mubr.bf16.gmra.mrb[0].mxu0 %v7159
      %v8448 = vpop.f32.mrb[0].mxu0
      %v8449 = vadd.f32 0.0, %v8448
      %v8450 = vpop.f32.mrb[0].mxu0
      %v8451 = vpop.f32.mrb[0].mxu0
      %v8452 = vadd.f32 0.0, %v8451
      %v8453 = vpop.f32.mrb[0].mxu0
      %8454 = vmatprep.mubr.bf16.mxu0 0
      %8455 = vmatmul.mubr.bf16.gmra.mrb[0].mxu0 %v7161
      %v8456 = vpop.f32.mrb[0].mxu0
      %v8457 = vadd.f32 0.0, %v8456
      %v8458 = vpop.f32.mrb[0].mxu0
      %v8459 = vpop.f32.mrb[0].mxu0
      %v8460 = vadd.f32 0.0, %v8459
      %v8461 = vpop.f32.mrb[0].mxu0
      %8462 = vmatprep.mubr.bf16.mxu0 0
      %8463 = vmatmul.mubr.bf16.gmra.mrb[0].mxu0 %v7163
      %v8464 = vpop.f32.mrb[0].mxu0
      %v8465 = vadd.f32 0.0, %v8464
      %v8466 = vpop.f32.mrb[0].mxu0
      %v8467 = vpop.f32.mrb[0].mxu0
      %v8468 = vadd.f32 0.0, %v8467
      %v8469 = vpop.f32.mrb[0].mxu0
      %8470 = vmatprep.mubr.bf16.mxu0 0
      %8471 = vmatmul.mubr.bf16.gmra.mrb[0].mxu0 %v7165
      %v8472 = vpop.f32.mrb[0].mxu0
      %v8473 = vadd.f32 0.0, %v8472
      %v8474 = vpop.f32.mrb[0].mxu0
      %v8475 = vpop.f32.mrb[0].mxu0
      %v8476 = vadd.f32 0.0, %v8475
      %v8477 = vpop.f32.mrb[0].mxu0
      %8478 = vmatprep.mubr.bf16.mxu0 0
      %8479 = vmatmul.mubr.bf16.gmra.mrb[0].mxu0 %v7167
      %v8480 = vpop.f32.mrb[0].mxu0
      %v8481 = vadd.f32 0.0, %v8480
      %v8482 = vpop.f32.mrb[0].mxu0
      %v8483 = vpop.f32.mrb[0].mxu0
      %v8484 = vadd.f32 0.0, %v8483
      %v8485 = vpop.f32.mrb[0].mxu0
      %8486 = vmatprep.mubr.bf16.mxu0 0
      %8487 = vmatmul.mubr.bf16.gmra.mrb[0].mxu0 %v7169
      %v8488 = vpop.f32.mrb[0].mxu0
      %v8489 = vadd.f32 0.0, %v8488
      %v8490 = vpop.f32.mrb[0].mxu0
      %v8491 = vpop.f32.mrb[0].mxu0
      %v8492 = vadd.f32 0.0, %v8491
      %v8493 = vpop.f32.mrb[0].mxu0
      %8494 = vmatprep.mubr.bf16.mxu0 0
      %8495 = vmatmul.mubr.bf16.gmra.mrb[0].mxu0 %v7171
      %v8496 = vpop.f32.mrb[0].mxu0
      %v8497 = vadd.f32 0.0, %v8496
      %v8498 = vpop.f32.mrb[0].mxu0
      %v8499 = vpop.f32.mrb[0].mxu0
      %v8500 = vadd.f32 0.0, %v8499
      %v8501 = vpop.f32.mrb[0].mxu0
      %8502 = vmatprep.mubr.bf16.mxu0 0
      %8503 = vmatmul.mubr.bf16.gmra.mrb[0].mxu0 %v7173
      %v8504 = vpop.f32.mrb[0].mxu0
      %v8505 = vadd.f32 0.0, %v8504
      %v8506 = vpop.f32.mrb[0].mxu0
      %v8507 = vpop.f32.mrb[0].mxu0
      %v8508 = vadd.f32 0.0, %v8507
      %v8509 = vpop.f32.mrb[0].mxu0
      %8510 = vmatprep.mubr.bf16.mxu0 0
      %8511 = vmatmul.mubr.bf16.gmra.mrb[0].mxu0 %v7175
      %v8512 = vpop.f32.mrb[0].mxu0
      %v8513 = vadd.f32 0.0, %v8512
      %v8514 = vpop.f32.mrb[0].mxu0
      %v8515 = vpop.f32.mrb[0].mxu0
      %v8516 = vadd.f32 0.0, %v8515
      %v8517 = vpop.f32.mrb[0].mxu0
      %8518 = vmatprep.mubr.bf16.mxu0 0
      %8519 = vmatmul.mubr.bf16.gmra.mrb[0].mxu0 %v7177
      %v8520 = vpop.f32.mrb[0].mxu0
      %v8521 = vadd.f32 0.0, %v8520
      %v8522 = vpop.f32.mrb[0].mxu0
      %v8523 = vpop.f32.mrb[0].mxu0
      %v8524 = vadd.f32 0.0, %v8523
      %v8525 = vpop.f32.mrb[0].mxu0
      %8526 = vmatprep.mubr.bf16.mxu0 0
      %8527 = vmatmul.mubr.bf16.gmra.mrb[0].mxu0 %v7179
      %v8528 = vpop.f32.mrb[0].mxu0
      %v8529 = vadd.f32 0.0, %v8528
      %v8530 = vpop.f32.mrb[0].mxu0
      %v8531 = vpop.f32.mrb[0].mxu0
      %v8532 = vadd.f32 0.0, %v8531
      %v8533 = vpop.f32.mrb[0].mxu0
      %8534 = vmatprep.mubr.bf16.mxu0 0
      %8535 = vmatmul.mubr.bf16.gmra.mrb[0].mxu0 %v7181
      %v8536 = vpop.f32.mrb[0].mxu0
      %v8537 = vadd.f32 0.0, %v8536
      %v8538 = vpop.f32.mrb[0].mxu0
      %v8539 = vpop.f32.mrb[0].mxu0
      %v8540 = vadd.f32 0.0, %v8539
      %v8541 = vpop.f32.mrb[0].mxu0
      %8542 = vmatprep.mubr.bf16.mxu0 0
      %8543 = vmatmul.mubr.bf16.gmra.mrb[0].mxu0 %v7717
      %v8544 = vpop.f32.mrb[0].mxu0
      %v8545 = vadd.f32 0.0, %v8544
      %v8546 = vpop.f32.mrb[0].mxu0
      %v8547 = vpop.f32.mrb[0].mxu0
      %v8548 = vadd.f32 0.0, %v8547
      %v8549 = vpop.f32.mrb[0].mxu0
      %8550 = vmatprep.mubr.bf16.mxu0 0
      %8551 = vmatmul.mubr.bf16.gmra.mrb[0].mxu0 %v8396
      %v8552 = vpop.f32.mrb[0].mxu0
      %v8553 = vadd.f32 0.0, %v8552
      %v8554 = vpop.f32.mrb[0].mxu0
      %v8555 = vpop.f32.mrb[0].mxu0
      %v8556 = vadd.f32 0.0, %v8555
      %v8557 = vpop.f32.mrb[0].mxu0
      %8558 = vdwg.mxu0
      %v8559 = vadd.f32 %v8338, %v8433
      %v8560 = vadd.f32 %v8339, %v8436
      %v8561 = vadd.f32 %v8340, %v8441
      %v8562 = vadd.f32 %v8341, %v8444
      %v8563 = vadd.f32 %v8342, %v8449
      %v8564 = vadd.f32 %v8343, %v8452
      %v8565 = vadd.f32 %v8344, %v8457
      %v8566 = vadd.f32 %v8345, %v8460
      %v8567 = vadd.f32 %v8346, %v8465
      %v8568 = vadd.f32 %v8347, %v8468
      %v8569 = vadd.f32 %v8348, %v8473
      %v8570 = vadd.f32 %v8349, %v8476
      %v8571 = vadd.f32 %v8350, %v8481
      %v8572 = vadd.f32 %v8351, %v8484
      %v8573 = vadd.f32 %v8352, %v8489
      %v8574 = vadd.f32 %v8353, %v8492
      %v8575 = vadd.f32 %v8354, %v8497
      %v8576 = vadd.f32 %v8355, %v8500
      %v8577 = vadd.f32 %v8356, %v8505
      %v8578 = vadd.f32 %v8357, %v8508
      %v8579 = vadd.f32 %v8358, %v8513
      %v8580 = vadd.f32 %v8359, %v8516
      %v8581 = vadd.f32 %v8360, %v8521
      %v8582 = vadd.f32 %v8361, %v8524
      %v8583 = vadd.f32 %v8362, %v8529
      %v8584 = vadd.f32 %v8363, %v8532
      %v8585 = vadd.f32 %v8364, %v8537
      %v8586 = vadd.f32 %v8365, %v8540
      %v8587 = vadd.f32 %v8366, %v8545
      %v8588 = vadd.f32 %v8367, %v8548
      %v8589 = vadd.f32 %v8368, %v8553
      %v8590 = vadd.f32 %v8369, %v8556
      %v8591 = vshrl.u32 %v6697, 16
      %v8593 = vshll.u32 %v6697, 16
      %v8595 = vrot.slane %v8593, 1
      %v8596 = vor.u32 %v8591, %v8595
      %v8598 = vshll.u32 %v6698, 16
      %v8600 = vrot.slane %v8598, 1
      %v8601 = vsel %vm6705, %v8596, %v8600
      %s8602 = scalar_lea.vmem %s1, 168
      %v8603 = vld [vmem:[%s8602] sm:$0xf]
      %v8604 = vld [vmem:[%s8602 + $0x4] sm:$0xf]
      %v8605 = vld [vmem:[%s8602 + $0x8] sm:$0xf]
      %v8606 = vld [vmem:[%s8602 + $0xc] sm:$0xf]
      %v8607 = vld [vmem:[%s8602 + $0x10] sm:$0xf]
      %v8608 = vld [vmem:[%s8602 + $0x14] sm:$0xf]
      %v8615 = vunpack.c.l.b16 %v8603
      %v8616 = vunpack.c.l.b16 %v8604
      %v8617 = vunpack.c.l.b16 %v8605
      %v8618 = vunpack.c.l.b16 %v8606
      %v8619 = vunpack.c.l.b16 %v8607
      %v8620 = vunpack.c.l.b16 %v8608
      %v8621 = vpack.c.b16 %v8616, %v8615
      %v8622 = vpack.c.b16 %v8618, %v8617
      %v8623 = vpack.c.b16 %v8620, %v8619
      %v8628 = vsel %vm6923, %v8601, 0
      %8630 = vmatprep.subr.bf16.mxu0 0
      %8631 = vmatpush1.bf16.msra.mxu0 %v8621
      %8632 = vmatprep.subr.bf16.mxu0 0
      %8633 = vmatpush1.bf16.msra.mxu0 %v8622
      %8634 = vmatprep.subr.bf16.mxu0 0
      %8635 = vmatpush1.bf16.msra.mxu0 %v8623
      %8636 = vmatprep.subr.bf16.mxu0 0
      %8637 = vmatpush1.bf16.msra.mxu0 0
      %8638 = vmatprep.subr.bf16.mxu0 0
      %8639 = vmatpush1.bf16.msra.mxu0 0
      %8640 = vmatprep.subr.bf16.mxu0 0
      %8641 = vmatpush1.bf16.msra.mxu0 0
      %8642 = vmatprep.subr.bf16.mxu0 0
      %8643 = vmatpush1.bf16.msra.mxu0 0
      %8644 = vmatprep.subr.bf16.mxu0 0
      %8645 = vmatpush1.bf16.msra.mxu0 0
      %8646 = vmatprep.subr.bf16.mxu0 0
      %8647 = vmatpush1.bf16.msra.mxu0 0
      %8648 = vmatprep.subr.bf16.mxu0 0
      %8649 = vmatpush1.bf16.msra.mxu0 0
      %8650 = vmatprep.subr.bf16.mxu0 0
      %8651 = vmatpush1.bf16.msra.mxu0 0
      %8652 = vmatprep.subr.bf16.mxu0 0
      %8653 = vmatpush1.bf16.msra.mxu0 0
      %8654 = vmatprep.subr.bf16.mxu0 0
      %8655 = vmatpush1.bf16.msra.mxu0 0
      %8656 = vmatprep.subr.bf16.mxu0 0
      %8657 = vmatpush1.bf16.msra.mxu0 0
      %8658 = vmatprep.subr.bf16.mxu0 0
      %8659 = vmatpush1.bf16.msra.mxu0 0
      %8660 = vmatprep.subr.bf16.mxu0 0
      %8661 = vmatpush1.bf16.msra.mxu0 0
      %8662 = vmatprep.mubr.bf16.mxu0 0
      %8663 = vmatmul.mubr.bf16.gmra.mrb[0].mxu0 %v6931
      %v8664 = vpop.f32.mrb[0].mxu0
      %v8665 = vadd.f32 0.0, %v8664
      %v8666 = vpop.f32.mrb[0].mxu0
      %v8667 = vpop.f32.mrb[0].mxu0
      %v8668 = vadd.f32 0.0, %v8667
      %v8669 = vpop.f32.mrb[0].mxu0
      %8670 = vmatprep.mubr.bf16.mxu0 0
      %8671 = vmatmul.mubr.bf16.gmra.mrb[0].mxu0 %v6934
      %v8672 = vpop.f32.mrb[0].mxu0
      %v8673 = vadd.f32 0.0, %v8672
      %v8674 = vpop.f32.mrb[0].mxu0
      %v8675 = vpop.f32.mrb[0].mxu0
      %v8676 = vadd.f32 0.0, %v8675
      %v8677 = vpop.f32.mrb[0].mxu0
      %8678 = vmatprep.mubr.bf16.mxu0 0
      %8679 = vmatmul.mubr.bf16.gmra.mrb[0].mxu0 %v6937
      %v8680 = vpop.f32.mrb[0].mxu0
      %v8681 = vadd.f32 0.0, %v8680
      %v8682 = vpop.f32.mrb[0].mxu0
      %v8683 = vpop.f32.mrb[0].mxu0
      %v8684 = vadd.f32 0.0, %v8683
      %v8685 = vpop.f32.mrb[0].mxu0
      %8686 = vmatprep.mubr.bf16.mxu0 0
      %8687 = vmatmul.mubr.bf16.gmra.mrb[0].mxu0 %v6940
      %v8688 = vpop.f32.mrb[0].mxu0
      %v8689 = vadd.f32 0.0, %v8688
      %v8690 = vpop.f32.mrb[0].mxu0
      %v8691 = vpop.f32.mrb[0].mxu0
      %v8692 = vadd.f32 0.0, %v8691
      %v8693 = vpop.f32.mrb[0].mxu0
      %8694 = vmatprep.mubr.bf16.mxu0 0
      %8695 = vmatmul.mubr.bf16.gmra.mrb[0].mxu0 %v6943
      %v8696 = vpop.f32.mrb[0].mxu0
      %v8697 = vadd.f32 0.0, %v8696
      %v8698 = vpop.f32.mrb[0].mxu0
      %v8699 = vpop.f32.mrb[0].mxu0
      %v8700 = vadd.f32 0.0, %v8699
      %v8701 = vpop.f32.mrb[0].mxu0
      %8702 = vmatprep.mubr.bf16.mxu0 0
      %8703 = vmatmul.mubr.bf16.gmra.mrb[0].mxu0 %v6946
      %v8704 = vpop.f32.mrb[0].mxu0
      %v8705 = vadd.f32 0.0, %v8704
      %v8706 = vpop.f32.mrb[0].mxu0
      %v8707 = vpop.f32.mrb[0].mxu0
      %v8708 = vadd.f32 0.0, %v8707
      %v8709 = vpop.f32.mrb[0].mxu0
      %8710 = vmatprep.mubr.bf16.mxu0 0
      %8711 = vmatmul.mubr.bf16.gmra.mrb[0].mxu0 %v6949
      %v8712 = vpop.f32.mrb[0].mxu0
      %v8713 = vadd.f32 0.0, %v8712
      %v8714 = vpop.f32.mrb[0].mxu0
      %v8715 = vpop.f32.mrb[0].mxu0
      %v8716 = vadd.f32 0.0, %v8715
      %v8717 = vpop.f32.mrb[0].mxu0
      %8718 = vmatprep.mubr.bf16.mxu0 0
      %8719 = vmatmul.mubr.bf16.gmra.mrb[0].mxu0 %v6952
      %v8720 = vpop.f32.mrb[0].mxu0
      %v8721 = vadd.f32 0.0, %v8720
      %v8722 = vpop.f32.mrb[0].mxu0
      %v8723 = vpop.f32.mrb[0].mxu0
      %v8724 = vadd.f32 0.0, %v8723
      %v8725 = vpop.f32.mrb[0].mxu0
      %8726 = vmatprep.mubr.bf16.mxu0 0
      %8727 = vmatmul.mubr.bf16.gmra.mrb[0].mxu0 %v6955
      %v8728 = vpop.f32.mrb[0].mxu0
      %v8729 = vadd.f32 0.0, %v8728
      %v8730 = vpop.f32.mrb[0].mxu0
      %v8731 = vpop.f32.mrb[0].mxu0
      %v8732 = vadd.f32 0.0, %v8731
      %v8733 = vpop.f32.mrb[0].mxu0
      %8734 = vmatprep.mubr.bf16.mxu0 0
      %8735 = vmatmul.mubr.bf16.gmra.mrb[0].mxu0 %v6958
      %v8736 = vpop.f32.mrb[0].mxu0
      %v8737 = vadd.f32 0.0, %v8736
      %v8738 = vpop.f32.mrb[0].mxu0
      %v8739 = vpop.f32.mrb[0].mxu0
      %v8740 = vadd.f32 0.0, %v8739
      %v8741 = vpop.f32.mrb[0].mxu0
      %8742 = vmatprep.mubr.bf16.mxu0 0
      %8743 = vmatmul.mubr.bf16.gmra.mrb[0].mxu0 %v6961
      %v8744 = vpop.f32.mrb[0].mxu0
      %v8745 = vadd.f32 0.0, %v8744
      %v8746 = vpop.f32.mrb[0].mxu0
      %v8747 = vpop.f32.mrb[0].mxu0
      %v8748 = vadd.f32 0.0, %v8747
      %v8749 = vpop.f32.mrb[0].mxu0
      %8750 = vmatprep.mubr.bf16.mxu0 0
      %8751 = vmatmul.mubr.bf16.gmra.mrb[0].mxu0 %v6964
      %v8752 = vpop.f32.mrb[0].mxu0
      %v8753 = vadd.f32 0.0, %v8752
      %v8754 = vpop.f32.mrb[0].mxu0
      %v8755 = vpop.f32.mrb[0].mxu0
      %v8756 = vadd.f32 0.0, %v8755
      %v8757 = vpop.f32.mrb[0].mxu0
      %8758 = vmatprep.mubr.bf16.mxu0 0
      %8759 = vmatmul.mubr.bf16.gmra.mrb[0].mxu0 %v6967
      %v8760 = vpop.f32.mrb[0].mxu0
      %v8761 = vadd.f32 0.0, %v8760
      %v8762 = vpop.f32.mrb[0].mxu0
      %v8763 = vpop.f32.mrb[0].mxu0
      %v8764 = vadd.f32 0.0, %v8763
      %v8765 = vpop.f32.mrb[0].mxu0
      %8766 = vmatprep.mubr.bf16.mxu0 0
      %8767 = vmatmul.mubr.bf16.gmra.mrb[0].mxu0 %v6970
      %v8768 = vpop.f32.mrb[0].mxu0
      %v8769 = vadd.f32 0.0, %v8768
      %v8770 = vpop.f32.mrb[0].mxu0
      %v8771 = vpop.f32.mrb[0].mxu0
      %v8772 = vadd.f32 0.0, %v8771
      %v8773 = vpop.f32.mrb[0].mxu0
      %8774 = vmatprep.mubr.bf16.mxu0 0
      %8775 = vmatmul.mubr.bf16.gmra.mrb[0].mxu0 %v7949
      %v8776 = vpop.f32.mrb[0].mxu0
      %v8777 = vadd.f32 0.0, %v8776
      %v8778 = vpop.f32.mrb[0].mxu0
      %v8779 = vpop.f32.mrb[0].mxu0
      %v8780 = vadd.f32 0.0, %v8779
      %v8781 = vpop.f32.mrb[0].mxu0
      %8782 = vmatprep.mubr.bf16.mxu0 0
      %8783 = vmatmul.mubr.bf16.gmra.mrb[0].mxu0 %v8628
      %v8784 = vpop.f32.mrb[0].mxu0
      %v8785 = vadd.f32 0.0, %v8784
      %v8786 = vpop.f32.mrb[0].mxu0
      %v8787 = vpop.f32.mrb[0].mxu0
      %v8788 = vadd.f32 0.0, %v8787
      %v8789 = vpop.f32.mrb[0].mxu0
      %8790 = vdwg.mxu0
      %v8791 = vadd.f32 %v8559, %v8665
      %v8792 = vadd.f32 %v8560, %v8668
      %v8793 = vadd.f32 %v8561, %v8673
      %v8794 = vadd.f32 %v8562, %v8676
      %v8795 = vadd.f32 %v8563, %v8681
      %v8796 = vadd.f32 %v8564, %v8684
      %v8797 = vadd.f32 %v8565, %v8689
      %v8798 = vadd.f32 %v8566, %v8692
      %v8799 = vadd.f32 %v8567, %v8697
      %v8800 = vadd.f32 %v8568, %v8700
      %v8801 = vadd.f32 %v8569, %v8705
      %v8802 = vadd.f32 %v8570, %v8708
      %v8803 = vadd.f32 %v8571, %v8713
      %v8804 = vadd.f32 %v8572, %v8716
      %v8805 = vadd.f32 %v8573, %v8721
      %v8806 = vadd.f32 %v8574, %v8724
      %v8807 = vadd.f32 %v8575, %v8729
      %v8808 = vadd.f32 %v8576, %v8732
      %v8809 = vadd.f32 %v8577, %v8737
      %v8810 = vadd.f32 %v8578, %v8740
      %v8811 = vadd.f32 %v8579, %v8745
      %v8812 = vadd.f32 %v8580, %v8748
      %v8813 = vadd.f32 %v8581, %v8753
      %v8814 = vadd.f32 %v8582, %v8756
      %v8815 = vadd.f32 %v8583, %v8761
      %v8816 = vadd.f32 %v8584, %v8764
      %v8817 = vadd.f32 %v8585, %v8769
      %v8818 = vadd.f32 %v8586, %v8772
      %v8819 = vadd.f32 %v8587, %v8777
      %v8820 = vadd.f32 %v8588, %v8780
      %v8821 = vadd.f32 %v8589, %v8785
      %v8822 = vadd.f32 %v8590, %v8788
      %v8825 = vrot.slane %v6697, 1
      %v8826 = vrot.slane %v6698, 1
      %v8827 = vsel %vm7376, %v8825, %v8826
      %s8828 = scalar_lea.vmem %s1, 192
      %v8829 = vld [vmem:[%s8828] sm:$0xf]
      %v8830 = vld [vmem:[%s8828 + $0x4] sm:$0xf]
      %v8831 = vld [vmem:[%s8828 + $0x8] sm:$0xf]
      %v8832 = vld [vmem:[%s8828 + $0xc] sm:$0xf]
      %v8833 = vld [vmem:[%s8828 + $0x10] sm:$0xf]
      %v8834 = vld [vmem:[%s8828 + $0x14] sm:$0xf]
      %v8841 = vunpack.c.l.b16 %v8829
      %v8842 = vunpack.c.l.b16 %v8830
      %v8843 = vunpack.c.l.b16 %v8831
      %v8844 = vunpack.c.l.b16 %v8832
      %v8845 = vunpack.c.l.b16 %v8833
      %v8846 = vunpack.c.l.b16 %v8834
      %v8847 = vpack.c.b16 %v8842, %v8841
      %v8848 = vpack.c.b16 %v8844, %v8843
      %v8849 = vpack.c.b16 %v8846, %v8845
      %v8854 = vsel %vm6923, %v8827, 0
      %8856 = vmatprep.subr.bf16.mxu0 0
      %8857 = vmatpush1.bf16.msra.mxu0 %v8847
      %8858 = vmatprep.subr.bf16.mxu0 0
      %8859 = vmatpush1.bf16.msra.mxu0 %v8848
      %8860 = vmatprep.subr.bf16.mxu0 0
      %8861 = vmatpush1.bf16.msra.mxu0 %v8849
      %8862 = vmatprep.subr.bf16.mxu0 0
      %8863 = vmatpush1.bf16.msra.mxu0 0
      %8864 = vmatprep.subr.bf16.mxu0 0
      %8865 = vmatpush1.bf16.msra.mxu0 0
      %8866 = vmatprep.subr.bf16.mxu0 0
      %8867 = vmatpush1.bf16.msra.mxu0 0
      %8868 = vmatprep.subr.bf16.mxu0 0
      %8869 = vmatpush1.bf16.msra.mxu0 0
      %8870 = vmatprep.subr.bf16.mxu0 0
      %8871 = vmatpush1.bf16.msra.mxu0 0
      %8872 = vmatprep.subr.bf16.mxu0 0
      %8873 = vmatpush1.bf16.msra.mxu0 0
      %8874 = vmatprep.subr.bf16.mxu0 0
      %8875 = vmatpush1.bf16.msra.mxu0 0
      %8876 = vmatprep.subr.bf16.mxu0 0
      %8877 = vmatpush1.bf16.msra.mxu0 0
      %8878 = vmatprep.subr.bf16.mxu0 0
      %8879 = vmatpush1.bf16.msra.mxu0 0
      %8880 = vmatprep.subr.bf16.mxu0 0
      %8881 = vmatpush1.bf16.msra.mxu0 0
      %8882 = vmatprep.subr.bf16.mxu0 0
      %8883 = vmatpush1.bf16.msra.mxu0 0
      %8884 = vmatprep.subr.bf16.mxu0 0
      %8885 = vmatpush1.bf16.msra.mxu0 0
      %8886 = vmatprep.subr.bf16.mxu0 0
      %8887 = vmatpush1.bf16.msra.mxu0 0
      %8888 = vmatprep.mubr.bf16.mxu0 0
      %8889 = vmatmul.mubr.bf16.gmra.mrb[0].mxu0 %v7457
      %v8890 = vpop.f32.mrb[0].mxu0
      %v8891 = vadd.f32 0.0, %v8890
      %v8892 = vpop.f32.mrb[0].mxu0
      %v8893 = vpop.f32.mrb[0].mxu0
      %v8894 = vadd.f32 0.0, %v8893
      %v8895 = vpop.f32.mrb[0].mxu0
      %8896 = vmatprep.mubr.bf16.mxu0 0
      %8897 = vmatmul.mubr.bf16.gmra.mrb[0].mxu0 %v7460
      %v8898 = vpop.f32.mrb[0].mxu0
      %v8899 = vadd.f32 0.0, %v8898
      %v8900 = vpop.f32.mrb[0].mxu0
      %v8901 = vpop.f32.mrb[0].mxu0
      %v8902 = vadd.f32 0.0, %v8901
      %v8903 = vpop.f32.mrb[0].mxu0
      %8904 = vmatprep.mubr.bf16.mxu0 0
      %8905 = vmatmul.mubr.bf16.gmra.mrb[0].mxu0 %v7463
      %v8906 = vpop.f32.mrb[0].mxu0
      %v8907 = vadd.f32 0.0, %v8906
      %v8908 = vpop.f32.mrb[0].mxu0
      %v8909 = vpop.f32.mrb[0].mxu0
      %v8910 = vadd.f32 0.0, %v8909
      %v8911 = vpop.f32.mrb[0].mxu0
      %8912 = vmatprep.mubr.bf16.mxu0 0
      %8913 = vmatmul.mubr.bf16.gmra.mrb[0].mxu0 %v7466
      %v8914 = vpop.f32.mrb[0].mxu0
      %v8915 = vadd.f32 0.0, %v8914
      %v8916 = vpop.f32.mrb[0].mxu0
      %v8917 = vpop.f32.mrb[0].mxu0
      %v8918 = vadd.f32 0.0, %v8917
      %v8919 = vpop.f32.mrb[0].mxu0
      %8920 = vmatprep.mubr.bf16.mxu0 0
      %8921 = vmatmul.mubr.bf16.gmra.mrb[0].mxu0 %v7469
      %v8922 = vpop.f32.mrb[0].mxu0
      %v8923 = vadd.f32 0.0, %v8922
      %v8924 = vpop.f32.mrb[0].mxu0
      %v8925 = vpop.f32.mrb[0].mxu0
      %v8926 = vadd.f32 0.0, %v8925
      %v8927 = vpop.f32.mrb[0].mxu0
      %8928 = vmatprep.mubr.bf16.mxu0 0
      %8929 = vmatmul.mubr.bf16.gmra.mrb[0].mxu0 %v7472
      %v8930 = vpop.f32.mrb[0].mxu0
      %v8931 = vadd.f32 0.0, %v8930
      %v8932 = vpop.f32.mrb[0].mxu0
      %v8933 = vpop.f32.mrb[0].mxu0
      %v8934 = vadd.f32 0.0, %v8933
      %v8935 = vpop.f32.mrb[0].mxu0
      %8936 = vmatprep.mubr.bf16.mxu0 0
      %8937 = vmatmul.mubr.bf16.gmra.mrb[0].mxu0 %v7475
      %v8938 = vpop.f32.mrb[0].mxu0
      %v8939 = vadd.f32 0.0, %v8938
      %v8940 = vpop.f32.mrb[0].mxu0
      %v8941 = vpop.f32.mrb[0].mxu0
      %v8942 = vadd.f32 0.0, %v8941
      %v8943 = vpop.f32.mrb[0].mxu0
      %8944 = vmatprep.mubr.bf16.mxu0 0
      %8945 = vmatmul.mubr.bf16.gmra.mrb[0].mxu0 %v7478
      %v8946 = vpop.f32.mrb[0].mxu0
      %v8947 = vadd.f32 0.0, %v8946
      %v8948 = vpop.f32.mrb[0].mxu0
      %v8949 = vpop.f32.mrb[0].mxu0
      %v8950 = vadd.f32 0.0, %v8949
      %v8951 = vpop.f32.mrb[0].mxu0
      %8952 = vmatprep.mubr.bf16.mxu0 0
      %8953 = vmatmul.mubr.bf16.gmra.mrb[0].mxu0 %v7481
      %v8954 = vpop.f32.mrb[0].mxu0
      %v8955 = vadd.f32 0.0, %v8954
      %v8956 = vpop.f32.mrb[0].mxu0
      %v8957 = vpop.f32.mrb[0].mxu0
      %v8958 = vadd.f32 0.0, %v8957
      %v8959 = vpop.f32.mrb[0].mxu0
      %8960 = vmatprep.mubr.bf16.mxu0 0
      %8961 = vmatmul.mubr.bf16.gmra.mrb[0].mxu0 %v7484
      %v8962 = vpop.f32.mrb[0].mxu0
      %v8963 = vadd.f32 0.0, %v8962
      %v8964 = vpop.f32.mrb[0].mxu0
      %v8965 = vpop.f32.mrb[0].mxu0
      %v8966 = vadd.f32 0.0, %v8965
      %v8967 = vpop.f32.mrb[0].mxu0
      %8968 = vmatprep.mubr.bf16.mxu0 0
      %8969 = vmatmul.mubr.bf16.gmra.mrb[0].mxu0 %v7487
      %v8970 = vpop.f32.mrb[0].mxu0
      %v8971 = vadd.f32 0.0, %v8970
      %v8972 = vpop.f32.mrb[0].mxu0
      %v8973 = vpop.f32.mrb[0].mxu0
      %v8974 = vadd.f32 0.0, %v8973
      %v8975 = vpop.f32.mrb[0].mxu0
      %8976 = vmatprep.mubr.bf16.mxu0 0
      %8977 = vmatmul.mubr.bf16.gmra.mrb[0].mxu0 %v7490
      %v8978 = vpop.f32.mrb[0].mxu0
      %v8979 = vadd.f32 0.0, %v8978
      %v8980 = vpop.f32.mrb[0].mxu0
      %v8981 = vpop.f32.mrb[0].mxu0
      %v8982 = vadd.f32 0.0, %v8981
      %v8983 = vpop.f32.mrb[0].mxu0
      %8984 = vmatprep.mubr.bf16.mxu0 0
      %8985 = vmatmul.mubr.bf16.gmra.mrb[0].mxu0 %v7493
      %v8986 = vpop.f32.mrb[0].mxu0
      %v8987 = vadd.f32 0.0, %v8986
      %v8988 = vpop.f32.mrb[0].mxu0
      %v8989 = vpop.f32.mrb[0].mxu0
      %v8990 = vadd.f32 0.0, %v8989
      %v8991 = vpop.f32.mrb[0].mxu0
      %8992 = vmatprep.mubr.bf16.mxu0 0
      %8993 = vmatmul.mubr.bf16.gmra.mrb[0].mxu0 %v7496
      %v8994 = vpop.f32.mrb[0].mxu0
      %v8995 = vadd.f32 0.0, %v8994
      %v8996 = vpop.f32.mrb[0].mxu0
      %v8997 = vpop.f32.mrb[0].mxu0
      %v8998 = vadd.f32 0.0, %v8997
      %v8999 = vpop.f32.mrb[0].mxu0
      %9000 = vmatprep.mubr.bf16.mxu0 0
      %9001 = vmatmul.mubr.bf16.gmra.mrb[0].mxu0 %v8175
      %v9002 = vpop.f32.mrb[0].mxu0
      %v9003 = vadd.f32 0.0, %v9002
      %v9004 = vpop.f32.mrb[0].mxu0
      %v9005 = vpop.f32.mrb[0].mxu0
      %v9006 = vadd.f32 0.0, %v9005
      %v9007 = vpop.f32.mrb[0].mxu0
      %9008 = vmatprep.mubr.bf16.mxu0 0
      %9009 = vmatmul.mubr.bf16.gmra.mrb[0].mxu0 %v8854
      %v9010 = vpop.f32.mrb[0].mxu0
      %v9011 = vadd.f32 0.0, %v9010
      %v9012 = vpop.f32.mrb[0].mxu0
      %v9013 = vpop.f32.mrb[0].mxu0
      %v9014 = vadd.f32 0.0, %v9013
      %v9015 = vpop.f32.mrb[0].mxu0
      %9016 = vdwg.mxu0
      %v9017 = vadd.f32 %v8791, %v8891
      %v9018 = vadd.f32 %v8792, %v8894
      %v9019 = vadd.f32 %v8793, %v8899
      %v9020 = vadd.f32 %v8794, %v8902
      %v9021 = vadd.f32 %v8795, %v8907
      %v9022 = vadd.f32 %v8796, %v8910
      %v9023 = vadd.f32 %v8797, %v8915
      %v9024 = vadd.f32 %v8798, %v8918
      %v9025 = vadd.f32 %v8799, %v8923
      %v9026 = vadd.f32 %v8800, %v8926
      %v9027 = vadd.f32 %v8801, %v8931
      %v9028 = vadd.f32 %v8802, %v8934
      %v9029 = vadd.f32 %v8803, %v8939
      %v9030 = vadd.f32 %v8804, %v8942
      %v9031 = vadd.f32 %v8805, %v8947
      %v9032 = vadd.f32 %v8806, %v8950
      %v9033 = vadd.f32 %v8807, %v8955
      %v9034 = vadd.f32 %v8808, %v8958
      %v9035 = vadd.f32 %v8809, %v8963
      %v9036 = vadd.f32 %v8810, %v8966
      %v9037 = vadd.f32 %v8811, %v8971
      %v9038 = vadd.f32 %v8812, %v8974
      %v9039 = vadd.f32 %v8813, %v8979
      %v9040 = vadd.f32 %v8814, %v8982
      %v9041 = vadd.f32 %v8815, %v8987
      %v9042 = vadd.f32 %v8816, %v8990
      %v9043 = vadd.f32 %v8817, %v8995
      %v9044 = vadd.f32 %v8818, %v8998
      %v9045 = vadd.f32 %v8819, %v9003
      %v9046 = vadd.f32 %v8820, %v9006
      %v9047 = vadd.f32 %v8821, %v9011
      %v9048 = vadd.f32 %v8822, %v9014
      %v9049 = vmax.f32 %v9017, 0.0
      %v9050 = vmax.f32 %v9018, 0.0
      %v9051 = vmax.f32 %v9019, 0.0
      %v9052 = vmax.f32 %v9020, 0.0
      %v9053 = vmax.f32 %v9021, 0.0
      %v9054 = vmax.f32 %v9022, 0.0
      %v9055 = vmax.f32 %v9023, 0.0
      %v9056 = vmax.f32 %v9024, 0.0
      %v9057 = vmax.f32 %v9025, 0.0
      %v9058 = vmax.f32 %v9026, 0.0
      %v9059 = vmax.f32 %v9027, 0.0
      %v9060 = vmax.f32 %v9028, 0.0
      %v9061 = vmax.f32 %v9029, 0.0
      %v9062 = vmax.f32 %v9030, 0.0
      %v9063 = vmax.f32 %v9031, 0.0
      %v9064 = vmax.f32 %v9032, 0.0
      %v9065 = vmax.f32 %v9033, 0.0
      %v9066 = vmax.f32 %v9034, 0.0
      %v9067 = vmax.f32 %v9035, 0.0
      %v9068 = vmax.f32 %v9036, 0.0
      %v9069 = vmax.f32 %v9037, 0.0
      %v9070 = vmax.f32 %v9038, 0.0
      %v9071 = vmax.f32 %v9039, 0.0
      %v9072 = vmax.f32 %v9040, 0.0
      %v9073 = vmax.f32 %v9041, 0.0
      %v9074 = vmax.f32 %v9042, 0.0
      %v9075 = vmax.f32 %v9043, 0.0
      %v9076 = vmax.f32 %v9044, 0.0
      %v9077 = vmax.f32 %v9045, 0.0
      %v9078 = vmax.f32 %v9046, 0.0
      %v9079 = vmax.f32 %v9047, 0.0
      %v9080 = vmax.f32 %v9048, 0.0
      %v9081 = vpack.c.bf16 %v9050, %v9049
      %v9082 = vpack.c.bf16 %v9052, %v9051
      %v9083 = vpack.c.bf16 %v9054, %v9053
      %v9084 = vpack.c.bf16 %v9056, %v9055
      %v9085 = vpack.c.bf16 %v9058, %v9057
      %v9086 = vpack.c.bf16 %v9060, %v9059
      %v9087 = vpack.c.bf16 %v9062, %v9061
      %v9088 = vpack.c.bf16 %v9064, %v9063
      %v9089 = vpack.c.bf16 %v9066, %v9065
      %v9090 = vpack.c.bf16 %v9068, %v9067
      %v9091 = vpack.c.bf16 %v9070, %v9069
      %v9092 = vpack.c.bf16 %v9072, %v9071
      %v9093 = vpack.c.bf16 %v9074, %v9073
      %v9094 = vpack.c.bf16 %v9076, %v9075
      %v9095 = vpack.c.bf16 %v9078, %v9077
      %v9096 = vpack.c.bf16 %v9080, %v9079
      %v9113 = vunpack.c.l.b16 %v9081
      %v9114 = vunpack.c.h.b16 %v9081
      %v9115 = vunpack.c.l.b16 %v9082
      %v9116 = vunpack.c.h.b16 %v9082
      %v9117 = vunpack.c.l.b16 %v9083
      %v9118 = vunpack.c.h.b16 %v9083
      %v9119 = vunpack.c.l.b16 %v9084
      %v9120 = vunpack.c.h.b16 %v9084
      %v9121 = vunpack.c.l.b16 %v9085
      %v9122 = vunpack.c.h.b16 %v9085
      %v9123 = vunpack.c.l.b16 %v9086
      %v9124 = vunpack.c.h.b16 %v9086
      %v9125 = vunpack.c.l.b16 %v9087
      %v9126 = vunpack.c.h.b16 %v9087
      %v9127 = vunpack.c.l.b16 %v9088
      %v9128 = vunpack.c.h.b16 %v9088
      %v9129 = vunpack.c.l.b16 %v9089
      %v9130 = vunpack.c.h.b16 %v9089
      %v9131 = vunpack.c.l.b16 %v9090
      %v9132 = vunpack.c.h.b16 %v9090
      %v9133 = vunpack.c.l.b16 %v9091
      %v9134 = vunpack.c.h.b16 %v9091
      %v9135 = vunpack.c.l.b16 %v9092
      %v9136 = vunpack.c.h.b16 %v9092
      %v9137 = vunpack.c.l.b16 %v9093
      %v9138 = vunpack.c.h.b16 %v9093
      %v9139 = vunpack.c.l.b16 %v9094
      %v9140 = vunpack.c.h.b16 %v9094
      %v9141 = vunpack.c.l.b16 %v9095
      %v9142 = vunpack.c.h.b16 %v9095
      %v9143 = vunpack.c.l.b16 %v9096
      %v9144 = vunpack.c.h.b16 %v9096
      %v9145 = vpack.c.b16 %v9113, %v9113
      %v9146 = vpack.c.b16 %v9114, %v9114
      %v9147 = vpack.c.b16 %v9115, %v9115
      %v9148 = vpack.c.b16 %v9116, %v9116
      %v9149 = vpack.c.b16 %v9117, %v9117
      %v9150 = vpack.c.b16 %v9118, %v9118
      %v9151 = vpack.c.b16 %v9119, %v9119
      %v9152 = vpack.c.b16 %v9120, %v9120
      %v9153 = vpack.c.b16 %v9121, %v9121
      %v9154 = vpack.c.b16 %v9122, %v9122
      %v9155 = vpack.c.b16 %v9123, %v9123
      %v9156 = vpack.c.b16 %v9124, %v9124
      %v9157 = vpack.c.b16 %v9125, %v9125
      %v9158 = vpack.c.b16 %v9126, %v9126
      %v9159 = vpack.c.b16 %v9127, %v9127
      %v9160 = vpack.c.b16 %v9128, %v9128
      %v9161 = vpack.c.b16 %v9129, %v9129
      %v9162 = vpack.c.b16 %v9130, %v9130
      %v9163 = vpack.c.b16 %v9131, %v9131
      %v9164 = vpack.c.b16 %v9132, %v9132
      %v9165 = vpack.c.b16 %v9133, %v9133
      %v9166 = vpack.c.b16 %v9134, %v9134
      %v9167 = vpack.c.b16 %v9135, %v9135
      %v9168 = vpack.c.b16 %v9136, %v9136
      %v9169 = vpack.c.b16 %v9137, %v9137
      %v9170 = vpack.c.b16 %v9138, %v9138
      %v9171 = vpack.c.b16 %v9139, %v9139
      %v9172 = vpack.c.b16 %v9140, %v9140
      %v9173 = vpack.c.b16 %v9141, %v9141
      %v9174 = vpack.c.b16 %v9142, %v9142
      %v9175 = vpack.c.b16 %v9143, %v9143
      %v9176 = vpack.c.b16 %v9144, %v9144
      %9209 = vst [vmem:[%s165] sm:$0xf] %v9145
      %9210 = vst [vmem:[%s165 + $0x4] sm:$0xf] %v9146
      %9211 = vst [vmem:[%s165 + $0x8] sm:$0xf] %v9147
      %9212 = vst [vmem:[%s165 + $0xc] sm:$0xf] %v9148
      %9213 = vst [vmem:[%s165 + $0x10] sm:$0xf] %v9149
      %9214 = vst [vmem:[%s165 + $0x14] sm:$0xf] %v9150
      %9215 = vst [vmem:[%s165 + $0x18] sm:$0xf] %v9151
      %9216 = vst [vmem:[%s165 + $0x1c] sm:$0xf] %v9152
      %9217 = vst [vmem:[%s165 + $0x20] sm:$0xf] %v9153
      %9218 = vst [vmem:[%s165 + $0x24] sm:$0xf] %v9154
      %9219 = vst [vmem:[%s165 + $0x28] sm:$0xf] %v9155
      %9220 = vst [vmem:[%s165 + $0x2c] sm:$0xf] %v9156
      %9221 = vst [vmem:[%s165 + $0x30] sm:$0xf] %v9157
      %9222 = vst [vmem:[%s165 + $0x34] sm:$0xf] %v9158
      %9223 = vst [vmem:[%s165 + $0x38] sm:$0xf] %v9159
      %9224 = vst [vmem:[%s165 + $0x3c] sm:$0xf] %v9160
      %9225 = vst [vmem:[%s165 + $0x40] sm:$0xf] %v9161
      %9226 = vst [vmem:[%s165 + $0x44] sm:$0xf] %v9162
      %9227 = vst [vmem:[%s165 + $0x48] sm:$0xf] %v9163
      %9228 = vst [vmem:[%s165 + $0x4c] sm:$0xf] %v9164
      %9229 = vst [vmem:[%s165 + $0x50] sm:$0xf] %v9165
      %9230 = vst [vmem:[%s165 + $0x54] sm:$0xf] %v9166
      %9231 = vst [vmem:[%s165 + $0x58] sm:$0xf] %v9167
      %9232 = vst [vmem:[%s165 + $0x5c] sm:$0xf] %v9168
      %9233 = vst [vmem:[%s165 + $0x60] sm:$0xf] %v9169
      %9234 = vst [vmem:[%s165 + $0x64] sm:$0xf] %v9170
      %9235 = vst [vmem:[%s165 + $0x68] sm:$0xf] %v9171
      %9236 = vst [vmem:[%s165 + $0x6c] sm:$0xf] %v9172
      %9237 = vst [vmem:[%s165 + $0x70] sm:$0xf] %v9173
      %9238 = vst [vmem:[%s165 + $0x74] sm:$0xf] %v9174
      %9239 = vst [vmem:[%s165 + $0x78] sm:$0xf] %v9175
      %9240 = vst [vmem:[%s165 + $0x7c] sm:$0xf] %v9176
      %s9241 = smul.u32 32, %s18
      %p9242 = scmp.lt.s32.totalorder %s17, 1
      %s9243 = scalar_select %p9242, %s17, 1
      %p9244 = scmp.lt.s32.totalorder %s9241, 31
      %s9245 = scalar_select %p9244, %s9241, 31
      %s9246 = smul.addr %s9243, 32
      %s9247 = sadd.s32 %s9245, %s9246
      %s9248 = smul.addr %s9247, 4
      %s9249 = scalar_lea.vmem %s2, %s9248
      // Predicated region
      $region29: #{forward.1} parent=27 // pred_check
        %p9250 = pneg %p92
      $region30: #{forward.1} parent=27 // pred_check_branch
        %9252 = sbr.rel (%p9250) target = $region32
      $region31: #{forward.1} parent=27 // pred_region
        %s9253 = smul.u32 32, %s18
      $region32: #{forward.1} parent=27 // pred_fallthru
        _
    $region28: #{forward.1} parent=5 // pred_fallthru
      _
    %p9254 = scmp.le.s32.totalorder 2, %s8
    // Predicated region
    $region33: #{forward.1} parent=5 // pred_check
      %p9255 = pneg %p9254
    $region34: #{forward.1} parent=5 // pred_check_branch
      %9257 = sbr.rel (%p9255) target = $region36
    $region35: #{forward.1} parent=5 // pred_region
      %s9258 = ssub.s32 %s8, 2
      // Predicated region
      $region37: #{forward.1} parent=35 // pred_check
        %p9259 = pneg %p98
      $region38: #{forward.1} parent=35 // pred_check_branch
        %9261 = sbr.rel (%p9259) target = $region40
      $region39: #{forward.1} parent=35 // pred_region
        %s9262 = smul.u32 32, %s20
        %p9263 = scmp.lt.s32.totalorder %s19, 1
        %s9264 = scalar_select %p9263, %s19, 1
        %p9265 = scmp.lt.s32.totalorder %s9262, 31
        %s9266 = scalar_select %p9265, %s9262, 31
        %s9267 = smul.addr %s9264, 32
        %s9268 = sadd.s32 %s9266, %s9267
        %s9269 = smul.addr %s9268, 4
        %s9270 = scalar_lea.vmem %s2, %s9269
      $region40: #{forward.1} parent=35 // pred_fallthru
        _
    $region36: #{forward.1} parent=5 // pred_fallthru
      _
  $region6: #{forward.1} parent=0 // loop_footer
    %s12 = sadd.s32 1, %s8
  $region7: #{forward.1} parent=0 // loop_footer_branch
    %7 = sbr.rel target = $region3
  $region8: #{forward.1} parent=0 // loop_exit
    _

</llo_original>
